<compile_context>
chip_gen: v7x
topology: tpu7x:2x2x1
jax: 0.10.0
libtpu: 0.0.40
codegen_flags: <defaults>
</compile_context>

<pallas_src>
import functools

import numpy as np
import jax
import jax.numpy as jnp
from jax.experimental import pallas as pl
from jax.experimental.pallas import tpu as pltpu

# ----------------- synthetic traffic config (stands in for TRAFFIC_INFO) ----
NUM_LANE = 8
NUM_PHASE = 8
PHASE_DIM = 8            # len(phase_links)
VEHICLE_DIM = 8
HIDDEN_DIM = 10          # Context GRU hidden size
HIDDEN_PAD = 16          # padded so NUM_PHASE * HIDDEN_PAD == 128 (one lane tile/gate)
T_HIST = 8               # history sequence length

PHASE_LANE_MAPPING = {
    p: [1 if l in (p, (p + 4) % NUM_LANE) else 0 for l in range(NUM_LANE)]
    for p in range(NUM_PHASE)
}
RELATION = np.array(
    [[(i + k) % 2 for k in range(NUM_PHASE - 1)] for i in range(NUM_PHASE)],
    dtype=np.int32)


# --------------------------------- kernel -----------------------------------
def fraprq_kernel(feat_ref, hist_ref, pks_ref, pkb_ref, out_ref, *,
                  off_s, off_b, P, HP):
    """One batch tile of the FRAPRQ forward.

    Layout: embeddings / GRU / lane-pressure keep batch on sublanes and the P
    per-phase channel blocks side by side on the lane axis (P*HP = 128 lanes per
    gate).  The pairwise FRAP stage switches to (phase, batch, channel) tiles and
    the final store is lane-dense (P, TB) with batch on the lane axis.
    """
    TB = feat_ref.shape[0]
    T = hist_ref.shape[1]
    PH = P * HP                                    # lanes per GRU gate slab (=128)
    f32 = jnp.float32

    def gs(name):                                  # static slice of the narrow pack
        r0, nr, nc = off_s[name]
        return pks_ref[r0:r0 + nr, 0:nc]

    def gb(name):                                  # static slice of the wide pack
        r0, nr, nc = off_b[name]
        return pkb_ref[r0:r0 + nr, 0:nc]

    def dot(a, b):
        return jnp.dot(a, b, preferred_element_type=f32)

    feat = feat_ref[...]                                                  # (TB, 16)

    # ---- phase / vehicle embeddings (first-lane selection folded in weights) ----
    ph_emb = jax.nn.sigmoid(dot(feat, gs('k_phase')) + gs('b_phase'))     # (TB, P*4)
    veh_emb = jax.nn.sigmoid(dot(feat, gs('k_veh')) + gs('b_veh'))        # (TB, P*4)

    # ---- history: per-phase column gather + Linear(3,4) fused in one matmul ----
    hist2 = hist_ref[...].reshape(TB * T, hist_ref.shape[2])              # (TB*T, 24)
    he = jax.nn.sigmoid(dot(hist2, gs('w_sel')) + gs('b_hist'))           # (TB*T, P*4)

    # ---- GRU over time; input-gate matmul hoisted out of the recurrence --------
    gx = (dot(he, gb('w_ih')) + gb('b_ih')).reshape(TB, T, 3 * PH)        # (TB,T,384)
    w_hh = gb('w_hh')                                                     # (128, 384)
    b_hh = gb('b_hh')                                                     # (1, 384)
    h = jnp.zeros((TB, PH), f32)
    for t in range(T):                              # static unroll, T == 8
        gx_t = gx[:, t, :]                                                # (TB, 384)
        gh = dot(h, w_hh) + b_hh                                          # (TB, 384)
        rz = jax.nn.sigmoid(gx_t[:, :2 * PH] + gh[:, :2 * PH])            # fused r|z
        r = rz[:, :PH]
        zg = rz[:, PH:2 * PH]
        n = jnp.tanh(gx_t[:, 2 * PH:] + r * gh[:, 2 * PH:])
        h = (1.0 - zg) * n + zg * h                                       # (TB, 128)

    # ---- per-phase pressure: Linear(18,16) + ReLU (phase-blocked on lanes) ------
    pressed = jnp.maximum(
        dot(veh_emb, gs('wp_veh')) + dot(ph_emb, gs('wp_ph'))
        + dot(h, gs('wp_h')) + gs('b_l'), 0.0)                            # (TB, 128)
    # Reference uses the same (first) lane twice per phase -> combine = 2 * lane1.
    ppress = 2.0 * pressed

    # ---- pair features: A_i (w_cfa half) + B_j (w_cfb half) --------------------
    w_cfa = gs('w_cfa')                                                   # (16, 20)
    w_cfb = gs('w_cfb')
    a_parts, b_parts = [], []
    for p in range(P):
        pp_p = ppress[:, p * 16:(p + 1) * 16]                             # (TB, 16)
        a_parts.append(dot(pp_p, w_cfa)[None])                            # (1, TB, 20)
        b_parts.append(dot(pp_p, w_cfb)[None])
    A = jnp.concatenate(a_parts, axis=0)                                  # (P, TB, 20)
    Bm = jnp.concatenate(b_parts, axis=0)                                 # (P, TB, 20)
    x4 = jnp.maximum(A[:, None, :, :] + Bm[None, :, :, :]
                     + gs('b_cf').reshape(1, 1, 1, 20), 0.0)              # (P,P,TB,20)

    # ---- constant (phase relation) branch: Embedding(2,4) + 1x1 conv + ReLU ----
    rel = gs('rel')[:, :, None]                                           # (P, P, 1)
    c0 = gs('emb_const')[0:1, :].reshape(1, 1, 4)
    c1 = gs('emb_const')[1:2, :].reshape(1, 1, 4)
    cemb = rel * c1 + (1.0 - rel) * c0                                    # (P, P, 4)
    y = jnp.maximum(dot(cemb.reshape(P * P, 4), gs('w_cc')) + gs('b_cc'), 0.0)
    y4 = y.reshape(P, P, 20)[:, :, None, :]                               # (P,P,1,20)

    # ---- combine (1x1 conv + ReLU) and final 1x1 conv ---------------------------
    zc = (x4 * y4).reshape(P * P, TB, 20)                                 # (PP,TB,20)
    wcb = jnp.broadcast_to(gs('w_cb')[None], (P * P, 20, 20))
    zc = jnp.maximum(
        jnp.einsum('kbc,kcd->kbd', zc, wcb, preferred_element_type=f32)
        + gs('b_cb').reshape(1, 1, 20), 0.0)                              # (PP,TB,20)
    zf = jnp.sum(zc * gs('w_fin').reshape(1, 1, 20), axis=-1)             # (PP, TB)
    zf = zf.reshape(P, P, TB) + gs('b_fin')                               # (P, P, TB)

    # ---- masked sum over j (off-diagonal pairs); lane-dense (P, TB) output ------
    mask = gs('mask')                                                     # (P, P)
    acc = zf[:, 0, :] * mask[:, 0:1]
    for j in range(1, P):
        acc = acc + zf[:, j, :] * mask[:, j:j + 1]
    out_ref[...] = acc                                                    # (P, TB)


# ---------------------- parameter repacking (done once) ----------------------
def _pack(entries, width):
    """Pack small 2-D f32 arrays into one (rows, width) slab, 8-row aligned."""
    offs, chunks, r = {}, [], 0
    for name, a in entries:
        a = jnp.asarray(a, jnp.float32)
        if a.ndim == 1:
            a = a.reshape(1, -1)
        nr, nc = a.shape
        pad_r = (-nr) % 8
        chunks.append(jnp.pad(a, ((0, pad_r), (0, width - nc))))
        offs[name] = (r, nr, nc)
        r += nr + pad_r
    return jnp.concatenate(chunks, axis=0), offs


def pack_params(params, first_lane, rel_full, diag_mask):
    """Fold per-phase gathers / weight sharing into block-diagonal + selection
    matrices and pack everything into two flat f32 slabs for the kernel."""
    P, H, HP, PD, VD = NUM_PHASE, HIDDEN_DIM, HIDDEN_PAD, PHASE_DIM, VEHICLE_DIM
    eye = jnp.eye(P, dtype=jnp.float32)
    fl = [int(i) for i in first_lane]

    def pad_cols(a, n):
        return jnp.pad(a, ((0, 0), (0, n - a.shape[1])))

    def pad_rows(a, n):
        return jnp.pad(a, ((0, n - a.shape[0]), (0, 0)))

    # phase / vehicle: first-lane selection folded into Embedding(2,4) / Linear(1,4)
    sel_ph = np.zeros((PD + VD, P), np.float32)
    sel_veh = np.zeros((PD + VD, P), np.float32)
    for p in range(P):
        sel_ph[fl[p], p] = 1.0
        sel_veh[PD + fl[p], p] = 1.0
    tab0 = params['emb_phase'][0:1]
    tab1 = params['emb_phase'][1:2]
    k_phase = jnp.asarray(sel_ph) @ jnp.kron(eye, tab1 - tab0)            # (16, 32)
    b_phase = jnp.tile(tab0, (1, P))                                      # (1, 32)
    k_veh = jnp.asarray(sel_veh) @ jnp.kron(eye, params['w_veh'])         # (16, 32)
    b_veh = jnp.tile(params['b_veh'], (1, P))

    # history: per-phase [fl, fl+8, fl+16] column selection fused with Linear(3,4)
    nh = PD + VD + PD
    sel_h = np.zeros((nh, 3 * P), np.float32)
    for p in range(P):
        for k, c in enumerate((fl[p], fl[p] + PD, fl[p] + PD + VD)):
            sel_h[c, 3 * p + k] = 1.0
    w_sel = jnp.asarray(sel_h) @ jnp.kron(eye, params['w_hist'])          # (24, 32)
    b_hist = jnp.tile(params['b_hist'], (1, P))

    # GRU: per-phase block-diagonal weights, gate-major columns [r | z | n],
    # hidden padded H -> HP so each gate slab is exactly P*HP = 128 lanes.
    def gru_w(w, pad_in=None):
        if pad_in is not None:
            w = pad_rows(w, pad_in)
        return jnp.concatenate(
            [jnp.kron(eye, pad_cols(w[:, g * H:(g + 1) * H], HP)) for g in range(3)],
            axis=1)

    def gru_b(b):
        return jnp.concatenate(
            [jnp.tile(pad_cols(b[:, g * H:(g + 1) * H], HP), (1, P)) for g in range(3)],
            axis=1)

    w_ih = gru_w(params['w_ih'])                     # (32, 384)
    w_hh = gru_w(params['w_hh'], pad_in=HP)          # (128, 384)
    b_ih = gru_b(params['b_ih'])                     # (1, 384)
    b_hh = gru_b(params['b_hh'])                     # (1, 384)

    # pressure Linear(18, 16): input order [veh(4) | phase(4) | hidden(10)]
    wl = params['w_lane']
    wp_veh = jnp.kron(eye, wl[0:4])                  # (32, 128)
    wp_ph = jnp.kron(eye, wl[4:8])                   # (32, 128)
    wp_h = jnp.kron(eye, pad_rows(wl[8:8 + H], HP))  # (128, 128)
    b_l = jnp.tile(params['b_l'], (1, P))            # (1, 128)

    small = [
        ('k_phase', k_phase), ('b_phase', b_phase),
        ('k_veh', k_veh), ('b_veh', b_veh),
        ('w_sel', w_sel), ('b_hist', b_hist),
        ('wp_veh', wp_veh), ('wp_ph', wp_ph), ('wp_h', wp_h), ('b_l', b_l),
        ('w_cfa', params['w_cf'][0:16]), ('w_cfb', params['w_cf'][16:32]),
        ('b_cf', params['b_cf']),
        ('rel', rel_full), ('emb_const', params['emb_const']),
        ('w_cc', params['w_cc']), ('b_cc', params['b_cc']),
        ('w_cb', params['w_cb']), ('b_cb', params['b_cb']),
        ('w_fin', params['w_fin']), ('b_fin', params['b_fin']),
        ('mask', diag_mask),
    ]
    big = [('w_ih', w_ih), ('b_ih', b_ih), ('w_hh', w_hh), ('b_hh', b_hh)]

    pk_small, off_small = _pack(small, 128)
    pk_big, off_big = _pack(big, 3 * P * HP)
    return pk_small, off_small, pk_big, off_big


# ------------------------------- wrapper -------------------------------------
def fraprq_forward(feature_input, history_input, packed):
    """feature_input: (B, 16) = [phase bits(8) | vehicle counts(8)]
       history_input: (B, T, 24).  Returns (B, NUM_PHASE) q-values."""
    pk_small, off_small, pk_big, off_big = packed
    B, F = feature_input.shape
    _, T, HC = history_input.shape
    P = NUM_PHASE

    # Batch tile: whole batch for small B; 128-row tiles (lane-dense output blocks,
    # bounded per-step VMEM on v7x) once the batch is production sized.
    TB = 128 if (B > 128 and B % 128 == 0) else B
    grid = (B // TB,)

    kernel = functools.partial(
        fraprq_kernel, off_s=off_small, off_b=off_big, P=P, HP=HIDDEN_PAD)

    out_t = pl.pallas_call(
        kernel,
        out_shape=jax.ShapeDtypeStruct((P, B), jnp.float32),
        grid=grid,
        in_specs=[
            pl.BlockSpec((TB, F), lambda b: (b, 0)),
            pl.BlockSpec((TB, T, HC), lambda b: (b, 0, 0)),
            pl.BlockSpec(pk_small.shape, lambda b: (0, 0)),
            pl.BlockSpec(pk_big.shape, lambda b: (0, 0)),
        ],
        out_specs=pl.BlockSpec((P, TB), lambda b: (0, b)),
        compiler_params=pltpu.CompilerParams(
            dimension_semantics=("parallel",),
            vmem_limit_bytes=32 * 1024 * 1024),
    )(feature_input, history_input, pk_small, pk_big)
    return out_t.T                                  # (B, P); store inside was lane-dense


# -------------------------- deterministic parameters -------------------------
def init_params(key):
    ks = jax.random.split(key, 20)
    u = lambda k, shape, s=0.5: jax.random.uniform(k, shape, jnp.float32, -s, s)
    p = {}
    p['emb_phase'] = jax.random.normal(ks[0], (2, 4), jnp.float32)
    p['w_veh'] = u(ks[1], (1, 4)); p['b_veh'] = u(ks[2], (1, 4))
    p['w_hist'] = u(ks[3], (3, 4)); p['b_hist'] = u(ks[4], (1, 4))
    p['w_ih'] = u(ks[5], (4, 3 * HIDDEN_DIM))
    p['w_hh'] = u(ks[6], (HIDDEN_DIM, 3 * HIDDEN_DIM))
    p['b_ih'] = u(ks[7], (1, 3 * HIDDEN_DIM))
    p['b_hh'] = u(ks[8], (1, 3 * HIDDEN_DIM))
    p['w_lane'] = u(ks[9], (8 + HIDDEN_DIM, 16))      # weight_feature_lane (18,16)
    p['b_l'] = u(ks[10], (1, 16))
    p['emb_const'] = jax.random.normal(ks[11], (2, 4), jnp.float32)
    p['w_cf'] = u(ks[12], (32, 20)); p['b_cf'] = u(ks[13], (1, 20))   # conv_feature
    p['w_cc'] = u(ks[14], (4, 20)); p['b_cc'] = u(ks[15], (1, 20))    # conv_constant
    p['w_cb'] = u(ks[16], (20, 20)); p['b_cb'] = u(ks[17], (1, 20))   # conv_combine
    p['w_fin'] = u(ks[18], (1, 20)); p['b_fin'] = u(ks[19], (1, 1))   # conv_final
    return p


if __name__ == "__main__":
    key = jax.random.PRNGKey(0)
    kf, kv, kh, kp = jax.random.split(key, 4)
    B = 2

    phase_bits = jax.random.bernoulli(kf, 0.5, (B, PHASE_DIM)).astype(jnp.float32)
    vehicle = jax.random.uniform(kv, (B, VEHICLE_DIM), jnp.float32, 0.0, 10.0)
    feature_input = jnp.concatenate([phase_bits, vehicle], axis=-1)       # (B, 16)
    history_input = jax.random.uniform(
        kh, (B, T_HIST, PHASE_DIM + VEHICLE_DIM + PHASE_DIM), jnp.float32)  # (B, 8, 24)

    params = init_params(kp)

    # static config: first active lane per phase (forward only uses lane_combine[0])
    first_lane = []
    for ph in sorted(PHASE_LANE_MAPPING.keys()):
        lane_map = PHASE_LANE_MAPPING[ph]
        lane_combine = [idx for idx, l in enumerate(lane_map) if l == 1]
        first_lane.append(lane_combine[0])

    # expand relation (P, P-1) to (P, P) off-diagonal positions, plus diagonal mask
    rel_full_np = np.zeros((NUM_PHASE, NUM_PHASE), np.float32)
    for i in range(NUM_PHASE):
        k = 0
        for j in range(NUM_PHASE):
            if i != j:
                rel_full_np[i, j] = float(RELATION[i, k])
                k += 1
    rel_full = jnp.asarray(rel_full_np)
    diag_mask = jnp.asarray(1.0 - np.eye(NUM_PHASE, dtype=np.float32))

    packed = pack_params(params, first_lane, rel_full, diag_mask)

    out = fraprq_forward(feature_input, history_input, packed)
    out = jax.block_until_ready(out)
    assert out.shape == (B, NUM_PHASE)
    assert bool(jnp.all(jnp.isfinite(out)))
    print("KERNEL_OK")
</pallas_src>

<mosaic_0001>
module attributes {stable_mosaic.version = 11 : i64} {
  func.func @fraprq_kernel(%arg0: i32, %arg1: memref<2x16xf32, #tpu.memory_space<vmem>>, %arg2: memref<2x8x24xf32, #tpu.memory_space<vmem>>, %arg3: memref<408x128xf32, #tpu.memory_space<vmem>>, %arg4: memref<176x384xf32, #tpu.memory_space<vmem>>, %arg5: memref<8x2xf32, #tpu.memory_space<vmem>>) attributes {dimension_semantics = [#tpu.dimension_semantics<parallel>], iteration_bounds = array<i64: 1>, scalar_prefetch = 0 : i64, scratch_operands = 0 : i64, tpu.core_type = #tpu.core_type<tc>, window_params = [{transform_indices = @transform_0, window_bounds = array<i64: 2, 16>}, {transform_indices = @transform_1, window_bounds = array<i64: 2, 8, 24>}, {pipeline_mode = #tpu.pipeline_mode<synchronous>, transform_indices = @transform_2, window_bounds = array<i64: 408, 128>}, {pipeline_mode = #tpu.pipeline_mode<synchronous>, transform_indices = @transform_3, window_bounds = array<i64: 176, 384>}, {transform_indices = @transform_4, window_bounds = array<i64: 8, 2>}]} {
    %c0 = arith.constant 0 : index
    %c0_0 = arith.constant 0 : index
    %0 = vector.load %arg1[%c0, %c0_0] : memref<2x16xf32, #tpu.memory_space<vmem>>, vector<2x16xf32>
    %c0_1 = arith.constant 0 : index
    %c0_2 = arith.constant 0 : index
    %1 = vector.load %arg3[%c0_1, %c0_2] : memref<408x128xf32, #tpu.memory_space<vmem>>, vector<16x32xf32>
    %cst = arith.constant dense<0.000000e+00> : vector<2x32xf32>
    %2 = tpu.matmul %0, %1, %cst {dimension_numbers = #tpu.dot_dimension_numbers<[1], [0], [0], [1], [0, 0, 1, 1], [], []>} : vector<2x16xf32>, vector<16x32xf32>, vector<2x32xf32> -> vector<2x32xf32>
    %c16 = arith.constant 16 : index
    %c0_3 = arith.constant 0 : index
    %3 = vector.load %arg3[%c16, %c0_3] : memref<408x128xf32, #tpu.memory_space<vmem>>, vector<1x32xf32>
    %4 = vector.broadcast %3 : vector<1x32xf32> to vector<2x32xf32>
    %5 = arith.addf %2, %4 : vector<2x32xf32>
    %6 = arith.negf %5 : vector<2x32xf32>
    %7 = math.exp %6 : vector<2x32xf32>
    %cst_4 = arith.constant 1.000000e+00 : f32
    %8 = vector.broadcast %cst_4 : f32 to vector<2x32xf32>
    %9 = arith.addf %8, %7 : vector<2x32xf32>
    %10 = arith.divf %8, %9 : vector<2x32xf32>
    %c24 = arith.constant 24 : index
    %c0_5 = arith.constant 0 : index
    %11 = vector.load %arg3[%c24, %c0_5] : memref<408x128xf32, #tpu.memory_space<vmem>>, vector<16x32xf32>
    %cst_6 = arith.constant dense<0.000000e+00> : vector<2x32xf32>
    %12 = tpu.matmul %0, %11, %cst_6 {dimension_numbers = #tpu.dot_dimension_numbers<[1], [0], [0], [1], [0, 0, 1, 1], [], []>} : vector<2x16xf32>, vector<16x32xf32>, vector<2x32xf32> -> vector<2x32xf32>
    %c40 = arith.constant 40 : index
    %c0_7 = arith.constant 0 : index
    %13 = vector.load %arg3[%c40, %c0_7] : memref<408x128xf32, #tpu.memory_space<vmem>>, vector<1x32xf32>
    %14 = vector.broadcast %13 : vector<1x32xf32> to vector<2x32xf32>
    %15 = arith.addf %12, %14 : vector<2x32xf32>
    %16 = arith.negf %15 : vector<2x32xf32>
    %17 = math.exp %16 : vector<2x32xf32>
    %cst_8 = arith.constant 1.000000e+00 : f32
    %18 = vector.broadcast %cst_8 : f32 to vector<2x32xf32>
    %19 = arith.addf %18, %17 : vector<2x32xf32>
    %20 = arith.divf %18, %19 : vector<2x32xf32>
    %c0_9 = arith.constant 0 : index
    %c0_10 = arith.constant 0 : index
    %c0_11 = arith.constant 0 : index
    %21 = vector.load %arg2[%c0_9, %c0_10, %c0_11] : memref<2x8x24xf32, #tpu.memory_space<vmem>>, vector<2x8x24xf32>
    %22 = vector.shape_cast %21 : vector<2x8x24xf32> to vector<16x24xf32>
    %c48 = arith.constant 48 : index
    %c0_12 = arith.constant 0 : index
    %23 = vector.load %arg3[%c48, %c0_12] : memref<408x128xf32, #tpu.memory_space<vmem>>, vector<24x32xf32>
    %cst_13 = arith.constant dense<0.000000e+00> : vector<16x32xf32>
    %24 = tpu.matmul %22, %23, %cst_13 {dimension_numbers = #tpu.dot_dimension_numbers<[1], [0], [0], [1], [0, 0, 1, 1], [], []>} : vector<16x24xf32>, vector<24x32xf32>, vector<16x32xf32> -> vector<16x32xf32>
    %c72 = arith.constant 72 : index
    %c0_14 = arith.constant 0 : index
    %25 = vector.load %arg3[%c72, %c0_14] : memref<408x128xf32, #tpu.memory_space<vmem>>, vector<1x32xf32>
    %26 = vector.broadcast %25 : vector<1x32xf32> to vector<16x32xf32>
    %27 = arith.addf %24, %26 : vector<16x32xf32>
    %28 = arith.negf %27 : vector<16x32xf32>
    %29 = math.exp %28 : vector<16x32xf32>
    %cst_15 = arith.constant 1.000000e+00 : f32
    %30 = vector.broadcast %cst_15 : f32 to vector<16x32xf32>
    %31 = arith.addf %30, %29 : vector<16x32xf32>
    %32 = arith.divf %30, %31 : vector<16x32xf32>
    %c0_16 = arith.constant 0 : index
    %c0_17 = arith.constant 0 : index
    %33 = vector.load %arg4[%c0_16, %c0_17] : memref<176x384xf32, #tpu.memory_space<vmem>>, vector<32x384xf32>
    %cst_18 = arith.constant dense<0.000000e+00> : vector<16x384xf32>
    %34 = tpu.matmul %32, %33, %cst_18 {dimension_numbers = #tpu.dot_dimension_numbers<[1], [0], [0], [1], [0, 0, 1, 1], [], []>} : vector<16x32xf32>, vector<32x384xf32>, vector<16x384xf32> -> vector<16x384xf32>
    %c32 = arith.constant 32 : index
    %c0_19 = arith.constant 0 : index
    %35 = vector.load %arg4[%c32, %c0_19] : memref<176x384xf32, #tpu.memory_space<vmem>>, vector<1x384xf32>
    %36 = vector.broadcast %35 : vector<1x384xf32> to vector<16x384xf32>
    %37 = arith.addf %34, %36 : vector<16x384xf32>
    %38 = vector.shape_cast %37 : vector<16x384xf32> to vector<2x8x384xf32>
    %c40_20 = arith.constant 40 : index
    %c0_21 = arith.constant 0 : index
    %39 = vector.load %arg4[%c40_20, %c0_21] : memref<176x384xf32, #tpu.memory_space<vmem>>, vector<128x384xf32>
    %c168 = arith.constant 168 : index
    %c0_22 = arith.constant 0 : index
    %40 = vector.load %arg4[%c168, %c0_22] : memref<176x384xf32, #tpu.memory_space<vmem>>, vector<1x384xf32>
    %cst_23 = arith.constant 0.000000e+00 : f32
    %41 = vector.broadcast %cst_23 : f32 to vector<2x128xf32>
    %42 = vector.extract_strided_slice %38 {offsets = [0, 0, 0], sizes = [2, 1, 384], strides = [1, 1, 1]} : vector<2x8x384xf32> to vector<2x1x384xf32>
    %43 = vector.shape_cast %42 : vector<2x1x384xf32> to vector<2x384xf32>
    %cst_24 = arith.constant dense<0.000000e+00> : vector<2x384xf32>
    %44 = tpu.matmul %41, %39, %cst_24 {dimension_numbers = #tpu.dot_dimension_numbers<[1], [0], [0], [1], [0, 0, 1, 1], [], []>} : vector<2x128xf32>, vector<128x384xf32>, vector<2x384xf32> -> vector<2x384xf32>
    %45 = vector.broadcast %40 : vector<1x384xf32> to vector<2x384xf32>
    %46 = arith.addf %44, %45 : vector<2x384xf32>
    %47 = vector.extract_strided_slice %43 {offsets = [0, 0], sizes = [2, 256], strides = [1, 1]} : vector<2x384xf32> to vector<2x256xf32>
    %48 = vector.extract_strided_slice %46 {offsets = [0, 0], sizes = [2, 256], strides = [1, 1]} : vector<2x384xf32> to vector<2x256xf32>
    %49 = arith.addf %47, %48 : vector<2x256xf32>
    %50 = arith.negf %49 : vector<2x256xf32>
    %51 = math.exp %50 : vector<2x256xf32>
    %cst_25 = arith.constant 1.000000e+00 : f32
    %52 = vector.broadcast %cst_25 : f32 to vector<2x256xf32>
    %53 = arith.addf %52, %51 : vector<2x256xf32>
    %54 = arith.divf %52, %53 : vector<2x256xf32>
    %55 = vector.extract_strided_slice %54 {offsets = [0, 0], sizes = [2, 128], strides = [1, 1]} : vector<2x256xf32> to vector<2x128xf32>
    %56 = vector.extract_strided_slice %54 {offsets = [0, 128], sizes = [2, 128], strides = [1, 1]} : vector<2x256xf32> to vector<2x128xf32>
    %57 = vector.extract_strided_slice %43 {offsets = [0, 256], sizes = [2, 128], strides = [1, 1]} : vector<2x384xf32> to vector<2x128xf32>
    %58 = vector.extract_strided_slice %46 {offsets = [0, 256], sizes = [2, 128], strides = [1, 1]} : vector<2x384xf32> to vector<2x128xf32>
    %59 = arith.mulf %55, %58 : vector<2x128xf32>
    %60 = arith.addf %57, %59 : vector<2x128xf32>
    %61 = math.tanh %60 : vector<2x128xf32>
    %cst_26 = arith.constant 1.000000e+00 : f32
    %62 = vector.broadcast %cst_26 : f32 to vector<2x128xf32>
    %63 = arith.subf %62, %56 : vector<2x128xf32>
    %64 = arith.mulf %63, %61 : vector<2x128xf32>
    %65 = arith.mulf %56, %41 : vector<2x128xf32>
    %66 = arith.addf %64, %65 : vector<2x128xf32>
    %67 = vector.extract_strided_slice %38 {offsets = [0, 1, 0], sizes = [2, 1, 384], strides = [1, 1, 1]} : vector<2x8x384xf32> to vector<2x1x384xf32>
    %68 = vector.shape_cast %67 : vector<2x1x384xf32> to vector<2x384xf32>
    %cst_27 = arith.constant dense<0.000000e+00> : vector<2x384xf32>
    %69 = tpu.matmul %66, %39, %cst_27 {dimension_numbers = #tpu.dot_dimension_numbers<[1], [0], [0], [1], [0, 0, 1, 1], [], []>} : vector<2x128xf32>, vector<128x384xf32>, vector<2x384xf32> -> vector<2x384xf32>
    %70 = vector.broadcast %40 : vector<1x384xf32> to vector<2x384xf32>
    %71 = arith.addf %69, %70 : vector<2x384xf32>
    %72 = vector.extract_strided_slice %68 {offsets = [0, 0], sizes = [2, 256], strides = [1, 1]} : vector<2x384xf32> to vector<2x256xf32>
    %73 = vector.extract_strided_slice %71 {offsets = [0, 0], sizes = [2, 256], strides = [1, 1]} : vector<2x384xf32> to vector<2x256xf32>
    %74 = arith.addf %72, %73 : vector<2x256xf32>
    %75 = arith.negf %74 : vector<2x256xf32>
    %76 = math.exp %75 : vector<2x256xf32>
    %cst_28 = arith.constant 1.000000e+00 : f32
    %77 = vector.broadcast %cst_28 : f32 to vector<2x256xf32>
    %78 = arith.addf %77, %76 : vector<2x256xf32>
    %79 = arith.divf %77, %78 : vector<2x256xf32>
    %80 = vector.extract_strided_slice %79 {offsets = [0, 0], sizes = [2, 128], strides = [1, 1]} : vector<2x256xf32> to vector<2x128xf32>
    %81 = vector.extract_strided_slice %79 {offsets = [0, 128], sizes = [2, 128], strides = [1, 1]} : vector<2x256xf32> to vector<2x128xf32>
    %82 = vector.extract_strided_slice %68 {offsets = [0, 256], sizes = [2, 128], strides = [1, 1]} : vector<2x384xf32> to vector<2x128xf32>
    %83 = vector.extract_strided_slice %71 {offsets = [0, 256], sizes = [2, 128], strides = [1, 1]} : vector<2x384xf32> to vector<2x128xf32>
    %84 = arith.mulf %80, %83 : vector<2x128xf32>
    %85 = arith.addf %82, %84 : vector<2x128xf32>
    %86 = math.tanh %85 : vector<2x128xf32>
    %cst_29 = arith.constant 1.000000e+00 : f32
    %87 = vector.broadcast %cst_29 : f32 to vector<2x128xf32>
    %88 = arith.subf %87, %81 : vector<2x128xf32>
    %89 = arith.mulf %88, %86 : vector<2x128xf32>
    %90 = arith.mulf %81, %66 : vector<2x128xf32>
    %91 = arith.addf %89, %90 : vector<2x128xf32>
    %92 = vector.extract_strided_slice %38 {offsets = [0, 2, 0], sizes = [2, 1, 384], strides = [1, 1, 1]} : vector<2x8x384xf32> to vector<2x1x384xf32>
    %93 = vector.shape_cast %92 : vector<2x1x384xf32> to vector<2x384xf32>
    %cst_30 = arith.constant dense<0.000000e+00> : vector<2x384xf32>
    %94 = tpu.matmul %91, %39, %cst_30 {dimension_numbers = #tpu.dot_dimension_numbers<[1], [0], [0], [1], [0, 0, 1, 1], [], []>} : vector<2x128xf32>, vector<128x384xf32>, vector<2x384xf32> -> vector<2x384xf32>
    %95 = vector.broadcast %40 : vector<1x384xf32> to vector<2x384xf32>
    %96 = arith.addf %94, %95 : vector<2x384xf32>
    %97 = vector.extract_strided_slice %93 {offsets = [0, 0], sizes = [2, 256], strides = [1, 1]} : vector<2x384xf32> to vector<2x256xf32>
    %98 = vector.extract_strided_slice %96 {offsets = [0, 0], sizes = [2, 256], strides = [1, 1]} : vector<2x384xf32> to vector<2x256xf32>
    %99 = arith.addf %97, %98 : vector<2x256xf32>
    %100 = arith.negf %99 : vector<2x256xf32>
    %101 = math.exp %100 : vector<2x256xf32>
    %cst_31 = arith.constant 1.000000e+00 : f32
    %102 = vector.broadcast %cst_31 : f32 to vector<2x256xf32>
    %103 = arith.addf %102, %101 : vector<2x256xf32>
    %104 = arith.divf %102, %103 : vector<2x256xf32>
    %105 = vector.extract_strided_slice %104 {offsets = [0, 0], sizes = [2, 128], strides = [1, 1]} : vector<2x256xf32> to vector<2x128xf32>
    %106 = vector.extract_strided_slice %104 {offsets = [0, 128], sizes = [2, 128], strides = [1, 1]} : vector<2x256xf32> to vector<2x128xf32>
    %107 = vector.extract_strided_slice %93 {offsets = [0, 256], sizes = [2, 128], strides = [1, 1]} : vector<2x384xf32> to vector<2x128xf32>
    %108 = vector.extract_strided_slice %96 {offsets = [0, 256], sizes = [2, 128], strides = [1, 1]} : vector<2x384xf32> to vector<2x128xf32>
    %109 = arith.mulf %105, %108 : vector<2x128xf32>
    %110 = arith.addf %107, %109 : vector<2x128xf32>
    %111 = math.tanh %110 : vector<2x128xf32>
    %cst_32 = arith.constant 1.000000e+00 : f32
    %112 = vector.broadcast %cst_32 : f32 to vector<2x128xf32>
    %113 = arith.subf %112, %106 : vector<2x128xf32>
    %114 = arith.mulf %113, %111 : vector<2x128xf32>
    %115 = arith.mulf %106, %91 : vector<2x128xf32>
    %116 = arith.addf %114, %115 : vector<2x128xf32>
    %117 = vector.extract_strided_slice %38 {offsets = [0, 3, 0], sizes = [2, 1, 384], strides = [1, 1, 1]} : vector<2x8x384xf32> to vector<2x1x384xf32>
    %118 = vector.shape_cast %117 : vector<2x1x384xf32> to vector<2x384xf32>
    %cst_33 = arith.constant dense<0.000000e+00> : vector<2x384xf32>
    %119 = tpu.matmul %116, %39, %cst_33 {dimension_numbers = #tpu.dot_dimension_numbers<[1], [0], [0], [1], [0, 0, 1, 1], [], []>} : vector<2x128xf32>, vector<128x384xf32>, vector<2x384xf32> -> vector<2x384xf32>
    %120 = vector.broadcast %40 : vector<1x384xf32> to vector<2x384xf32>
    %121 = arith.addf %119, %120 : vector<2x384xf32>
    %122 = vector.extract_strided_slice %118 {offsets = [0, 0], sizes = [2, 256], strides = [1, 1]} : vector<2x384xf32> to vector<2x256xf32>
    %123 = vector.extract_strided_slice %121 {offsets = [0, 0], sizes = [2, 256], strides = [1, 1]} : vector<2x384xf32> to vector<2x256xf32>
    %124 = arith.addf %122, %123 : vector<2x256xf32>
    %125 = arith.negf %124 : vector<2x256xf32>
    %126 = math.exp %125 : vector<2x256xf32>
    %cst_34 = arith.constant 1.000000e+00 : f32
    %127 = vector.broadcast %cst_34 : f32 to vector<2x256xf32>
    %128 = arith.addf %127, %126 : vector<2x256xf32>
    %129 = arith.divf %127, %128 : vector<2x256xf32>
    %130 = vector.extract_strided_slice %129 {offsets = [0, 0], sizes = [2, 128], strides = [1, 1]} : vector<2x256xf32> to vector<2x128xf32>
    %131 = vector.extract_strided_slice %129 {offsets = [0, 128], sizes = [2, 128], strides = [1, 1]} : vector<2x256xf32> to vector<2x128xf32>
    %132 = vector.extract_strided_slice %118 {offsets = [0, 256], sizes = [2, 128], strides = [1, 1]} : vector<2x384xf32> to vector<2x128xf32>
    %133 = vector.extract_strided_slice %121 {offsets = [0, 256], sizes = [2, 128], strides = [1, 1]} : vector<2x384xf32> to vector<2x128xf32>
    %134 = arith.mulf %130, %133 : vector<2x128xf32>
    %135 = arith.addf %132, %134 : vector<2x128xf32>
    %136 = math.tanh %135 : vector<2x128xf32>
    %cst_35 = arith.constant 1.000000e+00 : f32
    %137 = vector.broadcast %cst_35 : f32 to vector<2x128xf32>
    %138 = arith.subf %137, %131 : vector<2x128xf32>
    %139 = arith.mulf %138, %136 : vector<2x128xf32>
    %140 = arith.mulf %131, %116 : vector<2x128xf32>
    %141 = arith.addf %139, %140 : vector<2x128xf32>
    %142 = vector.extract_strided_slice %38 {offsets = [0, 4, 0], sizes = [2, 1, 384], strides = [1, 1, 1]} : vector<2x8x384xf32> to vector<2x1x384xf32>
    %143 = vector.shape_cast %142 : vector<2x1x384xf32> to vector<2x384xf32>
    %cst_36 = arith.constant dense<0.000000e+00> : vector<2x384xf32>
    %144 = tpu.matmul %141, %39, %cst_36 {dimension_numbers = #tpu.dot_dimension_numbers<[1], [0], [0], [1], [0, 0, 1, 1], [], []>} : vector<2x128xf32>, vector<128x384xf32>, vector<2x384xf32> -> vector<2x384xf32>
    %145 = vector.broadcast %40 : vector<1x384xf32> to vector<2x384xf32>
    %146 = arith.addf %144, %145 : vector<2x384xf32>
    %147 = vector.extract_strided_slice %143 {offsets = [0, 0], sizes = [2, 256], strides = [1, 1]} : vector<2x384xf32> to vector<2x256xf32>
    %148 = vector.extract_strided_slice %146 {offsets = [0, 0], sizes = [2, 256], strides = [1, 1]} : vector<2x384xf32> to vector<2x256xf32>
    %149 = arith.addf %147, %148 : vector<2x256xf32>
    %150 = arith.negf %149 : vector<2x256xf32>
    %151 = math.exp %150 : vector<2x256xf32>
    %cst_37 = arith.constant 1.000000e+00 : f32
    %152 = vector.broadcast %cst_37 : f32 to vector<2x256xf32>
    %153 = arith.addf %152, %151 : vector<2x256xf32>
    %154 = arith.divf %152, %153 : vector<2x256xf32>
    %155 = vector.extract_strided_slice %154 {offsets = [0, 0], sizes = [2, 128], strides = [1, 1]} : vector<2x256xf32> to vector<2x128xf32>
    %156 = vector.extract_strided_slice %154 {offsets = [0, 128], sizes = [2, 128], strides = [1, 1]} : vector<2x256xf32> to vector<2x128xf32>
    %157 = vector.extract_strided_slice %143 {offsets = [0, 256], sizes = [2, 128], strides = [1, 1]} : vector<2x384xf32> to vector<2x128xf32>
    %158 = vector.extract_strided_slice %146 {offsets = [0, 256], sizes = [2, 128], strides = [1, 1]} : vector<2x384xf32> to vector<2x128xf32>
    %159 = arith.mulf %155, %158 : vector<2x128xf32>
    %160 = arith.addf %157, %159 : vector<2x128xf32>
    %161 = math.tanh %160 : vector<2x128xf32>
    %cst_38 = arith.constant 1.000000e+00 : f32
    %162 = vector.broadcast %cst_38 : f32 to vector<2x128xf32>
    %163 = arith.subf %162, %156 : vector<2x128xf32>
    %164 = arith.mulf %163, %161 : vector<2x128xf32>
    %165 = arith.mulf %156, %141 : vector<2x128xf32>
    %166 = arith.addf %164, %165 : vector<2x128xf32>
    %167 = vector.extract_strided_slice %38 {offsets = [0, 5, 0], sizes = [2, 1, 384], strides = [1, 1, 1]} : vector<2x8x384xf32> to vector<2x1x384xf32>
    %168 = vector.shape_cast %167 : vector<2x1x384xf32> to vector<2x384xf32>
    %cst_39 = arith.constant dense<0.000000e+00> : vector<2x384xf32>
    %169 = tpu.matmul %166, %39, %cst_39 {dimension_numbers = #tpu.dot_dimension_numbers<[1], [0], [0], [1], [0, 0, 1, 1], [], []>} : vector<2x128xf32>, vector<128x384xf32>, vector<2x384xf32> -> vector<2x384xf32>
    %170 = vector.broadcast %40 : vector<1x384xf32> to vector<2x384xf32>
    %171 = arith.addf %169, %170 : vector<2x384xf32>
    %172 = vector.extract_strided_slice %168 {offsets = [0, 0], sizes = [2, 256], strides = [1, 1]} : vector<2x384xf32> to vector<2x256xf32>
    %173 = vector.extract_strided_slice %171 {offsets = [0, 0], sizes = [2, 256], strides = [1, 1]} : vector<2x384xf32> to vector<2x256xf32>
    %174 = arith.addf %172, %173 : vector<2x256xf32>
    %175 = arith.negf %174 : vector<2x256xf32>
    %176 = math.exp %175 : vector<2x256xf32>
    %cst_40 = arith.constant 1.000000e+00 : f32
    %177 = vector.broadcast %cst_40 : f32 to vector<2x256xf32>
    %178 = arith.addf %177, %176 : vector<2x256xf32>
    %179 = arith.divf %177, %178 : vector<2x256xf32>
    %180 = vector.extract_strided_slice %179 {offsets = [0, 0], sizes = [2, 128], strides = [1, 1]} : vector<2x256xf32> to vector<2x128xf32>
    %181 = vector.extract_strided_slice %179 {offsets = [0, 128], sizes = [2, 128], strides = [1, 1]} : vector<2x256xf32> to vector<2x128xf32>
    %182 = vector.extract_strided_slice %168 {offsets = [0, 256], sizes = [2, 128], strides = [1, 1]} : vector<2x384xf32> to vector<2x128xf32>
    %183 = vector.extract_strided_slice %171 {offsets = [0, 256], sizes = [2, 128], strides = [1, 1]} : vector<2x384xf32> to vector<2x128xf32>
    %184 = arith.mulf %180, %183 : vector<2x128xf32>
    %185 = arith.addf %182, %184 : vector<2x128xf32>
    %186 = math.tanh %185 : vector<2x128xf32>
    %cst_41 = arith.constant 1.000000e+00 : f32
    %187 = vector.broadcast %cst_41 : f32 to vector<2x128xf32>
    %188 = arith.subf %187, %181 : vector<2x128xf32>
    %189 = arith.mulf %188, %186 : vector<2x128xf32>
    %190 = arith.mulf %181, %166 : vector<2x128xf32>
    %191 = arith.addf %189, %190 : vector<2x128xf32>
    %192 = vector.extract_strided_slice %38 {offsets = [0, 6, 0], sizes = [2, 1, 384], strides = [1, 1, 1]} : vector<2x8x384xf32> to vector<2x1x384xf32>
    %193 = vector.shape_cast %192 : vector<2x1x384xf32> to vector<2x384xf32>
    %cst_42 = arith.constant dense<0.000000e+00> : vector<2x384xf32>
    %194 = tpu.matmul %191, %39, %cst_42 {dimension_numbers = #tpu.dot_dimension_numbers<[1], [0], [0], [1], [0, 0, 1, 1], [], []>} : vector<2x128xf32>, vector<128x384xf32>, vector<2x384xf32> -> vector<2x384xf32>
    %195 = vector.broadcast %40 : vector<1x384xf32> to vector<2x384xf32>
    %196 = arith.addf %194, %195 : vector<2x384xf32>
    %197 = vector.extract_strided_slice %193 {offsets = [0, 0], sizes = [2, 256], strides = [1, 1]} : vector<2x384xf32> to vector<2x256xf32>
    %198 = vector.extract_strided_slice %196 {offsets = [0, 0], sizes = [2, 256], strides = [1, 1]} : vector<2x384xf32> to vector<2x256xf32>
    %199 = arith.addf %197, %198 : vector<2x256xf32>
    %200 = arith.negf %199 : vector<2x256xf32>
    %201 = math.exp %200 : vector<2x256xf32>
    %cst_43 = arith.constant 1.000000e+00 : f32
    %202 = vector.broadcast %cst_43 : f32 to vector<2x256xf32>
    %203 = arith.addf %202, %201 : vector<2x256xf32>
    %204 = arith.divf %202, %203 : vector<2x256xf32>
    %205 = vector.extract_strided_slice %204 {offsets = [0, 0], sizes = [2, 128], strides = [1, 1]} : vector<2x256xf32> to vector<2x128xf32>
    %206 = vector.extract_strided_slice %204 {offsets = [0, 128], sizes = [2, 128], strides = [1, 1]} : vector<2x256xf32> to vector<2x128xf32>
    %207 = vector.extract_strided_slice %193 {offsets = [0, 256], sizes = [2, 128], strides = [1, 1]} : vector<2x384xf32> to vector<2x128xf32>
    %208 = vector.extract_strided_slice %196 {offsets = [0, 256], sizes = [2, 128], strides = [1, 1]} : vector<2x384xf32> to vector<2x128xf32>
    %209 = arith.mulf %205, %208 : vector<2x128xf32>
    %210 = arith.addf %207, %209 : vector<2x128xf32>
    %211 = math.tanh %210 : vector<2x128xf32>
    %cst_44 = arith.constant 1.000000e+00 : f32
    %212 = vector.broadcast %cst_44 : f32 to vector<2x128xf32>
    %213 = arith.subf %212, %206 : vector<2x128xf32>
    %214 = arith.mulf %213, %211 : vector<2x128xf32>
    %215 = arith.mulf %206, %191 : vector<2x128xf32>
    %216 = arith.addf %214, %215 : vector<2x128xf32>
    %217 = vector.extract_strided_slice %38 {offsets = [0, 7, 0], sizes = [2, 1, 384], strides = [1, 1, 1]} : vector<2x8x384xf32> to vector<2x1x384xf32>
    %218 = vector.shape_cast %217 : vector<2x1x384xf32> to vector<2x384xf32>
    %cst_45 = arith.constant dense<0.000000e+00> : vector<2x384xf32>
    %219 = tpu.matmul %216, %39, %cst_45 {dimension_numbers = #tpu.dot_dimension_numbers<[1], [0], [0], [1], [0, 0, 1, 1], [], []>} : vector<2x128xf32>, vector<128x384xf32>, vector<2x384xf32> -> vector<2x384xf32>
    %220 = vector.broadcast %40 : vector<1x384xf32> to vector<2x384xf32>
    %221 = arith.addf %219, %220 : vector<2x384xf32>
    %222 = vector.extract_strided_slice %218 {offsets = [0, 0], sizes = [2, 256], strides = [1, 1]} : vector<2x384xf32> to vector<2x256xf32>
    %223 = vector.extract_strided_slice %221 {offsets = [0, 0], sizes = [2, 256], strides = [1, 1]} : vector<2x384xf32> to vector<2x256xf32>
    %224 = arith.addf %222, %223 : vector<2x256xf32>
    %225 = arith.negf %224 : vector<2x256xf32>
    %226 = math.exp %225 : vector<2x256xf32>
    %cst_46 = arith.constant 1.000000e+00 : f32
    %227 = vector.broadcast %cst_46 : f32 to vector<2x256xf32>
    %228 = arith.addf %227, %226 : vector<2x256xf32>
    %229 = arith.divf %227, %228 : vector<2x256xf32>
    %230 = vector.extract_strided_slice %229 {offsets = [0, 0], sizes = [2, 128], strides = [1, 1]} : vector<2x256xf32> to vector<2x128xf32>
    %231 = vector.extract_strided_slice %229 {offsets = [0, 128], sizes = [2, 128], strides = [1, 1]} : vector<2x256xf32> to vector<2x128xf32>
    %232 = vector.extract_strided_slice %218 {offsets = [0, 256], sizes = [2, 128], strides = [1, 1]} : vector<2x384xf32> to vector<2x128xf32>
    %233 = vector.extract_strided_slice %221 {offsets = [0, 256], sizes = [2, 128], strides = [1, 1]} : vector<2x384xf32> to vector<2x128xf32>
    %234 = arith.mulf %230, %233 : vector<2x128xf32>
    %235 = arith.addf %232, %234 : vector<2x128xf32>
    %236 = math.tanh %235 : vector<2x128xf32>
    %cst_47 = arith.constant 1.000000e+00 : f32
    %237 = vector.broadcast %cst_47 : f32 to vector<2x128xf32>
    %238 = arith.subf %237, %231 : vector<2x128xf32>
    %239 = arith.mulf %238, %236 : vector<2x128xf32>
    %240 = arith.mulf %231, %216 : vector<2x128xf32>
    %241 = arith.addf %239, %240 : vector<2x128xf32>
    %c80 = arith.constant 80 : index
    %c0_48 = arith.constant 0 : index
    %242 = vector.load %arg3[%c80, %c0_48] : memref<408x128xf32, #tpu.memory_space<vmem>>, vector<32x128xf32>
    %cst_49 = arith.constant dense<0.000000e+00> : vector<2x128xf32>
    %243 = tpu.matmul %20, %242, %cst_49 {dimension_numbers = #tpu.dot_dimension_numbers<[1], [0], [0], [1], [0, 0, 1, 1], [], []>} : vector<2x32xf32>, vector<32x128xf32>, vector<2x128xf32> -> vector<2x128xf32>
    %c112 = arith.constant 112 : index
    %c0_50 = arith.constant 0 : index
    %244 = vector.load %arg3[%c112, %c0_50] : memref<408x128xf32, #tpu.memory_space<vmem>>, vector<32x128xf32>
    %cst_51 = arith.constant dense<0.000000e+00> : vector<2x128xf32>
    %245 = tpu.matmul %10, %244, %cst_51 {dimension_numbers = #tpu.dot_dimension_numbers<[1], [0], [0], [1], [0, 0, 1, 1], [], []>} : vector<2x32xf32>, vector<32x128xf32>, vector<2x128xf32> -> vector<2x128xf32>
    %246 = arith.addf %243, %245 : vector<2x128xf32>
    %c144 = arith.constant 144 : index
    %c0_52 = arith.constant 0 : index
    %247 = vector.load %arg3[%c144, %c0_52] : memref<408x128xf32, #tpu.memory_space<vmem>>, vector<128x128xf32>
    %cst_53 = arith.constant dense<0.000000e+00> : vector<2x128xf32>
    %248 = tpu.matmul %241, %247, %cst_53 {dimension_numbers = #tpu.dot_dimension_numbers<[1], [0], [0], [1], [0, 0, 1, 1], [], []>} : vector<2x128xf32>, vector<128x128xf32>, vector<2x128xf32> -> vector<2x128xf32>
    %249 = arith.addf %246, %248 : vector<2x128xf32>
    %c272 = arith.constant 272 : index
    %c0_54 = arith.constant 0 : index
    %250 = vector.load %arg3[%c272, %c0_54] : memref<408x128xf32, #tpu.memory_space<vmem>>, vector<1x128xf32>
    %251 = vector.broadcast %250 : vector<1x128xf32> to vector<2x128xf32>
    %252 = arith.addf %249, %251 : vector<2x128xf32>
    %cst_55 = arith.constant 0.000000e+00 : f32
    %253 = vector.broadcast %cst_55 : f32 to vector<2x128xf32>
    %254 = arith.maximumf %252, %253 : vector<2x128xf32>
    %cst_56 = arith.constant 2.000000e+00 : f32
    %255 = vector.broadcast %cst_56 : f32 to vector<2x128xf32>
    %256 = arith.mulf %255, %254 : vector<2x128xf32>
    %c280 = arith.constant 280 : index
    %c0_57 = arith.constant 0 : index
    %257 = vector.load %arg3[%c280, %c0_57] : memref<408x128xf32, #tpu.memory_space<vmem>>, vector<16x20xf32>
    %c296 = arith.constant 296 : index
    %c0_58 = arith.constant 0 : index
    %258 = vector.load %arg3[%c296, %c0_58] : memref<408x128xf32, #tpu.memory_space<vmem>>, vector<16x20xf32>
    %259 = vector.extract_strided_slice %256 {offsets = [0, 0], sizes = [2, 16], strides = [1, 1]} : vector<2x128xf32> to vector<2x16xf32>
    %cst_59 = arith.constant dense<0.000000e+00> : vector<2x20xf32>
    %260 = tpu.matmul %259, %257, %cst_59 {dimension_numbers = #tpu.dot_dimension_numbers<[1], [0], [0], [1], [0, 0, 1, 1], [], []>} : vector<2x16xf32>, vector<16x20xf32>, vector<2x20xf32> -> vector<2x20xf32>
    %261 = vector.shape_cast %260 : vector<2x20xf32> to vector<1x2x20xf32>
    %cst_60 = arith.constant dense<0.000000e+00> : vector<2x20xf32>
    %262 = tpu.matmul %259, %258, %cst_60 {dimension_numbers = #tpu.dot_dimension_numbers<[1], [0], [0], [1], [0, 0, 1, 1], [], []>} : vector<2x16xf32>, vector<16x20xf32>, vector<2x20xf32> -> vector<2x20xf32>
    %263 = vector.shape_cast %262 : vector<2x20xf32> to vector<1x2x20xf32>
    %264 = vector.extract_strided_slice %256 {offsets = [0, 16], sizes = [2, 16], strides = [1, 1]} : vector<2x128xf32> to vector<2x16xf32>
    %cst_61 = arith.constant dense<0.000000e+00> : vector<2x20xf32>
    %265 = tpu.matmul %264, %257, %cst_61 {dimension_numbers = #tpu.dot_dimension_numbers<[1], [0], [0], [1], [0, 0, 1, 1], [], []>} : vector<2x16xf32>, vector<16x20xf32>, vector<2x20xf32> -> vector<2x20xf32>
    %266 = vector.shape_cast %265 : vector<2x20xf32> to vector<1x2x20xf32>
    %cst_62 = arith.constant dense<0.000000e+00> : vector<2x20xf32>
    %267 = tpu.matmul %264, %258, %cst_62 {dimension_numbers = #tpu.dot_dimension_numbers<[1], [0], [0], [1], [0, 0, 1, 1], [], []>} : vector<2x16xf32>, vector<16x20xf32>, vector<2x20xf32> -> vector<2x20xf32>
    %268 = vector.shape_cast %267 : vector<2x20xf32> to vector<1x2x20xf32>
    %269 = vector.extract_strided_slice %256 {offsets = [0, 32], sizes = [2, 16], strides = [1, 1]} : vector<2x128xf32> to vector<2x16xf32>
    %cst_63 = arith.constant dense<0.000000e+00> : vector<2x20xf32>
    %270 = tpu.matmul %269, %257, %cst_63 {dimension_numbers = #tpu.dot_dimension_numbers<[1], [0], [0], [1], [0, 0, 1, 1], [], []>} : vector<2x16xf32>, vector<16x20xf32>, vector<2x20xf32> -> vector<2x20xf32>
    %271 = vector.shape_cast %270 : vector<2x20xf32> to vector<1x2x20xf32>
    %cst_64 = arith.constant dense<0.000000e+00> : vector<2x20xf32>
    %272 = tpu.matmul %269, %258, %cst_64 {dimension_numbers = #tpu.dot_dimension_numbers<[1], [0], [0], [1], [0, 0, 1, 1], [], []>} : vector<2x16xf32>, vector<16x20xf32>, vector<2x20xf32> -> vector<2x20xf32>
    %273 = vector.shape_cast %272 : vector<2x20xf32> to vector<1x2x20xf32>
    %274 = vector.extract_strided_slice %256 {offsets = [0, 48], sizes = [2, 16], strides = [1, 1]} : vector<2x128xf32> to vector<2x16xf32>
    %cst_65 = arith.constant dense<0.000000e+00> : vector<2x20xf32>
    %275 = tpu.matmul %274, %257, %cst_65 {dimension_numbers = #tpu.dot_dimension_numbers<[1], [0], [0], [1], [0, 0, 1, 1], [], []>} : vector<2x16xf32>, vector<16x20xf32>, vector<2x20xf32> -> vector<2x20xf32>
    %276 = vector.shape_cast %275 : vector<2x20xf32> to vector<1x2x20xf32>
    %cst_66 = arith.constant dense<0.000000e+00> : vector<2x20xf32>
    %277 = tpu.matmul %274, %258, %cst_66 {dimension_numbers = #tpu.dot_dimension_numbers<[1], [0], [0], [1], [0, 0, 1, 1], [], []>} : vector<2x16xf32>, vector<16x20xf32>, vector<2x20xf32> -> vector<2x20xf32>
    %278 = vector.shape_cast %277 : vector<2x20xf32> to vector<1x2x20xf32>
    %279 = vector.extract_strided_slice %256 {offsets = [0, 64], sizes = [2, 16], strides = [1, 1]} : vector<2x128xf32> to vector<2x16xf32>
    %cst_67 = arith.constant dense<0.000000e+00> : vector<2x20xf32>
    %280 = tpu.matmul %279, %257, %cst_67 {dimension_numbers = #tpu.dot_dimension_numbers<[1], [0], [0], [1], [0, 0, 1, 1], [], []>} : vector<2x16xf32>, vector<16x20xf32>, vector<2x20xf32> -> vector<2x20xf32>
    %281 = vector.shape_cast %280 : vector<2x20xf32> to vector<1x2x20xf32>
    %cst_68 = arith.constant dense<0.000000e+00> : vector<2x20xf32>
    %282 = tpu.matmul %279, %258, %cst_68 {dimension_numbers = #tpu.dot_dimension_numbers<[1], [0], [0], [1], [0, 0, 1, 1], [], []>} : vector<2x16xf32>, vector<16x20xf32>, vector<2x20xf32> -> vector<2x20xf32>
    %283 = vector.shape_cast %282 : vector<2x20xf32> to vector<1x2x20xf32>
    %284 = vector.extract_strided_slice %256 {offsets = [0, 80], sizes = [2, 16], strides = [1, 1]} : vector<2x128xf32> to vector<2x16xf32>
    %cst_69 = arith.constant dense<0.000000e+00> : vector<2x20xf32>
    %285 = tpu.matmul %284, %257, %cst_69 {dimension_numbers = #tpu.dot_dimension_numbers<[1], [0], [0], [1], [0, 0, 1, 1], [], []>} : vector<2x16xf32>, vector<16x20xf32>, vector<2x20xf32> -> vector<2x20xf32>
    %286 = vector.shape_cast %285 : vector<2x20xf32> to vector<1x2x20xf32>
    %cst_70 = arith.constant dense<0.000000e+00> : vector<2x20xf32>
    %287 = tpu.matmul %284, %258, %cst_70 {dimension_numbers = #tpu.dot_dimension_numbers<[1], [0], [0], [1], [0, 0, 1, 1], [], []>} : vector<2x16xf32>, vector<16x20xf32>, vector<2x20xf32> -> vector<2x20xf32>
    %288 = vector.shape_cast %287 : vector<2x20xf32> to vector<1x2x20xf32>
    %289 = vector.extract_strided_slice %256 {offsets = [0, 96], sizes = [2, 16], strides = [1, 1]} : vector<2x128xf32> to vector<2x16xf32>
    %cst_71 = arith.constant dense<0.000000e+00> : vector<2x20xf32>
    %290 = tpu.matmul %289, %257, %cst_71 {dimension_numbers = #tpu.dot_dimension_numbers<[1], [0], [0], [1], [0, 0, 1, 1], [], []>} : vector<2x16xf32>, vector<16x20xf32>, vector<2x20xf32> -> vector<2x20xf32>
    %291 = vector.shape_cast %290 : vector<2x20xf32> to vector<1x2x20xf32>
    %cst_72 = arith.constant dense<0.000000e+00> : vector<2x20xf32>
    %292 = tpu.matmul %289, %258, %cst_72 {dimension_numbers = #tpu.dot_dimension_numbers<[1], [0], [0], [1], [0, 0, 1, 1], [], []>} : vector<2x16xf32>, vector<16x20xf32>, vector<2x20xf32> -> vector<2x20xf32>
    %293 = vector.shape_cast %292 : vector<2x20xf32> to vector<1x2x20xf32>
    %294 = vector.extract_strided_slice %256 {offsets = [0, 112], sizes = [2, 16], strides = [1, 1]} : vector<2x128xf32> to vector<2x16xf32>
    %cst_73 = arith.constant dense<0.000000e+00> : vector<2x20xf32>
    %295 = tpu.matmul %294, %257, %cst_73 {dimension_numbers = #tpu.dot_dimension_numbers<[1], [0], [0], [1], [0, 0, 1, 1], [], []>} : vector<2x16xf32>, vector<16x20xf32>, vector<2x20xf32> -> vector<2x20xf32>
    %296 = vector.shape_cast %295 : vector<2x20xf32> to vector<1x2x20xf32>
    %cst_74 = arith.constant dense<0.000000e+00> : vector<2x20xf32>
    %297 = tpu.matmul %294, %258, %cst_74 {dimension_numbers = #tpu.dot_dimension_numbers<[1], [0], [0], [1], [0, 0, 1, 1], [], []>} : vector<2x16xf32>, vector<16x20xf32>, vector<2x20xf32> -> vector<2x20xf32>
    %298 = vector.shape_cast %297 : vector<2x20xf32> to vector<1x2x20xf32>
    %299 = tpu.concatenate %261, %266, %271, %276, %281, %286, %291, %296 in 0 : vector<1x2x20xf32>, vector<1x2x20xf32>, vector<1x2x20xf32>, vector<1x2x20xf32>, vector<1x2x20xf32>, vector<1x2x20xf32>, vector<1x2x20xf32>, vector<1x2x20xf32> -> vector<8x2x20xf32>
    %300 = tpu.concatenate %263, %268, %273, %278, %283, %288, %293, %298 in 0 : vector<1x2x20xf32>, vector<1x2x20xf32>, vector<1x2x20xf32>, vector<1x2x20xf32>, vector<1x2x20xf32>, vector<1x2x20xf32>, vector<1x2x20xf32>, vector<1x2x20xf32> -> vector<8x2x20xf32>
    %301 = vector.shape_cast %299 : vector<8x2x20xf32> to vector<8x1x2x20xf32>
    %302 = vector.shape_cast %300 : vector<8x2x20xf32> to vector<1x8x2x20xf32>
    %303 = vector.broadcast %301 : vector<8x1x2x20xf32> to vector<8x8x2x20xf32>
    %304 = vector.broadcast %302 : vector<1x8x2x20xf32> to vector<8x8x2x20xf32>
    %305 = arith.addf %303, %304 : vector<8x8x2x20xf32>
    %c312 = arith.constant 312 : index
    %c0_75 = arith.constant 0 : index
    %306 = vector.load %arg3[%c312, %c0_75] : memref<408x128xf32, #tpu.memory_space<vmem>>, vector<1x20xf32>
    %307 = vector.shape_cast %306 : vector<1x20xf32> to vector<1x1x1x20xf32>
    %308 = vector.broadcast %307 : vector<1x1x1x20xf32> to vector<8x8x2x20xf32>
    %309 = arith.addf %305, %308 : vector<8x8x2x20xf32>
    %cst_76 = arith.constant 0.000000e+00 : f32
    %310 = vector.broadcast %cst_76 : f32 to vector<8x8x2x20xf32>
    %311 = arith.maximumf %309, %310 : vector<8x8x2x20xf32>
    %c320 = arith.constant 320 : index
    %c0_77 = arith.constant 0 : index
    %312 = vector.load %arg3[%c320, %c0_77] : memref<408x128xf32, #tpu.memory_space<vmem>>, vector<8x8xf32>
    %313 = vector.shape_cast %312 : vector<8x8xf32> to vector<8x8x1xf32>
    %c328 = arith.constant 328 : index
    %c0_78 = arith.constant 0 : index
    %314 = vector.load %arg3[%c328, %c0_78] : memref<408x128xf32, #tpu.memory_space<vmem>>, vector<2x4xf32>
    %315 = vector.extract_strided_slice %314 {offsets = [0, 0], sizes = [1, 4], strides = [1, 1]} : vector<2x4xf32> to vector<1x4xf32>
    %316 = vector.shape_cast %315 : vector<1x4xf32> to vector<1x1x4xf32>
    %c328_79 = arith.constant 328 : index
    %c0_80 = arith.constant 0 : index
    %317 = vector.load %arg3[%c328_79, %c0_80] : memref<408x128xf32, #tpu.memory_space<vmem>>, vector<2x4xf32>
    %318 = vector.extract_strided_slice %317 {offsets = [1, 0], sizes = [1, 4], strides = [1, 1]} : vector<2x4xf32> to vector<1x4xf32>
    %319 = vector.shape_cast %318 : vector<1x4xf32> to vector<1x1x4xf32>
    %320 = vector.broadcast %313 : vector<8x8x1xf32> to vector<8x8x4xf32>
    %321 = vector.broadcast %319 : vector<1x1x4xf32> to vector<8x8x4xf32>
    %322 = arith.mulf %320, %321 : vector<8x8x4xf32>
    %cst_81 = arith.constant 1.000000e+00 : f32
    %323 = vector.broadcast %cst_81 : f32 to vector<8x8x1xf32>
    %324 = arith.subf %323, %313 : vector<8x8x1xf32>
    %325 = vector.broadcast %324 : vector<8x8x1xf32> to vector<8x8x4xf32>
    %326 = vector.broadcast %316 : vector<1x1x4xf32> to vector<8x8x4xf32>
    %327 = arith.mulf %325, %326 : vector<8x8x4xf32>
    %328 = arith.addf %322, %327 : vector<8x8x4xf32>
    %329 = vector.shape_cast %328 : vector<8x8x4xf32> to vector<64x4xf32>
    %c336 = arith.constant 336 : index
    %c0_82 = arith.constant 0 : index
    %330 = vector.load %arg3[%c336, %c0_82] : memref<408x128xf32, #tpu.memory_space<vmem>>, vector<4x20xf32>
    %cst_83 = arith.constant dense<0.000000e+00> : vector<64x20xf32>
    %331 = tpu.matmul %329, %330, %cst_83 {dimension_numbers = #tpu.dot_dimension_numbers<[1], [0], [0], [1], [0, 0, 1, 1], [], []>} : vector<64x4xf32>, vector<4x20xf32>, vector<64x20xf32> -> vector<64x20xf32>
    %c344 = arith.constant 344 : index
    %c0_84 = arith.constant 0 : index
    %332 = vector.load %arg3[%c344, %c0_84] : memref<408x128xf32, #tpu.memory_space<vmem>>, vector<1x20xf32>
    %333 = vector.broadcast %332 : vector<1x20xf32> to vector<64x20xf32>
    %334 = arith.addf %331, %333 : vector<64x20xf32>
    %cst_85 = arith.constant 0.000000e+00 : f32
    %335 = vector.broadcast %cst_85 : f32 to vector<64x20xf32>
    %336 = arith.maximumf %334, %335 : vector<64x20xf32>
    %337 = vector.shape_cast %336 : vector<64x20xf32> to vector<8x8x20xf32>
    %338 = vector.shape_cast %337 : vector<8x8x20xf32> to vector<8x8x1x20xf32>
    %339 = vector.broadcast %338 : vector<8x8x1x20xf32> to vector<8x8x2x20xf32>
    %340 = arith.mulf %311, %339 : vector<8x8x2x20xf32>
    %341 = vector.shape_cast %340 : vector<8x8x2x20xf32> to vector<64x2x20xf32>
    %c352 = arith.constant 352 : index
    %c0_86 = arith.constant 0 : index
    %342 = vector.load %arg3[%c352, %c0_86] : memref<408x128xf32, #tpu.memory_space<vmem>>, vector<20x20xf32>
    %343 = vector.shape_cast %342 : vector<20x20xf32> to vector<1x20x20xf32>
    %344 = vector.shape_cast %343 : vector<1x20x20xf32> to vector<1x20x20xf32>
    %345 = vector.broadcast %344 : vector<1x20x20xf32> to vector<64x20x20xf32>
    "tpu.trace_start"() <{level = 10 : i32, message = "kbc,kcd->kbd"}> : () -> ()
    %cst_87 = arith.constant dense<0.000000e+00> : vector<64x2x20xf32>
    %346 = tpu.matmul %341, %345, %cst_87 {dimension_numbers = #tpu.dot_dimension_numbers<[2], [1], [1], [2], [0, 0, 0, 1, 1, 2], [0], [0]>} : vector<64x2x20xf32>, vector<64x20x20xf32>, vector<64x2x20xf32> -> vector<64x2x20xf32>
    "tpu.trace_stop"() : () -> ()
    %c376 = arith.constant 376 : index
    %c0_88 = arith.constant 0 : index
    %347 = vector.load %arg3[%c376, %c0_88] : memref<408x128xf32, #tpu.memory_space<vmem>>, vector<1x20xf32>
    %348 = vector.shape_cast %347 : vector<1x20xf32> to vector<1x1x20xf32>
    %349 = vector.broadcast %348 : vector<1x1x20xf32> to vector<64x2x20xf32>
    %350 = arith.addf %346, %349 : vector<64x2x20xf32>
    %cst_89 = arith.constant 0.000000e+00 : f32
    %351 = vector.broadcast %cst_89 : f32 to vector<64x2x20xf32>
    %352 = arith.maximumf %350, %351 : vector<64x2x20xf32>
    %c384 = arith.constant 384 : index
    %c0_90 = arith.constant 0 : index
    %353 = vector.load %arg3[%c384, %c0_90] : memref<408x128xf32, #tpu.memory_space<vmem>>, vector<1x20xf32>
    %354 = vector.shape_cast %353 : vector<1x20xf32> to vector<1x1x20xf32>
    %355 = vector.broadcast %354 : vector<1x1x20xf32> to vector<64x2x20xf32>
    %356 = arith.mulf %352, %355 : vector<64x2x20xf32>
    %cst_91 = arith.constant dense<0.000000e+00> : vector<64x2xf32>
    %357 = vector.multi_reduction <add>, %356, %cst_91 [2] : vector<64x2x20xf32> to vector<64x2xf32>
    %358 = vector.shape_cast %357 : vector<64x2xf32> to vector<8x8x2xf32>
    %c392 = arith.constant 392 : index
    %c0_92 = arith.constant 0 : index
    %359 = vector.load %arg3[%c392, %c0_92] : memref<408x128xf32, #tpu.memory_space<vmem>>, vector<1x1xf32>
    %360 = vector.shape_cast %359 : vector<1x1xf32> to vector<1x1x1xf32>
    %361 = vector.broadcast %360 : vector<1x1x1xf32> to vector<8x8x2xf32>
    %362 = arith.addf %358, %361 : vector<8x8x2xf32>
    %c400 = arith.constant 400 : index
    %c0_93 = arith.constant 0 : index
    %363 = vector.load %arg3[%c400, %c0_93] : memref<408x128xf32, #tpu.memory_space<vmem>>, vector<8x8xf32>
    %364 = vector.extract_strided_slice %362 {offsets = [0, 0, 0], sizes = [8, 1, 2], strides = [1, 1, 1]} : vector<8x8x2xf32> to vector<8x1x2xf32>
    %365 = vector.shape_cast %364 : vector<8x1x2xf32> to vector<8x2xf32>
    %366 = vector.extract_strided_slice %363 {offsets = [0, 0], sizes = [8, 1], strides = [1, 1]} : vector<8x8xf32> to vector<8x1xf32>
    %367 = vector.broadcast %366 : vector<8x1xf32> to vector<8x2xf32>
    %368 = arith.mulf %365, %367 : vector<8x2xf32>
    %369 = vector.extract_strided_slice %362 {offsets = [0, 1, 0], sizes = [8, 1, 2], strides = [1, 1, 1]} : vector<8x8x2xf32> to vector<8x1x2xf32>
    %370 = vector.shape_cast %369 : vector<8x1x2xf32> to vector<8x2xf32>
    %371 = vector.extract_strided_slice %363 {offsets = [0, 1], sizes = [8, 1], strides = [1, 1]} : vector<8x8xf32> to vector<8x1xf32>
    %372 = vector.broadcast %371 : vector<8x1xf32> to vector<8x2xf32>
    %373 = arith.mulf %370, %372 : vector<8x2xf32>
    %374 = arith.addf %368, %373 : vector<8x2xf32>
    %375 = vector.extract_strided_slice %362 {offsets = [0, 2, 0], sizes = [8, 1, 2], strides = [1, 1, 1]} : vector<8x8x2xf32> to vector<8x1x2xf32>
    %376 = vector.shape_cast %375 : vector<8x1x2xf32> to vector<8x2xf32>
    %377 = vector.extract_strided_slice %363 {offsets = [0, 2], sizes = [8, 1], strides = [1, 1]} : vector<8x8xf32> to vector<8x1xf32>
    %378 = vector.broadcast %377 : vector<8x1xf32> to vector<8x2xf32>
    %379 = arith.mulf %376, %378 : vector<8x2xf32>
    %380 = arith.addf %374, %379 : vector<8x2xf32>
    %381 = vector.extract_strided_slice %362 {offsets = [0, 3, 0], sizes = [8, 1, 2], strides = [1, 1, 1]} : vector<8x8x2xf32> to vector<8x1x2xf32>
    %382 = vector.shape_cast %381 : vector<8x1x2xf32> to vector<8x2xf32>
    %383 = vector.extract_strided_slice %363 {offsets = [0, 3], sizes = [8, 1], strides = [1, 1]} : vector<8x8xf32> to vector<8x1xf32>
    %384 = vector.broadcast %383 : vector<8x1xf32> to vector<8x2xf32>
    %385 = arith.mulf %382, %384 : vector<8x2xf32>
    %386 = arith.addf %380, %385 : vector<8x2xf32>
    %387 = vector.extract_strided_slice %362 {offsets = [0, 4, 0], sizes = [8, 1, 2], strides = [1, 1, 1]} : vector<8x8x2xf32> to vector<8x1x2xf32>
    %388 = vector.shape_cast %387 : vector<8x1x2xf32> to vector<8x2xf32>
    %389 = vector.extract_strided_slice %363 {offsets = [0, 4], sizes = [8, 1], strides = [1, 1]} : vector<8x8xf32> to vector<8x1xf32>
    %390 = vector.broadcast %389 : vector<8x1xf32> to vector<8x2xf32>
    %391 = arith.mulf %388, %390 : vector<8x2xf32>
    %392 = arith.addf %386, %391 : vector<8x2xf32>
    %393 = vector.extract_strided_slice %362 {offsets = [0, 5, 0], sizes = [8, 1, 2], strides = [1, 1, 1]} : vector<8x8x2xf32> to vector<8x1x2xf32>
    %394 = vector.shape_cast %393 : vector<8x1x2xf32> to vector<8x2xf32>
    %395 = vector.extract_strided_slice %363 {offsets = [0, 5], sizes = [8, 1], strides = [1, 1]} : vector<8x8xf32> to vector<8x1xf32>
    %396 = vector.broadcast %395 : vector<8x1xf32> to vector<8x2xf32>
    %397 = arith.mulf %394, %396 : vector<8x2xf32>
    %398 = arith.addf %392, %397 : vector<8x2xf32>
    %399 = vector.extract_strided_slice %362 {offsets = [0, 6, 0], sizes = [8, 1, 2], strides = [1, 1, 1]} : vector<8x8x2xf32> to vector<8x1x2xf32>
    %400 = vector.shape_cast %399 : vector<8x1x2xf32> to vector<8x2xf32>
    %401 = vector.extract_strided_slice %363 {offsets = [0, 6], sizes = [8, 1], strides = [1, 1]} : vector<8x8xf32> to vector<8x1xf32>
    %402 = vector.broadcast %401 : vector<8x1xf32> to vector<8x2xf32>
    %403 = arith.mulf %400, %402 : vector<8x2xf32>
    %404 = arith.addf %398, %403 : vector<8x2xf32>
    %405 = vector.extract_strided_slice %362 {offsets = [0, 7, 0], sizes = [8, 1, 2], strides = [1, 1, 1]} : vector<8x8x2xf32> to vector<8x1x2xf32>
    %406 = vector.shape_cast %405 : vector<8x1x2xf32> to vector<8x2xf32>
    %407 = vector.extract_strided_slice %363 {offsets = [0, 7], sizes = [8, 1], strides = [1, 1]} : vector<8x8xf32> to vector<8x1xf32>
    %408 = vector.broadcast %407 : vector<8x1xf32> to vector<8x2xf32>
    %409 = arith.mulf %406, %408 : vector<8x2xf32>
    %410 = arith.addf %404, %409 : vector<8x2xf32>
    %c0_94 = arith.constant 0 : index
    %c0_95 = arith.constant 0 : index
    %411 = vector.load %arg5[%c0_94, %c0_95] : memref<8x2xf32, #tpu.memory_space<vmem>>, vector<8x2xf32>
    tpu.vector_store %arg5[%c0_94, %c0_95], %410 {strides = array<i32>} : memref<8x2xf32, #tpu.memory_space<vmem>>, vector<8x2xf32>,
    return
  }
  func.func @transform_0(%arg0: i32) -> (i32, i32) {
    %c0_i32 = arith.constant 0 : i32
    %c0_i32_0 = arith.constant 0 : i32
    return %arg0, %c0_i32 : i32, i32
  }
  func.func @transform_1(%arg0: i32) -> (i32, i32, i32) {
    %c0_i32 = arith.constant 0 : i32
    %c0_i32_0 = arith.constant 0 : i32
    %c0_i32_1 = arith.constant 0 : i32
    return %arg0, %c0_i32, %c0_i32_0 : i32, i32, i32
  }
  func.func @transform_2(%arg0: i32) -> (i32, i32) {
    %c0_i32 = arith.constant 0 : i32
    %c0_i32_0 = arith.constant 0 : i32
    %c0_i32_1 = arith.constant 0 : i32
    return %c0_i32, %c0_i32_0 : i32, i32
  }
  func.func @transform_3(%arg0: i32) -> (i32, i32) {
    %c0_i32 = arith.constant 0 : i32
    %c0_i32_0 = arith.constant 0 : i32
    %c0_i32_1 = arith.constant 0 : i32
    return %c0_i32, %c0_i32_0 : i32, i32
  }
  func.func @transform_4(%arg0: i32) -> (i32, i32) {
    %c0_i32 = arith.constant 0 : i32
    %c0_i32_0 = arith.constant 0 : i32
    return %c0_i32, %arg0 : i32, i32
  }
}

</mosaic_0001>

<llo_original>
// kernel: tpu_custom_call.1
$region0: #{tpu_custom_call.1}
  #allocation0 [shape = 'u32[]', space=smem, size = 0x4, offset = 0x4, fixed_abs, tag = 'smem constant byte address 0x4 - core index']
  #allocation1 [shape = 'u32[144,128]{1,0:T(1,128)}', space=vmem, size = 0x12000, scoped, tag = 'internal scratch']
  %s0 = inlined_call_operand.hbm [shape: f32[2,16], index: 0, kind: input, shape index: {}]
  %s1 = inlined_call_operand.hbm [shape: f32[2,8,24], index: 1, kind: input, shape index: {}]
  %s2 = inlined_call_operand.hbm [shape: f32[408,128], index: 2, kind: input, shape index: {}]
  %s3 = inlined_call_operand.hbm [shape: f32[176,384], index: 3, kind: input, shape index: {}]
  %s4 = inlined_call_operand.vmem [shape: f32[8,2], index: 4, kind: output, shape index: {}]
  %s5 = sld [smem:[#allocation0]]
  $region42: #{tpu_custom_call.1} parent=0
    _
  %s7 = ssub.s32 1, %s5
  %s8 = scalar_select 0, %s7, %s5
  $region1: #{tpu_custom_call.1} parent=0
    #allocation2 [shape = 'u8[1024]{0}', space=vmem, size = 0x400, scoped, tag = 'input window, operand 0, single buffered']
    #allocation3 [shape = 's32[1]{0}', space=sflag, size = 0x4, scoped, tag = 'scoped memory for tpu_custom_call.1']
    #allocation4 [shape = 'u8[8192]{0}', space=vmem, size = 0x2000, scoped, tag = 'input window, operand 1, single buffered']
    #allocation5 [shape = 's32[1]{0}', space=sflag, size = 0x4, scoped, tag = 'scoped memory for tpu_custom_call.1']
    #allocation6 [shape = 'u8[208896]{0}', space=vmem, size = 0x33000, scoped, tag = 'input window, operand 2, single buffered']
    #allocation7 [shape = 'u8[270336]{0}', space=vmem, size = 0x42000, scoped, tag = 'input window, operand 3, single buffered']
    #allocation8 [shape = 's32[1]{0}', space=sflag, size = 0x4, scoped, tag = 'scoped memory for tpu_custom_call.1']
    %9 = vsyncpa [#allocation3], 0
    %10 = vsyncpa [#allocation5], 0
    %11 = vsyncpa [#allocation8], 0
    // Predicated region
    $region2: #{tpu_custom_call.1} parent=1 // pred_check
      _
    $region3: #{tpu_custom_call.1} parent=1 // pred_check_branch
      %13 = sbr.rel (0) target = $region5
    $region4: #{tpu_custom_call.1} parent=1 // pred_region
      %s15 = ssub.s32 32, 32
      %16 = vsyncadd [#allocation3], %s15
      %s18 = sshll.u32 [#allocation2], 4
      %s19 = int_to_ptr.vmem [resolvable:$true] %s18
      %21 = dma.hbm_to_vmem [thread:$0]  %s0, 32, %s19, [#allocation3]
    $region5: #{tpu_custom_call.1} parent=1 // pred_fallthru
      _
    // Predicated region
    $region6: #{tpu_custom_call.1} parent=1 // pred_check
      _
    $region7: #{tpu_custom_call.1} parent=1 // pred_check_branch
      %23 = sbr.rel (0) target = $region9
    $region8: #{tpu_custom_call.1} parent=1 // pred_region
      %s25 = ssub.s32 256, 256
      %26 = vsyncadd [#allocation5], %s25
      %s27 = sshll.u32 [#allocation4], 4
      %s28 = int_to_ptr.vmem [resolvable:$true] %s27
      %33 = dma.hbm_to_vmem [thread:$0]  %s1, 256, %s28, [#allocation5], 128, 128, 8
    $region9: #{tpu_custom_call.1} parent=1 // pred_fallthru
      _
    // Predicated region
    $region10: #{tpu_custom_call.1} parent=1 // pred_check
      _
    $region11: #{tpu_custom_call.1} parent=1 // pred_check_branch
      %35 = sbr.rel (0) target = $region13
    $region12: #{tpu_custom_call.1} parent=1 // pred_region
      %s37 = ssub.s32 6528, 6528
      %38 = vsyncadd [#allocation5], %s37
      %s39 = sshll.u32 [#allocation6], 4
      %s40 = int_to_ptr.vmem [resolvable:$true] %s39
      %45 = dma.hbm_to_vmem [thread:$0]  %s2, 6528, %s40, [#allocation5], 128, 128, 8
    $region13: #{tpu_custom_call.1} parent=1 // pred_fallthru
      _
    // Predicated region
    $region14: #{tpu_custom_call.1} parent=1 // pred_check
      _
    $region15: #{tpu_custom_call.1} parent=1 // pred_check_branch
      %47 = sbr.rel (0) target = $region17
    $region16: #{tpu_custom_call.1} parent=1 // pred_region
      %s49 = ssub.s32 8448, 8448
      %50 = vsyncadd [#allocation8], %s49
      %s51 = sshll.u32 [#allocation7], 4
      %s52 = int_to_ptr.vmem [resolvable:$true] %s51
      %57 = dma.hbm_to_vmem [thread:$0]  %s3, 8448, %s52, [#allocation8], 384, 384, 24
    $region17: #{tpu_custom_call.1} parent=1 // pred_fallthru
      _
    // Predicated region
    $region18: #{tpu_custom_call.1} parent=1 // pred_check
      _
    $region19: #{tpu_custom_call.1} parent=1 // pred_check_branch
      %59 = sbr.rel (0) target = $region21
    $region20: #{tpu_custom_call.1} parent=1 // pred_region
      %60 = dma.done [#allocation3], 32
    $region21: #{tpu_custom_call.1} parent=1 // pred_fallthru
      _
    // Predicated region
    $region22: #{tpu_custom_call.1} parent=1 // pred_check
      _
    $region23: #{tpu_custom_call.1} parent=1 // pred_check_branch
      %62 = sbr.rel (0) target = $region25
    $region24: #{tpu_custom_call.1} parent=1 // pred_region
      %63 = dma.done [#allocation5], 256
    $region25: #{tpu_custom_call.1} parent=1 // pred_fallthru
      _
    // Predicated region
    $region26: #{tpu_custom_call.1} parent=1 // pred_check
      _
    $region27: #{tpu_custom_call.1} parent=1 // pred_check_branch
      %65 = sbr.rel (0) target = $region29
    $region28: #{tpu_custom_call.1} parent=1 // pred_region
      %66 = dma.done [#allocation5], 6528
    $region29: #{tpu_custom_call.1} parent=1 // pred_fallthru
      _
    // Predicated region
    $region30: #{tpu_custom_call.1} parent=1 // pred_check
      _
    $region31: #{tpu_custom_call.1} parent=1 // pred_check_branch
      %68 = sbr.rel (0) target = $region33
    $region32: #{tpu_custom_call.1} parent=1 // pred_region
      %69 = dma.done [#allocation8], 8448
    $region33: #{tpu_custom_call.1} parent=1 // pred_fallthru
      _
    %v70 = vld [vmem:[#allocation2] sm:$0x3]
    %v71 = vld [vmem:[#allocation6] sm:$0xff]
    %v72 = vld [vmem:[#allocation6 + $0x8] sm:$0xff]
    %v73 = vld [vmem:[#allocation6 + $0x10] sm:$0x1]
    %v74 = vlaneseq
    %v75 = vshrl.u32 %v74, 7
    %v76 = vsub.s32 0, %v75
    %v77 = vrot.slane %v73, %v76
    %vm78 = vcmask 130048
    %v80 = vsel %vm78, %v70, 0
    %82 = vmatprep.subr.mxu0 0.0
    %83 = vmatpush1.msra.mxu0 %v71
    %84 = vmatprep.subr.mxu0 0.0
    %85 = vmatpush1.msra.mxu0 %v72
    %86 = vmatprep.subr.mxu0 0.0
    %87 = vmatpush1.msra.mxu0 0.0
    %88 = vmatprep.subr.mxu0 0.0
    %89 = vmatpush1.msra.mxu0 0.0
    %90 = vmatprep.subr.mxu0 0.0
    %91 = vmatpush1.msra.mxu0 0.0
    %92 = vmatprep.subr.mxu0 0.0
    %93 = vmatpush1.msra.mxu0 0.0
    %94 = vmatprep.subr.mxu0 0.0
    %95 = vmatpush1.msra.mxu0 0.0
    %96 = vmatprep.subr.mxu0 0.0
    %97 = vmatpush1.msra.mxu0 0.0
    %98 = vmatprep.subr.mxu0 0.0
    %99 = vmatpush1.msra.mxu0 0.0
    %100 = vmatprep.subr.mxu0 0.0
    %101 = vmatpush1.msra.mxu0 0.0
    %102 = vmatprep.subr.mxu0 0.0
    %103 = vmatpush1.msra.mxu0 0.0
    %104 = vmatprep.subr.mxu0 0.0
    %105 = vmatpush1.msra.mxu0 0.0
    %106 = vmatprep.subr.mxu0 0.0
    %107 = vmatpush1.msra.mxu0 0.0
    %108 = vmatprep.subr.mxu0 0.0
    %109 = vmatpush1.msra.mxu0 0.0
    %110 = vmatprep.subr.mxu0 0.0
    %111 = vmatpush1.msra.mxu0 0.0
    %112 = vmatprep.subr.mxu0 0.0
    %113 = vmatpush1.msra.mxu0 0.0
    %114 = vmatprep.subr.mxu0 0.0
    %115 = vmatpush1.msra.mxu0 0.0
    %116 = vmatprep.subr.mxu0 0.0
    %117 = vmatpush1.msra.mxu0 0.0
    %118 = vmatprep.subr.mxu0 0.0
    %119 = vmatpush1.msra.mxu0 0.0
    %120 = vmatprep.subr.mxu0 0.0
    %121 = vmatpush1.msra.mxu0 0.0
    %122 = vmatprep.subr.mxu0 0.0
    %123 = vmatpush1.msra.mxu0 0.0
    %124 = vmatprep.subr.mxu0 0.0
    %125 = vmatpush1.msra.mxu0 0.0
    %126 = vmatprep.subr.mxu0 0.0
    %127 = vmatpush1.msra.mxu0 0.0
    %128 = vmatprep.subr.mxu0 0.0
    %129 = vmatpush1.msra.mxu0 0.0
    %130 = vmatprep.subr.mxu0 0.0
    %131 = vmatpush1.msra.mxu0 0.0
    %132 = vmatprep.subr.mxu0 0.0
    %133 = vmatpush1.msra.mxu0 0.0
    %134 = vmatprep.subr.mxu0 0.0
    %135 = vmatpush1.msra.mxu0 0.0
    %136 = vmatprep.subr.mxu0 0.0
    %137 = vmatpush1.msra.mxu0 0.0
    %138 = vmatprep.subr.mxu0 0.0
    %139 = vmatpush1.msra.mxu0 0.0
    %140 = vmatprep.subr.mxu0 0.0
    %141 = vmatpush1.msra.mxu0 0.0
    %142 = vmatprep.subr.mxu0 0.0
    %143 = vmatpush1.msra.mxu0 0.0
    %144 = vmatprep.subr.mxu0 0.0
    %145 = vmatpush1.msra.mxu0 0.0
    %146 = vmatprep.mubr.f32.mxu0 0.0
    %147 = vmatmul.mubr.f32.gmra.mrb[0].mxu0 %v80
    %v148 = vpop.f32.mrb[0].mxu0
    %v149 = vadd.f32 %v77, %v148
    %v150 = vpop.f32.mrb[0].mxu0
    %151 = vdwg.mxu0
    %v152 = vxor.u32 %v149, 2147483648
    %v153 = vmul.f32 %v152, 1.442695
    %v154 = vpow.pop %v153
    %v155 = vadd.f32 %v154, 1.0
    %v156 = vrcp.pop %v155
    %v157 = vmul.f32 1.0, %v156
    %v158 = vld [vmem:[#allocation6 + $0x18] sm:$0xff]
    %v159 = vld [vmem:[#allocation6 + $0x20] sm:$0xff]
    %v160 = vld [vmem:[#allocation6 + $0x28] sm:$0x1]
    %v161 = vlaneseq
    %v162 = vshrl.u32 %v161, 7
    %v163 = vsub.s32 0, %v162
    %v164 = vrot.slane %v160, %v163
    %165 = vmatprep.subr.mxu0 0.0
    %166 = vmatpush1.msra.mxu0 %v158
    %167 = vmatprep.subr.mxu0 0.0
    %168 = vmatpush1.msra.mxu0 %v159
    %169 = vmatprep.subr.mxu0 0.0
    %170 = vmatpush1.msra.mxu0 0.0
    %171 = vmatprep.subr.mxu0 0.0
    %172 = vmatpush1.msra.mxu0 0.0
    %173 = vmatprep.subr.mxu0 0.0
    %174 = vmatpush1.msra.mxu0 0.0
    %175 = vmatprep.subr.mxu0 0.0
    %176 = vmatpush1.msra.mxu0 0.0
    %177 = vmatprep.subr.mxu0 0.0
    %178 = vmatpush1.msra.mxu0 0.0
    %179 = vmatprep.subr.mxu0 0.0
    %180 = vmatpush1.msra.mxu0 0.0
    %181 = vmatprep.subr.mxu0 0.0
    %182 = vmatpush1.msra.mxu0 0.0
    %183 = vmatprep.subr.mxu0 0.0
    %184 = vmatpush1.msra.mxu0 0.0
    %185 = vmatprep.subr.mxu0 0.0
    %186 = vmatpush1.msra.mxu0 0.0
    %187 = vmatprep.subr.mxu0 0.0
    %188 = vmatpush1.msra.mxu0 0.0
    %189 = vmatprep.subr.mxu0 0.0
    %190 = vmatpush1.msra.mxu0 0.0
    %191 = vmatprep.subr.mxu0 0.0
    %192 = vmatpush1.msra.mxu0 0.0
    %193 = vmatprep.subr.mxu0 0.0
    %194 = vmatpush1.msra.mxu0 0.0
    %195 = vmatprep.subr.mxu0 0.0
    %196 = vmatpush1.msra.mxu0 0.0
    %197 = vmatprep.subr.mxu0 0.0
    %198 = vmatpush1.msra.mxu0 0.0
    %199 = vmatprep.subr.mxu0 0.0
    %200 = vmatpush1.msra.mxu0 0.0
    %201 = vmatprep.subr.mxu0 0.0
    %202 = vmatpush1.msra.mxu0 0.0
    %203 = vmatprep.subr.mxu0 0.0
    %204 = vmatpush1.msra.mxu0 0.0
    %205 = vmatprep.subr.mxu0 0.0
    %206 = vmatpush1.msra.mxu0 0.0
    %207 = vmatprep.subr.mxu0 0.0
    %208 = vmatpush1.msra.mxu0 0.0
    %209 = vmatprep.subr.mxu0 0.0
    %210 = vmatpush1.msra.mxu0 0.0
    %211 = vmatprep.subr.mxu0 0.0
    %212 = vmatpush1.msra.mxu0 0.0
    %213 = vmatprep.subr.mxu0 0.0
    %214 = vmatpush1.msra.mxu0 0.0
    %215 = vmatprep.subr.mxu0 0.0
    %216 = vmatpush1.msra.mxu0 0.0
    %217 = vmatprep.subr.mxu0 0.0
    %218 = vmatpush1.msra.mxu0 0.0
    %219 = vmatprep.subr.mxu0 0.0
    %220 = vmatpush1.msra.mxu0 0.0
    %221 = vmatprep.subr.mxu0 0.0
    %222 = vmatpush1.msra.mxu0 0.0
    %223 = vmatprep.subr.mxu0 0.0
    %224 = vmatpush1.msra.mxu0 0.0
    %225 = vmatprep.subr.mxu0 0.0
    %226 = vmatpush1.msra.mxu0 0.0
    %227 = vmatprep.subr.mxu0 0.0
    %228 = vmatpush1.msra.mxu0 0.0
    %229 = vmatprep.mubr.f32.mxu0 0.0
    %230 = vmatmul.mubr.f32.gmra.mrb[0].mxu0 %v80
    %v231 = vpop.f32.mrb[0].mxu0
    %v232 = vadd.f32 %v164, %v231
    %v233 = vpop.f32.mrb[0].mxu0
    %234 = vdwg.mxu0
    %v235 = vxor.u32 %v232, 2147483648
    %v236 = vmul.f32 %v235, 1.442695
    %v237 = vpow.pop %v236
    %v238 = vadd.f32 %v237, 1.0
    %v239 = vrcp.pop %v238
    %v240 = vmul.f32 1.0, %v239
    %v241 = vld [vmem:[#allocation4] sm:$0xff]
    %v242 = vld [vmem:[#allocation4 + $0x8] sm:$0xff]
    %v243 = vld [vmem:[#allocation6 + $0x30] sm:$0xff]
    %v244 = vld [vmem:[#allocation6 + $0x38] sm:$0xff]
    %v245 = vld [vmem:[#allocation6 + $0x40] sm:$0xff]
    %v246 = vld [vmem:[#allocation6 + $0x48] sm:$0x1]
    %v247 = vlaneseq
    %v248 = vshrl.u32 %v247, 7
    %v249 = vsub.s32 0, %v248
    %v250 = vrot.slane %v246, %v249
    %vm251 = vcmask 195584
    %v253 = vsel %vm251, %v241, 0
    %v256 = vsel %vm251, %v242, 0
    %258 = vmatprep.subr.mxu0 0.0
    %259 = vmatpush1.msra.mxu0 %v243
    %260 = vmatprep.subr.mxu0 0.0
    %261 = vmatpush1.msra.mxu0 %v244
    %262 = vmatprep.subr.mxu0 0.0
    %263 = vmatpush1.msra.mxu0 %v245
    %264 = vmatprep.subr.mxu0 0.0
    %265 = vmatpush1.msra.mxu0 0.0
    %266 = vmatprep.subr.mxu0 0.0
    %267 = vmatpush1.msra.mxu0 0.0
    %268 = vmatprep.subr.mxu0 0.0
    %269 = vmatpush1.msra.mxu0 0.0
    %270 = vmatprep.subr.mxu0 0.0
    %271 = vmatpush1.msra.mxu0 0.0
    %272 = vmatprep.subr.mxu0 0.0
    %273 = vmatpush1.msra.mxu0 0.0
    %274 = vmatprep.subr.mxu0 0.0
    %275 = vmatpush1.msra.mxu0 0.0
    %276 = vmatprep.subr.mxu0 0.0
    %277 = vmatpush1.msra.mxu0 0.0
    %278 = vmatprep.subr.mxu0 0.0
    %279 = vmatpush1.msra.mxu0 0.0
    %280 = vmatprep.subr.mxu0 0.0
    %281 = vmatpush1.msra.mxu0 0.0
    %282 = vmatprep.subr.mxu0 0.0
    %283 = vmatpush1.msra.mxu0 0.0
    %284 = vmatprep.subr.mxu0 0.0
    %285 = vmatpush1.msra.mxu0 0.0
    %286 = vmatprep.subr.mxu0 0.0
    %287 = vmatpush1.msra.mxu0 0.0
    %288 = vmatprep.subr.mxu0 0.0
    %289 = vmatpush1.msra.mxu0 0.0
    %290 = vmatprep.subr.mxu0 0.0
    %291 = vmatpush1.msra.mxu0 0.0
    %292 = vmatprep.subr.mxu0 0.0
    %293 = vmatpush1.msra.mxu0 0.0
    %294 = vmatprep.subr.mxu0 0.0
    %295 = vmatpush1.msra.mxu0 0.0
    %296 = vmatprep.subr.mxu0 0.0
    %297 = vmatpush1.msra.mxu0 0.0
    %298 = vmatprep.subr.mxu0 0.0
    %299 = vmatpush1.msra.mxu0 0.0
    %300 = vmatprep.subr.mxu0 0.0
    %301 = vmatpush1.msra.mxu0 0.0
    %302 = vmatprep.subr.mxu0 0.0
    %303 = vmatpush1.msra.mxu0 0.0
    %304 = vmatprep.subr.mxu0 0.0
    %305 = vmatpush1.msra.mxu0 0.0
    %306 = vmatprep.subr.mxu0 0.0
    %307 = vmatpush1.msra.mxu0 0.0
    %308 = vmatprep.subr.mxu0 0.0
    %309 = vmatpush1.msra.mxu0 0.0
    %310 = vmatprep.subr.mxu0 0.0
    %311 = vmatpush1.msra.mxu0 0.0
    %312 = vmatprep.subr.mxu0 0.0
    %313 = vmatpush1.msra.mxu0 0.0
    %314 = vmatprep.subr.mxu0 0.0
    %315 = vmatpush1.msra.mxu0 0.0
    %316 = vmatprep.subr.mxu0 0.0
    %317 = vmatpush1.msra.mxu0 0.0
    %318 = vmatprep.subr.mxu0 0.0
    %319 = vmatpush1.msra.mxu0 0.0
    %320 = vmatprep.subr.mxu0 0.0
    %321 = vmatpush1.msra.mxu0 0.0
    %322 = vmatprep.mubr.f32.mxu0 0.0
    %323 = vmatmul.mubr.f32.gmra.mrb[0].mxu0 %v253
    %v324 = vpop.f32.mrb[0].mxu0
    %v325 = vadd.f32 %v250, %v324
    %v326 = vpop.f32.mrb[0].mxu0
    %327 = vmatprep.mubr.f32.mxu0 0.0
    %328 = vmatmul.mubr.f32.gmra.mrb[0].mxu0 %v256
    %v329 = vpop.f32.mrb[0].mxu0
    %v330 = vadd.f32 %v250, %v329
    %v331 = vpop.f32.mrb[0].mxu0
    %332 = vdwg.mxu0
    %v333 = vxor.u32 %v325, 2147483648
    %v334 = vxor.u32 %v330, 2147483648
    %v335 = vmul.f32 %v333, 1.442695
    %v336 = vpow.pop %v335
    %v337 = vmul.f32 %v334, 1.442695
    %v338 = vpow.pop %v337
    %v339 = vadd.f32 %v336, 1.0
    %v340 = vadd.f32 %v338, 1.0
    %v341 = vrcp.pop %v339
    %v342 = vmul.f32 1.0, %v341
    %v343 = vrcp.pop %v340
    %v344 = vmul.f32 1.0, %v343
    %v345 = vld [vmem:[#allocation7] sm:$0xff]
    %v346 = vld [vmem:[#allocation7 + $0x8] sm:$0xff]
    %v347 = vld [vmem:[#allocation7 + $0x10] sm:$0xff]
    %v348 = vld [vmem:[#allocation7 + $0x18] sm:$0xff]
    %v349 = vld [vmem:[#allocation7 + $0x20] sm:$0xff]
    %v350 = vld [vmem:[#allocation7 + $0x28] sm:$0xff]
    %v351 = vld [vmem:[#allocation7 + $0x30] sm:$0xff]
    %v352 = vld [vmem:[#allocation7 + $0x38] sm:$0xff]
    %v353 = vld [vmem:[#allocation7 + $0x40] sm:$0xff]
    %v354 = vld [vmem:[#allocation7 + $0x48] sm:$0xff]
    %v355 = vld [vmem:[#allocation7 + $0x50] sm:$0xff]
    %v356 = vld [vmem:[#allocation7 + $0x58] sm:$0xff]
    %s357 = scalar_lea.vmem [#allocation7], 96
    %v358 = vld [vmem:[%s357] ss:$8 sm:$0x7]
    %v360 = vlaneseq
    %v361 = vshrl.u32 %v360, 7
    %v362 = vsub.s32 0, %v361
    %v363 = vrot.slane %v358, %v362
    %v364 = vlaneseq
    %v365 = vshrl.u32 %v364, 7
    %v366 = vsub.s32 1, %v365
    %v367 = vrot.slane %v358, %v366
    %v368 = vlaneseq
    %v369 = vshrl.u32 %v368, 7
    %v370 = vsub.s32 2, %v369
    %v371 = vrot.slane %v358, %v370
    %vm375 = vcmask 261120
    %v377 = vsel %vm375, %v342, 0
    %v380 = vsel %vm375, %v344, 0
    %382 = vmatprep.subr.mxu0 %v346
    %383 = vmatpush1.msra.mxu0 %v345
    %384 = vmatprep.subr.mxu0 %v349
    %385 = vmatpush1.msra.mxu0 %v348
    %386 = vmatprep.subr.mxu0 %v352
    %387 = vmatpush1.msra.mxu0 %v351
    %388 = vmatprep.subr.mxu0 %v355
    %389 = vmatpush1.msra.mxu0 %v354
    %390 = vmatprep.subr.mxu0 0.0
    %391 = vmatpush1.msra.mxu0 0.0
    %392 = vmatprep.subr.mxu0 0.0
    %393 = vmatpush1.msra.mxu0 0.0
    %394 = vmatprep.subr.mxu0 0.0
    %395 = vmatpush1.msra.mxu0 0.0
    %396 = vmatprep.subr.mxu0 0.0
    %397 = vmatpush1.msra.mxu0 0.0
    %398 = vmatprep.subr.mxu0 0.0
    %399 = vmatpush1.msra.mxu0 0.0
    %400 = vmatprep.subr.mxu0 0.0
    %401 = vmatpush1.msra.mxu0 0.0
    %402 = vmatprep.subr.mxu0 0.0
    %403 = vmatpush1.msra.mxu0 0.0
    %404 = vmatprep.subr.mxu0 0.0
    %405 = vmatpush1.msra.mxu0 0.0
    %406 = vmatprep.subr.mxu0 0.0
    %407 = vmatpush1.msra.mxu0 0.0
    %408 = vmatprep.subr.mxu0 0.0
    %409 = vmatpush1.msra.mxu0 0.0
    %410 = vmatprep.subr.mxu0 0.0
    %411 = vmatpush1.msra.mxu0 0.0
    %412 = vmatprep.subr.mxu0 0.0
    %413 = vmatpush1.msra.mxu0 0.0
    %414 = vmatprep.subr.mxu0 0.0
    %415 = vmatpush1.msra.mxu0 0.0
    %416 = vmatprep.subr.mxu0 0.0
    %417 = vmatpush1.msra.mxu0 0.0
    %418 = vmatprep.subr.mxu0 0.0
    %419 = vmatpush1.msra.mxu0 0.0
    %420 = vmatprep.subr.mxu0 0.0
    %421 = vmatpush1.msra.mxu0 0.0
    %422 = vmatprep.subr.mxu0 0.0
    %423 = vmatpush1.msra.mxu0 0.0
    %424 = vmatprep.subr.mxu0 0.0
    %425 = vmatpush1.msra.mxu0 0.0
    %426 = vmatprep.subr.mxu0 0.0
    %427 = vmatpush1.msra.mxu0 0.0
    %428 = vmatprep.subr.mxu0 0.0
    %429 = vmatpush1.msra.mxu0 0.0
    %430 = vmatprep.subr.mxu0 0.0
    %431 = vmatpush1.msra.mxu0 0.0
    %432 = vmatprep.subr.mxu0 0.0
    %433 = vmatpush1.msra.mxu0 0.0
    %434 = vmatprep.subr.mxu0 0.0
    %435 = vmatpush1.msra.mxu0 0.0
    %436 = vmatprep.subr.mxu0 0.0
    %437 = vmatpush1.msra.mxu0 0.0
    %438 = vmatprep.subr.mxu0 0.0
    %439 = vmatpush1.msra.mxu0 0.0
    %440 = vmatprep.subr.mxu0 0.0
    %441 = vmatpush1.msra.mxu0 0.0
    %442 = vmatprep.subr.mxu0 0.0
    %443 = vmatpush1.msra.mxu0 0.0
    %444 = vmatprep.subr.mxu0 0.0
    %445 = vmatpush1.msra.mxu0 0.0
    %446 = vmatprep.mubr.f32.mxu0 0.0
    %447 = vmatmul.mubr.f32.gmra.mrb[0].mxu0 %v377
    %v448 = vpop.f32.mrb[0].mxu0
    %v449 = vadd.f32 %v363, %v448
    %v450 = vpop.f32.mrb[0].mxu0
    %v451 = vadd.f32 %v367, %v450
    %452 = vmatprep.mubr.f32.mxu0 0.0
    %453 = vmatmul.mubr.f32.gmra.mrb[0].mxu0 %v380
    %v454 = vpop.f32.mrb[0].mxu0
    %v455 = vadd.f32 %v363, %v454
    %v456 = vpop.f32.mrb[0].mxu0
    %v457 = vadd.f32 %v367, %v456
    %458 = vdwg.mxu0
    %459 = vmatprep.subr.mxu0 0.0
    %460 = vmatpush1.msra.mxu0 %v347
    %461 = vmatprep.subr.mxu0 0.0
    %462 = vmatpush1.msra.mxu0 %v350
    %463 = vmatprep.subr.mxu0 0.0
    %464 = vmatpush1.msra.mxu0 %v353
    %465 = vmatprep.subr.mxu0 0.0
    %466 = vmatpush1.msra.mxu0 %v356
    %467 = vmatprep.subr.mxu0 0.0
    %468 = vmatpush1.msra.mxu0 0.0
    %469 = vmatprep.subr.mxu0 0.0
    %470 = vmatpush1.msra.mxu0 0.0
    %471 = vmatprep.subr.mxu0 0.0
    %472 = vmatpush1.msra.mxu0 0.0
    %473 = vmatprep.subr.mxu0 0.0
    %474 = vmatpush1.msra.mxu0 0.0
    %475 = vmatprep.subr.mxu0 0.0
    %476 = vmatpush1.msra.mxu0 0.0
    %477 = vmatprep.subr.mxu0 0.0
    %478 = vmatpush1.msra.mxu0 0.0
    %479 = vmatprep.subr.mxu0 0.0
    %480 = vmatpush1.msra.mxu0 0.0
    %481 = vmatprep.subr.mxu0 0.0
    %482 = vmatpush1.msra.mxu0 0.0
    %483 = vmatprep.subr.mxu0 0.0
    %484 = vmatpush1.msra.mxu0 0.0
    %485 = vmatprep.subr.mxu0 0.0
    %486 = vmatpush1.msra.mxu0 0.0
    %487 = vmatprep.subr.mxu0 0.0
    %488 = vmatpush1.msra.mxu0 0.0
    %489 = vmatprep.subr.mxu0 0.0
    %490 = vmatpush1.msra.mxu0 0.0
    %491 = vmatprep.subr.mxu0 0.0
    %492 = vmatpush1.msra.mxu0 0.0
    %493 = vmatprep.subr.mxu0 0.0
    %494 = vmatpush1.msra.mxu0 0.0
    %495 = vmatprep.subr.mxu0 0.0
    %496 = vmatpush1.msra.mxu0 0.0
    %497 = vmatprep.subr.mxu0 0.0
    %498 = vmatpush1.msra.mxu0 0.0
    %499 = vmatprep.subr.mxu0 0.0
    %500 = vmatpush1.msra.mxu0 0.0
    %501 = vmatprep.subr.mxu0 0.0
    %502 = vmatpush1.msra.mxu0 0.0
    %503 = vmatprep.subr.mxu0 0.0
    %504 = vmatpush1.msra.mxu0 0.0
    %505 = vmatprep.subr.mxu0 0.0
    %506 = vmatpush1.msra.mxu0 0.0
    %507 = vmatprep.subr.mxu0 0.0
    %508 = vmatpush1.msra.mxu0 0.0
    %509 = vmatprep.subr.mxu0 0.0
    %510 = vmatpush1.msra.mxu0 0.0
    %511 = vmatprep.subr.mxu0 0.0
    %512 = vmatpush1.msra.mxu0 0.0
    %513 = vmatprep.subr.mxu0 0.0
    %514 = vmatpush1.msra.mxu0 0.0
    %515 = vmatprep.subr.mxu0 0.0
    %516 = vmatpush1.msra.mxu0 0.0
    %517 = vmatprep.subr.mxu0 0.0
    %518 = vmatpush1.msra.mxu0 0.0
    %519 = vmatprep.subr.mxu0 0.0
    %520 = vmatpush1.msra.mxu0 0.0
    %521 = vmatprep.subr.mxu0 0.0
    %522 = vmatpush1.msra.mxu0 0.0
    %523 = vmatprep.mubr.f32.mxu0 0.0
    %524 = vmatmul.mubr.f32.gmra.mrb[0].mxu0 %v377
    %v525 = vpop.f32.mrb[0].mxu0
    %v526 = vadd.f32 %v371, %v525
    %v527 = vpop.f32.mrb[0].mxu0
    %528 = vmatprep.mubr.f32.mxu0 0.0
    %529 = vmatmul.mubr.f32.gmra.mrb[0].mxu0 %v380
    %v530 = vpop.f32.mrb[0].mxu0
    %v531 = vadd.f32 %v371, %v530
    %v532 = vpop.f32.mrb[0].mxu0
    %533 = vdwg.mxu0
    %v534 = vld [vmem:[#allocation7 + $0x78] sm:$0xff]
    %v535 = vld [vmem:[#allocation7 + $0x80] sm:$0xff]
    %v536 = vld [vmem:[#allocation7 + $0x88] sm:$0xff]
    %v537 = vld [vmem:[#allocation7 + $0x90] sm:$0xff]
    %v538 = vld [vmem:[#allocation7 + $0x98] sm:$0xff]
    %v539 = vld [vmem:[#allocation7 + $0xa0] sm:$0xff]
    %v540 = vld [vmem:[#allocation7 + $0xa8] sm:$0xff]
    %v541 = vld [vmem:[#allocation7 + $0xb0] sm:$0xff]
    %v542 = vld [vmem:[#allocation7 + $0xb8] sm:$0xff]
    %v543 = vld [vmem:[#allocation7 + $0xc0] sm:$0xff]
    %v544 = vld [vmem:[#allocation7 + $0xc8] sm:$0xff]
    %v545 = vld [vmem:[#allocation7 + $0xd0] sm:$0xff]
    %v546 = vld [vmem:[#allocation7 + $0xd8] sm:$0xff]
    %v547 = vld [vmem:[#allocation7 + $0xe0] sm:$0xff]
    %v548 = vld [vmem:[#allocation7 + $0xe8] sm:$0xff]
    %v549 = vld [vmem:[#allocation7 + $0xf0] sm:$0xff]
    %v550 = vld [vmem:[#allocation7 + $0xf8] sm:$0xff]
    %v551 = vld [vmem:[#allocation7 + $0x100] sm:$0xff]
    %v552 = vld [vmem:[#allocation7 + $0x108] sm:$0xff]
    %v553 = vld [vmem:[#allocation7 + $0x110] sm:$0xff]
    %v554 = vld [vmem:[#allocation7 + $0x118] sm:$0xff]
    %v555 = vld [vmem:[#allocation7 + $0x120] sm:$0xff]
    %v556 = vld [vmem:[#allocation7 + $0x128] sm:$0xff]
    %v557 = vld [vmem:[#allocation7 + $0x130] sm:$0xff]
    %v558 = vld [vmem:[#allocation7 + $0x138] sm:$0xff]
    %v559 = vld [vmem:[#allocation7 + $0x140] sm:$0xff]
    %v560 = vld [vmem:[#allocation7 + $0x148] sm:$0xff]
    %v561 = vld [vmem:[#allocation7 + $0x150] sm:$0xff]
    %v562 = vld [vmem:[#allocation7 + $0x158] sm:$0xff]
    %v563 = vld [vmem:[#allocation7 + $0x160] sm:$0xff]
    %v564 = vld [vmem:[#allocation7 + $0x168] sm:$0xff]
    %v565 = vld [vmem:[#allocation7 + $0x170] sm:$0xff]
    %v566 = vld [vmem:[#allocation7 + $0x178] sm:$0xff]
    %v567 = vld [vmem:[#allocation7 + $0x180] sm:$0xff]
    %v568 = vld [vmem:[#allocation7 + $0x188] sm:$0xff]
    %v569 = vld [vmem:[#allocation7 + $0x190] sm:$0xff]
    %v570 = vld [vmem:[#allocation7 + $0x198] sm:$0xff]
    %v571 = vld [vmem:[#allocation7 + $0x1a0] sm:$0xff]
    %v572 = vld [vmem:[#allocation7 + $0x1a8] sm:$0xff]
    %v573 = vld [vmem:[#allocation7 + $0x1b0] sm:$0xff]
    %v574 = vld [vmem:[#allocation7 + $0x1b8] sm:$0xff]
    %v575 = vld [vmem:[#allocation7 + $0x1c0] sm:$0xff]
    %v576 = vld [vmem:[#allocation7 + $0x1c8] sm:$0xff]
    %v577 = vld [vmem:[#allocation7 + $0x1d0] sm:$0xff]
    %v578 = vld [vmem:[#allocation7 + $0x1d8] sm:$0xff]
    %v579 = vld [vmem:[#allocation7 + $0x1e0] sm:$0xff]
    %v580 = vld [vmem:[#allocation7 + $0x1e8] sm:$0xff]
    %v581 = vld [vmem:[#allocation7 + $0x1f0] sm:$0xff]
    %s582 = scalar_lea.vmem [#allocation7], 504
    %v583 = vld [vmem:[%s582] ss:$8 sm:$0x7]
    %v585 = vlaneseq
    %v586 = vshrl.u32 %v585, 7
    %v587 = vsub.s32 0, %v586
    %v588 = vrot.slane %v583, %v587
    %v589 = vlaneseq
    %v590 = vshrl.u32 %v589, 7
    %v591 = vsub.s32 1, %v590
    %v592 = vrot.slane %v583, %v591
    %v593 = vlaneseq
    %v594 = vshrl.u32 %v593, 7
    %v595 = vsub.s32 2, %v594
    %v596 = vrot.slane %v583, %v595
    %600 = vmatprep.subr.mxu0 %v535
    %601 = vmatpush1.msra.mxu0 %v534
    %602 = vmatprep.subr.mxu0 %v538
    %603 = vmatpush1.msra.mxu0 %v537
    %604 = vmatprep.subr.mxu0 %v541
    %605 = vmatpush1.msra.mxu0 %v540
    %606 = vmatprep.subr.mxu0 %v544
    %607 = vmatpush1.msra.mxu0 %v543
    %608 = vmatprep.subr.mxu0 %v547
    %609 = vmatpush1.msra.mxu0 %v546
    %610 = vmatprep.subr.mxu0 %v550
    %611 = vmatpush1.msra.mxu0 %v549
    %612 = vmatprep.subr.mxu0 %v553
    %613 = vmatpush1.msra.mxu0 %v552
    %614 = vmatprep.subr.mxu0 %v556
    %615 = vmatpush1.msra.mxu0 %v555
    %616 = vmatprep.subr.mxu0 %v559
    %617 = vmatpush1.msra.mxu0 %v558
    %618 = vmatprep.subr.mxu0 %v562
    %619 = vmatpush1.msra.mxu0 %v561
    %620 = vmatprep.subr.mxu0 %v565
    %621 = vmatpush1.msra.mxu0 %v564
    %622 = vmatprep.subr.mxu0 %v568
    %623 = vmatpush1.msra.mxu0 %v567
    %624 = vmatprep.subr.mxu0 %v571
    %625 = vmatpush1.msra.mxu0 %v570
    %626 = vmatprep.subr.mxu0 %v574
    %627 = vmatpush1.msra.mxu0 %v573
    %628 = vmatprep.subr.mxu0 %v577
    %629 = vmatpush1.msra.mxu0 %v576
    %630 = vmatprep.subr.mxu0 %v580
    %631 = vmatpush1.msra.mxu0 %v579
    %632 = vmatprep.subr.mxu0 0.0
    %633 = vmatpush1.msra.mxu0 0.0
    %634 = vmatprep.subr.mxu0 0.0
    %635 = vmatpush1.msra.mxu0 0.0
    %636 = vmatprep.subr.mxu0 0.0
    %637 = vmatpush1.msra.mxu0 0.0
    %638 = vmatprep.subr.mxu0 0.0
    %639 = vmatpush1.msra.mxu0 0.0
    %640 = vmatprep.subr.mxu0 0.0
    %641 = vmatpush1.msra.mxu0 0.0
    %642 = vmatprep.subr.mxu0 0.0
    %643 = vmatpush1.msra.mxu0 0.0
    %644 = vmatprep.subr.mxu0 0.0
    %645 = vmatpush1.msra.mxu0 0.0
    %646 = vmatprep.subr.mxu0 0.0
    %647 = vmatpush1.msra.mxu0 0.0
    %648 = vmatprep.subr.mxu0 0.0
    %649 = vmatpush1.msra.mxu0 0.0
    %650 = vmatprep.subr.mxu0 0.0
    %651 = vmatpush1.msra.mxu0 0.0
    %652 = vmatprep.subr.mxu0 0.0
    %653 = vmatpush1.msra.mxu0 0.0
    %654 = vmatprep.subr.mxu0 0.0
    %655 = vmatpush1.msra.mxu0 0.0
    %656 = vmatprep.subr.mxu0 0.0
    %657 = vmatpush1.msra.mxu0 0.0
    %658 = vmatprep.subr.mxu0 0.0
    %659 = vmatpush1.msra.mxu0 0.0
    %660 = vmatprep.subr.mxu0 0.0
    %661 = vmatpush1.msra.mxu0 0.0
    %662 = vmatprep.subr.mxu0 0.0
    %663 = vmatpush1.msra.mxu0 0.0
    %664 = vmatprep.mubr.f32.mxu0 0.0
    %665 = vmatmul.mubr.f32.gmra.mrb[0].mxu0 0.0
    %v666 = vpop.f32.mrb[0].mxu0
    %v667 = vadd.f32 %v588, %v666
    %v668 = vpop.f32.mrb[0].mxu0
    %v669 = vadd.f32 %v592, %v668
    %670 = vdwg.mxu0
    %671 = vmatprep.subr.mxu0 0.0
    %672 = vmatpush1.msra.mxu0 %v536
    %673 = vmatprep.subr.mxu0 0.0
    %674 = vmatpush1.msra.mxu0 %v539
    %675 = vmatprep.subr.mxu0 0.0
    %676 = vmatpush1.msra.mxu0 %v542
    %677 = vmatprep.subr.mxu0 0.0
    %678 = vmatpush1.msra.mxu0 %v545
    %679 = vmatprep.subr.mxu0 0.0
    %680 = vmatpush1.msra.mxu0 %v548
    %681 = vmatprep.subr.mxu0 0.0
    %682 = vmatpush1.msra.mxu0 %v551
    %683 = vmatprep.subr.mxu0 0.0
    %684 = vmatpush1.msra.mxu0 %v554
    %685 = vmatprep.subr.mxu0 0.0
    %686 = vmatpush1.msra.mxu0 %v557
    %687 = vmatprep.subr.mxu0 0.0
    %688 = vmatpush1.msra.mxu0 %v560
    %689 = vmatprep.subr.mxu0 0.0
    %690 = vmatpush1.msra.mxu0 %v563
    %691 = vmatprep.subr.mxu0 0.0
    %692 = vmatpush1.msra.mxu0 %v566
    %693 = vmatprep.subr.mxu0 0.0
    %694 = vmatpush1.msra.mxu0 %v569
    %695 = vmatprep.subr.mxu0 0.0
    %696 = vmatpush1.msra.mxu0 %v572
    %697 = vmatprep.subr.mxu0 0.0
    %698 = vmatpush1.msra.mxu0 %v575
    %699 = vmatprep.subr.mxu0 0.0
    %700 = vmatpush1.msra.mxu0 %v578
    %701 = vmatprep.subr.mxu0 0.0
    %702 = vmatpush1.msra.mxu0 %v581
    %703 = vmatprep.subr.mxu0 0.0
    %704 = vmatpush1.msra.mxu0 0.0
    %705 = vmatprep.subr.mxu0 0.0
    %706 = vmatpush1.msra.mxu0 0.0
    %707 = vmatprep.subr.mxu0 0.0
    %708 = vmatpush1.msra.mxu0 0.0
    %709 = vmatprep.subr.mxu0 0.0
    %710 = vmatpush1.msra.mxu0 0.0
    %711 = vmatprep.subr.mxu0 0.0
    %712 = vmatpush1.msra.mxu0 0.0
    %713 = vmatprep.subr.mxu0 0.0
    %714 = vmatpush1.msra.mxu0 0.0
    %715 = vmatprep.subr.mxu0 0.0
    %716 = vmatpush1.msra.mxu0 0.0
    %717 = vmatprep.subr.mxu0 0.0
    %718 = vmatpush1.msra.mxu0 0.0
    %719 = vmatprep.subr.mxu0 0.0
    %720 = vmatpush1.msra.mxu0 0.0
    %721 = vmatprep.subr.mxu0 0.0
    %722 = vmatpush1.msra.mxu0 0.0
    %723 = vmatprep.subr.mxu0 0.0
    %724 = vmatpush1.msra.mxu0 0.0
    %725 = vmatprep.subr.mxu0 0.0
    %726 = vmatpush1.msra.mxu0 0.0
    %727 = vmatprep.subr.mxu0 0.0
    %728 = vmatpush1.msra.mxu0 0.0
    %729 = vmatprep.subr.mxu0 0.0
    %730 = vmatpush1.msra.mxu0 0.0
    %731 = vmatprep.subr.mxu0 0.0
    %732 = vmatpush1.msra.mxu0 0.0
    %733 = vmatprep.subr.mxu0 0.0
    %734 = vmatpush1.msra.mxu0 0.0
    %735 = vmatprep.mubr.f32.mxu0 0.0
    %736 = vmatmul.mubr.f32.gmra.mrb[0].mxu0 0.0
    %v737 = vpop.f32.mrb[0].mxu0
    %v738 = vadd.f32 %v596, %v737
    %v739 = vpop.f32.mrb[0].mxu0
    %740 = vdwg.mxu0
    %v743 = vrot.slane %v667, 1
    %v744 = vrot.slane %v669, 1
    %v749 = vadd.f32 %v449, %v667
    %v750 = vadd.f32 %v451, %v669
    %v751 = vadd.f32 %v455, %v743
    %v752 = vadd.f32 %v457, %v744
    %v753 = vxor.u32 %v749, 2147483648
    %v754 = vxor.u32 %v750, 2147483648
    %v755 = vxor.u32 %v751, 2147483648
    %v756 = vxor.u32 %v752, 2147483648
    %v757 = vmul.f32 %v753, 1.442695
    %v758 = vpow.pop %v757
    %v759 = vmul.f32 %v754, 1.442695
    %v760 = vpow.pop %v759
    %v761 = vmul.f32 %v755, 1.442695
    %v762 = vpow.pop %v761
    %v763 = vmul.f32 %v756, 1.442695
    %v764 = vpow.pop %v763
    %v765 = vadd.f32 %v758, 1.0
    %v766 = vadd.f32 %v760, 1.0
    %v767 = vadd.f32 %v762, 1.0
    %v768 = vadd.f32 %v764, 1.0
    %v769 = vrcp.pop %v765
    %v770 = vmul.f32 1.0, %v769
    %v771 = vrcp.pop %v766
    %v772 = vmul.f32 1.0, %v771
    %v773 = vrcp.pop %v767
    %v774 = vmul.f32 1.0, %v773
    %v775 = vrcp.pop %v768
    %v776 = vmul.f32 1.0, %v775
    %v778 = vrot.slane %v738, 1
    %v781 = vmul.f32 %v770, %v738
    %v782 = vmul.f32 %v774, %v778
    %v783 = vadd.f32 %v526, %v781
    %v784 = vadd.f32 %v531, %v782
    %v785 = vtanh.pop %v783
    %v786 = vtanh.pop %v784
    %v787 = vsub.f32 1.0, %v772
    %v788 = vsub.f32 1.0, %v776
    %v789 = vmul.f32 %v787, %v785
    %v790 = vmul.f32 %v788, %v786
    %v791 = vmul.f32 %v772, 0.0
    %v792 = vmul.f32 %v776, 0.0
    %v793 = vadd.f32 %v789, %v791
    %v794 = vadd.f32 %v790, %v792
    %v797 = vrot.slane %v794, 7
    %vm798 = vcmask 1041409
    %v799 = vsel %vm798, %v797, %v793
    %801 = vmatprep.subr.mxu0 %v535
    %802 = vmatpush1.msra.mxu0 %v534
    %803 = vmatprep.subr.mxu0 %v538
    %804 = vmatpush1.msra.mxu0 %v537
    %805 = vmatprep.subr.mxu0 %v541
    %806 = vmatpush1.msra.mxu0 %v540
    %807 = vmatprep.subr.mxu0 %v544
    %808 = vmatpush1.msra.mxu0 %v543
    %809 = vmatprep.subr.mxu0 %v547
    %810 = vmatpush1.msra.mxu0 %v546
    %811 = vmatprep.subr.mxu0 %v550
    %812 = vmatpush1.msra.mxu0 %v549
    %813 = vmatprep.subr.mxu0 %v553
    %814 = vmatpush1.msra.mxu0 %v552
    %815 = vmatprep.subr.mxu0 %v556
    %816 = vmatpush1.msra.mxu0 %v555
    %817 = vmatprep.subr.mxu0 %v559
    %818 = vmatpush1.msra.mxu0 %v558
    %819 = vmatprep.subr.mxu0 %v562
    %820 = vmatpush1.msra.mxu0 %v561
    %821 = vmatprep.subr.mxu0 %v565
    %822 = vmatpush1.msra.mxu0 %v564
    %823 = vmatprep.subr.mxu0 %v568
    %824 = vmatpush1.msra.mxu0 %v567
    %825 = vmatprep.subr.mxu0 %v571
    %826 = vmatpush1.msra.mxu0 %v570
    %827 = vmatprep.subr.mxu0 %v574
    %828 = vmatpush1.msra.mxu0 %v573
    %829 = vmatprep.subr.mxu0 %v577
    %830 = vmatpush1.msra.mxu0 %v576
    %831 = vmatprep.subr.mxu0 %v580
    %832 = vmatpush1.msra.mxu0 %v579
    %833 = vmatprep.subr.mxu0 0.0
    %834 = vmatpush1.msra.mxu0 0.0
    %835 = vmatprep.subr.mxu0 0.0
    %836 = vmatpush1.msra.mxu0 0.0
    %837 = vmatprep.subr.mxu0 0.0
    %838 = vmatpush1.msra.mxu0 0.0
    %839 = vmatprep.subr.mxu0 0.0
    %840 = vmatpush1.msra.mxu0 0.0
    %841 = vmatprep.subr.mxu0 0.0
    %842 = vmatpush1.msra.mxu0 0.0
    %843 = vmatprep.subr.mxu0 0.0
    %844 = vmatpush1.msra.mxu0 0.0
    %845 = vmatprep.subr.mxu0 0.0
    %846 = vmatpush1.msra.mxu0 0.0
    %847 = vmatprep.subr.mxu0 0.0
    %848 = vmatpush1.msra.mxu0 0.0
    %849 = vmatprep.subr.mxu0 0.0
    %850 = vmatpush1.msra.mxu0 0.0
    %851 = vmatprep.subr.mxu0 0.0
    %852 = vmatpush1.msra.mxu0 0.0
    %853 = vmatprep.subr.mxu0 0.0
    %854 = vmatpush1.msra.mxu0 0.0
    %855 = vmatprep.subr.mxu0 0.0
    %856 = vmatpush1.msra.mxu0 0.0
    %857 = vmatprep.subr.mxu0 0.0
    %858 = vmatpush1.msra.mxu0 0.0
    %859 = vmatprep.subr.mxu0 0.0
    %860 = vmatpush1.msra.mxu0 0.0
    %861 = vmatprep.subr.mxu0 0.0
    %862 = vmatpush1.msra.mxu0 0.0
    %863 = vmatprep.subr.mxu0 0.0
    %864 = vmatpush1.msra.mxu0 0.0
    %865 = vmatprep.mubr.f32.mxu0 0.0
    %866 = vmatmul.mubr.f32.gmra.mrb[0].mxu0 %v799
    %v867 = vpop.f32.mrb[0].mxu0
    %v868 = vadd.f32 %v588, %v867
    %v869 = vpop.f32.mrb[0].mxu0
    %v870 = vadd.f32 %v592, %v869
    %871 = vdwg.mxu0
    %872 = vmatprep.subr.mxu0 0.0
    %873 = vmatpush1.msra.mxu0 %v536
    %874 = vmatprep.subr.mxu0 0.0
    %875 = vmatpush1.msra.mxu0 %v539
    %876 = vmatprep.subr.mxu0 0.0
    %877 = vmatpush1.msra.mxu0 %v542
    %878 = vmatprep.subr.mxu0 0.0
    %879 = vmatpush1.msra.mxu0 %v545
    %880 = vmatprep.subr.mxu0 0.0
    %881 = vmatpush1.msra.mxu0 %v548
    %882 = vmatprep.subr.mxu0 0.0
    %883 = vmatpush1.msra.mxu0 %v551
    %884 = vmatprep.subr.mxu0 0.0
    %885 = vmatpush1.msra.mxu0 %v554
    %886 = vmatprep.subr.mxu0 0.0
    %887 = vmatpush1.msra.mxu0 %v557
    %888 = vmatprep.subr.mxu0 0.0
    %889 = vmatpush1.msra.mxu0 %v560
    %890 = vmatprep.subr.mxu0 0.0
    %891 = vmatpush1.msra.mxu0 %v563
    %892 = vmatprep.subr.mxu0 0.0
    %893 = vmatpush1.msra.mxu0 %v566
    %894 = vmatprep.subr.mxu0 0.0
    %895 = vmatpush1.msra.mxu0 %v569
    %896 = vmatprep.subr.mxu0 0.0
    %897 = vmatpush1.msra.mxu0 %v572
    %898 = vmatprep.subr.mxu0 0.0
    %899 = vmatpush1.msra.mxu0 %v575
    %900 = vmatprep.subr.mxu0 0.0
    %901 = vmatpush1.msra.mxu0 %v578
    %902 = vmatprep.subr.mxu0 0.0
    %903 = vmatpush1.msra.mxu0 %v581
    %904 = vmatprep.subr.mxu0 0.0
    %905 = vmatpush1.msra.mxu0 0.0
    %906 = vmatprep.subr.mxu0 0.0
    %907 = vmatpush1.msra.mxu0 0.0
    %908 = vmatprep.subr.mxu0 0.0
    %909 = vmatpush1.msra.mxu0 0.0
    %910 = vmatprep.subr.mxu0 0.0
    %911 = vmatpush1.msra.mxu0 0.0
    %912 = vmatprep.subr.mxu0 0.0
    %913 = vmatpush1.msra.mxu0 0.0
    %914 = vmatprep.subr.mxu0 0.0
    %915 = vmatpush1.msra.mxu0 0.0
    %916 = vmatprep.subr.mxu0 0.0
    %917 = vmatpush1.msra.mxu0 0.0
    %918 = vmatprep.subr.mxu0 0.0
    %919 = vmatpush1.msra.mxu0 0.0
    %920 = vmatprep.subr.mxu0 0.0
    %921 = vmatpush1.msra.mxu0 0.0
    %922 = vmatprep.subr.mxu0 0.0
    %923 = vmatpush1.msra.mxu0 0.0
    %924 = vmatprep.subr.mxu0 0.0
    %925 = vmatpush1.msra.mxu0 0.0
    %926 = vmatprep.subr.mxu0 0.0
    %927 = vmatpush1.msra.mxu0 0.0
    %928 = vmatprep.subr.mxu0 0.0
    %929 = vmatpush1.msra.mxu0 0.0
    %930 = vmatprep.subr.mxu0 0.0
    %931 = vmatpush1.msra.mxu0 0.0
    %932 = vmatprep.subr.mxu0 0.0
    %933 = vmatpush1.msra.mxu0 0.0
    %934 = vmatprep.subr.mxu0 0.0
    %935 = vmatpush1.msra.mxu0 0.0
    %936 = vmatprep.mubr.f32.mxu0 0.0
    %937 = vmatmul.mubr.f32.gmra.mrb[0].mxu0 %v799
    %v938 = vpop.f32.mrb[0].mxu0
    %v939 = vadd.f32 %v596, %v938
    %v940 = vpop.f32.mrb[0].mxu0
    %941 = vdwg.mxu0
    %v944 = vrot.slane %v868, 7
    %v945 = vrot.slane %v870, 7
    %v950 = vadd.f32 %v449, %v944
    %v951 = vadd.f32 %v451, %v945
    %v952 = vadd.f32 %v455, %v868
    %v953 = vadd.f32 %v457, %v870
    %v954 = vxor.u32 %v950, 2147483648
    %v955 = vxor.u32 %v951, 2147483648
    %v956 = vxor.u32 %v952, 2147483648
    %v957 = vxor.u32 %v953, 2147483648
    %v958 = vmul.f32 %v954, 1.442695
    %v959 = vpow.pop %v958
    %v960 = vmul.f32 %v955, 1.442695
    %v961 = vpow.pop %v960
    %v962 = vmul.f32 %v956, 1.442695
    %v963 = vpow.pop %v962
    %v964 = vmul.f32 %v957, 1.442695
    %v965 = vpow.pop %v964
    %v966 = vadd.f32 %v959, 1.0
    %v967 = vadd.f32 %v961, 1.0
    %v968 = vadd.f32 %v963, 1.0
    %v969 = vadd.f32 %v965, 1.0
    %v970 = vrcp.pop %v966
    %v971 = vmul.f32 1.0, %v970
    %v972 = vrcp.pop %v967
    %v973 = vmul.f32 1.0, %v972
    %v974 = vrcp.pop %v968
    %v975 = vmul.f32 1.0, %v974
    %v976 = vrcp.pop %v969
    %v977 = vmul.f32 1.0, %v976
    %v979 = vrot.slane %v939, 7
    %v982 = vmul.f32 %v971, %v979
    %v983 = vmul.f32 %v975, %v939
    %v984 = vadd.f32 %v526, %v982
    %v985 = vadd.f32 %v531, %v983
    %v986 = vtanh.pop %v984
    %v987 = vtanh.pop %v985
    %v988 = vsub.f32 1.0, %v973
    %v989 = vsub.f32 1.0, %v977
    %v990 = vmul.f32 %v988, %v986
    %v991 = vmul.f32 %v989, %v987
    %v992 = vrot.slane %v793, 7
    %v995 = vmul.f32 %v973, %v992
    %v996 = vmul.f32 %v977, %v797
    %v997 = vadd.f32 %v990, %v995
    %v998 = vadd.f32 %v991, %v996
    %v1001 = vrot.slane %v997, 1
    %v1002 = vsel %vm798, %v998, %v1001
    %1004 = vmatprep.subr.mxu0 %v535
    %1005 = vmatpush1.msra.mxu0 %v534
    %1006 = vmatprep.subr.mxu0 %v538
    %1007 = vmatpush1.msra.mxu0 %v537
    %1008 = vmatprep.subr.mxu0 %v541
    %1009 = vmatpush1.msra.mxu0 %v540
    %1010 = vmatprep.subr.mxu0 %v544
    %1011 = vmatpush1.msra.mxu0 %v543
    %1012 = vmatprep.subr.mxu0 %v547
    %1013 = vmatpush1.msra.mxu0 %v546
    %1014 = vmatprep.subr.mxu0 %v550
    %1015 = vmatpush1.msra.mxu0 %v549
    %1016 = vmatprep.subr.mxu0 %v553
    %1017 = vmatpush1.msra.mxu0 %v552
    %1018 = vmatprep.subr.mxu0 %v556
    %1019 = vmatpush1.msra.mxu0 %v555
    %1020 = vmatprep.subr.mxu0 %v559
    %1021 = vmatpush1.msra.mxu0 %v558
    %1022 = vmatprep.subr.mxu0 %v562
    %1023 = vmatpush1.msra.mxu0 %v561
    %1024 = vmatprep.subr.mxu0 %v565
    %1025 = vmatpush1.msra.mxu0 %v564
    %1026 = vmatprep.subr.mxu0 %v568
    %1027 = vmatpush1.msra.mxu0 %v567
    %1028 = vmatprep.subr.mxu0 %v571
    %1029 = vmatpush1.msra.mxu0 %v570
    %1030 = vmatprep.subr.mxu0 %v574
    %1031 = vmatpush1.msra.mxu0 %v573
    %1032 = vmatprep.subr.mxu0 %v577
    %1033 = vmatpush1.msra.mxu0 %v576
    %1034 = vmatprep.subr.mxu0 %v580
    %1035 = vmatpush1.msra.mxu0 %v579
    %1036 = vmatprep.subr.mxu0 0.0
    %1037 = vmatpush1.msra.mxu0 0.0
    %1038 = vmatprep.subr.mxu0 0.0
    %1039 = vmatpush1.msra.mxu0 0.0
    %1040 = vmatprep.subr.mxu0 0.0
    %1041 = vmatpush1.msra.mxu0 0.0
    %1042 = vmatprep.subr.mxu0 0.0
    %1043 = vmatpush1.msra.mxu0 0.0
    %1044 = vmatprep.subr.mxu0 0.0
    %1045 = vmatpush1.msra.mxu0 0.0
    %1046 = vmatprep.subr.mxu0 0.0
    %1047 = vmatpush1.msra.mxu0 0.0
    %1048 = vmatprep.subr.mxu0 0.0
    %1049 = vmatpush1.msra.mxu0 0.0
    %1050 = vmatprep.subr.mxu0 0.0
    %1051 = vmatpush1.msra.mxu0 0.0
    %1052 = vmatprep.subr.mxu0 0.0
    %1053 = vmatpush1.msra.mxu0 0.0
    %1054 = vmatprep.subr.mxu0 0.0
    %1055 = vmatpush1.msra.mxu0 0.0
    %1056 = vmatprep.subr.mxu0 0.0
    %1057 = vmatpush1.msra.mxu0 0.0
    %1058 = vmatprep.subr.mxu0 0.0
    %1059 = vmatpush1.msra.mxu0 0.0
    %1060 = vmatprep.subr.mxu0 0.0
    %1061 = vmatpush1.msra.mxu0 0.0
    %1062 = vmatprep.subr.mxu0 0.0
    %1063 = vmatpush1.msra.mxu0 0.0
    %1064 = vmatprep.subr.mxu0 0.0
    %1065 = vmatpush1.msra.mxu0 0.0
    %1066 = vmatprep.subr.mxu0 0.0
    %1067 = vmatpush1.msra.mxu0 0.0
    %1068 = vmatprep.mubr.f32.mxu0 0.0
    %1069 = vmatmul.mubr.f32.gmra.mrb[0].mxu0 %v1002
    %v1070 = vpop.f32.mrb[0].mxu0
    %v1071 = vadd.f32 %v588, %v1070
    %v1072 = vpop.f32.mrb[0].mxu0
    %v1073 = vadd.f32 %v592, %v1072
    %1074 = vdwg.mxu0
    %1075 = vmatprep.subr.mxu0 0.0
    %1076 = vmatpush1.msra.mxu0 %v536
    %1077 = vmatprep.subr.mxu0 0.0
    %1078 = vmatpush1.msra.mxu0 %v539
    %1079 = vmatprep.subr.mxu0 0.0
    %1080 = vmatpush1.msra.mxu0 %v542
    %1081 = vmatprep.subr.mxu0 0.0
    %1082 = vmatpush1.msra.mxu0 %v545
    %1083 = vmatprep.subr.mxu0 0.0
    %1084 = vmatpush1.msra.mxu0 %v548
    %1085 = vmatprep.subr.mxu0 0.0
    %1086 = vmatpush1.msra.mxu0 %v551
    %1087 = vmatprep.subr.mxu0 0.0
    %1088 = vmatpush1.msra.mxu0 %v554
    %1089 = vmatprep.subr.mxu0 0.0
    %1090 = vmatpush1.msra.mxu0 %v557
    %1091 = vmatprep.subr.mxu0 0.0
    %1092 = vmatpush1.msra.mxu0 %v560
    %1093 = vmatprep.subr.mxu0 0.0
    %1094 = vmatpush1.msra.mxu0 %v563
    %1095 = vmatprep.subr.mxu0 0.0
    %1096 = vmatpush1.msra.mxu0 %v566
    %1097 = vmatprep.subr.mxu0 0.0
    %1098 = vmatpush1.msra.mxu0 %v569
    %1099 = vmatprep.subr.mxu0 0.0
    %1100 = vmatpush1.msra.mxu0 %v572
    %1101 = vmatprep.subr.mxu0 0.0
    %1102 = vmatpush1.msra.mxu0 %v575
    %1103 = vmatprep.subr.mxu0 0.0
    %1104 = vmatpush1.msra.mxu0 %v578
    %1105 = vmatprep.subr.mxu0 0.0
    %1106 = vmatpush1.msra.mxu0 %v581
    %1107 = vmatprep.subr.mxu0 0.0
    %1108 = vmatpush1.msra.mxu0 0.0
    %1109 = vmatprep.subr.mxu0 0.0
    %1110 = vmatpush1.msra.mxu0 0.0
    %1111 = vmatprep.subr.mxu0 0.0
    %1112 = vmatpush1.msra.mxu0 0.0
    %1113 = vmatprep.subr.mxu0 0.0
    %1114 = vmatpush1.msra.mxu0 0.0
    %1115 = vmatprep.subr.mxu0 0.0
    %1116 = vmatpush1.msra.mxu0 0.0
    %1117 = vmatprep.subr.mxu0 0.0
    %1118 = vmatpush1.msra.mxu0 0.0
    %1119 = vmatprep.subr.mxu0 0.0
    %1120 = vmatpush1.msra.mxu0 0.0
    %1121 = vmatprep.subr.mxu0 0.0
    %1122 = vmatpush1.msra.mxu0 0.0
    %1123 = vmatprep.subr.mxu0 0.0
    %1124 = vmatpush1.msra.mxu0 0.0
    %1125 = vmatprep.subr.mxu0 0.0
    %1126 = vmatpush1.msra.mxu0 0.0
    %1127 = vmatprep.subr.mxu0 0.0
    %1128 = vmatpush1.msra.mxu0 0.0
    %1129 = vmatprep.subr.mxu0 0.0
    %1130 = vmatpush1.msra.mxu0 0.0
    %1131 = vmatprep.subr.mxu0 0.0
    %1132 = vmatpush1.msra.mxu0 0.0
    %1133 = vmatprep.subr.mxu0 0.0
    %1134 = vmatpush1.msra.mxu0 0.0
    %1135 = vmatprep.subr.mxu0 0.0
    %1136 = vmatpush1.msra.mxu0 0.0
    %1137 = vmatprep.subr.mxu0 0.0
    %1138 = vmatpush1.msra.mxu0 0.0
    %1139 = vmatprep.mubr.f32.mxu0 0.0
    %1140 = vmatmul.mubr.f32.gmra.mrb[0].mxu0 %v1002
    %v1141 = vpop.f32.mrb[0].mxu0
    %v1142 = vadd.f32 %v596, %v1141
    %v1143 = vpop.f32.mrb[0].mxu0
    %1144 = vdwg.mxu0
    %v1147 = vrot.slane %v1071, 6
    %v1148 = vrot.slane %v1073, 6
    %v1149 = vrot.slane %v1071, 7
    %v1150 = vrot.slane %v1073, 7
    %v1155 = vadd.f32 %v449, %v1147
    %v1156 = vadd.f32 %v451, %v1148
    %v1157 = vadd.f32 %v455, %v1149
    %v1158 = vadd.f32 %v457, %v1150
    %v1159 = vxor.u32 %v1155, 2147483648
    %v1160 = vxor.u32 %v1156, 2147483648
    %v1161 = vxor.u32 %v1157, 2147483648
    %v1162 = vxor.u32 %v1158, 2147483648
    %v1163 = vmul.f32 %v1159, 1.442695
    %v1164 = vpow.pop %v1163
    %v1165 = vmul.f32 %v1160, 1.442695
    %v1166 = vpow.pop %v1165
    %v1167 = vmul.f32 %v1161, 1.442695
    %v1168 = vpow.pop %v1167
    %v1169 = vmul.f32 %v1162, 1.442695
    %v1170 = vpow.pop %v1169
    %v1171 = vadd.f32 %v1164, 1.0
    %v1172 = vadd.f32 %v1166, 1.0
    %v1173 = vadd.f32 %v1168, 1.0
    %v1174 = vadd.f32 %v1170, 1.0
    %v1175 = vrcp.pop %v1171
    %v1176 = vmul.f32 1.0, %v1175
    %v1177 = vrcp.pop %v1172
    %v1178 = vmul.f32 1.0, %v1177
    %v1179 = vrcp.pop %v1173
    %v1180 = vmul.f32 1.0, %v1179
    %v1181 = vrcp.pop %v1174
    %v1182 = vmul.f32 1.0, %v1181
    %v1184 = vrot.slane %v1142, 6
    %v1185 = vrot.slane %v1142, 7
    %v1188 = vmul.f32 %v1176, %v1184
    %v1189 = vmul.f32 %v1180, %v1185
    %v1190 = vadd.f32 %v526, %v1188
    %v1191 = vadd.f32 %v531, %v1189
    %v1192 = vtanh.pop %v1190
    %v1193 = vtanh.pop %v1191
    %v1194 = vsub.f32 1.0, %v1178
    %v1195 = vsub.f32 1.0, %v1182
    %v1196 = vmul.f32 %v1194, %v1192
    %v1197 = vmul.f32 %v1195, %v1193
    %v1198 = vrot.slane %v997, 7
    %v1199 = vrot.slane %v998, 7
    %v1202 = vmul.f32 %v1178, %v1198
    %v1203 = vmul.f32 %v1182, %v1199
    %v1204 = vadd.f32 %v1196, %v1202
    %v1205 = vadd.f32 %v1197, %v1203
    %v1208 = vrot.slane %v1204, 2
    %v1209 = vrot.slane %v1205, 1
    %v1210 = vsel %vm798, %v1209, %v1208
    %1212 = vmatprep.subr.mxu0 %v535
    %1213 = vmatpush1.msra.mxu0 %v534
    %1214 = vmatprep.subr.mxu0 %v538
    %1215 = vmatpush1.msra.mxu0 %v537
    %1216 = vmatprep.subr.mxu0 %v541
    %1217 = vmatpush1.msra.mxu0 %v540
    %1218 = vmatprep.subr.mxu0 %v544
    %1219 = vmatpush1.msra.mxu0 %v543
    %1220 = vmatprep.subr.mxu0 %v547
    %1221 = vmatpush1.msra.mxu0 %v546
    %1222 = vmatprep.subr.mxu0 %v550
    %1223 = vmatpush1.msra.mxu0 %v549
    %1224 = vmatprep.subr.mxu0 %v553
    %1225 = vmatpush1.msra.mxu0 %v552
    %1226 = vmatprep.subr.mxu0 %v556
    %1227 = vmatpush1.msra.mxu0 %v555
    %1228 = vmatprep.subr.mxu0 %v559
    %1229 = vmatpush1.msra.mxu0 %v558
    %1230 = vmatprep.subr.mxu0 %v562
    %1231 = vmatpush1.msra.mxu0 %v561
    %1232 = vmatprep.subr.mxu0 %v565
    %1233 = vmatpush1.msra.mxu0 %v564
    %1234 = vmatprep.subr.mxu0 %v568
    %1235 = vmatpush1.msra.mxu0 %v567
    %1236 = vmatprep.subr.mxu0 %v571
    %1237 = vmatpush1.msra.mxu0 %v570
    %1238 = vmatprep.subr.mxu0 %v574
    %1239 = vmatpush1.msra.mxu0 %v573
    %1240 = vmatprep.subr.mxu0 %v577
    %1241 = vmatpush1.msra.mxu0 %v576
    %1242 = vmatprep.subr.mxu0 %v580
    %1243 = vmatpush1.msra.mxu0 %v579
    %1244 = vmatprep.subr.mxu0 0.0
    %1245 = vmatpush1.msra.mxu0 0.0
    %1246 = vmatprep.subr.mxu0 0.0
    %1247 = vmatpush1.msra.mxu0 0.0
    %1248 = vmatprep.subr.mxu0 0.0
    %1249 = vmatpush1.msra.mxu0 0.0
    %1250 = vmatprep.subr.mxu0 0.0
    %1251 = vmatpush1.msra.mxu0 0.0
    %1252 = vmatprep.subr.mxu0 0.0
    %1253 = vmatpush1.msra.mxu0 0.0
    %1254 = vmatprep.subr.mxu0 0.0
    %1255 = vmatpush1.msra.mxu0 0.0
    %1256 = vmatprep.subr.mxu0 0.0
    %1257 = vmatpush1.msra.mxu0 0.0
    %1258 = vmatprep.subr.mxu0 0.0
    %1259 = vmatpush1.msra.mxu0 0.0
    %1260 = vmatprep.subr.mxu0 0.0
    %1261 = vmatpush1.msra.mxu0 0.0
    %1262 = vmatprep.subr.mxu0 0.0
    %1263 = vmatpush1.msra.mxu0 0.0
    %1264 = vmatprep.subr.mxu0 0.0
    %1265 = vmatpush1.msra.mxu0 0.0
    %1266 = vmatprep.subr.mxu0 0.0
    %1267 = vmatpush1.msra.mxu0 0.0
    %1268 = vmatprep.subr.mxu0 0.0
    %1269 = vmatpush1.msra.mxu0 0.0
    %1270 = vmatprep.subr.mxu0 0.0
    %1271 = vmatpush1.msra.mxu0 0.0
    %1272 = vmatprep.subr.mxu0 0.0
    %1273 = vmatpush1.msra.mxu0 0.0
    %1274 = vmatprep.subr.mxu0 0.0
    %1275 = vmatpush1.msra.mxu0 0.0
    %1276 = vmatprep.mubr.f32.mxu0 0.0
    %1277 = vmatmul.mubr.f32.gmra.mrb[0].mxu0 %v1210
    %v1278 = vpop.f32.mrb[0].mxu0
    %v1279 = vadd.f32 %v588, %v1278
    %v1280 = vpop.f32.mrb[0].mxu0
    %v1281 = vadd.f32 %v592, %v1280
    %1282 = vdwg.mxu0
    %1283 = vmatprep.subr.mxu0 0.0
    %1284 = vmatpush1.msra.mxu0 %v536
    %1285 = vmatprep.subr.mxu0 0.0
    %1286 = vmatpush1.msra.mxu0 %v539
    %1287 = vmatprep.subr.mxu0 0.0
    %1288 = vmatpush1.msra.mxu0 %v542
    %1289 = vmatprep.subr.mxu0 0.0
    %1290 = vmatpush1.msra.mxu0 %v545
    %1291 = vmatprep.subr.mxu0 0.0
    %1292 = vmatpush1.msra.mxu0 %v548
    %1293 = vmatprep.subr.mxu0 0.0
    %1294 = vmatpush1.msra.mxu0 %v551
    %1295 = vmatprep.subr.mxu0 0.0
    %1296 = vmatpush1.msra.mxu0 %v554
    %1297 = vmatprep.subr.mxu0 0.0
    %1298 = vmatpush1.msra.mxu0 %v557
    %1299 = vmatprep.subr.mxu0 0.0
    %1300 = vmatpush1.msra.mxu0 %v560
    %1301 = vmatprep.subr.mxu0 0.0
    %1302 = vmatpush1.msra.mxu0 %v563
    %1303 = vmatprep.subr.mxu0 0.0
    %1304 = vmatpush1.msra.mxu0 %v566
    %1305 = vmatprep.subr.mxu0 0.0
    %1306 = vmatpush1.msra.mxu0 %v569
    %1307 = vmatprep.subr.mxu0 0.0
    %1308 = vmatpush1.msra.mxu0 %v572
    %1309 = vmatprep.subr.mxu0 0.0
    %1310 = vmatpush1.msra.mxu0 %v575
    %1311 = vmatprep.subr.mxu0 0.0
    %1312 = vmatpush1.msra.mxu0 %v578
    %1313 = vmatprep.subr.mxu0 0.0
    %1314 = vmatpush1.msra.mxu0 %v581
    %1315 = vmatprep.subr.mxu0 0.0
    %1316 = vmatpush1.msra.mxu0 0.0
    %1317 = vmatprep.subr.mxu0 0.0
    %1318 = vmatpush1.msra.mxu0 0.0
    %1319 = vmatprep.subr.mxu0 0.0
    %1320 = vmatpush1.msra.mxu0 0.0
    %1321 = vmatprep.subr.mxu0 0.0
    %1322 = vmatpush1.msra.mxu0 0.0
    %1323 = vmatprep.subr.mxu0 0.0
    %1324 = vmatpush1.msra.mxu0 0.0
    %1325 = vmatprep.subr.mxu0 0.0
    %1326 = vmatpush1.msra.mxu0 0.0
    %1327 = vmatprep.subr.mxu0 0.0
    %1328 = vmatpush1.msra.mxu0 0.0
    %1329 = vmatprep.subr.mxu0 0.0
    %1330 = vmatpush1.msra.mxu0 0.0
    %1331 = vmatprep.subr.mxu0 0.0
    %1332 = vmatpush1.msra.mxu0 0.0
    %1333 = vmatprep.subr.mxu0 0.0
    %1334 = vmatpush1.msra.mxu0 0.0
    %1335 = vmatprep.subr.mxu0 0.0
    %1336 = vmatpush1.msra.mxu0 0.0
    %1337 = vmatprep.subr.mxu0 0.0
    %1338 = vmatpush1.msra.mxu0 0.0
    %1339 = vmatprep.subr.mxu0 0.0
    %1340 = vmatpush1.msra.mxu0 0.0
    %1341 = vmatprep.subr.mxu0 0.0
    %1342 = vmatpush1.msra.mxu0 0.0
    %1343 = vmatprep.subr.mxu0 0.0
    %1344 = vmatpush1.msra.mxu0 0.0
    %1345 = vmatprep.subr.mxu0 0.0
    %1346 = vmatpush1.msra.mxu0 0.0
    %1347 = vmatprep.mubr.f32.mxu0 0.0
    %1348 = vmatmul.mubr.f32.gmra.mrb[0].mxu0 %v1210
    %v1349 = vpop.f32.mrb[0].mxu0
    %v1350 = vadd.f32 %v596, %v1349
    %v1351 = vpop.f32.mrb[0].mxu0
    %1352 = vdwg.mxu0
    %v1355 = vrot.slane %v1279, 5
    %v1356 = vrot.slane %v1281, 5
    %v1357 = vrot.slane %v1279, 6
    %v1358 = vrot.slane %v1281, 6
    %v1363 = vadd.f32 %v449, %v1355
    %v1364 = vadd.f32 %v451, %v1356
    %v1365 = vadd.f32 %v455, %v1357
    %v1366 = vadd.f32 %v457, %v1358
    %v1367 = vxor.u32 %v1363, 2147483648
    %v1368 = vxor.u32 %v1364, 2147483648
    %v1369 = vxor.u32 %v1365, 2147483648
    %v1370 = vxor.u32 %v1366, 2147483648
    %v1371 = vmul.f32 %v1367, 1.442695
    %v1372 = vpow.pop %v1371
    %v1373 = vmul.f32 %v1368, 1.442695
    %v1374 = vpow.pop %v1373
    %v1375 = vmul.f32 %v1369, 1.442695
    %v1376 = vpow.pop %v1375
    %v1377 = vmul.f32 %v1370, 1.442695
    %v1378 = vpow.pop %v1377
    %v1379 = vadd.f32 %v1372, 1.0
    %v1380 = vadd.f32 %v1374, 1.0
    %v1381 = vadd.f32 %v1376, 1.0
    %v1382 = vadd.f32 %v1378, 1.0
    %v1383 = vrcp.pop %v1379
    %v1384 = vmul.f32 1.0, %v1383
    %v1385 = vrcp.pop %v1380
    %v1386 = vmul.f32 1.0, %v1385
    %v1387 = vrcp.pop %v1381
    %v1388 = vmul.f32 1.0, %v1387
    %v1389 = vrcp.pop %v1382
    %v1390 = vmul.f32 1.0, %v1389
    %v1392 = vrot.slane %v1350, 5
    %v1393 = vrot.slane %v1350, 6
    %v1396 = vmul.f32 %v1384, %v1392
    %v1397 = vmul.f32 %v1388, %v1393
    %v1398 = vadd.f32 %v526, %v1396
    %v1399 = vadd.f32 %v531, %v1397
    %v1400 = vtanh.pop %v1398
    %v1401 = vtanh.pop %v1399
    %v1402 = vsub.f32 1.0, %v1386
    %v1403 = vsub.f32 1.0, %v1390
    %v1404 = vmul.f32 %v1402, %v1400
    %v1405 = vmul.f32 %v1403, %v1401
    %v1406 = vrot.slane %v1204, 7
    %v1407 = vrot.slane %v1205, 7
    %v1410 = vmul.f32 %v1386, %v1406
    %v1411 = vmul.f32 %v1390, %v1407
    %v1412 = vadd.f32 %v1404, %v1410
    %v1413 = vadd.f32 %v1405, %v1411
    %v1416 = vrot.slane %v1412, 3
    %v1417 = vrot.slane %v1413, 2
    %v1418 = vsel %vm798, %v1417, %v1416
    %1420 = vmatprep.subr.mxu0 %v535
    %1421 = vmatpush1.msra.mxu0 %v534
    %1422 = vmatprep.subr.mxu0 %v538
    %1423 = vmatpush1.msra.mxu0 %v537
    %1424 = vmatprep.subr.mxu0 %v541
    %1425 = vmatpush1.msra.mxu0 %v540
    %1426 = vmatprep.subr.mxu0 %v544
    %1427 = vmatpush1.msra.mxu0 %v543
    %1428 = vmatprep.subr.mxu0 %v547
    %1429 = vmatpush1.msra.mxu0 %v546
    %1430 = vmatprep.subr.mxu0 %v550
    %1431 = vmatpush1.msra.mxu0 %v549
    %1432 = vmatprep.subr.mxu0 %v553
    %1433 = vmatpush1.msra.mxu0 %v552
    %1434 = vmatprep.subr.mxu0 %v556
    %1435 = vmatpush1.msra.mxu0 %v555
    %1436 = vmatprep.subr.mxu0 %v559
    %1437 = vmatpush1.msra.mxu0 %v558
    %1438 = vmatprep.subr.mxu0 %v562
    %1439 = vmatpush1.msra.mxu0 %v561
    %1440 = vmatprep.subr.mxu0 %v565
    %1441 = vmatpush1.msra.mxu0 %v564
    %1442 = vmatprep.subr.mxu0 %v568
    %1443 = vmatpush1.msra.mxu0 %v567
    %1444 = vmatprep.subr.mxu0 %v571
    %1445 = vmatpush1.msra.mxu0 %v570
    %1446 = vmatprep.subr.mxu0 %v574
    %1447 = vmatpush1.msra.mxu0 %v573
    %1448 = vmatprep.subr.mxu0 %v577
    %1449 = vmatpush1.msra.mxu0 %v576
    %1450 = vmatprep.subr.mxu0 %v580
    %1451 = vmatpush1.msra.mxu0 %v579
    %1452 = vmatprep.subr.mxu0 0.0
    %1453 = vmatpush1.msra.mxu0 0.0
    %1454 = vmatprep.subr.mxu0 0.0
    %1455 = vmatpush1.msra.mxu0 0.0
    %1456 = vmatprep.subr.mxu0 0.0
    %1457 = vmatpush1.msra.mxu0 0.0
    %1458 = vmatprep.subr.mxu0 0.0
    %1459 = vmatpush1.msra.mxu0 0.0
    %1460 = vmatprep.subr.mxu0 0.0
    %1461 = vmatpush1.msra.mxu0 0.0
    %1462 = vmatprep.subr.mxu0 0.0
    %1463 = vmatpush1.msra.mxu0 0.0
    %1464 = vmatprep.subr.mxu0 0.0
    %1465 = vmatpush1.msra.mxu0 0.0
    %1466 = vmatprep.subr.mxu0 0.0
    %1467 = vmatpush1.msra.mxu0 0.0
    %1468 = vmatprep.subr.mxu0 0.0
    %1469 = vmatpush1.msra.mxu0 0.0
    %1470 = vmatprep.subr.mxu0 0.0
    %1471 = vmatpush1.msra.mxu0 0.0
    %1472 = vmatprep.subr.mxu0 0.0
    %1473 = vmatpush1.msra.mxu0 0.0
    %1474 = vmatprep.subr.mxu0 0.0
    %1475 = vmatpush1.msra.mxu0 0.0
    %1476 = vmatprep.subr.mxu0 0.0
    %1477 = vmatpush1.msra.mxu0 0.0
    %1478 = vmatprep.subr.mxu0 0.0
    %1479 = vmatpush1.msra.mxu0 0.0
    %1480 = vmatprep.subr.mxu0 0.0
    %1481 = vmatpush1.msra.mxu0 0.0
    %1482 = vmatprep.subr.mxu0 0.0
    %1483 = vmatpush1.msra.mxu0 0.0
    %1484 = vmatprep.mubr.f32.mxu0 0.0
    %1485 = vmatmul.mubr.f32.gmra.mrb[0].mxu0 %v1418
    %v1486 = vpop.f32.mrb[0].mxu0
    %v1487 = vadd.f32 %v588, %v1486
    %v1488 = vpop.f32.mrb[0].mxu0
    %v1489 = vadd.f32 %v592, %v1488
    %1490 = vdwg.mxu0
    %1491 = vmatprep.subr.mxu0 0.0
    %1492 = vmatpush1.msra.mxu0 %v536
    %1493 = vmatprep.subr.mxu0 0.0
    %1494 = vmatpush1.msra.mxu0 %v539
    %1495 = vmatprep.subr.mxu0 0.0
    %1496 = vmatpush1.msra.mxu0 %v542
    %1497 = vmatprep.subr.mxu0 0.0
    %1498 = vmatpush1.msra.mxu0 %v545
    %1499 = vmatprep.subr.mxu0 0.0
    %1500 = vmatpush1.msra.mxu0 %v548
    %1501 = vmatprep.subr.mxu0 0.0
    %1502 = vmatpush1.msra.mxu0 %v551
    %1503 = vmatprep.subr.mxu0 0.0
    %1504 = vmatpush1.msra.mxu0 %v554
    %1505 = vmatprep.subr.mxu0 0.0
    %1506 = vmatpush1.msra.mxu0 %v557
    %1507 = vmatprep.subr.mxu0 0.0
    %1508 = vmatpush1.msra.mxu0 %v560
    %1509 = vmatprep.subr.mxu0 0.0
    %1510 = vmatpush1.msra.mxu0 %v563
    %1511 = vmatprep.subr.mxu0 0.0
    %1512 = vmatpush1.msra.mxu0 %v566
    %1513 = vmatprep.subr.mxu0 0.0
    %1514 = vmatpush1.msra.mxu0 %v569
    %1515 = vmatprep.subr.mxu0 0.0
    %1516 = vmatpush1.msra.mxu0 %v572
    %1517 = vmatprep.subr.mxu0 0.0
    %1518 = vmatpush1.msra.mxu0 %v575
    %1519 = vmatprep.subr.mxu0 0.0
    %1520 = vmatpush1.msra.mxu0 %v578
    %1521 = vmatprep.subr.mxu0 0.0
    %1522 = vmatpush1.msra.mxu0 %v581
    %1523 = vmatprep.subr.mxu0 0.0
    %1524 = vmatpush1.msra.mxu0 0.0
    %1525 = vmatprep.subr.mxu0 0.0
    %1526 = vmatpush1.msra.mxu0 0.0
    %1527 = vmatprep.subr.mxu0 0.0
    %1528 = vmatpush1.msra.mxu0 0.0
    %1529 = vmatprep.subr.mxu0 0.0
    %1530 = vmatpush1.msra.mxu0 0.0
    %1531 = vmatprep.subr.mxu0 0.0
    %1532 = vmatpush1.msra.mxu0 0.0
    %1533 = vmatprep.subr.mxu0 0.0
    %1534 = vmatpush1.msra.mxu0 0.0
    %1535 = vmatprep.subr.mxu0 0.0
    %1536 = vmatpush1.msra.mxu0 0.0
    %1537 = vmatprep.subr.mxu0 0.0
    %1538 = vmatpush1.msra.mxu0 0.0
    %1539 = vmatprep.subr.mxu0 0.0
    %1540 = vmatpush1.msra.mxu0 0.0
    %1541 = vmatprep.subr.mxu0 0.0
    %1542 = vmatpush1.msra.mxu0 0.0
    %1543 = vmatprep.subr.mxu0 0.0
    %1544 = vmatpush1.msra.mxu0 0.0
    %1545 = vmatprep.subr.mxu0 0.0
    %1546 = vmatpush1.msra.mxu0 0.0
    %1547 = vmatprep.subr.mxu0 0.0
    %1548 = vmatpush1.msra.mxu0 0.0
    %1549 = vmatprep.subr.mxu0 0.0
    %1550 = vmatpush1.msra.mxu0 0.0
    %1551 = vmatprep.subr.mxu0 0.0
    %1552 = vmatpush1.msra.mxu0 0.0
    %1553 = vmatprep.subr.mxu0 0.0
    %1554 = vmatpush1.msra.mxu0 0.0
    %1555 = vmatprep.mubr.f32.mxu0 0.0
    %1556 = vmatmul.mubr.f32.gmra.mrb[0].mxu0 %v1418
    %v1557 = vpop.f32.mrb[0].mxu0
    %v1558 = vadd.f32 %v596, %v1557
    %v1559 = vpop.f32.mrb[0].mxu0
    %1560 = vdwg.mxu0
    %v1563 = vrot.slane %v1487, 4
    %v1564 = vrot.slane %v1489, 4
    %v1565 = vrot.slane %v1487, 5
    %v1566 = vrot.slane %v1489, 5
    %v1571 = vadd.f32 %v449, %v1563
    %v1572 = vadd.f32 %v451, %v1564
    %v1573 = vadd.f32 %v455, %v1565
    %v1574 = vadd.f32 %v457, %v1566
    %v1575 = vxor.u32 %v1571, 2147483648
    %v1576 = vxor.u32 %v1572, 2147483648
    %v1577 = vxor.u32 %v1573, 2147483648
    %v1578 = vxor.u32 %v1574, 2147483648
    %v1579 = vmul.f32 %v1575, 1.442695
    %v1580 = vpow.pop %v1579
    %v1581 = vmul.f32 %v1576, 1.442695
    %v1582 = vpow.pop %v1581
    %v1583 = vmul.f32 %v1577, 1.442695
    %v1584 = vpow.pop %v1583
    %v1585 = vmul.f32 %v1578, 1.442695
    %v1586 = vpow.pop %v1585
    %v1587 = vadd.f32 %v1580, 1.0
    %v1588 = vadd.f32 %v1582, 1.0
    %v1589 = vadd.f32 %v1584, 1.0
    %v1590 = vadd.f32 %v1586, 1.0
    %v1591 = vrcp.pop %v1587
    %v1592 = vmul.f32 1.0, %v1591
    %v1593 = vrcp.pop %v1588
    %v1594 = vmul.f32 1.0, %v1593
    %v1595 = vrcp.pop %v1589
    %v1596 = vmul.f32 1.0, %v1595
    %v1597 = vrcp.pop %v1590
    %v1598 = vmul.f32 1.0, %v1597
    %v1600 = vrot.slane %v1558, 4
    %v1601 = vrot.slane %v1558, 5
    %v1604 = vmul.f32 %v1592, %v1600
    %v1605 = vmul.f32 %v1596, %v1601
    %v1606 = vadd.f32 %v526, %v1604
    %v1607 = vadd.f32 %v531, %v1605
    %v1608 = vtanh.pop %v1606
    %v1609 = vtanh.pop %v1607
    %v1610 = vsub.f32 1.0, %v1594
    %v1611 = vsub.f32 1.0, %v1598
    %v1612 = vmul.f32 %v1610, %v1608
    %v1613 = vmul.f32 %v1611, %v1609
    %v1614 = vrot.slane %v1412, 7
    %v1615 = vrot.slane %v1413, 7
    %v1618 = vmul.f32 %v1594, %v1614
    %v1619 = vmul.f32 %v1598, %v1615
    %v1620 = vadd.f32 %v1612, %v1618
    %v1621 = vadd.f32 %v1613, %v1619
    %v1624 = vrot.slane %v1620, 4
    %v1625 = vrot.slane %v1621, 3
    %v1626 = vsel %vm798, %v1625, %v1624
    %1628 = vmatprep.subr.mxu0 %v535
    %1629 = vmatpush1.msra.mxu0 %v534
    %1630 = vmatprep.subr.mxu0 %v538
    %1631 = vmatpush1.msra.mxu0 %v537
    %1632 = vmatprep.subr.mxu0 %v541
    %1633 = vmatpush1.msra.mxu0 %v540
    %1634 = vmatprep.subr.mxu0 %v544
    %1635 = vmatpush1.msra.mxu0 %v543
    %1636 = vmatprep.subr.mxu0 %v547
    %1637 = vmatpush1.msra.mxu0 %v546
    %1638 = vmatprep.subr.mxu0 %v550
    %1639 = vmatpush1.msra.mxu0 %v549
    %1640 = vmatprep.subr.mxu0 %v553
    %1641 = vmatpush1.msra.mxu0 %v552
    %1642 = vmatprep.subr.mxu0 %v556
    %1643 = vmatpush1.msra.mxu0 %v555
    %1644 = vmatprep.subr.mxu0 %v559
    %1645 = vmatpush1.msra.mxu0 %v558
    %1646 = vmatprep.subr.mxu0 %v562
    %1647 = vmatpush1.msra.mxu0 %v561
    %1648 = vmatprep.subr.mxu0 %v565
    %1649 = vmatpush1.msra.mxu0 %v564
    %1650 = vmatprep.subr.mxu0 %v568
    %1651 = vmatpush1.msra.mxu0 %v567
    %1652 = vmatprep.subr.mxu0 %v571
    %1653 = vmatpush1.msra.mxu0 %v570
    %1654 = vmatprep.subr.mxu0 %v574
    %1655 = vmatpush1.msra.mxu0 %v573
    %1656 = vmatprep.subr.mxu0 %v577
    %1657 = vmatpush1.msra.mxu0 %v576
    %1658 = vmatprep.subr.mxu0 %v580
    %1659 = vmatpush1.msra.mxu0 %v579
    %1660 = vmatprep.subr.mxu0 0.0
    %1661 = vmatpush1.msra.mxu0 0.0
    %1662 = vmatprep.subr.mxu0 0.0
    %1663 = vmatpush1.msra.mxu0 0.0
    %1664 = vmatprep.subr.mxu0 0.0
    %1665 = vmatpush1.msra.mxu0 0.0
    %1666 = vmatprep.subr.mxu0 0.0
    %1667 = vmatpush1.msra.mxu0 0.0
    %1668 = vmatprep.subr.mxu0 0.0
    %1669 = vmatpush1.msra.mxu0 0.0
    %1670 = vmatprep.subr.mxu0 0.0
    %1671 = vmatpush1.msra.mxu0 0.0
    %1672 = vmatprep.subr.mxu0 0.0
    %1673 = vmatpush1.msra.mxu0 0.0
    %1674 = vmatprep.subr.mxu0 0.0
    %1675 = vmatpush1.msra.mxu0 0.0
    %1676 = vmatprep.subr.mxu0 0.0
    %1677 = vmatpush1.msra.mxu0 0.0
    %1678 = vmatprep.subr.mxu0 0.0
    %1679 = vmatpush1.msra.mxu0 0.0
    %1680 = vmatprep.subr.mxu0 0.0
    %1681 = vmatpush1.msra.mxu0 0.0
    %1682 = vmatprep.subr.mxu0 0.0
    %1683 = vmatpush1.msra.mxu0 0.0
    %1684 = vmatprep.subr.mxu0 0.0
    %1685 = vmatpush1.msra.mxu0 0.0
    %1686 = vmatprep.subr.mxu0 0.0
    %1687 = vmatpush1.msra.mxu0 0.0
    %1688 = vmatprep.subr.mxu0 0.0
    %1689 = vmatpush1.msra.mxu0 0.0
    %1690 = vmatprep.subr.mxu0 0.0
    %1691 = vmatpush1.msra.mxu0 0.0
    %1692 = vmatprep.mubr.f32.mxu0 0.0
    %1693 = vmatmul.mubr.f32.gmra.mrb[0].mxu0 %v1626
    %v1694 = vpop.f32.mrb[0].mxu0
    %v1695 = vadd.f32 %v588, %v1694
    %v1696 = vpop.f32.mrb[0].mxu0
    %v1697 = vadd.f32 %v592, %v1696
    %1698 = vdwg.mxu0
    %1699 = vmatprep.subr.mxu0 0.0
    %1700 = vmatpush1.msra.mxu0 %v536
    %1701 = vmatprep.subr.mxu0 0.0
    %1702 = vmatpush1.msra.mxu0 %v539
    %1703 = vmatprep.subr.mxu0 0.0
    %1704 = vmatpush1.msra.mxu0 %v542
    %1705 = vmatprep.subr.mxu0 0.0
    %1706 = vmatpush1.msra.mxu0 %v545
    %1707 = vmatprep.subr.mxu0 0.0
    %1708 = vmatpush1.msra.mxu0 %v548
    %1709 = vmatprep.subr.mxu0 0.0
    %1710 = vmatpush1.msra.mxu0 %v551
    %1711 = vmatprep.subr.mxu0 0.0
    %1712 = vmatpush1.msra.mxu0 %v554
    %1713 = vmatprep.subr.mxu0 0.0
    %1714 = vmatpush1.msra.mxu0 %v557
    %1715 = vmatprep.subr.mxu0 0.0
    %1716 = vmatpush1.msra.mxu0 %v560
    %1717 = vmatprep.subr.mxu0 0.0
    %1718 = vmatpush1.msra.mxu0 %v563
    %1719 = vmatprep.subr.mxu0 0.0
    %1720 = vmatpush1.msra.mxu0 %v566
    %1721 = vmatprep.subr.mxu0 0.0
    %1722 = vmatpush1.msra.mxu0 %v569
    %1723 = vmatprep.subr.mxu0 0.0
    %1724 = vmatpush1.msra.mxu0 %v572
    %1725 = vmatprep.subr.mxu0 0.0
    %1726 = vmatpush1.msra.mxu0 %v575
    %1727 = vmatprep.subr.mxu0 0.0
    %1728 = vmatpush1.msra.mxu0 %v578
    %1729 = vmatprep.subr.mxu0 0.0
    %1730 = vmatpush1.msra.mxu0 %v581
    %1731 = vmatprep.subr.mxu0 0.0
    %1732 = vmatpush1.msra.mxu0 0.0
    %1733 = vmatprep.subr.mxu0 0.0
    %1734 = vmatpush1.msra.mxu0 0.0
    %1735 = vmatprep.subr.mxu0 0.0
    %1736 = vmatpush1.msra.mxu0 0.0
    %1737 = vmatprep.subr.mxu0 0.0
    %1738 = vmatpush1.msra.mxu0 0.0
    %1739 = vmatprep.subr.mxu0 0.0
    %1740 = vmatpush1.msra.mxu0 0.0
    %1741 = vmatprep.subr.mxu0 0.0
    %1742 = vmatpush1.msra.mxu0 0.0
    %1743 = vmatprep.subr.mxu0 0.0
    %1744 = vmatpush1.msra.mxu0 0.0
    %1745 = vmatprep.subr.mxu0 0.0
    %1746 = vmatpush1.msra.mxu0 0.0
    %1747 = vmatprep.subr.mxu0 0.0
    %1748 = vmatpush1.msra.mxu0 0.0
    %1749 = vmatprep.subr.mxu0 0.0
    %1750 = vmatpush1.msra.mxu0 0.0
    %1751 = vmatprep.subr.mxu0 0.0
    %1752 = vmatpush1.msra.mxu0 0.0
    %1753 = vmatprep.subr.mxu0 0.0
    %1754 = vmatpush1.msra.mxu0 0.0
    %1755 = vmatprep.subr.mxu0 0.0
    %1756 = vmatpush1.msra.mxu0 0.0
    %1757 = vmatprep.subr.mxu0 0.0
    %1758 = vmatpush1.msra.mxu0 0.0
    %1759 = vmatprep.subr.mxu0 0.0
    %1760 = vmatpush1.msra.mxu0 0.0
    %1761 = vmatprep.subr.mxu0 0.0
    %1762 = vmatpush1.msra.mxu0 0.0
    %1763 = vmatprep.mubr.f32.mxu0 0.0
    %1764 = vmatmul.mubr.f32.gmra.mrb[0].mxu0 %v1626
    %v1765 = vpop.f32.mrb[0].mxu0
    %v1766 = vadd.f32 %v596, %v1765
    %v1767 = vpop.f32.mrb[0].mxu0
    %1768 = vdwg.mxu0
    %v1771 = vrot.slane %v1695, 3
    %v1772 = vrot.slane %v1697, 3
    %v1773 = vrot.slane %v1695, 4
    %v1774 = vrot.slane %v1697, 4
    %v1779 = vadd.f32 %v449, %v1771
    %v1780 = vadd.f32 %v451, %v1772
    %v1781 = vadd.f32 %v455, %v1773
    %v1782 = vadd.f32 %v457, %v1774
    %v1783 = vxor.u32 %v1779, 2147483648
    %v1784 = vxor.u32 %v1780, 2147483648
    %v1785 = vxor.u32 %v1781, 2147483648
    %v1786 = vxor.u32 %v1782, 2147483648
    %v1787 = vmul.f32 %v1783, 1.442695
    %v1788 = vpow.pop %v1787
    %v1789 = vmul.f32 %v1784, 1.442695
    %v1790 = vpow.pop %v1789
    %v1791 = vmul.f32 %v1785, 1.442695
    %v1792 = vpow.pop %v1791
    %v1793 = vmul.f32 %v1786, 1.442695
    %v1794 = vpow.pop %v1793
    %v1795 = vadd.f32 %v1788, 1.0
    %v1796 = vadd.f32 %v1790, 1.0
    %v1797 = vadd.f32 %v1792, 1.0
    %v1798 = vadd.f32 %v1794, 1.0
    %v1799 = vrcp.pop %v1795
    %v1800 = vmul.f32 1.0, %v1799
    %v1801 = vrcp.pop %v1796
    %v1802 = vmul.f32 1.0, %v1801
    %v1803 = vrcp.pop %v1797
    %v1804 = vmul.f32 1.0, %v1803
    %v1805 = vrcp.pop %v1798
    %v1806 = vmul.f32 1.0, %v1805
    %v1808 = vrot.slane %v1766, 3
    %v1809 = vrot.slane %v1766, 4
    %v1812 = vmul.f32 %v1800, %v1808
    %v1813 = vmul.f32 %v1804, %v1809
    %v1814 = vadd.f32 %v526, %v1812
    %v1815 = vadd.f32 %v531, %v1813
    %v1816 = vtanh.pop %v1814
    %v1817 = vtanh.pop %v1815
    %v1818 = vsub.f32 1.0, %v1802
    %v1819 = vsub.f32 1.0, %v1806
    %v1820 = vmul.f32 %v1818, %v1816
    %v1821 = vmul.f32 %v1819, %v1817
    %v1822 = vrot.slane %v1620, 7
    %v1823 = vrot.slane %v1621, 7
    %v1826 = vmul.f32 %v1802, %v1822
    %v1827 = vmul.f32 %v1806, %v1823
    %v1828 = vadd.f32 %v1820, %v1826
    %v1829 = vadd.f32 %v1821, %v1827
    %v1832 = vrot.slane %v1828, 5
    %v1833 = vrot.slane %v1829, 4
    %v1834 = vsel %vm798, %v1833, %v1832
    %1836 = vmatprep.subr.mxu0 %v535
    %1837 = vmatpush1.msra.mxu0 %v534
    %1838 = vmatprep.subr.mxu0 %v538
    %1839 = vmatpush1.msra.mxu0 %v537
    %1840 = vmatprep.subr.mxu0 %v541
    %1841 = vmatpush1.msra.mxu0 %v540
    %1842 = vmatprep.subr.mxu0 %v544
    %1843 = vmatpush1.msra.mxu0 %v543
    %1844 = vmatprep.subr.mxu0 %v547
    %1845 = vmatpush1.msra.mxu0 %v546
    %1846 = vmatprep.subr.mxu0 %v550
    %1847 = vmatpush1.msra.mxu0 %v549
    %1848 = vmatprep.subr.mxu0 %v553
    %1849 = vmatpush1.msra.mxu0 %v552
    %1850 = vmatprep.subr.mxu0 %v556
    %1851 = vmatpush1.msra.mxu0 %v555
    %1852 = vmatprep.subr.mxu0 %v559
    %1853 = vmatpush1.msra.mxu0 %v558
    %1854 = vmatprep.subr.mxu0 %v562
    %1855 = vmatpush1.msra.mxu0 %v561
    %1856 = vmatprep.subr.mxu0 %v565
    %1857 = vmatpush1.msra.mxu0 %v564
    %1858 = vmatprep.subr.mxu0 %v568
    %1859 = vmatpush1.msra.mxu0 %v567
    %1860 = vmatprep.subr.mxu0 %v571
    %1861 = vmatpush1.msra.mxu0 %v570
    %1862 = vmatprep.subr.mxu0 %v574
    %1863 = vmatpush1.msra.mxu0 %v573
    %1864 = vmatprep.subr.mxu0 %v577
    %1865 = vmatpush1.msra.mxu0 %v576
    %1866 = vmatprep.subr.mxu0 %v580
    %1867 = vmatpush1.msra.mxu0 %v579
    %1868 = vmatprep.subr.mxu0 0.0
    %1869 = vmatpush1.msra.mxu0 0.0
    %1870 = vmatprep.subr.mxu0 0.0
    %1871 = vmatpush1.msra.mxu0 0.0
    %1872 = vmatprep.subr.mxu0 0.0
    %1873 = vmatpush1.msra.mxu0 0.0
    %1874 = vmatprep.subr.mxu0 0.0
    %1875 = vmatpush1.msra.mxu0 0.0
    %1876 = vmatprep.subr.mxu0 0.0
    %1877 = vmatpush1.msra.mxu0 0.0
    %1878 = vmatprep.subr.mxu0 0.0
    %1879 = vmatpush1.msra.mxu0 0.0
    %1880 = vmatprep.subr.mxu0 0.0
    %1881 = vmatpush1.msra.mxu0 0.0
    %1882 = vmatprep.subr.mxu0 0.0
    %1883 = vmatpush1.msra.mxu0 0.0
    %1884 = vmatprep.subr.mxu0 0.0
    %1885 = vmatpush1.msra.mxu0 0.0
    %1886 = vmatprep.subr.mxu0 0.0
    %1887 = vmatpush1.msra.mxu0 0.0
    %1888 = vmatprep.subr.mxu0 0.0
    %1889 = vmatpush1.msra.mxu0 0.0
    %1890 = vmatprep.subr.mxu0 0.0
    %1891 = vmatpush1.msra.mxu0 0.0
    %1892 = vmatprep.subr.mxu0 0.0
    %1893 = vmatpush1.msra.mxu0 0.0
    %1894 = vmatprep.subr.mxu0 0.0
    %1895 = vmatpush1.msra.mxu0 0.0
    %1896 = vmatprep.subr.mxu0 0.0
    %1897 = vmatpush1.msra.mxu0 0.0
    %1898 = vmatprep.subr.mxu0 0.0
    %1899 = vmatpush1.msra.mxu0 0.0
    %1900 = vmatprep.mubr.f32.mxu0 0.0
    %1901 = vmatmul.mubr.f32.gmra.mrb[0].mxu0 %v1834
    %v1902 = vpop.f32.mrb[0].mxu0
    %v1903 = vadd.f32 %v588, %v1902
    %v1904 = vpop.f32.mrb[0].mxu0
    %v1905 = vadd.f32 %v592, %v1904
    %1906 = vdwg.mxu0
    %1907 = vmatprep.subr.mxu0 0.0
    %1908 = vmatpush1.msra.mxu0 %v536
    %1909 = vmatprep.subr.mxu0 0.0
    %1910 = vmatpush1.msra.mxu0 %v539
    %1911 = vmatprep.subr.mxu0 0.0
    %1912 = vmatpush1.msra.mxu0 %v542
    %1913 = vmatprep.subr.mxu0 0.0
    %1914 = vmatpush1.msra.mxu0 %v545
    %1915 = vmatprep.subr.mxu0 0.0
    %1916 = vmatpush1.msra.mxu0 %v548
    %1917 = vmatprep.subr.mxu0 0.0
    %1918 = vmatpush1.msra.mxu0 %v551
    %1919 = vmatprep.subr.mxu0 0.0
    %1920 = vmatpush1.msra.mxu0 %v554
    %1921 = vmatprep.subr.mxu0 0.0
    %1922 = vmatpush1.msra.mxu0 %v557
    %1923 = vmatprep.subr.mxu0 0.0
    %1924 = vmatpush1.msra.mxu0 %v560
    %1925 = vmatprep.subr.mxu0 0.0
    %1926 = vmatpush1.msra.mxu0 %v563
    %1927 = vmatprep.subr.mxu0 0.0
    %1928 = vmatpush1.msra.mxu0 %v566
    %1929 = vmatprep.subr.mxu0 0.0
    %1930 = vmatpush1.msra.mxu0 %v569
    %1931 = vmatprep.subr.mxu0 0.0
    %1932 = vmatpush1.msra.mxu0 %v572
    %1933 = vmatprep.subr.mxu0 0.0
    %1934 = vmatpush1.msra.mxu0 %v575
    %1935 = vmatprep.subr.mxu0 0.0
    %1936 = vmatpush1.msra.mxu0 %v578
    %1937 = vmatprep.subr.mxu0 0.0
    %1938 = vmatpush1.msra.mxu0 %v581
    %1939 = vmatprep.subr.mxu0 0.0
    %1940 = vmatpush1.msra.mxu0 0.0
    %1941 = vmatprep.subr.mxu0 0.0
    %1942 = vmatpush1.msra.mxu0 0.0
    %1943 = vmatprep.subr.mxu0 0.0
    %1944 = vmatpush1.msra.mxu0 0.0
    %1945 = vmatprep.subr.mxu0 0.0
    %1946 = vmatpush1.msra.mxu0 0.0
    %1947 = vmatprep.subr.mxu0 0.0
    %1948 = vmatpush1.msra.mxu0 0.0
    %1949 = vmatprep.subr.mxu0 0.0
    %1950 = vmatpush1.msra.mxu0 0.0
    %1951 = vmatprep.subr.mxu0 0.0
    %1952 = vmatpush1.msra.mxu0 0.0
    %1953 = vmatprep.subr.mxu0 0.0
    %1954 = vmatpush1.msra.mxu0 0.0
    %1955 = vmatprep.subr.mxu0 0.0
    %1956 = vmatpush1.msra.mxu0 0.0
    %1957 = vmatprep.subr.mxu0 0.0
    %1958 = vmatpush1.msra.mxu0 0.0
    %1959 = vmatprep.subr.mxu0 0.0
    %1960 = vmatpush1.msra.mxu0 0.0
    %1961 = vmatprep.subr.mxu0 0.0
    %1962 = vmatpush1.msra.mxu0 0.0
    %1963 = vmatprep.subr.mxu0 0.0
    %1964 = vmatpush1.msra.mxu0 0.0
    %1965 = vmatprep.subr.mxu0 0.0
    %1966 = vmatpush1.msra.mxu0 0.0
    %1967 = vmatprep.subr.mxu0 0.0
    %1968 = vmatpush1.msra.mxu0 0.0
    %1969 = vmatprep.subr.mxu0 0.0
    %1970 = vmatpush1.msra.mxu0 0.0
    %1971 = vmatprep.mubr.f32.mxu0 0.0
    %1972 = vmatmul.mubr.f32.gmra.mrb[0].mxu0 %v1834
    %v1973 = vpop.f32.mrb[0].mxu0
    %v1974 = vadd.f32 %v596, %v1973
    %v1975 = vpop.f32.mrb[0].mxu0
    %1976 = vdwg.mxu0
    %v1979 = vrot.slane %v1903, 2
    %v1980 = vrot.slane %v1905, 2
    %v1981 = vrot.slane %v1903, 3
    %v1982 = vrot.slane %v1905, 3
    %v1987 = vadd.f32 %v449, %v1979
    %v1988 = vadd.f32 %v451, %v1980
    %v1989 = vadd.f32 %v455, %v1981
    %v1990 = vadd.f32 %v457, %v1982
    %v1991 = vxor.u32 %v1987, 2147483648
    %v1992 = vxor.u32 %v1988, 2147483648
    %v1993 = vxor.u32 %v1989, 2147483648
    %v1994 = vxor.u32 %v1990, 2147483648
    %v1995 = vmul.f32 %v1991, 1.442695
    %v1996 = vpow.pop %v1995
    %v1997 = vmul.f32 %v1992, 1.442695
    %v1998 = vpow.pop %v1997
    %v1999 = vmul.f32 %v1993, 1.442695
    %v2000 = vpow.pop %v1999
    %v2001 = vmul.f32 %v1994, 1.442695
    %v2002 = vpow.pop %v2001
    %v2003 = vadd.f32 %v1996, 1.0
    %v2004 = vadd.f32 %v1998, 1.0
    %v2005 = vadd.f32 %v2000, 1.0
    %v2006 = vadd.f32 %v2002, 1.0
    %v2007 = vrcp.pop %v2003
    %v2008 = vmul.f32 1.0, %v2007
    %v2009 = vrcp.pop %v2004
    %v2010 = vmul.f32 1.0, %v2009
    %v2011 = vrcp.pop %v2005
    %v2012 = vmul.f32 1.0, %v2011
    %v2013 = vrcp.pop %v2006
    %v2014 = vmul.f32 1.0, %v2013
    %v2016 = vrot.slane %v1974, 2
    %v2017 = vrot.slane %v1974, 3
    %v2020 = vmul.f32 %v2008, %v2016
    %v2021 = vmul.f32 %v2012, %v2017
    %v2022 = vadd.f32 %v526, %v2020
    %v2023 = vadd.f32 %v531, %v2021
    %v2024 = vtanh.pop %v2022
    %v2025 = vtanh.pop %v2023
    %v2026 = vsub.f32 1.0, %v2010
    %v2027 = vsub.f32 1.0, %v2014
    %v2028 = vmul.f32 %v2026, %v2024
    %v2029 = vmul.f32 %v2027, %v2025
    %v2030 = vrot.slane %v1828, 7
    %v2031 = vrot.slane %v1829, 7
    %v2034 = vmul.f32 %v2010, %v2030
    %v2035 = vmul.f32 %v2014, %v2031
    %v2036 = vadd.f32 %v2028, %v2034
    %v2037 = vadd.f32 %v2029, %v2035
    %v2040 = vrot.slane %v2036, 6
    %v2041 = vrot.slane %v2037, 5
    %v2042 = vsel %vm798, %v2041, %v2040
    %2044 = vmatprep.subr.mxu0 %v535
    %2045 = vmatpush1.msra.mxu0 %v534
    %2046 = vmatprep.subr.mxu0 %v538
    %2047 = vmatpush1.msra.mxu0 %v537
    %2048 = vmatprep.subr.mxu0 %v541
    %2049 = vmatpush1.msra.mxu0 %v540
    %2050 = vmatprep.subr.mxu0 %v544
    %2051 = vmatpush1.msra.mxu0 %v543
    %2052 = vmatprep.subr.mxu0 %v547
    %2053 = vmatpush1.msra.mxu0 %v546
    %2054 = vmatprep.subr.mxu0 %v550
    %2055 = vmatpush1.msra.mxu0 %v549
    %2056 = vmatprep.subr.mxu0 %v553
    %2057 = vmatpush1.msra.mxu0 %v552
    %2058 = vmatprep.subr.mxu0 %v556
    %2059 = vmatpush1.msra.mxu0 %v555
    %2060 = vmatprep.subr.mxu0 %v559
    %2061 = vmatpush1.msra.mxu0 %v558
    %2062 = vmatprep.subr.mxu0 %v562
    %2063 = vmatpush1.msra.mxu0 %v561
    %2064 = vmatprep.subr.mxu0 %v565
    %2065 = vmatpush1.msra.mxu0 %v564
    %2066 = vmatprep.subr.mxu0 %v568
    %2067 = vmatpush1.msra.mxu0 %v567
    %2068 = vmatprep.subr.mxu0 %v571
    %2069 = vmatpush1.msra.mxu0 %v570
    %2070 = vmatprep.subr.mxu0 %v574
    %2071 = vmatpush1.msra.mxu0 %v573
    %2072 = vmatprep.subr.mxu0 %v577
    %2073 = vmatpush1.msra.mxu0 %v576
    %2074 = vmatprep.subr.mxu0 %v580
    %2075 = vmatpush1.msra.mxu0 %v579
    %2076 = vmatprep.subr.mxu0 0.0
    %2077 = vmatpush1.msra.mxu0 0.0
    %2078 = vmatprep.subr.mxu0 0.0
    %2079 = vmatpush1.msra.mxu0 0.0
    %2080 = vmatprep.subr.mxu0 0.0
    %2081 = vmatpush1.msra.mxu0 0.0
    %2082 = vmatprep.subr.mxu0 0.0
    %2083 = vmatpush1.msra.mxu0 0.0
    %2084 = vmatprep.subr.mxu0 0.0
    %2085 = vmatpush1.msra.mxu0 0.0
    %2086 = vmatprep.subr.mxu0 0.0
    %2087 = vmatpush1.msra.mxu0 0.0
    %2088 = vmatprep.subr.mxu0 0.0
    %2089 = vmatpush1.msra.mxu0 0.0
    %2090 = vmatprep.subr.mxu0 0.0
    %2091 = vmatpush1.msra.mxu0 0.0
    %2092 = vmatprep.subr.mxu0 0.0
    %2093 = vmatpush1.msra.mxu0 0.0
    %2094 = vmatprep.subr.mxu0 0.0
    %2095 = vmatpush1.msra.mxu0 0.0
    %2096 = vmatprep.subr.mxu0 0.0
    %2097 = vmatpush1.msra.mxu0 0.0
    %2098 = vmatprep.subr.mxu0 0.0
    %2099 = vmatpush1.msra.mxu0 0.0
    %2100 = vmatprep.subr.mxu0 0.0
    %2101 = vmatpush1.msra.mxu0 0.0
    %2102 = vmatprep.subr.mxu0 0.0
    %2103 = vmatpush1.msra.mxu0 0.0
    %2104 = vmatprep.subr.mxu0 0.0
    %2105 = vmatpush1.msra.mxu0 0.0
    %2106 = vmatprep.subr.mxu0 0.0
    %2107 = vmatpush1.msra.mxu0 0.0
    %2108 = vmatprep.mubr.f32.mxu0 0.0
    %2109 = vmatmul.mubr.f32.gmra.mrb[0].mxu0 %v2042
    %v2110 = vpop.f32.mrb[0].mxu0
    %v2111 = vadd.f32 %v588, %v2110
    %v2112 = vpop.f32.mrb[0].mxu0
    %v2113 = vadd.f32 %v592, %v2112
    %2114 = vdwg.mxu0
    %2115 = vmatprep.subr.mxu0 0.0
    %2116 = vmatpush1.msra.mxu0 %v536
    %2117 = vmatprep.subr.mxu0 0.0
    %2118 = vmatpush1.msra.mxu0 %v539
    %2119 = vmatprep.subr.mxu0 0.0
    %2120 = vmatpush1.msra.mxu0 %v542
    %2121 = vmatprep.subr.mxu0 0.0
    %2122 = vmatpush1.msra.mxu0 %v545
    %2123 = vmatprep.subr.mxu0 0.0
    %2124 = vmatpush1.msra.mxu0 %v548
    %2125 = vmatprep.subr.mxu0 0.0
    %2126 = vmatpush1.msra.mxu0 %v551
    %2127 = vmatprep.subr.mxu0 0.0
    %2128 = vmatpush1.msra.mxu0 %v554
    %2129 = vmatprep.subr.mxu0 0.0
    %2130 = vmatpush1.msra.mxu0 %v557
    %2131 = vmatprep.subr.mxu0 0.0
    %2132 = vmatpush1.msra.mxu0 %v560
    %2133 = vmatprep.subr.mxu0 0.0
    %2134 = vmatpush1.msra.mxu0 %v563
    %2135 = vmatprep.subr.mxu0 0.0
    %2136 = vmatpush1.msra.mxu0 %v566
    %2137 = vmatprep.subr.mxu0 0.0
    %2138 = vmatpush1.msra.mxu0 %v569
    %2139 = vmatprep.subr.mxu0 0.0
    %2140 = vmatpush1.msra.mxu0 %v572
    %2141 = vmatprep.subr.mxu0 0.0
    %2142 = vmatpush1.msra.mxu0 %v575
    %2143 = vmatprep.subr.mxu0 0.0
    %2144 = vmatpush1.msra.mxu0 %v578
    %2145 = vmatprep.subr.mxu0 0.0
    %2146 = vmatpush1.msra.mxu0 %v581
    %2147 = vmatprep.subr.mxu0 0.0
    %2148 = vmatpush1.msra.mxu0 0.0
    %2149 = vmatprep.subr.mxu0 0.0
    %2150 = vmatpush1.msra.mxu0 0.0
    %2151 = vmatprep.subr.mxu0 0.0
    %2152 = vmatpush1.msra.mxu0 0.0
    %2153 = vmatprep.subr.mxu0 0.0
    %2154 = vmatpush1.msra.mxu0 0.0
    %2155 = vmatprep.subr.mxu0 0.0
    %2156 = vmatpush1.msra.mxu0 0.0
    %2157 = vmatprep.subr.mxu0 0.0
    %2158 = vmatpush1.msra.mxu0 0.0
    %2159 = vmatprep.subr.mxu0 0.0
    %2160 = vmatpush1.msra.mxu0 0.0
    %2161 = vmatprep.subr.mxu0 0.0
    %2162 = vmatpush1.msra.mxu0 0.0
    %2163 = vmatprep.subr.mxu0 0.0
    %2164 = vmatpush1.msra.mxu0 0.0
    %2165 = vmatprep.subr.mxu0 0.0
    %2166 = vmatpush1.msra.mxu0 0.0
    %2167 = vmatprep.subr.mxu0 0.0
    %2168 = vmatpush1.msra.mxu0 0.0
    %2169 = vmatprep.subr.mxu0 0.0
    %2170 = vmatpush1.msra.mxu0 0.0
    %2171 = vmatprep.subr.mxu0 0.0
    %2172 = vmatpush1.msra.mxu0 0.0
    %2173 = vmatprep.subr.mxu0 0.0
    %2174 = vmatpush1.msra.mxu0 0.0
    %2175 = vmatprep.subr.mxu0 0.0
    %2176 = vmatpush1.msra.mxu0 0.0
    %2177 = vmatprep.subr.mxu0 0.0
    %2178 = vmatpush1.msra.mxu0 0.0
    %2179 = vmatprep.mubr.f32.mxu0 0.0
    %2180 = vmatmul.mubr.f32.gmra.mrb[0].mxu0 %v2042
    %v2181 = vpop.f32.mrb[0].mxu0
    %v2182 = vadd.f32 %v596, %v2181
    %v2183 = vpop.f32.mrb[0].mxu0
    %2184 = vdwg.mxu0
    %v2187 = vrot.slane %v2111, 1
    %v2188 = vrot.slane %v2113, 1
    %v2189 = vrot.slane %v2111, 2
    %v2190 = vrot.slane %v2113, 2
    %v2195 = vadd.f32 %v449, %v2187
    %v2196 = vadd.f32 %v451, %v2188
    %v2197 = vadd.f32 %v455, %v2189
    %v2198 = vadd.f32 %v457, %v2190
    %v2199 = vxor.u32 %v2195, 2147483648
    %v2200 = vxor.u32 %v2196, 2147483648
    %v2201 = vxor.u32 %v2197, 2147483648
    %v2202 = vxor.u32 %v2198, 2147483648
    %v2203 = vmul.f32 %v2199, 1.442695
    %v2204 = vpow.pop %v2203
    %v2205 = vmul.f32 %v2200, 1.442695
    %v2206 = vpow.pop %v2205
    %v2207 = vmul.f32 %v2201, 1.442695
    %v2208 = vpow.pop %v2207
    %v2209 = vmul.f32 %v2202, 1.442695
    %v2210 = vpow.pop %v2209
    %v2211 = vadd.f32 %v2204, 1.0
    %v2212 = vadd.f32 %v2206, 1.0
    %v2213 = vadd.f32 %v2208, 1.0
    %v2214 = vadd.f32 %v2210, 1.0
    %v2215 = vrcp.pop %v2211
    %v2216 = vmul.f32 1.0, %v2215
    %v2217 = vrcp.pop %v2212
    %v2218 = vmul.f32 1.0, %v2217
    %v2219 = vrcp.pop %v2213
    %v2220 = vmul.f32 1.0, %v2219
    %v2221 = vrcp.pop %v2214
    %v2222 = vmul.f32 1.0, %v2221
    %v2224 = vrot.slane %v2182, 1
    %v2225 = vrot.slane %v2182, 2
    %v2228 = vmul.f32 %v2216, %v2224
    %v2229 = vmul.f32 %v2220, %v2225
    %v2230 = vadd.f32 %v526, %v2228
    %v2231 = vadd.f32 %v531, %v2229
    %v2232 = vtanh.pop %v2230
    %v2233 = vtanh.pop %v2231
    %v2234 = vsub.f32 1.0, %v2218
    %v2235 = vsub.f32 1.0, %v2222
    %v2236 = vmul.f32 %v2234, %v2232
    %v2237 = vmul.f32 %v2235, %v2233
    %v2238 = vrot.slane %v2036, 7
    %v2239 = vrot.slane %v2037, 7
    %v2242 = vmul.f32 %v2218, %v2238
    %v2243 = vmul.f32 %v2222, %v2239
    %v2244 = vadd.f32 %v2236, %v2242
    %v2245 = vadd.f32 %v2237, %v2243
    %v2246 = vld [vmem:[#allocation6 + $0x50] sm:$0xff]
    %v2247 = vld [vmem:[#allocation6 + $0x58] sm:$0xff]
    %v2248 = vld [vmem:[#allocation6 + $0x60] sm:$0xff]
    %v2249 = vld [vmem:[#allocation6 + $0x68] sm:$0xff]
    %v2250 = vld [vmem:[#allocation6 + $0x70] sm:$0xff]
    %v2251 = vld [vmem:[#allocation6 + $0x78] sm:$0xff]
    %v2252 = vld [vmem:[#allocation6 + $0x80] sm:$0xff]
    %v2253 = vld [vmem:[#allocation6 + $0x88] sm:$0xff]
    %v2255 = vsel %vm375, %v157, 0
    %2257 = vmatprep.subr.mxu0 0.0
    %2258 = vmatpush1.msra.mxu0 %v2250
    %2259 = vmatprep.subr.mxu0 0.0
    %2260 = vmatpush1.msra.mxu0 %v2251
    %2261 = vmatprep.subr.mxu0 0.0
    %2262 = vmatpush1.msra.mxu0 %v2252
    %2263 = vmatprep.subr.mxu0 0.0
    %2264 = vmatpush1.msra.mxu0 %v2253
    %2265 = vmatprep.subr.mxu0 0.0
    %2266 = vmatpush1.msra.mxu0 0.0
    %2267 = vmatprep.subr.mxu0 0.0
    %2268 = vmatpush1.msra.mxu0 0.0
    %2269 = vmatprep.subr.mxu0 0.0
    %2270 = vmatpush1.msra.mxu0 0.0
    %2271 = vmatprep.subr.mxu0 0.0
    %2272 = vmatpush1.msra.mxu0 0.0
    %2273 = vmatprep.subr.mxu0 0.0
    %2274 = vmatpush1.msra.mxu0 0.0
    %2275 = vmatprep.subr.mxu0 0.0
    %2276 = vmatpush1.msra.mxu0 0.0
    %2277 = vmatprep.subr.mxu0 0.0
    %2278 = vmatpush1.msra.mxu0 0.0
    %2279 = vmatprep.subr.mxu0 0.0
    %2280 = vmatpush1.msra.mxu0 0.0
    %2281 = vmatprep.subr.mxu0 0.0
    %2282 = vmatpush1.msra.mxu0 0.0
    %2283 = vmatprep.subr.mxu0 0.0
    %2284 = vmatpush1.msra.mxu0 0.0
    %2285 = vmatprep.subr.mxu0 0.0
    %2286 = vmatpush1.msra.mxu0 0.0
    %2287 = vmatprep.subr.mxu0 0.0
    %2288 = vmatpush1.msra.mxu0 0.0
    %2289 = vmatprep.subr.mxu0 0.0
    %2290 = vmatpush1.msra.mxu0 0.0
    %2291 = vmatprep.subr.mxu0 0.0
    %2292 = vmatpush1.msra.mxu0 0.0
    %2293 = vmatprep.subr.mxu0 0.0
    %2294 = vmatpush1.msra.mxu0 0.0
    %2295 = vmatprep.subr.mxu0 0.0
    %2296 = vmatpush1.msra.mxu0 0.0
    %2297 = vmatprep.subr.mxu0 0.0
    %2298 = vmatpush1.msra.mxu0 0.0
    %2299 = vmatprep.subr.mxu0 0.0
    %2300 = vmatpush1.msra.mxu0 0.0
    %2301 = vmatprep.subr.mxu0 0.0
    %2302 = vmatpush1.msra.mxu0 0.0
    %2303 = vmatprep.subr.mxu0 0.0
    %2304 = vmatpush1.msra.mxu0 0.0
    %2305 = vmatprep.subr.mxu0 0.0
    %2306 = vmatpush1.msra.mxu0 0.0
    %2307 = vmatprep.subr.mxu0 0.0
    %2308 = vmatpush1.msra.mxu0 0.0
    %2309 = vmatprep.subr.mxu0 0.0
    %2310 = vmatpush1.msra.mxu0 0.0
    %2311 = vmatprep.subr.mxu0 0.0
    %2312 = vmatpush1.msra.mxu0 0.0
    %2313 = vmatprep.subr.mxu0 0.0
    %2314 = vmatpush1.msra.mxu0 0.0
    %2315 = vmatprep.subr.mxu0 0.0
    %2316 = vmatpush1.msra.mxu0 0.0
    %2317 = vmatprep.subr.mxu0 0.0
    %2318 = vmatpush1.msra.mxu0 0.0
    %2319 = vmatprep.subr.mxu0 0.0
    %2320 = vmatpush1.msra.mxu0 0.0
    %2321 = vmatprep.mubr.f32.mxu0 0.0
    %2322 = vmatmul.mubr.f32.gmra.mrb[0].mxu0 %v2255
    %v2323 = vpop.f32.mrb[0].mxu0
    %v2324 = vadd.f32 0.0, %v2323
    %v2325 = vpop.f32.mrb[0].mxu0
    %2326 = vdwg.mxu0
    %v2328 = vsel %vm375, %v240, 0
    %2330 = vmatprep.subr.mxu0 0.0
    %2331 = vmatpush1.msra.mxu0 %v2246
    %2332 = vmatprep.subr.mxu0 0.0
    %2333 = vmatpush1.msra.mxu0 %v2247
    %2334 = vmatprep.subr.mxu0 0.0
    %2335 = vmatpush1.msra.mxu0 %v2248
    %2336 = vmatprep.subr.mxu0 0.0
    %2337 = vmatpush1.msra.mxu0 %v2249
    %2338 = vmatprep.subr.mxu0 0.0
    %2339 = vmatpush1.msra.mxu0 0.0
    %2340 = vmatprep.subr.mxu0 0.0
    %2341 = vmatpush1.msra.mxu0 0.0
    %2342 = vmatprep.subr.mxu0 0.0
    %2343 = vmatpush1.msra.mxu0 0.0
    %2344 = vmatprep.subr.mxu0 0.0
    %2345 = vmatpush1.msra.mxu0 0.0
    %2346 = vmatprep.subr.mxu0 0.0
    %2347 = vmatpush1.msra.mxu0 0.0
    %2348 = vmatprep.subr.mxu0 0.0
    %2349 = vmatpush1.msra.mxu0 0.0
    %2350 = vmatprep.subr.mxu0 0.0
    %2351 = vmatpush1.msra.mxu0 0.0
    %2352 = vmatprep.subr.mxu0 0.0
    %2353 = vmatpush1.msra.mxu0 0.0
    %2354 = vmatprep.subr.mxu0 0.0
    %2355 = vmatpush1.msra.mxu0 0.0
    %2356 = vmatprep.subr.mxu0 0.0
    %2357 = vmatpush1.msra.mxu0 0.0
    %2358 = vmatprep.subr.mxu0 0.0
    %2359 = vmatpush1.msra.mxu0 0.0
    %2360 = vmatprep.subr.mxu0 0.0
    %2361 = vmatpush1.msra.mxu0 0.0
    %2362 = vmatprep.subr.mxu0 0.0
    %2363 = vmatpush1.msra.mxu0 0.0
    %2364 = vmatprep.subr.mxu0 0.0
    %2365 = vmatpush1.msra.mxu0 0.0
    %2366 = vmatprep.subr.mxu0 0.0
    %2367 = vmatpush1.msra.mxu0 0.0
    %2368 = vmatprep.subr.mxu0 0.0
    %2369 = vmatpush1.msra.mxu0 0.0
    %2370 = vmatprep.subr.mxu0 0.0
    %2371 = vmatpush1.msra.mxu0 0.0
    %2372 = vmatprep.subr.mxu0 0.0
    %2373 = vmatpush1.msra.mxu0 0.0
    %2374 = vmatprep.subr.mxu0 0.0
    %2375 = vmatpush1.msra.mxu0 0.0
    %2376 = vmatprep.subr.mxu0 0.0
    %2377 = vmatpush1.msra.mxu0 0.0
    %2378 = vmatprep.subr.mxu0 0.0
    %2379 = vmatpush1.msra.mxu0 0.0
    %2380 = vmatprep.subr.mxu0 0.0
    %2381 = vmatpush1.msra.mxu0 0.0
    %2382 = vmatprep.subr.mxu0 0.0
    %2383 = vmatpush1.msra.mxu0 0.0
    %2384 = vmatprep.subr.mxu0 0.0
    %2385 = vmatpush1.msra.mxu0 0.0
    %2386 = vmatprep.subr.mxu0 0.0
    %2387 = vmatpush1.msra.mxu0 0.0
    %2388 = vmatprep.subr.mxu0 0.0
    %2389 = vmatpush1.msra.mxu0 0.0
    %2390 = vmatprep.subr.mxu0 0.0
    %2391 = vmatpush1.msra.mxu0 0.0
    %2392 = vmatprep.subr.mxu0 0.0
    %2393 = vmatpush1.msra.mxu0 0.0
    %2394 = vmatprep.mubr.f32.mxu0 0.0
    %2395 = vmatmul.mubr.f32.gmra.mrb[0].mxu0 %v2328
    %v2396 = vpop.f32.mrb[0].mxu0
    %v2397 = vadd.f32 %v2324, %v2396
    %v2398 = vpop.f32.mrb[0].mxu0
    %2399 = vdwg.mxu0
    %v2400 = vld [vmem:[#allocation6 + $0x90] sm:$0xff]
    %v2401 = vld [vmem:[#allocation6 + $0x98] sm:$0xff]
    %v2402 = vld [vmem:[#allocation6 + $0xa0] sm:$0xff]
    %v2403 = vld [vmem:[#allocation6 + $0xa8] sm:$0xff]
    %v2404 = vld [vmem:[#allocation6 + $0xb0] sm:$0xff]
    %v2405 = vld [vmem:[#allocation6 + $0xb8] sm:$0xff]
    %v2406 = vld [vmem:[#allocation6 + $0xc0] sm:$0xff]
    %v2407 = vld [vmem:[#allocation6 + $0xc8] sm:$0xff]
    %v2408 = vld [vmem:[#allocation6 + $0xd0] sm:$0xff]
    %v2409 = vld [vmem:[#allocation6 + $0xd8] sm:$0xff]
    %v2410 = vld [vmem:[#allocation6 + $0xe0] sm:$0xff]
    %v2411 = vld [vmem:[#allocation6 + $0xe8] sm:$0xff]
    %v2412 = vld [vmem:[#allocation6 + $0xf0] sm:$0xff]
    %v2413 = vld [vmem:[#allocation6 + $0xf8] sm:$0xff]
    %v2414 = vld [vmem:[#allocation6 + $0x100] sm:$0xff]
    %v2415 = vld [vmem:[#allocation6 + $0x108] sm:$0xff]
    %v2418 = vrot.slane %v2244, 7
    %v2419 = vrot.slane %v2245, 6
    %v2420 = vsel %vm798, %v2419, %v2418
    %2422 = vmatprep.subr.mxu0 0.0
    %2423 = vmatpush1.msra.mxu0 %v2400
    %2424 = vmatprep.subr.mxu0 0.0
    %2425 = vmatpush1.msra.mxu0 %v2401
    %2426 = vmatprep.subr.mxu0 0.0
    %2427 = vmatpush1.msra.mxu0 %v2402
    %2428 = vmatprep.subr.mxu0 0.0
    %2429 = vmatpush1.msra.mxu0 %v2403
    %2430 = vmatprep.subr.mxu0 0.0
    %2431 = vmatpush1.msra.mxu0 %v2404
    %2432 = vmatprep.subr.mxu0 0.0
    %2433 = vmatpush1.msra.mxu0 %v2405
    %2434 = vmatprep.subr.mxu0 0.0
    %2435 = vmatpush1.msra.mxu0 %v2406
    %2436 = vmatprep.subr.mxu0 0.0
    %2437 = vmatpush1.msra.mxu0 %v2407
    %2438 = vmatprep.subr.mxu0 0.0
    %2439 = vmatpush1.msra.mxu0 %v2408
    %2440 = vmatprep.subr.mxu0 0.0
    %2441 = vmatpush1.msra.mxu0 %v2409
    %2442 = vmatprep.subr.mxu0 0.0
    %2443 = vmatpush1.msra.mxu0 %v2410
    %2444 = vmatprep.subr.mxu0 0.0
    %2445 = vmatpush1.msra.mxu0 %v2411
    %2446 = vmatprep.subr.mxu0 0.0
    %2447 = vmatpush1.msra.mxu0 %v2412
    %2448 = vmatprep.subr.mxu0 0.0
    %2449 = vmatpush1.msra.mxu0 %v2413
    %2450 = vmatprep.subr.mxu0 0.0
    %2451 = vmatpush1.msra.mxu0 %v2414
    %2452 = vmatprep.subr.mxu0 0.0
    %2453 = vmatpush1.msra.mxu0 %v2415
    %2454 = vmatprep.subr.mxu0 0.0
    %2455 = vmatpush1.msra.mxu0 0.0
    %2456 = vmatprep.subr.mxu0 0.0
    %2457 = vmatpush1.msra.mxu0 0.0
    %2458 = vmatprep.subr.mxu0 0.0
    %2459 = vmatpush1.msra.mxu0 0.0
    %2460 = vmatprep.subr.mxu0 0.0
    %2461 = vmatpush1.msra.mxu0 0.0
    %2462 = vmatprep.subr.mxu0 0.0
    %2463 = vmatpush1.msra.mxu0 0.0
    %2464 = vmatprep.subr.mxu0 0.0
    %2465 = vmatpush1.msra.mxu0 0.0
    %2466 = vmatprep.subr.mxu0 0.0
    %2467 = vmatpush1.msra.mxu0 0.0
    %2468 = vmatprep.subr.mxu0 0.0
    %2469 = vmatpush1.msra.mxu0 0.0
    %2470 = vmatprep.subr.mxu0 0.0
    %2471 = vmatpush1.msra.mxu0 0.0
    %2472 = vmatprep.subr.mxu0 0.0
    %2473 = vmatpush1.msra.mxu0 0.0
    %2474 = vmatprep.subr.mxu0 0.0
    %2475 = vmatpush1.msra.mxu0 0.0
    %2476 = vmatprep.subr.mxu0 0.0
    %2477 = vmatpush1.msra.mxu0 0.0
    %2478 = vmatprep.subr.mxu0 0.0
    %2479 = vmatpush1.msra.mxu0 0.0
    %2480 = vmatprep.subr.mxu0 0.0
    %2481 = vmatpush1.msra.mxu0 0.0
    %2482 = vmatprep.subr.mxu0 0.0
    %2483 = vmatpush1.msra.mxu0 0.0
    %2484 = vmatprep.subr.mxu0 0.0
    %2485 = vmatpush1.msra.mxu0 0.0
    %2486 = vmatprep.mubr.f32.mxu0 0.0
    %2487 = vmatmul.mubr.f32.gmra.mrb[0].mxu0 %v2420
    %v2488 = vpop.f32.mrb[0].mxu0
    %v2489 = vadd.f32 0.0, %v2488
    %v2490 = vpop.f32.mrb[0].mxu0
    %2491 = vdwg.mxu0
    %v2492 = vadd.f32 %v2397, %v2489
    %v2493 = vld [vmem:[#allocation6 + $0x110] sm:$0x1]
    %v2494 = vlaneseq
    %v2495 = vshrl.u32 %v2494, 7
    %v2496 = vsub.s32 0, %v2495
    %v2497 = vrot.slane %v2493, %v2496
    %v2498 = vadd.f32 %v2492, %v2497
    %v2499 = vmax.f32 %v2498, 0.0
    %v2500 = vmul.f32 %v2499, 2.0
    %v2501 = vld [vmem:[#allocation6 + $0x118] sm:$0xff]
    %v2502 = vld [vmem:[#allocation6 + $0x120] sm:$0xff]
    %v2503 = vld [vmem:[#allocation6 + $0x128] sm:$0xff]
    %v2504 = vld [vmem:[#allocation6 + $0x130] sm:$0xff]
    %v2506 = vsel %vm78, %v2500, 0
    %2508 = vmatprep.subr.mxu0 0.0
    %2509 = vmatpush1.msra.mxu0 %v2501
    %2510 = vmatprep.subr.mxu0 0.0
    %2511 = vmatpush1.msra.mxu0 %v2502
    %2512 = vmatprep.subr.mxu0 0.0
    %2513 = vmatpush1.msra.mxu0 0.0
    %2514 = vmatprep.subr.mxu0 0.0
    %2515 = vmatpush1.msra.mxu0 0.0
    %2516 = vmatprep.subr.mxu0 0.0
    %2517 = vmatpush1.msra.mxu0 0.0
    %2518 = vmatprep.subr.mxu0 0.0
    %2519 = vmatpush1.msra.mxu0 0.0
    %2520 = vmatprep.subr.mxu0 0.0
    %2521 = vmatpush1.msra.mxu0 0.0
    %2522 = vmatprep.subr.mxu0 0.0
    %2523 = vmatpush1.msra.mxu0 0.0
    %2524 = vmatprep.subr.mxu0 0.0
    %2525 = vmatpush1.msra.mxu0 0.0
    %2526 = vmatprep.subr.mxu0 0.0
    %2527 = vmatpush1.msra.mxu0 0.0
    %2528 = vmatprep.subr.mxu0 0.0
    %2529 = vmatpush1.msra.mxu0 0.0
    %2530 = vmatprep.subr.mxu0 0.0
    %2531 = vmatpush1.msra.mxu0 0.0
    %2532 = vmatprep.subr.mxu0 0.0
    %2533 = vmatpush1.msra.mxu0 0.0
    %2534 = vmatprep.subr.mxu0 0.0
    %2535 = vmatpush1.msra.mxu0 0.0
    %2536 = vmatprep.subr.mxu0 0.0
    %2537 = vmatpush1.msra.mxu0 0.0
    %2538 = vmatprep.subr.mxu0 0.0
    %2539 = vmatpush1.msra.mxu0 0.0
    %2540 = vmatprep.subr.mxu0 0.0
    %2541 = vmatpush1.msra.mxu0 0.0
    %2542 = vmatprep.subr.mxu0 0.0
    %2543 = vmatpush1.msra.mxu0 0.0
    %2544 = vmatprep.subr.mxu0 0.0
    %2545 = vmatpush1.msra.mxu0 0.0
    %2546 = vmatprep.subr.mxu0 0.0
    %2547 = vmatpush1.msra.mxu0 0.0
    %2548 = vmatprep.subr.mxu0 0.0
    %2549 = vmatpush1.msra.mxu0 0.0
    %2550 = vmatprep.subr.mxu0 0.0
    %2551 = vmatpush1.msra.mxu0 0.0
    %2552 = vmatprep.subr.mxu0 0.0
    %2553 = vmatpush1.msra.mxu0 0.0
    %2554 = vmatprep.subr.mxu0 0.0
    %2555 = vmatpush1.msra.mxu0 0.0
    %2556 = vmatprep.subr.mxu0 0.0
    %2557 = vmatpush1.msra.mxu0 0.0
    %2558 = vmatprep.subr.mxu0 0.0
    %2559 = vmatpush1.msra.mxu0 0.0
    %2560 = vmatprep.subr.mxu0 0.0
    %2561 = vmatpush1.msra.mxu0 0.0
    %2562 = vmatprep.subr.mxu0 0.0
    %2563 = vmatpush1.msra.mxu0 0.0
    %2564 = vmatprep.subr.mxu0 0.0
    %2565 = vmatpush1.msra.mxu0 0.0
    %2566 = vmatprep.subr.mxu0 0.0
    %2567 = vmatpush1.msra.mxu0 0.0
    %2568 = vmatprep.subr.mxu0 0.0
    %2569 = vmatpush1.msra.mxu0 0.0
    %2570 = vmatprep.subr.mxu0 0.0
    %2571 = vmatpush1.msra.mxu0 0.0
    %2572 = vmatprep.mubr.f32.mxu0 0.0
    %2573 = vmatmul.mubr.f32.gmra.mrb[0].mxu0 %v2506
    %v2574 = vpop.f32.mrb[0].mxu0
    %v2575 = vadd.f32 0.0, %v2574
    %v2576 = vpop.f32.mrb[0].mxu0
    %2577 = vdwg.mxu0
    %2578 = vmatprep.subr.mxu0 0.0
    %2579 = vmatpush1.msra.mxu0 %v2503
    %2580 = vmatprep.subr.mxu0 0.0
    %2581 = vmatpush1.msra.mxu0 %v2504
    %2582 = vmatprep.subr.mxu0 0.0
    %2583 = vmatpush1.msra.mxu0 0.0
    %2584 = vmatprep.subr.mxu0 0.0
    %2585 = vmatpush1.msra.mxu0 0.0
    %2586 = vmatprep.subr.mxu0 0.0
    %2587 = vmatpush1.msra.mxu0 0.0
    %2588 = vmatprep.subr.mxu0 0.0
    %2589 = vmatpush1.msra.mxu0 0.0
    %2590 = vmatprep.subr.mxu0 0.0
    %2591 = vmatpush1.msra.mxu0 0.0
    %2592 = vmatprep.subr.mxu0 0.0
    %2593 = vmatpush1.msra.mxu0 0.0
    %2594 = vmatprep.subr.mxu0 0.0
    %2595 = vmatpush1.msra.mxu0 0.0
    %2596 = vmatprep.subr.mxu0 0.0
    %2597 = vmatpush1.msra.mxu0 0.0
    %2598 = vmatprep.subr.mxu0 0.0
    %2599 = vmatpush1.msra.mxu0 0.0
    %2600 = vmatprep.subr.mxu0 0.0
    %2601 = vmatpush1.msra.mxu0 0.0
    %2602 = vmatprep.subr.mxu0 0.0
    %2603 = vmatpush1.msra.mxu0 0.0
    %2604 = vmatprep.subr.mxu0 0.0
    %2605 = vmatpush1.msra.mxu0 0.0
    %2606 = vmatprep.subr.mxu0 0.0
    %2607 = vmatpush1.msra.mxu0 0.0
    %2608 = vmatprep.subr.mxu0 0.0
    %2609 = vmatpush1.msra.mxu0 0.0
    %2610 = vmatprep.subr.mxu0 0.0
    %2611 = vmatpush1.msra.mxu0 0.0
    %2612 = vmatprep.subr.mxu0 0.0
    %2613 = vmatpush1.msra.mxu0 0.0
    %2614 = vmatprep.subr.mxu0 0.0
    %2615 = vmatpush1.msra.mxu0 0.0
    %2616 = vmatprep.subr.mxu0 0.0
    %2617 = vmatpush1.msra.mxu0 0.0
    %2618 = vmatprep.subr.mxu0 0.0
    %2619 = vmatpush1.msra.mxu0 0.0
    %2620 = vmatprep.subr.mxu0 0.0
    %2621 = vmatpush1.msra.mxu0 0.0
    %2622 = vmatprep.subr.mxu0 0.0
    %2623 = vmatpush1.msra.mxu0 0.0
    %2624 = vmatprep.subr.mxu0 0.0
    %2625 = vmatpush1.msra.mxu0 0.0
    %2626 = vmatprep.subr.mxu0 0.0
    %2627 = vmatpush1.msra.mxu0 0.0
    %2628 = vmatprep.subr.mxu0 0.0
    %2629 = vmatpush1.msra.mxu0 0.0
    %2630 = vmatprep.subr.mxu0 0.0
    %2631 = vmatpush1.msra.mxu0 0.0
    %2632 = vmatprep.subr.mxu0 0.0
    %2633 = vmatpush1.msra.mxu0 0.0
    %2634 = vmatprep.subr.mxu0 0.0
    %2635 = vmatpush1.msra.mxu0 0.0
    %2636 = vmatprep.subr.mxu0 0.0
    %2637 = vmatpush1.msra.mxu0 0.0
    %2638 = vmatprep.subr.mxu0 0.0
    %2639 = vmatpush1.msra.mxu0 0.0
    %2640 = vmatprep.subr.mxu0 0.0
    %2641 = vmatpush1.msra.mxu0 0.0
    %2642 = vmatprep.mubr.f32.mxu0 0.0
    %2643 = vmatmul.mubr.f32.gmra.mrb[0].mxu0 %v2506
    %v2644 = vpop.f32.mrb[0].mxu0
    %v2645 = vadd.f32 0.0, %v2644
    %v2646 = vpop.f32.mrb[0].mxu0
    %2647 = vdwg.mxu0
    %2648 = vrot.lane.b32.xlu0 %v2500, 112
    %v2649 = vpop.permute.xlu0 %2648
    %v2650 = vsel %vm78, %v2649, 0
    %2652 = vmatprep.subr.mxu0 0.0
    %2653 = vmatpush1.msra.mxu0 %v2501
    %2654 = vmatprep.subr.mxu0 0.0
    %2655 = vmatpush1.msra.mxu0 %v2502
    %2656 = vmatprep.subr.mxu0 0.0
    %2657 = vmatpush1.msra.mxu0 0.0
    %2658 = vmatprep.subr.mxu0 0.0
    %2659 = vmatpush1.msra.mxu0 0.0
    %2660 = vmatprep.subr.mxu0 0.0
    %2661 = vmatpush1.msra.mxu0 0.0
    %2662 = vmatprep.subr.mxu0 0.0
    %2663 = vmatpush1.msra.mxu0 0.0
    %2664 = vmatprep.subr.mxu0 0.0
    %2665 = vmatpush1.msra.mxu0 0.0
    %2666 = vmatprep.subr.mxu0 0.0
    %2667 = vmatpush1.msra.mxu0 0.0
    %2668 = vmatprep.subr.mxu0 0.0
    %2669 = vmatpush1.msra.mxu0 0.0
    %2670 = vmatprep.subr.mxu0 0.0
    %2671 = vmatpush1.msra.mxu0 0.0
    %2672 = vmatprep.subr.mxu0 0.0
    %2673 = vmatpush1.msra.mxu0 0.0
    %2674 = vmatprep.subr.mxu0 0.0
    %2675 = vmatpush1.msra.mxu0 0.0
    %2676 = vmatprep.subr.mxu0 0.0
    %2677 = vmatpush1.msra.mxu0 0.0
    %2678 = vmatprep.subr.mxu0 0.0
    %2679 = vmatpush1.msra.mxu0 0.0
    %2680 = vmatprep.subr.mxu0 0.0
    %2681 = vmatpush1.msra.mxu0 0.0
    %2682 = vmatprep.subr.mxu0 0.0
    %2683 = vmatpush1.msra.mxu0 0.0
    %2684 = vmatprep.subr.mxu0 0.0
    %2685 = vmatpush1.msra.mxu0 0.0
    %2686 = vmatprep.subr.mxu0 0.0
    %2687 = vmatpush1.msra.mxu0 0.0
    %2688 = vmatprep.subr.mxu0 0.0
    %2689 = vmatpush1.msra.mxu0 0.0
    %2690 = vmatprep.subr.mxu0 0.0
    %2691 = vmatpush1.msra.mxu0 0.0
    %2692 = vmatprep.subr.mxu0 0.0
    %2693 = vmatpush1.msra.mxu0 0.0
    %2694 = vmatprep.subr.mxu0 0.0
    %2695 = vmatpush1.msra.mxu0 0.0
    %2696 = vmatprep.subr.mxu0 0.0
    %2697 = vmatpush1.msra.mxu0 0.0
    %2698 = vmatprep.subr.mxu0 0.0
    %2699 = vmatpush1.msra.mxu0 0.0
    %2700 = vmatprep.subr.mxu0 0.0
    %2701 = vmatpush1.msra.mxu0 0.0
    %2702 = vmatprep.subr.mxu0 0.0
    %2703 = vmatpush1.msra.mxu0 0.0
    %2704 = vmatprep.subr.mxu0 0.0
    %2705 = vmatpush1.msra.mxu0 0.0
    %2706 = vmatprep.subr.mxu0 0.0
    %2707 = vmatpush1.msra.mxu0 0.0
    %2708 = vmatprep.subr.mxu0 0.0
    %2709 = vmatpush1.msra.mxu0 0.0
    %2710 = vmatprep.subr.mxu0 0.0
    %2711 = vmatpush1.msra.mxu0 0.0
    %2712 = vmatprep.subr.mxu0 0.0
    %2713 = vmatpush1.msra.mxu0 0.0
    %2714 = vmatprep.subr.mxu0 0.0
    %2715 = vmatpush1.msra.mxu0 0.0
    %2716 = vmatprep.mubr.f32.mxu0 0.0
    %2717 = vmatmul.mubr.f32.gmra.mrb[0].mxu0 %v2650
    %v2718 = vpop.f32.mrb[0].mxu0
    %v2719 = vadd.f32 0.0, %v2718
    %v2720 = vpop.f32.mrb[0].mxu0
    %2721 = vdwg.mxu0
    %2722 = vmatprep.subr.mxu0 0.0
    %2723 = vmatpush1.msra.mxu0 %v2503
    %2724 = vmatprep.subr.mxu0 0.0
    %2725 = vmatpush1.msra.mxu0 %v2504
    %2726 = vmatprep.subr.mxu0 0.0
    %2727 = vmatpush1.msra.mxu0 0.0
    %2728 = vmatprep.subr.mxu0 0.0
    %2729 = vmatpush1.msra.mxu0 0.0
    %2730 = vmatprep.subr.mxu0 0.0
    %2731 = vmatpush1.msra.mxu0 0.0
    %2732 = vmatprep.subr.mxu0 0.0
    %2733 = vmatpush1.msra.mxu0 0.0
    %2734 = vmatprep.subr.mxu0 0.0
    %2735 = vmatpush1.msra.mxu0 0.0
    %2736 = vmatprep.subr.mxu0 0.0
    %2737 = vmatpush1.msra.mxu0 0.0
    %2738 = vmatprep.subr.mxu0 0.0
    %2739 = vmatpush1.msra.mxu0 0.0
    %2740 = vmatprep.subr.mxu0 0.0
    %2741 = vmatpush1.msra.mxu0 0.0
    %2742 = vmatprep.subr.mxu0 0.0
    %2743 = vmatpush1.msra.mxu0 0.0
    %2744 = vmatprep.subr.mxu0 0.0
    %2745 = vmatpush1.msra.mxu0 0.0
    %2746 = vmatprep.subr.mxu0 0.0
    %2747 = vmatpush1.msra.mxu0 0.0
    %2748 = vmatprep.subr.mxu0 0.0
    %2749 = vmatpush1.msra.mxu0 0.0
    %2750 = vmatprep.subr.mxu0 0.0
    %2751 = vmatpush1.msra.mxu0 0.0
    %2752 = vmatprep.subr.mxu0 0.0
    %2753 = vmatpush1.msra.mxu0 0.0
    %2754 = vmatprep.subr.mxu0 0.0
    %2755 = vmatpush1.msra.mxu0 0.0
    %2756 = vmatprep.subr.mxu0 0.0
    %2757 = vmatpush1.msra.mxu0 0.0
    %2758 = vmatprep.subr.mxu0 0.0
    %2759 = vmatpush1.msra.mxu0 0.0
    %2760 = vmatprep.subr.mxu0 0.0
    %2761 = vmatpush1.msra.mxu0 0.0
    %2762 = vmatprep.subr.mxu0 0.0
    %2763 = vmatpush1.msra.mxu0 0.0
    %2764 = vmatprep.subr.mxu0 0.0
    %2765 = vmatpush1.msra.mxu0 0.0
    %2766 = vmatprep.subr.mxu0 0.0
    %2767 = vmatpush1.msra.mxu0 0.0
    %2768 = vmatprep.subr.mxu0 0.0
    %2769 = vmatpush1.msra.mxu0 0.0
    %2770 = vmatprep.subr.mxu0 0.0
    %2771 = vmatpush1.msra.mxu0 0.0
    %2772 = vmatprep.subr.mxu0 0.0
    %2773 = vmatpush1.msra.mxu0 0.0
    %2774 = vmatprep.subr.mxu0 0.0
    %2775 = vmatpush1.msra.mxu0 0.0
    %2776 = vmatprep.subr.mxu0 0.0
    %2777 = vmatpush1.msra.mxu0 0.0
    %2778 = vmatprep.subr.mxu0 0.0
    %2779 = vmatpush1.msra.mxu0 0.0
    %2780 = vmatprep.subr.mxu0 0.0
    %2781 = vmatpush1.msra.mxu0 0.0
    %2782 = vmatprep.subr.mxu0 0.0
    %2783 = vmatpush1.msra.mxu0 0.0
    %2784 = vmatprep.subr.mxu0 0.0
    %2785 = vmatpush1.msra.mxu0 0.0
    %2786 = vmatprep.mubr.f32.mxu0 0.0
    %2787 = vmatmul.mubr.f32.gmra.mrb[0].mxu0 %v2650
    %v2788 = vpop.f32.mrb[0].mxu0
    %v2789 = vadd.f32 0.0, %v2788
    %v2790 = vpop.f32.mrb[0].mxu0
    %2791 = vdwg.mxu0
    %2792 = vrot.lane.b32.xlu0 %v2500, 96
    %v2793 = vpop.permute.xlu0 %2792
    %v2794 = vsel %vm78, %v2793, 0
    %2796 = vmatprep.subr.mxu0 0.0
    %2797 = vmatpush1.msra.mxu0 %v2501
    %2798 = vmatprep.subr.mxu0 0.0
    %2799 = vmatpush1.msra.mxu0 %v2502
    %2800 = vmatprep.subr.mxu0 0.0
    %2801 = vmatpush1.msra.mxu0 0.0
    %2802 = vmatprep.subr.mxu0 0.0
    %2803 = vmatpush1.msra.mxu0 0.0
    %2804 = vmatprep.subr.mxu0 0.0
    %2805 = vmatpush1.msra.mxu0 0.0
    %2806 = vmatprep.subr.mxu0 0.0
    %2807 = vmatpush1.msra.mxu0 0.0
    %2808 = vmatprep.subr.mxu0 0.0
    %2809 = vmatpush1.msra.mxu0 0.0
    %2810 = vmatprep.subr.mxu0 0.0
    %2811 = vmatpush1.msra.mxu0 0.0
    %2812 = vmatprep.subr.mxu0 0.0
    %2813 = vmatpush1.msra.mxu0 0.0
    %2814 = vmatprep.subr.mxu0 0.0
    %2815 = vmatpush1.msra.mxu0 0.0
    %2816 = vmatprep.subr.mxu0 0.0
    %2817 = vmatpush1.msra.mxu0 0.0
    %2818 = vmatprep.subr.mxu0 0.0
    %2819 = vmatpush1.msra.mxu0 0.0
    %2820 = vmatprep.subr.mxu0 0.0
    %2821 = vmatpush1.msra.mxu0 0.0
    %2822 = vmatprep.subr.mxu0 0.0
    %2823 = vmatpush1.msra.mxu0 0.0
    %2824 = vmatprep.subr.mxu0 0.0
    %2825 = vmatpush1.msra.mxu0 0.0
    %2826 = vmatprep.subr.mxu0 0.0
    %2827 = vmatpush1.msra.mxu0 0.0
    %2828 = vmatprep.subr.mxu0 0.0
    %2829 = vmatpush1.msra.mxu0 0.0
    %2830 = vmatprep.subr.mxu0 0.0
    %2831 = vmatpush1.msra.mxu0 0.0
    %2832 = vmatprep.subr.mxu0 0.0
    %2833 = vmatpush1.msra.mxu0 0.0
    %2834 = vmatprep.subr.mxu0 0.0
    %2835 = vmatpush1.msra.mxu0 0.0
    %2836 = vmatprep.subr.mxu0 0.0
    %2837 = vmatpush1.msra.mxu0 0.0
    %2838 = vmatprep.subr.mxu0 0.0
    %2839 = vmatpush1.msra.mxu0 0.0
    %2840 = vmatprep.subr.mxu0 0.0
    %2841 = vmatpush1.msra.mxu0 0.0
    %2842 = vmatprep.subr.mxu0 0.0
    %2843 = vmatpush1.msra.mxu0 0.0
    %2844 = vmatprep.subr.mxu0 0.0
    %2845 = vmatpush1.msra.mxu0 0.0
    %2846 = vmatprep.subr.mxu0 0.0
    %2847 = vmatpush1.msra.mxu0 0.0
    %2848 = vmatprep.subr.mxu0 0.0
    %2849 = vmatpush1.msra.mxu0 0.0
    %2850 = vmatprep.subr.mxu0 0.0
    %2851 = vmatpush1.msra.mxu0 0.0
    %2852 = vmatprep.subr.mxu0 0.0
    %2853 = vmatpush1.msra.mxu0 0.0
    %2854 = vmatprep.subr.mxu0 0.0
    %2855 = vmatpush1.msra.mxu0 0.0
    %2856 = vmatprep.subr.mxu0 0.0
    %2857 = vmatpush1.msra.mxu0 0.0
    %2858 = vmatprep.subr.mxu0 0.0
    %2859 = vmatpush1.msra.mxu0 0.0
    %2860 = vmatprep.mubr.f32.mxu0 0.0
    %2861 = vmatmul.mubr.f32.gmra.mrb[0].mxu0 %v2794
    %v2862 = vpop.f32.mrb[0].mxu0
    %v2863 = vadd.f32 0.0, %v2862
    %v2864 = vpop.f32.mrb[0].mxu0
    %2865 = vdwg.mxu0
    %2866 = vmatprep.subr.mxu0 0.0
    %2867 = vmatpush1.msra.mxu0 %v2503
    %2868 = vmatprep.subr.mxu0 0.0
    %2869 = vmatpush1.msra.mxu0 %v2504
    %2870 = vmatprep.subr.mxu0 0.0
    %2871 = vmatpush1.msra.mxu0 0.0
    %2872 = vmatprep.subr.mxu0 0.0
    %2873 = vmatpush1.msra.mxu0 0.0
    %2874 = vmatprep.subr.mxu0 0.0
    %2875 = vmatpush1.msra.mxu0 0.0
    %2876 = vmatprep.subr.mxu0 0.0
    %2877 = vmatpush1.msra.mxu0 0.0
    %2878 = vmatprep.subr.mxu0 0.0
    %2879 = vmatpush1.msra.mxu0 0.0
    %2880 = vmatprep.subr.mxu0 0.0
    %2881 = vmatpush1.msra.mxu0 0.0
    %2882 = vmatprep.subr.mxu0 0.0
    %2883 = vmatpush1.msra.mxu0 0.0
    %2884 = vmatprep.subr.mxu0 0.0
    %2885 = vmatpush1.msra.mxu0 0.0
    %2886 = vmatprep.subr.mxu0 0.0
    %2887 = vmatpush1.msra.mxu0 0.0
    %2888 = vmatprep.subr.mxu0 0.0
    %2889 = vmatpush1.msra.mxu0 0.0
    %2890 = vmatprep.subr.mxu0 0.0
    %2891 = vmatpush1.msra.mxu0 0.0
    %2892 = vmatprep.subr.mxu0 0.0
    %2893 = vmatpush1.msra.mxu0 0.0
    %2894 = vmatprep.subr.mxu0 0.0
    %2895 = vmatpush1.msra.mxu0 0.0
    %2896 = vmatprep.subr.mxu0 0.0
    %2897 = vmatpush1.msra.mxu0 0.0
    %2898 = vmatprep.subr.mxu0 0.0
    %2899 = vmatpush1.msra.mxu0 0.0
    %2900 = vmatprep.subr.mxu0 0.0
    %2901 = vmatpush1.msra.mxu0 0.0
    %2902 = vmatprep.subr.mxu0 0.0
    %2903 = vmatpush1.msra.mxu0 0.0
    %2904 = vmatprep.subr.mxu0 0.0
    %2905 = vmatpush1.msra.mxu0 0.0
    %2906 = vmatprep.subr.mxu0 0.0
    %2907 = vmatpush1.msra.mxu0 0.0
    %2908 = vmatprep.subr.mxu0 0.0
    %2909 = vmatpush1.msra.mxu0 0.0
    %2910 = vmatprep.subr.mxu0 0.0
    %2911 = vmatpush1.msra.mxu0 0.0
    %2912 = vmatprep.subr.mxu0 0.0
    %2913 = vmatpush1.msra.mxu0 0.0
    %2914 = vmatprep.subr.mxu0 0.0
    %2915 = vmatpush1.msra.mxu0 0.0
    %2916 = vmatprep.subr.mxu0 0.0
    %2917 = vmatpush1.msra.mxu0 0.0
    %2918 = vmatprep.subr.mxu0 0.0
    %2919 = vmatpush1.msra.mxu0 0.0
    %2920 = vmatprep.subr.mxu0 0.0
    %2921 = vmatpush1.msra.mxu0 0.0
    %2922 = vmatprep.subr.mxu0 0.0
    %2923 = vmatpush1.msra.mxu0 0.0
    %2924 = vmatprep.subr.mxu0 0.0
    %2925 = vmatpush1.msra.mxu0 0.0
    %2926 = vmatprep.subr.mxu0 0.0
    %2927 = vmatpush1.msra.mxu0 0.0
    %2928 = vmatprep.subr.mxu0 0.0
    %2929 = vmatpush1.msra.mxu0 0.0
    %2930 = vmatprep.mubr.f32.mxu0 0.0
    %2931 = vmatmul.mubr.f32.gmra.mrb[0].mxu0 %v2794
    %v2932 = vpop.f32.mrb[0].mxu0
    %v2933 = vadd.f32 0.0, %v2932
    %v2934 = vpop.f32.mrb[0].mxu0
    %2935 = vdwg.mxu0
    %2936 = vrot.lane.b32.xlu0 %v2500, 80
    %v2937 = vpop.permute.xlu0 %2936
    %v2938 = vsel %vm78, %v2937, 0
    %2940 = vmatprep.subr.mxu0 0.0
    %2941 = vmatpush1.msra.mxu0 %v2501
    %2942 = vmatprep.subr.mxu0 0.0
    %2943 = vmatpush1.msra.mxu0 %v2502
    %2944 = vmatprep.subr.mxu0 0.0
    %2945 = vmatpush1.msra.mxu0 0.0
    %2946 = vmatprep.subr.mxu0 0.0
    %2947 = vmatpush1.msra.mxu0 0.0
    %2948 = vmatprep.subr.mxu0 0.0
    %2949 = vmatpush1.msra.mxu0 0.0
    %2950 = vmatprep.subr.mxu0 0.0
    %2951 = vmatpush1.msra.mxu0 0.0
    %2952 = vmatprep.subr.mxu0 0.0
    %2953 = vmatpush1.msra.mxu0 0.0
    %2954 = vmatprep.subr.mxu0 0.0
    %2955 = vmatpush1.msra.mxu0 0.0
    %2956 = vmatprep.subr.mxu0 0.0
    %2957 = vmatpush1.msra.mxu0 0.0
    %2958 = vmatprep.subr.mxu0 0.0
    %2959 = vmatpush1.msra.mxu0 0.0
    %2960 = vmatprep.subr.mxu0 0.0
    %2961 = vmatpush1.msra.mxu0 0.0
    %2962 = vmatprep.subr.mxu0 0.0
    %2963 = vmatpush1.msra.mxu0 0.0
    %2964 = vmatprep.subr.mxu0 0.0
    %2965 = vmatpush1.msra.mxu0 0.0
    %2966 = vmatprep.subr.mxu0 0.0
    %2967 = vmatpush1.msra.mxu0 0.0
    %2968 = vmatprep.subr.mxu0 0.0
    %2969 = vmatpush1.msra.mxu0 0.0
    %2970 = vmatprep.subr.mxu0 0.0
    %2971 = vmatpush1.msra.mxu0 0.0
    %2972 = vmatprep.subr.mxu0 0.0
    %2973 = vmatpush1.msra.mxu0 0.0
    %2974 = vmatprep.subr.mxu0 0.0
    %2975 = vmatpush1.msra.mxu0 0.0
    %2976 = vmatprep.subr.mxu0 0.0
    %2977 = vmatpush1.msra.mxu0 0.0
    %2978 = vmatprep.subr.mxu0 0.0
    %2979 = vmatpush1.msra.mxu0 0.0
    %2980 = vmatprep.subr.mxu0 0.0
    %2981 = vmatpush1.msra.mxu0 0.0
    %2982 = vmatprep.subr.mxu0 0.0
    %2983 = vmatpush1.msra.mxu0 0.0
    %2984 = vmatprep.subr.mxu0 0.0
    %2985 = vmatpush1.msra.mxu0 0.0
    %2986 = vmatprep.subr.mxu0 0.0
    %2987 = vmatpush1.msra.mxu0 0.0
    %2988 = vmatprep.subr.mxu0 0.0
    %2989 = vmatpush1.msra.mxu0 0.0
    %2990 = vmatprep.subr.mxu0 0.0
    %2991 = vmatpush1.msra.mxu0 0.0
    %2992 = vmatprep.subr.mxu0 0.0
    %2993 = vmatpush1.msra.mxu0 0.0
    %2994 = vmatprep.subr.mxu0 0.0
    %2995 = vmatpush1.msra.mxu0 0.0
    %2996 = vmatprep.subr.mxu0 0.0
    %2997 = vmatpush1.msra.mxu0 0.0
    %2998 = vmatprep.subr.mxu0 0.0
    %2999 = vmatpush1.msra.mxu0 0.0
    %3000 = vmatprep.subr.mxu0 0.0
    %3001 = vmatpush1.msra.mxu0 0.0
    %3002 = vmatprep.subr.mxu0 0.0
    %3003 = vmatpush1.msra.mxu0 0.0
    %3004 = vmatprep.mubr.f32.mxu0 0.0
    %3005 = vmatmul.mubr.f32.gmra.mrb[0].mxu0 %v2938
    %v3006 = vpop.f32.mrb[0].mxu0
    %v3007 = vadd.f32 0.0, %v3006
    %v3008 = vpop.f32.mrb[0].mxu0
    %3009 = vdwg.mxu0
    %3010 = vmatprep.subr.mxu0 0.0
    %3011 = vmatpush1.msra.mxu0 %v2503
    %3012 = vmatprep.subr.mxu0 0.0
    %3013 = vmatpush1.msra.mxu0 %v2504
    %3014 = vmatprep.subr.mxu0 0.0
    %3015 = vmatpush1.msra.mxu0 0.0
    %3016 = vmatprep.subr.mxu0 0.0
    %3017 = vmatpush1.msra.mxu0 0.0
    %3018 = vmatprep.subr.mxu0 0.0
    %3019 = vmatpush1.msra.mxu0 0.0
    %3020 = vmatprep.subr.mxu0 0.0
    %3021 = vmatpush1.msra.mxu0 0.0
    %3022 = vmatprep.subr.mxu0 0.0
    %3023 = vmatpush1.msra.mxu0 0.0
    %3024 = vmatprep.subr.mxu0 0.0
    %3025 = vmatpush1.msra.mxu0 0.0
    %3026 = vmatprep.subr.mxu0 0.0
    %3027 = vmatpush1.msra.mxu0 0.0
    %3028 = vmatprep.subr.mxu0 0.0
    %3029 = vmatpush1.msra.mxu0 0.0
    %3030 = vmatprep.subr.mxu0 0.0
    %3031 = vmatpush1.msra.mxu0 0.0
    %3032 = vmatprep.subr.mxu0 0.0
    %3033 = vmatpush1.msra.mxu0 0.0
    %3034 = vmatprep.subr.mxu0 0.0
    %3035 = vmatpush1.msra.mxu0 0.0
    %3036 = vmatprep.subr.mxu0 0.0
    %3037 = vmatpush1.msra.mxu0 0.0
    %3038 = vmatprep.subr.mxu0 0.0
    %3039 = vmatpush1.msra.mxu0 0.0
    %3040 = vmatprep.subr.mxu0 0.0
    %3041 = vmatpush1.msra.mxu0 0.0
    %3042 = vmatprep.subr.mxu0 0.0
    %3043 = vmatpush1.msra.mxu0 0.0
    %3044 = vmatprep.subr.mxu0 0.0
    %3045 = vmatpush1.msra.mxu0 0.0
    %3046 = vmatprep.subr.mxu0 0.0
    %3047 = vmatpush1.msra.mxu0 0.0
    %3048 = vmatprep.subr.mxu0 0.0
    %3049 = vmatpush1.msra.mxu0 0.0
    %3050 = vmatprep.subr.mxu0 0.0
    %3051 = vmatpush1.msra.mxu0 0.0
    %3052 = vmatprep.subr.mxu0 0.0
    %3053 = vmatpush1.msra.mxu0 0.0
    %3054 = vmatprep.subr.mxu0 0.0
    %3055 = vmatpush1.msra.mxu0 0.0
    %3056 = vmatprep.subr.mxu0 0.0
    %3057 = vmatpush1.msra.mxu0 0.0
    %3058 = vmatprep.subr.mxu0 0.0
    %3059 = vmatpush1.msra.mxu0 0.0
    %3060 = vmatprep.subr.mxu0 0.0
    %3061 = vmatpush1.msra.mxu0 0.0
    %3062 = vmatprep.subr.mxu0 0.0
    %3063 = vmatpush1.msra.mxu0 0.0
    %3064 = vmatprep.subr.mxu0 0.0
    %3065 = vmatpush1.msra.mxu0 0.0
    %3066 = vmatprep.subr.mxu0 0.0
    %3067 = vmatpush1.msra.mxu0 0.0
    %3068 = vmatprep.subr.mxu0 0.0
    %3069 = vmatpush1.msra.mxu0 0.0
    %3070 = vmatprep.subr.mxu0 0.0
    %3071 = vmatpush1.msra.mxu0 0.0
    %3072 = vmatprep.subr.mxu0 0.0
    %3073 = vmatpush1.msra.mxu0 0.0
    %3074 = vmatprep.mubr.f32.mxu0 0.0
    %3075 = vmatmul.mubr.f32.gmra.mrb[0].mxu0 %v2938
    %v3076 = vpop.f32.mrb[0].mxu0
    %v3077 = vadd.f32 0.0, %v3076
    %v3078 = vpop.f32.mrb[0].mxu0
    %3079 = vdwg.mxu0
    %3080 = vrot.lane.b32.xlu0 %v2500, 64
    %v3081 = vpop.permute.xlu0 %3080
    %v3082 = vsel %vm78, %v3081, 0
    %3084 = vmatprep.subr.mxu0 0.0
    %3085 = vmatpush1.msra.mxu0 %v2501
    %3086 = vmatprep.subr.mxu0 0.0
    %3087 = vmatpush1.msra.mxu0 %v2502
    %3088 = vmatprep.subr.mxu0 0.0
    %3089 = vmatpush1.msra.mxu0 0.0
    %3090 = vmatprep.subr.mxu0 0.0
    %3091 = vmatpush1.msra.mxu0 0.0
    %3092 = vmatprep.subr.mxu0 0.0
    %3093 = vmatpush1.msra.mxu0 0.0
    %3094 = vmatprep.subr.mxu0 0.0
    %3095 = vmatpush1.msra.mxu0 0.0
    %3096 = vmatprep.subr.mxu0 0.0
    %3097 = vmatpush1.msra.mxu0 0.0
    %3098 = vmatprep.subr.mxu0 0.0
    %3099 = vmatpush1.msra.mxu0 0.0
    %3100 = vmatprep.subr.mxu0 0.0
    %3101 = vmatpush1.msra.mxu0 0.0
    %3102 = vmatprep.subr.mxu0 0.0
    %3103 = vmatpush1.msra.mxu0 0.0
    %3104 = vmatprep.subr.mxu0 0.0
    %3105 = vmatpush1.msra.mxu0 0.0
    %3106 = vmatprep.subr.mxu0 0.0
    %3107 = vmatpush1.msra.mxu0 0.0
    %3108 = vmatprep.subr.mxu0 0.0
    %3109 = vmatpush1.msra.mxu0 0.0
    %3110 = vmatprep.subr.mxu0 0.0
    %3111 = vmatpush1.msra.mxu0 0.0
    %3112 = vmatprep.subr.mxu0 0.0
    %3113 = vmatpush1.msra.mxu0 0.0
    %3114 = vmatprep.subr.mxu0 0.0
    %3115 = vmatpush1.msra.mxu0 0.0
    %3116 = vmatprep.subr.mxu0 0.0
    %3117 = vmatpush1.msra.mxu0 0.0
    %3118 = vmatprep.subr.mxu0 0.0
    %3119 = vmatpush1.msra.mxu0 0.0
    %3120 = vmatprep.subr.mxu0 0.0
    %3121 = vmatpush1.msra.mxu0 0.0
    %3122 = vmatprep.subr.mxu0 0.0
    %3123 = vmatpush1.msra.mxu0 0.0
    %3124 = vmatprep.subr.mxu0 0.0
    %3125 = vmatpush1.msra.mxu0 0.0
    %3126 = vmatprep.subr.mxu0 0.0
    %3127 = vmatpush1.msra.mxu0 0.0
    %3128 = vmatprep.subr.mxu0 0.0
    %3129 = vmatpush1.msra.mxu0 0.0
    %3130 = vmatprep.subr.mxu0 0.0
    %3131 = vmatpush1.msra.mxu0 0.0
    %3132 = vmatprep.subr.mxu0 0.0
    %3133 = vmatpush1.msra.mxu0 0.0
    %3134 = vmatprep.subr.mxu0 0.0
    %3135 = vmatpush1.msra.mxu0 0.0
    %3136 = vmatprep.subr.mxu0 0.0
    %3137 = vmatpush1.msra.mxu0 0.0
    %3138 = vmatprep.subr.mxu0 0.0
    %3139 = vmatpush1.msra.mxu0 0.0
    %3140 = vmatprep.subr.mxu0 0.0
    %3141 = vmatpush1.msra.mxu0 0.0
    %3142 = vmatprep.subr.mxu0 0.0
    %3143 = vmatpush1.msra.mxu0 0.0
    %3144 = vmatprep.subr.mxu0 0.0
    %3145 = vmatpush1.msra.mxu0 0.0
    %3146 = vmatprep.subr.mxu0 0.0
    %3147 = vmatpush1.msra.mxu0 0.0
    %3148 = vmatprep.mubr.f32.mxu0 0.0
    %3149 = vmatmul.mubr.f32.gmra.mrb[0].mxu0 %v3082
    %v3150 = vpop.f32.mrb[0].mxu0
    %v3151 = vadd.f32 0.0, %v3150
    %v3152 = vpop.f32.mrb[0].mxu0
    %3153 = vdwg.mxu0
    %3154 = vmatprep.subr.mxu0 0.0
    %3155 = vmatpush1.msra.mxu0 %v2503
    %3156 = vmatprep.subr.mxu0 0.0
    %3157 = vmatpush1.msra.mxu0 %v2504
    %3158 = vmatprep.subr.mxu0 0.0
    %3159 = vmatpush1.msra.mxu0 0.0
    %3160 = vmatprep.subr.mxu0 0.0
    %3161 = vmatpush1.msra.mxu0 0.0
    %3162 = vmatprep.subr.mxu0 0.0
    %3163 = vmatpush1.msra.mxu0 0.0
    %3164 = vmatprep.subr.mxu0 0.0
    %3165 = vmatpush1.msra.mxu0 0.0
    %3166 = vmatprep.subr.mxu0 0.0
    %3167 = vmatpush1.msra.mxu0 0.0
    %3168 = vmatprep.subr.mxu0 0.0
    %3169 = vmatpush1.msra.mxu0 0.0
    %3170 = vmatprep.subr.mxu0 0.0
    %3171 = vmatpush1.msra.mxu0 0.0
    %3172 = vmatprep.subr.mxu0 0.0
    %3173 = vmatpush1.msra.mxu0 0.0
    %3174 = vmatprep.subr.mxu0 0.0
    %3175 = vmatpush1.msra.mxu0 0.0
    %3176 = vmatprep.subr.mxu0 0.0
    %3177 = vmatpush1.msra.mxu0 0.0
    %3178 = vmatprep.subr.mxu0 0.0
    %3179 = vmatpush1.msra.mxu0 0.0
    %3180 = vmatprep.subr.mxu0 0.0
    %3181 = vmatpush1.msra.mxu0 0.0
    %3182 = vmatprep.subr.mxu0 0.0
    %3183 = vmatpush1.msra.mxu0 0.0
    %3184 = vmatprep.subr.mxu0 0.0
    %3185 = vmatpush1.msra.mxu0 0.0
    %3186 = vmatprep.subr.mxu0 0.0
    %3187 = vmatpush1.msra.mxu0 0.0
    %3188 = vmatprep.subr.mxu0 0.0
    %3189 = vmatpush1.msra.mxu0 0.0
    %3190 = vmatprep.subr.mxu0 0.0
    %3191 = vmatpush1.msra.mxu0 0.0
    %3192 = vmatprep.subr.mxu0 0.0
    %3193 = vmatpush1.msra.mxu0 0.0
    %3194 = vmatprep.subr.mxu0 0.0
    %3195 = vmatpush1.msra.mxu0 0.0
    %3196 = vmatprep.subr.mxu0 0.0
    %3197 = vmatpush1.msra.mxu0 0.0
    %3198 = vmatprep.subr.mxu0 0.0
    %3199 = vmatpush1.msra.mxu0 0.0
    %3200 = vmatprep.subr.mxu0 0.0
    %3201 = vmatpush1.msra.mxu0 0.0
    %3202 = vmatprep.subr.mxu0 0.0
    %3203 = vmatpush1.msra.mxu0 0.0
    %3204 = vmatprep.subr.mxu0 0.0
    %3205 = vmatpush1.msra.mxu0 0.0
    %3206 = vmatprep.subr.mxu0 0.0
    %3207 = vmatpush1.msra.mxu0 0.0
    %3208 = vmatprep.subr.mxu0 0.0
    %3209 = vmatpush1.msra.mxu0 0.0
    %3210 = vmatprep.subr.mxu0 0.0
    %3211 = vmatpush1.msra.mxu0 0.0
    %3212 = vmatprep.subr.mxu0 0.0
    %3213 = vmatpush1.msra.mxu0 0.0
    %3214 = vmatprep.subr.mxu0 0.0
    %3215 = vmatpush1.msra.mxu0 0.0
    %3216 = vmatprep.subr.mxu0 0.0
    %3217 = vmatpush1.msra.mxu0 0.0
    %3218 = vmatprep.mubr.f32.mxu0 0.0
    %3219 = vmatmul.mubr.f32.gmra.mrb[0].mxu0 %v3082
    %v3220 = vpop.f32.mrb[0].mxu0
    %v3221 = vadd.f32 0.0, %v3220
    %v3222 = vpop.f32.mrb[0].mxu0
    %3223 = vdwg.mxu0
    %3224 = vrot.lane.b32.xlu0 %v2500, 48
    %v3225 = vpop.permute.xlu0 %3224
    %v3226 = vsel %vm78, %v3225, 0
    %3228 = vmatprep.subr.mxu0 0.0
    %3229 = vmatpush1.msra.mxu0 %v2501
    %3230 = vmatprep.subr.mxu0 0.0
    %3231 = vmatpush1.msra.mxu0 %v2502
    %3232 = vmatprep.subr.mxu0 0.0
    %3233 = vmatpush1.msra.mxu0 0.0
    %3234 = vmatprep.subr.mxu0 0.0
    %3235 = vmatpush1.msra.mxu0 0.0
    %3236 = vmatprep.subr.mxu0 0.0
    %3237 = vmatpush1.msra.mxu0 0.0
    %3238 = vmatprep.subr.mxu0 0.0
    %3239 = vmatpush1.msra.mxu0 0.0
    %3240 = vmatprep.subr.mxu0 0.0
    %3241 = vmatpush1.msra.mxu0 0.0
    %3242 = vmatprep.subr.mxu0 0.0
    %3243 = vmatpush1.msra.mxu0 0.0
    %3244 = vmatprep.subr.mxu0 0.0
    %3245 = vmatpush1.msra.mxu0 0.0
    %3246 = vmatprep.subr.mxu0 0.0
    %3247 = vmatpush1.msra.mxu0 0.0
    %3248 = vmatprep.subr.mxu0 0.0
    %3249 = vmatpush1.msra.mxu0 0.0
    %3250 = vmatprep.subr.mxu0 0.0
    %3251 = vmatpush1.msra.mxu0 0.0
    %3252 = vmatprep.subr.mxu0 0.0
    %3253 = vmatpush1.msra.mxu0 0.0
    %3254 = vmatprep.subr.mxu0 0.0
    %3255 = vmatpush1.msra.mxu0 0.0
    %3256 = vmatprep.subr.mxu0 0.0
    %3257 = vmatpush1.msra.mxu0 0.0
    %3258 = vmatprep.subr.mxu0 0.0
    %3259 = vmatpush1.msra.mxu0 0.0
    %3260 = vmatprep.subr.mxu0 0.0
    %3261 = vmatpush1.msra.mxu0 0.0
    %3262 = vmatprep.subr.mxu0 0.0
    %3263 = vmatpush1.msra.mxu0 0.0
    %3264 = vmatprep.subr.mxu0 0.0
    %3265 = vmatpush1.msra.mxu0 0.0
    %3266 = vmatprep.subr.mxu0 0.0
    %3267 = vmatpush1.msra.mxu0 0.0
    %3268 = vmatprep.subr.mxu0 0.0
    %3269 = vmatpush1.msra.mxu0 0.0
    %3270 = vmatprep.subr.mxu0 0.0
    %3271 = vmatpush1.msra.mxu0 0.0
    %3272 = vmatprep.subr.mxu0 0.0
    %3273 = vmatpush1.msra.mxu0 0.0
    %3274 = vmatprep.subr.mxu0 0.0
    %3275 = vmatpush1.msra.mxu0 0.0
    %3276 = vmatprep.subr.mxu0 0.0
    %3277 = vmatpush1.msra.mxu0 0.0
    %3278 = vmatprep.subr.mxu0 0.0
    %3279 = vmatpush1.msra.mxu0 0.0
    %3280 = vmatprep.subr.mxu0 0.0
    %3281 = vmatpush1.msra.mxu0 0.0
    %3282 = vmatprep.subr.mxu0 0.0
    %3283 = vmatpush1.msra.mxu0 0.0
    %3284 = vmatprep.subr.mxu0 0.0
    %3285 = vmatpush1.msra.mxu0 0.0
    %3286 = vmatprep.subr.mxu0 0.0
    %3287 = vmatpush1.msra.mxu0 0.0
    %3288 = vmatprep.subr.mxu0 0.0
    %3289 = vmatpush1.msra.mxu0 0.0
    %3290 = vmatprep.subr.mxu0 0.0
    %3291 = vmatpush1.msra.mxu0 0.0
    %3292 = vmatprep.mubr.f32.mxu0 0.0
    %3293 = vmatmul.mubr.f32.gmra.mrb[0].mxu0 %v3226
    %v3294 = vpop.f32.mrb[0].mxu0
    %v3295 = vadd.f32 0.0, %v3294
    %v3296 = vpop.f32.mrb[0].mxu0
    %3297 = vdwg.mxu0
    %3298 = vmatprep.subr.mxu0 0.0
    %3299 = vmatpush1.msra.mxu0 %v2503
    %3300 = vmatprep.subr.mxu0 0.0
    %3301 = vmatpush1.msra.mxu0 %v2504
    %3302 = vmatprep.subr.mxu0 0.0
    %3303 = vmatpush1.msra.mxu0 0.0
    %3304 = vmatprep.subr.mxu0 0.0
    %3305 = vmatpush1.msra.mxu0 0.0
    %3306 = vmatprep.subr.mxu0 0.0
    %3307 = vmatpush1.msra.mxu0 0.0
    %3308 = vmatprep.subr.mxu0 0.0
    %3309 = vmatpush1.msra.mxu0 0.0
    %3310 = vmatprep.subr.mxu0 0.0
    %3311 = vmatpush1.msra.mxu0 0.0
    %3312 = vmatprep.subr.mxu0 0.0
    %3313 = vmatpush1.msra.mxu0 0.0
    %3314 = vmatprep.subr.mxu0 0.0
    %3315 = vmatpush1.msra.mxu0 0.0
    %3316 = vmatprep.subr.mxu0 0.0
    %3317 = vmatpush1.msra.mxu0 0.0
    %3318 = vmatprep.subr.mxu0 0.0
    %3319 = vmatpush1.msra.mxu0 0.0
    %3320 = vmatprep.subr.mxu0 0.0
    %3321 = vmatpush1.msra.mxu0 0.0
    %3322 = vmatprep.subr.mxu0 0.0
    %3323 = vmatpush1.msra.mxu0 0.0
    %3324 = vmatprep.subr.mxu0 0.0
    %3325 = vmatpush1.msra.mxu0 0.0
    %3326 = vmatprep.subr.mxu0 0.0
    %3327 = vmatpush1.msra.mxu0 0.0
    %3328 = vmatprep.subr.mxu0 0.0
    %3329 = vmatpush1.msra.mxu0 0.0
    %3330 = vmatprep.subr.mxu0 0.0
    %3331 = vmatpush1.msra.mxu0 0.0
    %3332 = vmatprep.subr.mxu0 0.0
    %3333 = vmatpush1.msra.mxu0 0.0
    %3334 = vmatprep.subr.mxu0 0.0
    %3335 = vmatpush1.msra.mxu0 0.0
    %3336 = vmatprep.subr.mxu0 0.0
    %3337 = vmatpush1.msra.mxu0 0.0
    %3338 = vmatprep.subr.mxu0 0.0
    %3339 = vmatpush1.msra.mxu0 0.0
    %3340 = vmatprep.subr.mxu0 0.0
    %3341 = vmatpush1.msra.mxu0 0.0
    %3342 = vmatprep.subr.mxu0 0.0
    %3343 = vmatpush1.msra.mxu0 0.0
    %3344 = vmatprep.subr.mxu0 0.0
    %3345 = vmatpush1.msra.mxu0 0.0
    %3346 = vmatprep.subr.mxu0 0.0
    %3347 = vmatpush1.msra.mxu0 0.0
    %3348 = vmatprep.subr.mxu0 0.0
    %3349 = vmatpush1.msra.mxu0 0.0
    %3350 = vmatprep.subr.mxu0 0.0
    %3351 = vmatpush1.msra.mxu0 0.0
    %3352 = vmatprep.subr.mxu0 0.0
    %3353 = vmatpush1.msra.mxu0 0.0
    %3354 = vmatprep.subr.mxu0 0.0
    %3355 = vmatpush1.msra.mxu0 0.0
    %3356 = vmatprep.subr.mxu0 0.0
    %3357 = vmatpush1.msra.mxu0 0.0
    %3358 = vmatprep.subr.mxu0 0.0
    %3359 = vmatpush1.msra.mxu0 0.0
    %3360 = vmatprep.subr.mxu0 0.0
    %3361 = vmatpush1.msra.mxu0 0.0
    %3362 = vmatprep.mubr.f32.mxu0 0.0
    %3363 = vmatmul.mubr.f32.gmra.mrb[0].mxu0 %v3226
    %v3364 = vpop.f32.mrb[0].mxu0
    %v3365 = vadd.f32 0.0, %v3364
    %v3366 = vpop.f32.mrb[0].mxu0
    %3367 = vdwg.mxu0
    %3368 = vrot.lane.b32.xlu0 %v2500, 32
    %v3369 = vpop.permute.xlu0 %3368
    %v3370 = vsel %vm78, %v3369, 0
    %3372 = vmatprep.subr.mxu0 0.0
    %3373 = vmatpush1.msra.mxu0 %v2501
    %3374 = vmatprep.subr.mxu0 0.0
    %3375 = vmatpush1.msra.mxu0 %v2502
    %3376 = vmatprep.subr.mxu0 0.0
    %3377 = vmatpush1.msra.mxu0 0.0
    %3378 = vmatprep.subr.mxu0 0.0
    %3379 = vmatpush1.msra.mxu0 0.0
    %3380 = vmatprep.subr.mxu0 0.0
    %3381 = vmatpush1.msra.mxu0 0.0
    %3382 = vmatprep.subr.mxu0 0.0
    %3383 = vmatpush1.msra.mxu0 0.0
    %3384 = vmatprep.subr.mxu0 0.0
    %3385 = vmatpush1.msra.mxu0 0.0
    %3386 = vmatprep.subr.mxu0 0.0
    %3387 = vmatpush1.msra.mxu0 0.0
    %3388 = vmatprep.subr.mxu0 0.0
    %3389 = vmatpush1.msra.mxu0 0.0
    %3390 = vmatprep.subr.mxu0 0.0
    %3391 = vmatpush1.msra.mxu0 0.0
    %3392 = vmatprep.subr.mxu0 0.0
    %3393 = vmatpush1.msra.mxu0 0.0
    %3394 = vmatprep.subr.mxu0 0.0
    %3395 = vmatpush1.msra.mxu0 0.0
    %3396 = vmatprep.subr.mxu0 0.0
    %3397 = vmatpush1.msra.mxu0 0.0
    %3398 = vmatprep.subr.mxu0 0.0
    %3399 = vmatpush1.msra.mxu0 0.0
    %3400 = vmatprep.subr.mxu0 0.0
    %3401 = vmatpush1.msra.mxu0 0.0
    %3402 = vmatprep.subr.mxu0 0.0
    %3403 = vmatpush1.msra.mxu0 0.0
    %3404 = vmatprep.subr.mxu0 0.0
    %3405 = vmatpush1.msra.mxu0 0.0
    %3406 = vmatprep.subr.mxu0 0.0
    %3407 = vmatpush1.msra.mxu0 0.0
    %3408 = vmatprep.subr.mxu0 0.0
    %3409 = vmatpush1.msra.mxu0 0.0
    %3410 = vmatprep.subr.mxu0 0.0
    %3411 = vmatpush1.msra.mxu0 0.0
    %3412 = vmatprep.subr.mxu0 0.0
    %3413 = vmatpush1.msra.mxu0 0.0
    %3414 = vmatprep.subr.mxu0 0.0
    %3415 = vmatpush1.msra.mxu0 0.0
    %3416 = vmatprep.subr.mxu0 0.0
    %3417 = vmatpush1.msra.mxu0 0.0
    %3418 = vmatprep.subr.mxu0 0.0
    %3419 = vmatpush1.msra.mxu0 0.0
    %3420 = vmatprep.subr.mxu0 0.0
    %3421 = vmatpush1.msra.mxu0 0.0
    %3422 = vmatprep.subr.mxu0 0.0
    %3423 = vmatpush1.msra.mxu0 0.0
    %3424 = vmatprep.subr.mxu0 0.0
    %3425 = vmatpush1.msra.mxu0 0.0
    %3426 = vmatprep.subr.mxu0 0.0
    %3427 = vmatpush1.msra.mxu0 0.0
    %3428 = vmatprep.subr.mxu0 0.0
    %3429 = vmatpush1.msra.mxu0 0.0
    %3430 = vmatprep.subr.mxu0 0.0
    %3431 = vmatpush1.msra.mxu0 0.0
    %3432 = vmatprep.subr.mxu0 0.0
    %3433 = vmatpush1.msra.mxu0 0.0
    %3434 = vmatprep.subr.mxu0 0.0
    %3435 = vmatpush1.msra.mxu0 0.0
    %3436 = vmatprep.mubr.f32.mxu0 0.0
    %3437 = vmatmul.mubr.f32.gmra.mrb[0].mxu0 %v3370
    %v3438 = vpop.f32.mrb[0].mxu0
    %v3439 = vadd.f32 0.0, %v3438
    %v3440 = vpop.f32.mrb[0].mxu0
    %3441 = vdwg.mxu0
    %3442 = vmatprep.subr.mxu0 0.0
    %3443 = vmatpush1.msra.mxu0 %v2503
    %3444 = vmatprep.subr.mxu0 0.0
    %3445 = vmatpush1.msra.mxu0 %v2504
    %3446 = vmatprep.subr.mxu0 0.0
    %3447 = vmatpush1.msra.mxu0 0.0
    %3448 = vmatprep.subr.mxu0 0.0
    %3449 = vmatpush1.msra.mxu0 0.0
    %3450 = vmatprep.subr.mxu0 0.0
    %3451 = vmatpush1.msra.mxu0 0.0
    %3452 = vmatprep.subr.mxu0 0.0
    %3453 = vmatpush1.msra.mxu0 0.0
    %3454 = vmatprep.subr.mxu0 0.0
    %3455 = vmatpush1.msra.mxu0 0.0
    %3456 = vmatprep.subr.mxu0 0.0
    %3457 = vmatpush1.msra.mxu0 0.0
    %3458 = vmatprep.subr.mxu0 0.0
    %3459 = vmatpush1.msra.mxu0 0.0
    %3460 = vmatprep.subr.mxu0 0.0
    %3461 = vmatpush1.msra.mxu0 0.0
    %3462 = vmatprep.subr.mxu0 0.0
    %3463 = vmatpush1.msra.mxu0 0.0
    %3464 = vmatprep.subr.mxu0 0.0
    %3465 = vmatpush1.msra.mxu0 0.0
    %3466 = vmatprep.subr.mxu0 0.0
    %3467 = vmatpush1.msra.mxu0 0.0
    %3468 = vmatprep.subr.mxu0 0.0
    %3469 = vmatpush1.msra.mxu0 0.0
    %3470 = vmatprep.subr.mxu0 0.0
    %3471 = vmatpush1.msra.mxu0 0.0
    %3472 = vmatprep.subr.mxu0 0.0
    %3473 = vmatpush1.msra.mxu0 0.0
    %3474 = vmatprep.subr.mxu0 0.0
    %3475 = vmatpush1.msra.mxu0 0.0
    %3476 = vmatprep.subr.mxu0 0.0
    %3477 = vmatpush1.msra.mxu0 0.0
    %3478 = vmatprep.subr.mxu0 0.0
    %3479 = vmatpush1.msra.mxu0 0.0
    %3480 = vmatprep.subr.mxu0 0.0
    %3481 = vmatpush1.msra.mxu0 0.0
    %3482 = vmatprep.subr.mxu0 0.0
    %3483 = vmatpush1.msra.mxu0 0.0
    %3484 = vmatprep.subr.mxu0 0.0
    %3485 = vmatpush1.msra.mxu0 0.0
    %3486 = vmatprep.subr.mxu0 0.0
    %3487 = vmatpush1.msra.mxu0 0.0
    %3488 = vmatprep.subr.mxu0 0.0
    %3489 = vmatpush1.msra.mxu0 0.0
    %3490 = vmatprep.subr.mxu0 0.0
    %3491 = vmatpush1.msra.mxu0 0.0
    %3492 = vmatprep.subr.mxu0 0.0
    %3493 = vmatpush1.msra.mxu0 0.0
    %3494 = vmatprep.subr.mxu0 0.0
    %3495 = vmatpush1.msra.mxu0 0.0
    %3496 = vmatprep.subr.mxu0 0.0
    %3497 = vmatpush1.msra.mxu0 0.0
    %3498 = vmatprep.subr.mxu0 0.0
    %3499 = vmatpush1.msra.mxu0 0.0
    %3500 = vmatprep.subr.mxu0 0.0
    %3501 = vmatpush1.msra.mxu0 0.0
    %3502 = vmatprep.subr.mxu0 0.0
    %3503 = vmatpush1.msra.mxu0 0.0
    %3504 = vmatprep.subr.mxu0 0.0
    %3505 = vmatpush1.msra.mxu0 0.0
    %3506 = vmatprep.mubr.f32.mxu0 0.0
    %3507 = vmatmul.mubr.f32.gmra.mrb[0].mxu0 %v3370
    %v3508 = vpop.f32.mrb[0].mxu0
    %v3509 = vadd.f32 0.0, %v3508
    %v3510 = vpop.f32.mrb[0].mxu0
    %3511 = vdwg.mxu0
    %3512 = vrot.lane.b32.xlu0 %v2500, 16
    %v3513 = vpop.permute.xlu0 %3512
    %v3514 = vsel %vm78, %v3513, 0
    %3516 = vmatprep.subr.mxu0 0.0
    %3517 = vmatpush1.msra.mxu0 %v2501
    %3518 = vmatprep.subr.mxu0 0.0
    %3519 = vmatpush1.msra.mxu0 %v2502
    %3520 = vmatprep.subr.mxu0 0.0
    %3521 = vmatpush1.msra.mxu0 0.0
    %3522 = vmatprep.subr.mxu0 0.0
    %3523 = vmatpush1.msra.mxu0 0.0
    %3524 = vmatprep.subr.mxu0 0.0
    %3525 = vmatpush1.msra.mxu0 0.0
    %3526 = vmatprep.subr.mxu0 0.0
    %3527 = vmatpush1.msra.mxu0 0.0
    %3528 = vmatprep.subr.mxu0 0.0
    %3529 = vmatpush1.msra.mxu0 0.0
    %3530 = vmatprep.subr.mxu0 0.0
    %3531 = vmatpush1.msra.mxu0 0.0
    %3532 = vmatprep.subr.mxu0 0.0
    %3533 = vmatpush1.msra.mxu0 0.0
    %3534 = vmatprep.subr.mxu0 0.0
    %3535 = vmatpush1.msra.mxu0 0.0
    %3536 = vmatprep.subr.mxu0 0.0
    %3537 = vmatpush1.msra.mxu0 0.0
    %3538 = vmatprep.subr.mxu0 0.0
    %3539 = vmatpush1.msra.mxu0 0.0
    %3540 = vmatprep.subr.mxu0 0.0
    %3541 = vmatpush1.msra.mxu0 0.0
    %3542 = vmatprep.subr.mxu0 0.0
    %3543 = vmatpush1.msra.mxu0 0.0
    %3544 = vmatprep.subr.mxu0 0.0
    %3545 = vmatpush1.msra.mxu0 0.0
    %3546 = vmatprep.subr.mxu0 0.0
    %3547 = vmatpush1.msra.mxu0 0.0
    %3548 = vmatprep.subr.mxu0 0.0
    %3549 = vmatpush1.msra.mxu0 0.0
    %3550 = vmatprep.subr.mxu0 0.0
    %3551 = vmatpush1.msra.mxu0 0.0
    %3552 = vmatprep.subr.mxu0 0.0
    %3553 = vmatpush1.msra.mxu0 0.0
    %3554 = vmatprep.subr.mxu0 0.0
    %3555 = vmatpush1.msra.mxu0 0.0
    %3556 = vmatprep.subr.mxu0 0.0
    %3557 = vmatpush1.msra.mxu0 0.0
    %3558 = vmatprep.subr.mxu0 0.0
    %3559 = vmatpush1.msra.mxu0 0.0
    %3560 = vmatprep.subr.mxu0 0.0
    %3561 = vmatpush1.msra.mxu0 0.0
    %3562 = vmatprep.subr.mxu0 0.0
    %3563 = vmatpush1.msra.mxu0 0.0
    %3564 = vmatprep.subr.mxu0 0.0
    %3565 = vmatpush1.msra.mxu0 0.0
    %3566 = vmatprep.subr.mxu0 0.0
    %3567 = vmatpush1.msra.mxu0 0.0
    %3568 = vmatprep.subr.mxu0 0.0
    %3569 = vmatpush1.msra.mxu0 0.0
    %3570 = vmatprep.subr.mxu0 0.0
    %3571 = vmatpush1.msra.mxu0 0.0
    %3572 = vmatprep.subr.mxu0 0.0
    %3573 = vmatpush1.msra.mxu0 0.0
    %3574 = vmatprep.subr.mxu0 0.0
    %3575 = vmatpush1.msra.mxu0 0.0
    %3576 = vmatprep.subr.mxu0 0.0
    %3577 = vmatpush1.msra.mxu0 0.0
    %3578 = vmatprep.subr.mxu0 0.0
    %3579 = vmatpush1.msra.mxu0 0.0
    %3580 = vmatprep.mubr.f32.mxu0 0.0
    %3581 = vmatmul.mubr.f32.gmra.mrb[0].mxu0 %v3514
    %v3582 = vpop.f32.mrb[0].mxu0
    %v3583 = vadd.f32 0.0, %v3582
    %v3584 = vpop.f32.mrb[0].mxu0
    %3585 = vdwg.mxu0
    %3586 = vmatprep.subr.mxu0 0.0
    %3587 = vmatpush1.msra.mxu0 %v2503
    %3588 = vmatprep.subr.mxu0 0.0
    %3589 = vmatpush1.msra.mxu0 %v2504
    %3590 = vmatprep.subr.mxu0 0.0
    %3591 = vmatpush1.msra.mxu0 0.0
    %3592 = vmatprep.subr.mxu0 0.0
    %3593 = vmatpush1.msra.mxu0 0.0
    %3594 = vmatprep.subr.mxu0 0.0
    %3595 = vmatpush1.msra.mxu0 0.0
    %3596 = vmatprep.subr.mxu0 0.0
    %3597 = vmatpush1.msra.mxu0 0.0
    %3598 = vmatprep.subr.mxu0 0.0
    %3599 = vmatpush1.msra.mxu0 0.0
    %3600 = vmatprep.subr.mxu0 0.0
    %3601 = vmatpush1.msra.mxu0 0.0
    %3602 = vmatprep.subr.mxu0 0.0
    %3603 = vmatpush1.msra.mxu0 0.0
    %3604 = vmatprep.subr.mxu0 0.0
    %3605 = vmatpush1.msra.mxu0 0.0
    %3606 = vmatprep.subr.mxu0 0.0
    %3607 = vmatpush1.msra.mxu0 0.0
    %3608 = vmatprep.subr.mxu0 0.0
    %3609 = vmatpush1.msra.mxu0 0.0
    %3610 = vmatprep.subr.mxu0 0.0
    %3611 = vmatpush1.msra.mxu0 0.0
    %3612 = vmatprep.subr.mxu0 0.0
    %3613 = vmatpush1.msra.mxu0 0.0
    %3614 = vmatprep.subr.mxu0 0.0
    %3615 = vmatpush1.msra.mxu0 0.0
    %3616 = vmatprep.subr.mxu0 0.0
    %3617 = vmatpush1.msra.mxu0 0.0
    %3618 = vmatprep.subr.mxu0 0.0
    %3619 = vmatpush1.msra.mxu0 0.0
    %3620 = vmatprep.subr.mxu0 0.0
    %3621 = vmatpush1.msra.mxu0 0.0
    %3622 = vmatprep.subr.mxu0 0.0
    %3623 = vmatpush1.msra.mxu0 0.0
    %3624 = vmatprep.subr.mxu0 0.0
    %3625 = vmatpush1.msra.mxu0 0.0
    %3626 = vmatprep.subr.mxu0 0.0
    %3627 = vmatpush1.msra.mxu0 0.0
    %3628 = vmatprep.subr.mxu0 0.0
    %3629 = vmatpush1.msra.mxu0 0.0
    %3630 = vmatprep.subr.mxu0 0.0
    %3631 = vmatpush1.msra.mxu0 0.0
    %3632 = vmatprep.subr.mxu0 0.0
    %3633 = vmatpush1.msra.mxu0 0.0
    %3634 = vmatprep.subr.mxu0 0.0
    %3635 = vmatpush1.msra.mxu0 0.0
    %3636 = vmatprep.subr.mxu0 0.0
    %3637 = vmatpush1.msra.mxu0 0.0
    %3638 = vmatprep.subr.mxu0 0.0
    %3639 = vmatpush1.msra.mxu0 0.0
    %3640 = vmatprep.subr.mxu0 0.0
    %3641 = vmatpush1.msra.mxu0 0.0
    %3642 = vmatprep.subr.mxu0 0.0
    %3643 = vmatpush1.msra.mxu0 0.0
    %3644 = vmatprep.subr.mxu0 0.0
    %3645 = vmatpush1.msra.mxu0 0.0
    %3646 = vmatprep.subr.mxu0 0.0
    %3647 = vmatpush1.msra.mxu0 0.0
    %3648 = vmatprep.subr.mxu0 0.0
    %3649 = vmatpush1.msra.mxu0 0.0
    %3650 = vmatprep.mubr.f32.mxu0 0.0
    %3651 = vmatmul.mubr.f32.gmra.mrb[0].mxu0 %v3514
    %v3652 = vpop.f32.mrb[0].mxu0
    %v3653 = vadd.f32 0.0, %v3652
    %v3654 = vpop.f32.mrb[0].mxu0
    %3655 = vdwg.mxu0
    %v3656 = vadd.f32 %v2575, %v2645
    %v3657 = vadd.f32 %v2575, %v2789
    %v3658 = vadd.f32 %v2575, %v2933
    %v3659 = vadd.f32 %v2575, %v3077
    %v3660 = vadd.f32 %v2575, %v3221
    %v3661 = vadd.f32 %v2575, %v3365
    %v3662 = vadd.f32 %v2575, %v3509
    %v3663 = vadd.f32 %v2575, %v3653
    %v3664 = vadd.f32 %v2719, %v2645
    %v3665 = vadd.f32 %v2719, %v2789
    %v3666 = vadd.f32 %v2719, %v2933
    %v3667 = vadd.f32 %v2719, %v3077
    %v3668 = vadd.f32 %v2719, %v3221
    %v3669 = vadd.f32 %v2719, %v3365
    %v3670 = vadd.f32 %v2719, %v3509
    %v3671 = vadd.f32 %v2719, %v3653
    %v3672 = vadd.f32 %v2863, %v2645
    %v3673 = vadd.f32 %v2863, %v2789
    %v3674 = vadd.f32 %v2863, %v2933
    %v3675 = vadd.f32 %v2863, %v3077
    %v3676 = vadd.f32 %v2863, %v3221
    %v3677 = vadd.f32 %v2863, %v3365
    %v3678 = vadd.f32 %v2863, %v3509
    %v3679 = vadd.f32 %v2863, %v3653
    %v3680 = vadd.f32 %v3007, %v2645
    %v3681 = vadd.f32 %v3007, %v2789
    %v3682 = vadd.f32 %v3007, %v2933
    %v3683 = vadd.f32 %v3007, %v3077
    %v3684 = vadd.f32 %v3007, %v3221
    %v3685 = vadd.f32 %v3007, %v3365
    %v3686 = vadd.f32 %v3007, %v3509
    %v3687 = vadd.f32 %v3007, %v3653
    %v3688 = vadd.f32 %v3151, %v2645
    %v3689 = vadd.f32 %v3151, %v2789
    %v3690 = vadd.f32 %v3151, %v2933
    %v3691 = vadd.f32 %v3151, %v3077
    %v3692 = vadd.f32 %v3151, %v3221
    %v3693 = vadd.f32 %v3151, %v3365
    %v3694 = vadd.f32 %v3151, %v3509
    %v3695 = vadd.f32 %v3151, %v3653
    %v3696 = vadd.f32 %v3295, %v2645
    %v3697 = vadd.f32 %v3295, %v2789
    %v3698 = vadd.f32 %v3295, %v2933
    %v3699 = vadd.f32 %v3295, %v3077
    %v3700 = vadd.f32 %v3295, %v3221
    %v3701 = vadd.f32 %v3295, %v3365
    %v3702 = vadd.f32 %v3295, %v3509
    %v3703 = vadd.f32 %v3295, %v3653
    %v3704 = vadd.f32 %v3439, %v2645
    %v3705 = vadd.f32 %v3439, %v2789
    %v3706 = vadd.f32 %v3439, %v2933
    %v3707 = vadd.f32 %v3439, %v3077
    %v3708 = vadd.f32 %v3439, %v3221
    %v3709 = vadd.f32 %v3439, %v3365
    %v3710 = vadd.f32 %v3439, %v3509
    %v3711 = vadd.f32 %v3439, %v3653
    %v3712 = vadd.f32 %v3583, %v2645
    %v3713 = vadd.f32 %v3583, %v2789
    %v3714 = vadd.f32 %v3583, %v2933
    %v3715 = vadd.f32 %v3583, %v3077
    %v3716 = vadd.f32 %v3583, %v3221
    %v3717 = vadd.f32 %v3583, %v3365
    %v3718 = vadd.f32 %v3583, %v3509
    %v3719 = vadd.f32 %v3583, %v3653
    %v3720 = vld [vmem:[#allocation6 + $0x138] sm:$0x1]
    %v3721 = vlaneseq
    %v3722 = vshrl.u32 %v3721, 7
    %v3723 = vsub.s32 0, %v3722
    %v3724 = vrot.slane %v3720, %v3723
    %v3725 = vadd.f32 %v3656, %v3724
    %v3726 = vadd.f32 %v3657, %v3724
    %v3727 = vadd.f32 %v3658, %v3724
    %v3728 = vadd.f32 %v3659, %v3724
    %v3729 = vadd.f32 %v3660, %v3724
    %v3730 = vadd.f32 %v3661, %v3724
    %v3731 = vadd.f32 %v3662, %v3724
    %v3732 = vadd.f32 %v3663, %v3724
    %v3733 = vadd.f32 %v3664, %v3724
    %v3734 = vadd.f32 %v3665, %v3724
    %v3735 = vadd.f32 %v3666, %v3724
    %v3736 = vadd.f32 %v3667, %v3724
    %v3737 = vadd.f32 %v3668, %v3724
    %v3738 = vadd.f32 %v3669, %v3724
    %v3739 = vadd.f32 %v3670, %v3724
    %v3740 = vadd.f32 %v3671, %v3724
    %v3741 = vadd.f32 %v3672, %v3724
    %v3742 = vadd.f32 %v3673, %v3724
    %v3743 = vadd.f32 %v3674, %v3724
    %v3744 = vadd.f32 %v3675, %v3724
    %v3745 = vadd.f32 %v3676, %v3724
    %v3746 = vadd.f32 %v3677, %v3724
    %v3747 = vadd.f32 %v3678, %v3724
    %v3748 = vadd.f32 %v3679, %v3724
    %v3749 = vadd.f32 %v3680, %v3724
    %v3750 = vadd.f32 %v3681, %v3724
    %v3751 = vadd.f32 %v3682, %v3724
    %v3752 = vadd.f32 %v3683, %v3724
    %v3753 = vadd.f32 %v3684, %v3724
    %v3754 = vadd.f32 %v3685, %v3724
    %v3755 = vadd.f32 %v3686, %v3724
    %v3756 = vadd.f32 %v3687, %v3724
    %v3757 = vadd.f32 %v3688, %v3724
    %v3758 = vadd.f32 %v3689, %v3724
    %v3759 = vadd.f32 %v3690, %v3724
    %v3760 = vadd.f32 %v3691, %v3724
    %v3761 = vadd.f32 %v3692, %v3724
    %v3762 = vadd.f32 %v3693, %v3724
    %v3763 = vadd.f32 %v3694, %v3724
    %v3764 = vadd.f32 %v3695, %v3724
    %v3765 = vadd.f32 %v3696, %v3724
    %v3766 = vadd.f32 %v3697, %v3724
    %v3767 = vadd.f32 %v3698, %v3724
    %v3768 = vadd.f32 %v3699, %v3724
    %v3769 = vadd.f32 %v3700, %v3724
    %v3770 = vadd.f32 %v3701, %v3724
    %v3771 = vadd.f32 %v3702, %v3724
    %v3772 = vadd.f32 %v3703, %v3724
    %v3773 = vadd.f32 %v3704, %v3724
    %v3774 = vadd.f32 %v3705, %v3724
    %v3775 = vadd.f32 %v3706, %v3724
    %v3776 = vadd.f32 %v3707, %v3724
    %v3777 = vadd.f32 %v3708, %v3724
    %v3778 = vadd.f32 %v3709, %v3724
    %v3779 = vadd.f32 %v3710, %v3724
    %v3780 = vadd.f32 %v3711, %v3724
    %v3781 = vadd.f32 %v3712, %v3724
    %v3782 = vadd.f32 %v3713, %v3724
    %v3783 = vadd.f32 %v3714, %v3724
    %v3784 = vadd.f32 %v3715, %v3724
    %v3785 = vadd.f32 %v3716, %v3724
    %v3786 = vadd.f32 %v3717, %v3724
    %v3787 = vadd.f32 %v3718, %v3724
    %v3788 = vadd.f32 %v3719, %v3724
    %v3789 = vmax.f32 %v3725, 0.0
    %v3790 = vmax.f32 %v3726, 0.0
    %v3791 = vmax.f32 %v3727, 0.0
    %v3792 = vmax.f32 %v3728, 0.0
    %v3793 = vmax.f32 %v3729, 0.0
    %v3794 = vmax.f32 %v3730, 0.0
    %v3795 = vmax.f32 %v3731, 0.0
    %v3796 = vmax.f32 %v3732, 0.0
    %v3797 = vmax.f32 %v3733, 0.0
    %v3798 = vmax.f32 %v3734, 0.0
    %v3799 = vmax.f32 %v3735, 0.0
    %v3800 = vmax.f32 %v3736, 0.0
    %v3801 = vmax.f32 %v3737, 0.0
    %v3802 = vmax.f32 %v3738, 0.0
    %v3803 = vmax.f32 %v3739, 0.0
    %v3804 = vmax.f32 %v3740, 0.0
    %v3805 = vmax.f32 %v3741, 0.0
    %v3806 = vmax.f32 %v3742, 0.0
    %v3807 = vmax.f32 %v3743, 0.0
    %v3808 = vmax.f32 %v3744, 0.0
    %v3809 = vmax.f32 %v3745, 0.0
    %v3810 = vmax.f32 %v3746, 0.0
    %v3811 = vmax.f32 %v3747, 0.0
    %v3812 = vmax.f32 %v3748, 0.0
    %v3813 = vmax.f32 %v3749, 0.0
    %v3814 = vmax.f32 %v3750, 0.0
    %v3815 = vmax.f32 %v3751, 0.0
    %v3816 = vmax.f32 %v3752, 0.0
    %v3817 = vmax.f32 %v3753, 0.0
    %v3818 = vmax.f32 %v3754, 0.0
    %v3819 = vmax.f32 %v3755, 0.0
    %v3820 = vmax.f32 %v3756, 0.0
    %v3821 = vmax.f32 %v3757, 0.0
    %v3822 = vmax.f32 %v3758, 0.0
    %v3823 = vmax.f32 %v3759, 0.0
    %v3824 = vmax.f32 %v3760, 0.0
    %v3825 = vmax.f32 %v3761, 0.0
    %v3826 = vmax.f32 %v3762, 0.0
    %v3827 = vmax.f32 %v3763, 0.0
    %v3828 = vmax.f32 %v3764, 0.0
    %v3829 = vmax.f32 %v3765, 0.0
    %v3830 = vmax.f32 %v3766, 0.0
    %v3831 = vmax.f32 %v3767, 0.0
    %v3832 = vmax.f32 %v3768, 0.0
    %v3833 = vmax.f32 %v3769, 0.0
    %v3834 = vmax.f32 %v3770, 0.0
    %v3835 = vmax.f32 %v3771, 0.0
    %v3836 = vmax.f32 %v3772, 0.0
    %v3837 = vmax.f32 %v3773, 0.0
    %v3838 = vmax.f32 %v3774, 0.0
    %v3839 = vmax.f32 %v3775, 0.0
    %v3840 = vmax.f32 %v3776, 0.0
    %v3841 = vmax.f32 %v3777, 0.0
    %v3842 = vmax.f32 %v3778, 0.0
    %v3843 = vmax.f32 %v3779, 0.0
    %v3844 = vmax.f32 %v3780, 0.0
    %v3845 = vmax.f32 %v3781, 0.0
    %v3846 = vmax.f32 %v3782, 0.0
    %v3847 = vmax.f32 %v3783, 0.0
    %v3848 = vmax.f32 %v3784, 0.0
    %v3849 = vmax.f32 %v3785, 0.0
    %v3850 = vmax.f32 %v3786, 0.0
    %v3851 = vmax.f32 %v3787, 0.0
    %v3852 = vmax.f32 %v3788, 0.0
    %v3853 = vld [vmem:[#allocation6 + $0x140] sm:$0xff]
    %v3854 = vlaneseq
    %v3855 = vshrl.u32 %v3854, 7
    %v3856 = vsub.s32 0, %v3855
    %v3857 = vrot.slane %v3853, %v3856
    %3859 = vbcast.lane.b32.xlu0 %v3857, 256
    %v3860 = vpop.permute.xlu0 %3859
    %v3861 = vlaneseq
    %v3862 = vshrl.u32 %v3861, 7
    %v3863 = vsub.s32 1, %v3862
    %v3864 = vrot.slane %v3853, %v3863
    %3866 = vbcast.lane.b32.xlu0 %v3864, 256
    %v3867 = vpop.permute.xlu0 %3866
    %v3868 = vlaneseq
    %v3869 = vshrl.u32 %v3868, 7
    %v3870 = vsub.s32 2, %v3869
    %v3871 = vrot.slane %v3853, %v3870
    %3873 = vbcast.lane.b32.xlu0 %v3871, 256
    %v3874 = vpop.permute.xlu0 %3873
    %v3875 = vlaneseq
    %v3876 = vshrl.u32 %v3875, 7
    %v3877 = vsub.s32 3, %v3876
    %v3878 = vrot.slane %v3853, %v3877
    %3880 = vbcast.lane.b32.xlu0 %v3878, 256
    %v3881 = vpop.permute.xlu0 %3880
    %v3882 = vlaneseq
    %v3883 = vshrl.u32 %v3882, 7
    %v3884 = vsub.s32 4, %v3883
    %v3885 = vrot.slane %v3853, %v3884
    %3887 = vbcast.lane.b32.xlu0 %v3885, 256
    %v3888 = vpop.permute.xlu0 %3887
    %v3889 = vlaneseq
    %v3890 = vshrl.u32 %v3889, 7
    %v3891 = vsub.s32 5, %v3890
    %v3892 = vrot.slane %v3853, %v3891
    %3894 = vbcast.lane.b32.xlu0 %v3892, 256
    %v3895 = vpop.permute.xlu0 %3894
    %v3896 = vlaneseq
    %v3897 = vshrl.u32 %v3896, 7
    %v3898 = vsub.s32 6, %v3897
    %v3899 = vrot.slane %v3853, %v3898
    %3901 = vbcast.lane.b32.xlu0 %v3899, 256
    %v3902 = vpop.permute.xlu0 %3901
    %v3903 = vlaneseq
    %v3904 = vshrl.u32 %v3903, 7
    %v3905 = vsub.s32 7, %v3904
    %v3906 = vrot.slane %v3853, %v3905
    %3908 = vbcast.lane.b32.xlu0 %v3906, 256
    %v3909 = vpop.permute.xlu0 %3908
    %v3910 = vld [vmem:[#allocation6 + $0x148] sm:$0x3]
    %v3911 = vlaneseq
    %v3912 = vshrl.u32 %v3911, 7
    %v3913 = vsub.s32 1, %v3912
    %v3914 = vrot.slane %v3910, %v3913
    %v3915 = vmul.f32 %v3860, %v3914
    %v3916 = vmul.f32 %v3867, %v3914
    %v3917 = vmul.f32 %v3874, %v3914
    %v3918 = vmul.f32 %v3881, %v3914
    %v3919 = vmul.f32 %v3888, %v3914
    %v3920 = vmul.f32 %v3895, %v3914
    %v3921 = vmul.f32 %v3902, %v3914
    %v3922 = vmul.f32 %v3909, %v3914
    %v3923 = vsub.f32 1.0, %v3860
    %v3924 = vsub.f32 1.0, %v3867
    %v3925 = vsub.f32 1.0, %v3874
    %v3926 = vsub.f32 1.0, %v3881
    %v3927 = vsub.f32 1.0, %v3888
    %v3928 = vsub.f32 1.0, %v3895
    %v3929 = vsub.f32 1.0, %v3902
    %v3930 = vsub.f32 1.0, %v3909
    %v3931 = vlaneseq
    %v3932 = vshrl.u32 %v3931, 7
    %v3933 = vsub.s32 0, %v3932
    %v3934 = vrot.slane %v3910, %v3933
    %v3935 = vmul.f32 %v3923, %v3934
    %v3936 = vmul.f32 %v3924, %v3934
    %v3937 = vmul.f32 %v3925, %v3934
    %v3938 = vmul.f32 %v3926, %v3934
    %v3939 = vmul.f32 %v3927, %v3934
    %v3940 = vmul.f32 %v3928, %v3934
    %v3941 = vmul.f32 %v3929, %v3934
    %v3942 = vmul.f32 %v3930, %v3934
    %v3943 = vadd.f32 %v3915, %v3935
    %v3944 = vadd.f32 %v3916, %v3936
    %v3945 = vadd.f32 %v3917, %v3937
    %v3946 = vadd.f32 %v3918, %v3938
    %v3947 = vadd.f32 %v3919, %v3939
    %v3948 = vadd.f32 %v3920, %v3940
    %v3949 = vadd.f32 %v3921, %v3941
    %v3950 = vadd.f32 %v3922, %v3942
    %v3951 = vld [vmem:[#allocation6 + $0x150] sm:$0xf]
    %v3952 = vld [vmem:[#allocation6 + $0x158] sm:$0x1]
    %v3953 = vlaneseq
    %v3954 = vshrl.u32 %v3953, 7
    %v3955 = vsub.s32 0, %v3954
    %v3956 = vrot.slane %v3952, %v3955
    %vm3957 = vcmask 31744
    %v3959 = vsel %vm3957, %v3943, 0
    %v3962 = vsel %vm3957, %v3944, 0
    %v3965 = vsel %vm3957, %v3945, 0
    %v3968 = vsel %vm3957, %v3946, 0
    %v3971 = vsel %vm3957, %v3947, 0
    %v3974 = vsel %vm3957, %v3948, 0
    %v3977 = vsel %vm3957, %v3949, 0
    %v3980 = vsel %vm3957, %v3950, 0
    %vm3982 = vcmask 1043456
    %v3984 = vsel %vm3982, %v3951, 0
    %3986 = vmatprep.subr.mxu0 0.0
    %3987 = vmatpush1.msra.mxu0 %v3984
    %3988 = vmatprep.subr.mxu0 0.0
    %3989 = vmatpush1.msra.mxu0 0.0
    %3990 = vmatprep.subr.mxu0 0.0
    %3991 = vmatpush1.msra.mxu0 0.0
    %3992 = vmatprep.subr.mxu0 0.0
    %3993 = vmatpush1.msra.mxu0 0.0
    %3994 = vmatprep.subr.mxu0 0.0
    %3995 = vmatpush1.msra.mxu0 0.0
    %3996 = vmatprep.subr.mxu0 0.0
    %3997 = vmatpush1.msra.mxu0 0.0
    %3998 = vmatprep.subr.mxu0 0.0
    %3999 = vmatpush1.msra.mxu0 0.0
    %4000 = vmatprep.subr.mxu0 0.0
    %4001 = vmatpush1.msra.mxu0 0.0
    %4002 = vmatprep.subr.mxu0 0.0
    %4003 = vmatpush1.msra.mxu0 0.0
    %4004 = vmatprep.subr.mxu0 0.0
    %4005 = vmatpush1.msra.mxu0 0.0
    %4006 = vmatprep.subr.mxu0 0.0
    %4007 = vmatpush1.msra.mxu0 0.0
    %4008 = vmatprep.subr.mxu0 0.0
    %4009 = vmatpush1.msra.mxu0 0.0
    %4010 = vmatprep.subr.mxu0 0.0
    %4011 = vmatpush1.msra.mxu0 0.0
    %4012 = vmatprep.subr.mxu0 0.0
    %4013 = vmatpush1.msra.mxu0 0.0
    %4014 = vmatprep.subr.mxu0 0.0
    %4015 = vmatpush1.msra.mxu0 0.0
    %4016 = vmatprep.subr.mxu0 0.0
    %4017 = vmatpush1.msra.mxu0 0.0
    %4018 = vmatprep.subr.mxu0 0.0
    %4019 = vmatpush1.msra.mxu0 0.0
    %4020 = vmatprep.subr.mxu0 0.0
    %4021 = vmatpush1.msra.mxu0 0.0
    %4022 = vmatprep.subr.mxu0 0.0
    %4023 = vmatpush1.msra.mxu0 0.0
    %4024 = vmatprep.subr.mxu0 0.0
    %4025 = vmatpush1.msra.mxu0 0.0
    %4026 = vmatprep.subr.mxu0 0.0
    %4027 = vmatpush1.msra.mxu0 0.0
    %4028 = vmatprep.subr.mxu0 0.0
    %4029 = vmatpush1.msra.mxu0 0.0
    %4030 = vmatprep.subr.mxu0 0.0
    %4031 = vmatpush1.msra.mxu0 0.0
    %4032 = vmatprep.subr.mxu0 0.0
    %4033 = vmatpush1.msra.mxu0 0.0
    %4034 = vmatprep.subr.mxu0 0.0
    %4035 = vmatpush1.msra.mxu0 0.0
    %4036 = vmatprep.subr.mxu0 0.0
    %4037 = vmatpush1.msra.mxu0 0.0
    %4038 = vmatprep.subr.mxu0 0.0
    %4039 = vmatpush1.msra.mxu0 0.0
    %4040 = vmatprep.subr.mxu0 0.0
    %4041 = vmatpush1.msra.mxu0 0.0
    %4042 = vmatprep.subr.mxu0 0.0
    %4043 = vmatpush1.msra.mxu0 0.0
    %4044 = vmatprep.subr.mxu0 0.0
    %4045 = vmatpush1.msra.mxu0 0.0
    %4046 = vmatprep.subr.mxu0 0.0
    %4047 = vmatpush1.msra.mxu0 0.0
    %4048 = vmatprep.subr.mxu0 0.0
    %4049 = vmatpush1.msra.mxu0 0.0
    %4050 = vmatprep.mubr.f32.mxu0 0.0
    %4051 = vmatmul.mubr.f32.gmra.mrb[0].mxu0 %v3959
    %v4052 = vpop.f32.mrb[0].mxu0
    %v4053 = vadd.f32 %v3956, %v4052
    %v4054 = vpop.f32.mrb[0].mxu0
    %4055 = vmatprep.mubr.f32.mxu0 0.0
    %4056 = vmatmul.mubr.f32.gmra.mrb[0].mxu0 %v3962
    %v4057 = vpop.f32.mrb[0].mxu0
    %v4058 = vadd.f32 %v3956, %v4057
    %v4059 = vpop.f32.mrb[0].mxu0
    %4060 = vmatprep.mubr.f32.mxu0 0.0
    %4061 = vmatmul.mubr.f32.gmra.mrb[0].mxu0 %v3965
    %v4062 = vpop.f32.mrb[0].mxu0
    %v4063 = vadd.f32 %v3956, %v4062
    %v4064 = vpop.f32.mrb[0].mxu0
    %4065 = vmatprep.mubr.f32.mxu0 0.0
    %4066 = vmatmul.mubr.f32.gmra.mrb[0].mxu0 %v3968
    %v4067 = vpop.f32.mrb[0].mxu0
    %v4068 = vadd.f32 %v3956, %v4067
    %v4069 = vpop.f32.mrb[0].mxu0
    %4070 = vmatprep.mubr.f32.mxu0 0.0
    %4071 = vmatmul.mubr.f32.gmra.mrb[0].mxu0 %v3971
    %v4072 = vpop.f32.mrb[0].mxu0
    %v4073 = vadd.f32 %v3956, %v4072
    %v4074 = vpop.f32.mrb[0].mxu0
    %4075 = vmatprep.mubr.f32.mxu0 0.0
    %4076 = vmatmul.mubr.f32.gmra.mrb[0].mxu0 %v3974
    %v4077 = vpop.f32.mrb[0].mxu0
    %v4078 = vadd.f32 %v3956, %v4077
    %v4079 = vpop.f32.mrb[0].mxu0
    %4080 = vmatprep.mubr.f32.mxu0 0.0
    %4081 = vmatmul.mubr.f32.gmra.mrb[0].mxu0 %v3977
    %v4082 = vpop.f32.mrb[0].mxu0
    %v4083 = vadd.f32 %v3956, %v4082
    %v4084 = vpop.f32.mrb[0].mxu0
    %4085 = vmatprep.mubr.f32.mxu0 0.0
    %4086 = vmatmul.mubr.f32.gmra.mrb[0].mxu0 %v3980
    %v4087 = vpop.f32.mrb[0].mxu0
    %v4088 = vadd.f32 %v3956, %v4087
    %v4089 = vpop.f32.mrb[0].mxu0
    %4090 = vdwg.mxu0
    %v4091 = vmax.f32 %v4053, 0.0
    %v4092 = vmax.f32 %v4058, 0.0
    %v4093 = vmax.f32 %v4063, 0.0
    %v4094 = vmax.f32 %v4068, 0.0
    %v4095 = vmax.f32 %v4073, 0.0
    %v4096 = vmax.f32 %v4078, 0.0
    %v4097 = vmax.f32 %v4083, 0.0
    %v4098 = vmax.f32 %v4088, 0.0
    %v4107 = vcombine.high %v4091, %v4091
    %v4109 = vunpack.c.l.s4 1966171168
    %v4110 = vunpack.c.0.s8 %v4109
    %v4111 = vlaneseq
    %v4112 = vshrl.u32 %v4111, 7
    %v4113 = vsub.s32 %v4110, %v4112
    %v4114 = vrot.slane %v4091, %v4113
    %v4116 = vunpack.c.l.s4 1966171168
    %v4117 = vunpack.c.0.s8 %v4116
    %v4118 = vlaneseq
    %v4119 = vshrl.u32 %v4118, 7
    %v4120 = vsub.s32 %v4117, %v4119
    %v4121 = vrot.slane %v4107, %v4120
    %v4122 = vcombine.high %v4114, %v4114
    %v4123 = vcombine.high %v4121, %v4121
    %v4125 = vunpack.c.l.s4 1966171168
    %v4126 = vunpack.c.0.s8 %v4125
    %v4127 = vlaneseq
    %v4128 = vshrl.u32 %v4127, 7
    %v4129 = vsub.s32 %v4126, %v4128
    %v4130 = vrot.slane %v4114, %v4129
    %v4132 = vunpack.c.l.s4 1966171168
    %v4133 = vunpack.c.0.s8 %v4132
    %v4134 = vlaneseq
    %v4135 = vshrl.u32 %v4134, 7
    %v4136 = vsub.s32 %v4133, %v4135
    %v4137 = vrot.slane %v4121, %v4136
    %v4139 = vunpack.c.l.s4 1966171168
    %v4140 = vunpack.c.0.s8 %v4139
    %v4141 = vlaneseq
    %v4142 = vshrl.u32 %v4141, 7
    %v4143 = vsub.s32 %v4140, %v4142
    %v4144 = vrot.slane %v4122, %v4143
    %v4146 = vunpack.c.l.s4 1966171168
    %v4147 = vunpack.c.0.s8 %v4146
    %v4148 = vlaneseq
    %v4149 = vshrl.u32 %v4148, 7
    %v4150 = vsub.s32 %v4147, %v4149
    %v4151 = vrot.slane %v4123, %v4150
    %v4152 = vcombine.high %v4130, %v4130
    %v4153 = vcombine.high %v4137, %v4137
    %v4154 = vcombine.high %v4144, %v4144
    %v4155 = vcombine.high %v4151, %v4151
    %v4156 = vcombine.high %v4092, %v4092
    %v4158 = vunpack.c.l.s4 1966171168
    %v4159 = vunpack.c.0.s8 %v4158
    %v4160 = vlaneseq
    %v4161 = vshrl.u32 %v4160, 7
    %v4162 = vsub.s32 %v4159, %v4161
    %v4163 = vrot.slane %v4092, %v4162
    %v4165 = vunpack.c.l.s4 1966171168
    %v4166 = vunpack.c.0.s8 %v4165
    %v4167 = vlaneseq
    %v4168 = vshrl.u32 %v4167, 7
    %v4169 = vsub.s32 %v4166, %v4168
    %v4170 = vrot.slane %v4156, %v4169
    %v4171 = vcombine.high %v4163, %v4163
    %v4172 = vcombine.high %v4170, %v4170
    %v4174 = vunpack.c.l.s4 1966171168
    %v4175 = vunpack.c.0.s8 %v4174
    %v4176 = vlaneseq
    %v4177 = vshrl.u32 %v4176, 7
    %v4178 = vsub.s32 %v4175, %v4177
    %v4179 = vrot.slane %v4163, %v4178
    %v4181 = vunpack.c.l.s4 1966171168
    %v4182 = vunpack.c.0.s8 %v4181
    %v4183 = vlaneseq
    %v4184 = vshrl.u32 %v4183, 7
    %v4185 = vsub.s32 %v4182, %v4184
    %v4186 = vrot.slane %v4170, %v4185
    %v4188 = vunpack.c.l.s4 1966171168
    %v4189 = vunpack.c.0.s8 %v4188
    %v4190 = vlaneseq
    %v4191 = vshrl.u32 %v4190, 7
    %v4192 = vsub.s32 %v4189, %v4191
    %v4193 = vrot.slane %v4171, %v4192
    %v4195 = vunpack.c.l.s4 1966171168
    %v4196 = vunpack.c.0.s8 %v4195
    %v4197 = vlaneseq
    %v4198 = vshrl.u32 %v4197, 7
    %v4199 = vsub.s32 %v4196, %v4198
    %v4200 = vrot.slane %v4172, %v4199
    %v4201 = vcombine.high %v4179, %v4179
    %v4202 = vcombine.high %v4186, %v4186
    %v4203 = vcombine.high %v4193, %v4193
    %v4204 = vcombine.high %v4200, %v4200
    %v4205 = vcombine.high %v4093, %v4093
    %v4207 = vunpack.c.l.s4 1966171168
    %v4208 = vunpack.c.0.s8 %v4207
    %v4209 = vlaneseq
    %v4210 = vshrl.u32 %v4209, 7
    %v4211 = vsub.s32 %v4208, %v4210
    %v4212 = vrot.slane %v4093, %v4211
    %v4214 = vunpack.c.l.s4 1966171168
    %v4215 = vunpack.c.0.s8 %v4214
    %v4216 = vlaneseq
    %v4217 = vshrl.u32 %v4216, 7
    %v4218 = vsub.s32 %v4215, %v4217
    %v4219 = vrot.slane %v4205, %v4218
    %v4220 = vcombine.high %v4212, %v4212
    %v4221 = vcombine.high %v4219, %v4219
    %v4223 = vunpack.c.l.s4 1966171168
    %v4224 = vunpack.c.0.s8 %v4223
    %v4225 = vlaneseq
    %v4226 = vshrl.u32 %v4225, 7
    %v4227 = vsub.s32 %v4224, %v4226
    %v4228 = vrot.slane %v4212, %v4227
    %v4230 = vunpack.c.l.s4 1966171168
    %v4231 = vunpack.c.0.s8 %v4230
    %v4232 = vlaneseq
    %v4233 = vshrl.u32 %v4232, 7
    %v4234 = vsub.s32 %v4231, %v4233
    %v4235 = vrot.slane %v4219, %v4234
    %v4237 = vunpack.c.l.s4 1966171168
    %v4238 = vunpack.c.0.s8 %v4237
    %v4239 = vlaneseq
    %v4240 = vshrl.u32 %v4239, 7
    %v4241 = vsub.s32 %v4238, %v4240
    %v4242 = vrot.slane %v4220, %v4241
    %v4244 = vunpack.c.l.s4 1966171168
    %v4245 = vunpack.c.0.s8 %v4244
    %v4246 = vlaneseq
    %v4247 = vshrl.u32 %v4246, 7
    %v4248 = vsub.s32 %v4245, %v4247
    %v4249 = vrot.slane %v4221, %v4248
    %v4250 = vcombine.high %v4228, %v4228
    %v4251 = vcombine.high %v4235, %v4235
    %v4252 = vcombine.high %v4242, %v4242
    %v4253 = vcombine.high %v4249, %v4249
    %v4254 = vcombine.high %v4094, %v4094
    %v4256 = vunpack.c.l.s4 1966171168
    %v4257 = vunpack.c.0.s8 %v4256
    %v4258 = vlaneseq
    %v4259 = vshrl.u32 %v4258, 7
    %v4260 = vsub.s32 %v4257, %v4259
    %v4261 = vrot.slane %v4094, %v4260
    %v4263 = vunpack.c.l.s4 1966171168
    %v4264 = vunpack.c.0.s8 %v4263
    %v4265 = vlaneseq
    %v4266 = vshrl.u32 %v4265, 7
    %v4267 = vsub.s32 %v4264, %v4266
    %v4268 = vrot.slane %v4254, %v4267
    %v4269 = vcombine.high %v4261, %v4261
    %v4270 = vcombine.high %v4268, %v4268
    %v4272 = vunpack.c.l.s4 1966171168
    %v4273 = vunpack.c.0.s8 %v4272
    %v4274 = vlaneseq
    %v4275 = vshrl.u32 %v4274, 7
    %v4276 = vsub.s32 %v4273, %v4275
    %v4277 = vrot.slane %v4261, %v4276
    %v4279 = vunpack.c.l.s4 1966171168
    %v4280 = vunpack.c.0.s8 %v4279
    %v4281 = vlaneseq
    %v4282 = vshrl.u32 %v4281, 7
    %v4283 = vsub.s32 %v4280, %v4282
    %v4284 = vrot.slane %v4268, %v4283
    %v4286 = vunpack.c.l.s4 1966171168
    %v4287 = vunpack.c.0.s8 %v4286
    %v4288 = vlaneseq
    %v4289 = vshrl.u32 %v4288, 7
    %v4290 = vsub.s32 %v4287, %v4289
    %v4291 = vrot.slane %v4269, %v4290
    %v4293 = vunpack.c.l.s4 1966171168
    %v4294 = vunpack.c.0.s8 %v4293
    %v4295 = vlaneseq
    %v4296 = vshrl.u32 %v4295, 7
    %v4297 = vsub.s32 %v4294, %v4296
    %v4298 = vrot.slane %v4270, %v4297
    %v4299 = vcombine.high %v4277, %v4277
    %v4300 = vcombine.high %v4284, %v4284
    %v4301 = vcombine.high %v4291, %v4291
    %v4302 = vcombine.high %v4298, %v4298
    %v4303 = vcombine.high %v4095, %v4095
    %v4305 = vunpack.c.l.s4 1966171168
    %v4306 = vunpack.c.0.s8 %v4305
    %v4307 = vlaneseq
    %v4308 = vshrl.u32 %v4307, 7
    %v4309 = vsub.s32 %v4306, %v4308
    %v4310 = vrot.slane %v4095, %v4309
    %v4312 = vunpack.c.l.s4 1966171168
    %v4313 = vunpack.c.0.s8 %v4312
    %v4314 = vlaneseq
    %v4315 = vshrl.u32 %v4314, 7
    %v4316 = vsub.s32 %v4313, %v4315
    %v4317 = vrot.slane %v4303, %v4316
    %v4318 = vcombine.high %v4310, %v4310
    %v4319 = vcombine.high %v4317, %v4317
    %v4321 = vunpack.c.l.s4 1966171168
    %v4322 = vunpack.c.0.s8 %v4321
    %v4323 = vlaneseq
    %v4324 = vshrl.u32 %v4323, 7
    %v4325 = vsub.s32 %v4322, %v4324
    %v4326 = vrot.slane %v4310, %v4325
    %v4328 = vunpack.c.l.s4 1966171168
    %v4329 = vunpack.c.0.s8 %v4328
    %v4330 = vlaneseq
    %v4331 = vshrl.u32 %v4330, 7
    %v4332 = vsub.s32 %v4329, %v4331
    %v4333 = vrot.slane %v4317, %v4332
    %v4335 = vunpack.c.l.s4 1966171168
    %v4336 = vunpack.c.0.s8 %v4335
    %v4337 = vlaneseq
    %v4338 = vshrl.u32 %v4337, 7
    %v4339 = vsub.s32 %v4336, %v4338
    %v4340 = vrot.slane %v4318, %v4339
    %v4342 = vunpack.c.l.s4 1966171168
    %v4343 = vunpack.c.0.s8 %v4342
    %v4344 = vlaneseq
    %v4345 = vshrl.u32 %v4344, 7
    %v4346 = vsub.s32 %v4343, %v4345
    %v4347 = vrot.slane %v4319, %v4346
    %v4348 = vcombine.high %v4326, %v4326
    %v4349 = vcombine.high %v4333, %v4333
    %v4350 = vcombine.high %v4340, %v4340
    %v4351 = vcombine.high %v4347, %v4347
    %v4352 = vcombine.high %v4096, %v4096
    %v4354 = vunpack.c.l.s4 1966171168
    %v4355 = vunpack.c.0.s8 %v4354
    %v4356 = vlaneseq
    %v4357 = vshrl.u32 %v4356, 7
    %v4358 = vsub.s32 %v4355, %v4357
    %v4359 = vrot.slane %v4096, %v4358
    %v4361 = vunpack.c.l.s4 1966171168
    %v4362 = vunpack.c.0.s8 %v4361
    %v4363 = vlaneseq
    %v4364 = vshrl.u32 %v4363, 7
    %v4365 = vsub.s32 %v4362, %v4364
    %v4366 = vrot.slane %v4352, %v4365
    %v4367 = vcombine.high %v4359, %v4359
    %v4368 = vcombine.high %v4366, %v4366
    %v4370 = vunpack.c.l.s4 1966171168
    %v4371 = vunpack.c.0.s8 %v4370
    %v4372 = vlaneseq
    %v4373 = vshrl.u32 %v4372, 7
    %v4374 = vsub.s32 %v4371, %v4373
    %v4375 = vrot.slane %v4359, %v4374
    %v4377 = vunpack.c.l.s4 1966171168
    %v4378 = vunpack.c.0.s8 %v4377
    %v4379 = vlaneseq
    %v4380 = vshrl.u32 %v4379, 7
    %v4381 = vsub.s32 %v4378, %v4380
    %v4382 = vrot.slane %v4366, %v4381
    %v4384 = vunpack.c.l.s4 1966171168
    %v4385 = vunpack.c.0.s8 %v4384
    %v4386 = vlaneseq
    %v4387 = vshrl.u32 %v4386, 7
    %v4388 = vsub.s32 %v4385, %v4387
    %v4389 = vrot.slane %v4367, %v4388
    %v4391 = vunpack.c.l.s4 1966171168
    %v4392 = vunpack.c.0.s8 %v4391
    %v4393 = vlaneseq
    %v4394 = vshrl.u32 %v4393, 7
    %v4395 = vsub.s32 %v4392, %v4394
    %v4396 = vrot.slane %v4368, %v4395
    %v4397 = vcombine.high %v4375, %v4375
    %v4398 = vcombine.high %v4382, %v4382
    %v4399 = vcombine.high %v4389, %v4389
    %v4400 = vcombine.high %v4396, %v4396
    %v4401 = vcombine.high %v4097, %v4097
    %v4403 = vunpack.c.l.s4 1966171168
    %v4404 = vunpack.c.0.s8 %v4403
    %v4405 = vlaneseq
    %v4406 = vshrl.u32 %v4405, 7
    %v4407 = vsub.s32 %v4404, %v4406
    %v4408 = vrot.slane %v4097, %v4407
    %v4410 = vunpack.c.l.s4 1966171168
    %v4411 = vunpack.c.0.s8 %v4410
    %v4412 = vlaneseq
    %v4413 = vshrl.u32 %v4412, 7
    %v4414 = vsub.s32 %v4411, %v4413
    %v4415 = vrot.slane %v4401, %v4414
    %v4416 = vcombine.high %v4408, %v4408
    %v4417 = vcombine.high %v4415, %v4415
    %v4419 = vunpack.c.l.s4 1966171168
    %v4420 = vunpack.c.0.s8 %v4419
    %v4421 = vlaneseq
    %v4422 = vshrl.u32 %v4421, 7
    %v4423 = vsub.s32 %v4420, %v4422
    %v4424 = vrot.slane %v4408, %v4423
    %v4426 = vunpack.c.l.s4 1966171168
    %v4427 = vunpack.c.0.s8 %v4426
    %v4428 = vlaneseq
    %v4429 = vshrl.u32 %v4428, 7
    %v4430 = vsub.s32 %v4427, %v4429
    %v4431 = vrot.slane %v4415, %v4430
    %v4433 = vunpack.c.l.s4 1966171168
    %v4434 = vunpack.c.0.s8 %v4433
    %v4435 = vlaneseq
    %v4436 = vshrl.u32 %v4435, 7
    %v4437 = vsub.s32 %v4434, %v4436
    %v4438 = vrot.slane %v4416, %v4437
    %v4440 = vunpack.c.l.s4 1966171168
    %v4441 = vunpack.c.0.s8 %v4440
    %v4442 = vlaneseq
    %v4443 = vshrl.u32 %v4442, 7
    %v4444 = vsub.s32 %v4441, %v4443
    %v4445 = vrot.slane %v4417, %v4444
    %v4446 = vcombine.high %v4424, %v4424
    %v4447 = vcombine.high %v4431, %v4431
    %v4448 = vcombine.high %v4438, %v4438
    %v4449 = vcombine.high %v4445, %v4445
    %v4450 = vcombine.high %v4098, %v4098
    %v4452 = vunpack.c.l.s4 1966171168
    %v4453 = vunpack.c.0.s8 %v4452
    %v4454 = vlaneseq
    %v4455 = vshrl.u32 %v4454, 7
    %v4456 = vsub.s32 %v4453, %v4455
    %v4457 = vrot.slane %v4098, %v4456
    %v4459 = vunpack.c.l.s4 1966171168
    %v4460 = vunpack.c.0.s8 %v4459
    %v4461 = vlaneseq
    %v4462 = vshrl.u32 %v4461, 7
    %v4463 = vsub.s32 %v4460, %v4462
    %v4464 = vrot.slane %v4450, %v4463
    %v4465 = vcombine.high %v4457, %v4457
    %v4466 = vcombine.high %v4464, %v4464
    %v4468 = vunpack.c.l.s4 1966171168
    %v4469 = vunpack.c.0.s8 %v4468
    %v4470 = vlaneseq
    %v4471 = vshrl.u32 %v4470, 7
    %v4472 = vsub.s32 %v4469, %v4471
    %v4473 = vrot.slane %v4457, %v4472
    %v4475 = vunpack.c.l.s4 1966171168
    %v4476 = vunpack.c.0.s8 %v4475
    %v4477 = vlaneseq
    %v4478 = vshrl.u32 %v4477, 7
    %v4479 = vsub.s32 %v4476, %v4478
    %v4480 = vrot.slane %v4464, %v4479
    %v4482 = vunpack.c.l.s4 1966171168
    %v4483 = vunpack.c.0.s8 %v4482
    %v4484 = vlaneseq
    %v4485 = vshrl.u32 %v4484, 7
    %v4486 = vsub.s32 %v4483, %v4485
    %v4487 = vrot.slane %v4465, %v4486
    %v4489 = vunpack.c.l.s4 1966171168
    %v4490 = vunpack.c.0.s8 %v4489
    %v4491 = vlaneseq
    %v4492 = vshrl.u32 %v4491, 7
    %v4493 = vsub.s32 %v4490, %v4492
    %v4494 = vrot.slane %v4466, %v4493
    %v4495 = vcombine.high %v4473, %v4473
    %v4496 = vcombine.high %v4480, %v4480
    %v4497 = vcombine.high %v4487, %v4487
    %v4498 = vcombine.high %v4494, %v4494
    %v4499 = vlaneseq
    %v4500 = vshrl.u32 %v4499, 7
    %v4501 = vsub.s32 0, %v4500
    %v4502 = vrot.slane %v4130, %v4501
    %v4503 = vlaneseq
    %v4504 = vshrl.u32 %v4503, 7
    %v4505 = vsub.s32 0, %v4504
    %v4506 = vrot.slane %v4144, %v4505
    %v4507 = vlaneseq
    %v4508 = vshrl.u32 %v4507, 7
    %v4509 = vsub.s32 0, %v4508
    %v4510 = vrot.slane %v4152, %v4509
    %v4511 = vlaneseq
    %v4512 = vshrl.u32 %v4511, 7
    %v4513 = vsub.s32 0, %v4512
    %v4514 = vrot.slane %v4154, %v4513
    %v4515 = vlaneseq
    %v4516 = vshrl.u32 %v4515, 7
    %v4517 = vsub.s32 0, %v4516
    %v4518 = vrot.slane %v4137, %v4517
    %v4519 = vlaneseq
    %v4520 = vshrl.u32 %v4519, 7
    %v4521 = vsub.s32 0, %v4520
    %v4522 = vrot.slane %v4151, %v4521
    %v4523 = vlaneseq
    %v4524 = vshrl.u32 %v4523, 7
    %v4525 = vsub.s32 0, %v4524
    %v4526 = vrot.slane %v4153, %v4525
    %v4527 = vlaneseq
    %v4528 = vshrl.u32 %v4527, 7
    %v4529 = vsub.s32 0, %v4528
    %v4530 = vrot.slane %v4155, %v4529
    %v4531 = vlaneseq
    %v4532 = vshrl.u32 %v4531, 7
    %v4533 = vsub.s32 0, %v4532
    %v4534 = vrot.slane %v4179, %v4533
    %v4535 = vlaneseq
    %v4536 = vshrl.u32 %v4535, 7
    %v4537 = vsub.s32 0, %v4536
    %v4538 = vrot.slane %v4193, %v4537
    %v4539 = vlaneseq
    %v4540 = vshrl.u32 %v4539, 7
    %v4541 = vsub.s32 0, %v4540
    %v4542 = vrot.slane %v4201, %v4541
    %v4543 = vlaneseq
    %v4544 = vshrl.u32 %v4543, 7
    %v4545 = vsub.s32 0, %v4544
    %v4546 = vrot.slane %v4203, %v4545
    %v4547 = vlaneseq
    %v4548 = vshrl.u32 %v4547, 7
    %v4549 = vsub.s32 0, %v4548
    %v4550 = vrot.slane %v4186, %v4549
    %v4551 = vlaneseq
    %v4552 = vshrl.u32 %v4551, 7
    %v4553 = vsub.s32 0, %v4552
    %v4554 = vrot.slane %v4200, %v4553
    %v4555 = vlaneseq
    %v4556 = vshrl.u32 %v4555, 7
    %v4557 = vsub.s32 0, %v4556
    %v4558 = vrot.slane %v4202, %v4557
    %v4559 = vlaneseq
    %v4560 = vshrl.u32 %v4559, 7
    %v4561 = vsub.s32 0, %v4560
    %v4562 = vrot.slane %v4204, %v4561
    %v4563 = vlaneseq
    %v4564 = vshrl.u32 %v4563, 7
    %v4565 = vsub.s32 0, %v4564
    %v4566 = vrot.slane %v4228, %v4565
    %v4567 = vlaneseq
    %v4568 = vshrl.u32 %v4567, 7
    %v4569 = vsub.s32 0, %v4568
    %v4570 = vrot.slane %v4242, %v4569
    %v4571 = vlaneseq
    %v4572 = vshrl.u32 %v4571, 7
    %v4573 = vsub.s32 0, %v4572
    %v4574 = vrot.slane %v4250, %v4573
    %v4575 = vlaneseq
    %v4576 = vshrl.u32 %v4575, 7
    %v4577 = vsub.s32 0, %v4576
    %v4578 = vrot.slane %v4252, %v4577
    %v4579 = vlaneseq
    %v4580 = vshrl.u32 %v4579, 7
    %v4581 = vsub.s32 0, %v4580
    %v4582 = vrot.slane %v4235, %v4581
    %v4583 = vlaneseq
    %v4584 = vshrl.u32 %v4583, 7
    %v4585 = vsub.s32 0, %v4584
    %v4586 = vrot.slane %v4249, %v4585
    %v4587 = vlaneseq
    %v4588 = vshrl.u32 %v4587, 7
    %v4589 = vsub.s32 0, %v4588
    %v4590 = vrot.slane %v4251, %v4589
    %v4591 = vlaneseq
    %v4592 = vshrl.u32 %v4591, 7
    %v4593 = vsub.s32 0, %v4592
    %v4594 = vrot.slane %v4253, %v4593
    %v4595 = vlaneseq
    %v4596 = vshrl.u32 %v4595, 7
    %v4597 = vsub.s32 0, %v4596
    %v4598 = vrot.slane %v4277, %v4597
    %v4599 = vlaneseq
    %v4600 = vshrl.u32 %v4599, 7
    %v4601 = vsub.s32 0, %v4600
    %v4602 = vrot.slane %v4291, %v4601
    %v4603 = vlaneseq
    %v4604 = vshrl.u32 %v4603, 7
    %v4605 = vsub.s32 0, %v4604
    %v4606 = vrot.slane %v4299, %v4605
    %v4607 = vlaneseq
    %v4608 = vshrl.u32 %v4607, 7
    %v4609 = vsub.s32 0, %v4608
    %v4610 = vrot.slane %v4301, %v4609
    %v4611 = vlaneseq
    %v4612 = vshrl.u32 %v4611, 7
    %v4613 = vsub.s32 0, %v4612
    %v4614 = vrot.slane %v4284, %v4613
    %v4615 = vlaneseq
    %v4616 = vshrl.u32 %v4615, 7
    %v4617 = vsub.s32 0, %v4616
    %v4618 = vrot.slane %v4298, %v4617
    %v4619 = vlaneseq
    %v4620 = vshrl.u32 %v4619, 7
    %v4621 = vsub.s32 0, %v4620
    %v4622 = vrot.slane %v4300, %v4621
    %v4623 = vlaneseq
    %v4624 = vshrl.u32 %v4623, 7
    %v4625 = vsub.s32 0, %v4624
    %v4626 = vrot.slane %v4302, %v4625
    %v4627 = vlaneseq
    %v4628 = vshrl.u32 %v4627, 7
    %v4629 = vsub.s32 0, %v4628
    %v4630 = vrot.slane %v4326, %v4629
    %v4631 = vlaneseq
    %v4632 = vshrl.u32 %v4631, 7
    %v4633 = vsub.s32 0, %v4632
    %v4634 = vrot.slane %v4340, %v4633
    %v4635 = vlaneseq
    %v4636 = vshrl.u32 %v4635, 7
    %v4637 = vsub.s32 0, %v4636
    %v4638 = vrot.slane %v4348, %v4637
    %v4639 = vlaneseq
    %v4640 = vshrl.u32 %v4639, 7
    %v4641 = vsub.s32 0, %v4640
    %v4642 = vrot.slane %v4350, %v4641
    %v4643 = vlaneseq
    %v4644 = vshrl.u32 %v4643, 7
    %v4645 = vsub.s32 0, %v4644
    %v4646 = vrot.slane %v4333, %v4645
    %v4647 = vlaneseq
    %v4648 = vshrl.u32 %v4647, 7
    %v4649 = vsub.s32 0, %v4648
    %v4650 = vrot.slane %v4347, %v4649
    %v4651 = vlaneseq
    %v4652 = vshrl.u32 %v4651, 7
    %v4653 = vsub.s32 0, %v4652
    %v4654 = vrot.slane %v4349, %v4653
    %v4655 = vlaneseq
    %v4656 = vshrl.u32 %v4655, 7
    %v4657 = vsub.s32 0, %v4656
    %v4658 = vrot.slane %v4351, %v4657
    %v4659 = vlaneseq
    %v4660 = vshrl.u32 %v4659, 7
    %v4661 = vsub.s32 0, %v4660
    %v4662 = vrot.slane %v4375, %v4661
    %v4663 = vlaneseq
    %v4664 = vshrl.u32 %v4663, 7
    %v4665 = vsub.s32 0, %v4664
    %v4666 = vrot.slane %v4389, %v4665
    %v4667 = vlaneseq
    %v4668 = vshrl.u32 %v4667, 7
    %v4669 = vsub.s32 0, %v4668
    %v4670 = vrot.slane %v4397, %v4669
    %v4671 = vlaneseq
    %v4672 = vshrl.u32 %v4671, 7
    %v4673 = vsub.s32 0, %v4672
    %v4674 = vrot.slane %v4399, %v4673
    %v4675 = vlaneseq
    %v4676 = vshrl.u32 %v4675, 7
    %v4677 = vsub.s32 0, %v4676
    %v4678 = vrot.slane %v4382, %v4677
    %v4679 = vlaneseq
    %v4680 = vshrl.u32 %v4679, 7
    %v4681 = vsub.s32 0, %v4680
    %v4682 = vrot.slane %v4396, %v4681
    %v4683 = vlaneseq
    %v4684 = vshrl.u32 %v4683, 7
    %v4685 = vsub.s32 0, %v4684
    %v4686 = vrot.slane %v4398, %v4685
    %v4687 = vlaneseq
    %v4688 = vshrl.u32 %v4687, 7
    %v4689 = vsub.s32 0, %v4688
    %v4690 = vrot.slane %v4400, %v4689
    %v4691 = vlaneseq
    %v4692 = vshrl.u32 %v4691, 7
    %v4693 = vsub.s32 0, %v4692
    %v4694 = vrot.slane %v4424, %v4693
    %v4695 = vlaneseq
    %v4696 = vshrl.u32 %v4695, 7
    %v4697 = vsub.s32 0, %v4696
    %v4698 = vrot.slane %v4438, %v4697
    %v4699 = vlaneseq
    %v4700 = vshrl.u32 %v4699, 7
    %v4701 = vsub.s32 0, %v4700
    %v4702 = vrot.slane %v4446, %v4701
    %v4703 = vlaneseq
    %v4704 = vshrl.u32 %v4703, 7
    %v4705 = vsub.s32 0, %v4704
    %v4706 = vrot.slane %v4448, %v4705
    %v4707 = vlaneseq
    %v4708 = vshrl.u32 %v4707, 7
    %v4709 = vsub.s32 0, %v4708
    %v4710 = vrot.slane %v4431, %v4709
    %v4711 = vlaneseq
    %v4712 = vshrl.u32 %v4711, 7
    %v4713 = vsub.s32 0, %v4712
    %v4714 = vrot.slane %v4445, %v4713
    %v4715 = vlaneseq
    %v4716 = vshrl.u32 %v4715, 7
    %v4717 = vsub.s32 0, %v4716
    %v4718 = vrot.slane %v4447, %v4717
    %v4719 = vlaneseq
    %v4720 = vshrl.u32 %v4719, 7
    %v4721 = vsub.s32 0, %v4720
    %v4722 = vrot.slane %v4449, %v4721
    %v4723 = vlaneseq
    %v4724 = vshrl.u32 %v4723, 7
    %v4725 = vsub.s32 0, %v4724
    %v4726 = vrot.slane %v4473, %v4725
    %v4727 = vlaneseq
    %v4728 = vshrl.u32 %v4727, 7
    %v4729 = vsub.s32 0, %v4728
    %v4730 = vrot.slane %v4487, %v4729
    %v4731 = vlaneseq
    %v4732 = vshrl.u32 %v4731, 7
    %v4733 = vsub.s32 0, %v4732
    %v4734 = vrot.slane %v4495, %v4733
    %v4735 = vlaneseq
    %v4736 = vshrl.u32 %v4735, 7
    %v4737 = vsub.s32 0, %v4736
    %v4738 = vrot.slane %v4497, %v4737
    %v4739 = vlaneseq
    %v4740 = vshrl.u32 %v4739, 7
    %v4741 = vsub.s32 0, %v4740
    %v4742 = vrot.slane %v4480, %v4741
    %v4743 = vlaneseq
    %v4744 = vshrl.u32 %v4743, 7
    %v4745 = vsub.s32 0, %v4744
    %v4746 = vrot.slane %v4494, %v4745
    %v4747 = vlaneseq
    %v4748 = vshrl.u32 %v4747, 7
    %v4749 = vsub.s32 0, %v4748
    %v4750 = vrot.slane %v4496, %v4749
    %v4751 = vlaneseq
    %v4752 = vshrl.u32 %v4751, 7
    %v4753 = vsub.s32 0, %v4752
    %v4754 = vrot.slane %v4498, %v4753
    %v4819 = vmul.f32 %v3789, %v4502
    %v4820 = vmul.f32 %v3790, %v4506
    %v4821 = vmul.f32 %v3791, %v4510
    %v4822 = vmul.f32 %v3792, %v4514
    %v4823 = vmul.f32 %v3793, %v4518
    %v4824 = vmul.f32 %v3794, %v4522
    %v4825 = vmul.f32 %v3795, %v4526
    %v4826 = vmul.f32 %v3796, %v4530
    %v4827 = vmul.f32 %v3797, %v4534
    %v4828 = vmul.f32 %v3798, %v4538
    %v4829 = vmul.f32 %v3799, %v4542
    %v4830 = vmul.f32 %v3800, %v4546
    %v4831 = vmul.f32 %v3801, %v4550
    %v4832 = vmul.f32 %v3802, %v4554
    %v4833 = vmul.f32 %v3803, %v4558
    %v4834 = vmul.f32 %v3804, %v4562
    %v4835 = vmul.f32 %v3805, %v4566
    %v4836 = vmul.f32 %v3806, %v4570
    %v4837 = vmul.f32 %v3807, %v4574
    %v4838 = vmul.f32 %v3808, %v4578
    %v4839 = vmul.f32 %v3809, %v4582
    %v4840 = vmul.f32 %v3810, %v4586
    %v4841 = vmul.f32 %v3811, %v4590
    %v4842 = vmul.f32 %v3812, %v4594
    %v4843 = vmul.f32 %v3813, %v4598
    %v4844 = vmul.f32 %v3814, %v4602
    %v4845 = vmul.f32 %v3815, %v4606
    %v4846 = vmul.f32 %v3816, %v4610
    %v4847 = vmul.f32 %v3817, %v4614
    %v4848 = vmul.f32 %v3818, %v4618
    %v4849 = vmul.f32 %v3819, %v4622
    %v4850 = vmul.f32 %v3820, %v4626
    %v4851 = vmul.f32 %v3821, %v4630
    %v4852 = vmul.f32 %v3822, %v4634
    %v4853 = vmul.f32 %v3823, %v4638
    %v4854 = vmul.f32 %v3824, %v4642
    %v4855 = vmul.f32 %v3825, %v4646
    %v4856 = vmul.f32 %v3826, %v4650
    %v4857 = vmul.f32 %v3827, %v4654
    %v4858 = vmul.f32 %v3828, %v4658
    %v4859 = vmul.f32 %v3829, %v4662
    %v4860 = vmul.f32 %v3830, %v4666
    %v4861 = vmul.f32 %v3831, %v4670
    %v4862 = vmul.f32 %v3832, %v4674
    %v4863 = vmul.f32 %v3833, %v4678
    %v4864 = vmul.f32 %v3834, %v4682
    %v4865 = vmul.f32 %v3835, %v4686
    %v4866 = vmul.f32 %v3836, %v4690
    %v4867 = vmul.f32 %v3837, %v4694
    %v4868 = vmul.f32 %v3838, %v4698
    %v4869 = vmul.f32 %v3839, %v4702
    %v4870 = vmul.f32 %v3840, %v4706
    %v4871 = vmul.f32 %v3841, %v4710
    %v4872 = vmul.f32 %v3842, %v4714
    %v4873 = vmul.f32 %v3843, %v4718
    %v4874 = vmul.f32 %v3844, %v4722
    %v4875 = vmul.f32 %v3845, %v4726
    %v4876 = vmul.f32 %v3846, %v4730
    %v4877 = vmul.f32 %v3847, %v4734
    %v4878 = vmul.f32 %v3848, %v4738
    %v4879 = vmul.f32 %v3849, %v4742
    %v4880 = vmul.f32 %v3850, %v4746
    %v4881 = vmul.f32 %v3851, %v4750
    %v4882 = vmul.f32 %v3852, %v4754
    %v4883 = vld [vmem:[#allocation6 + $0x160] sm:$0xff]
    %v4884 = vld [vmem:[#allocation6 + $0x168] sm:$0xff]
    %v4885 = vld [vmem:[#allocation6 + $0x170] sm:$0xf]
    %v4886 = vld [vmem:[#allocation6 + $0x178] sm:$0x1]
    %v4887 = vlaneseq
    %v4888 = vshrl.u32 %v4887, 7
    %v4889 = vsub.s32 0, %v4888
    %v4890 = vrot.slane %v4886, %v4889
    %vm4891 = vcmask 162816
    %v4893 = vsel %vm4891, %v4819, 0
    %v4896 = vsel %vm3982, %v4885, 0
    %4898 = vmatprep.subr.mxu0 0.0
    %4899 = vmatpush1.msra.mxu0 %v4883
    %4900 = vmatprep.subr.mxu0 0.0
    %4901 = vmatpush1.msra.mxu0 %v4884
    %4902 = vmatprep.subr.mxu0 0.0
    %4903 = vmatpush1.msra.mxu0 %v4896
    %4904 = vmatprep.subr.mxu0 0.0
    %4905 = vmatpush1.msra.mxu0 0.0
    %4906 = vmatprep.subr.mxu0 0.0
    %4907 = vmatpush1.msra.mxu0 0.0
    %4908 = vmatprep.subr.mxu0 0.0
    %4909 = vmatpush1.msra.mxu0 0.0
    %4910 = vmatprep.subr.mxu0 0.0
    %4911 = vmatpush1.msra.mxu0 0.0
    %4912 = vmatprep.subr.mxu0 0.0
    %4913 = vmatpush1.msra.mxu0 0.0
    %4914 = vmatprep.subr.mxu0 0.0
    %4915 = vmatpush1.msra.mxu0 0.0
    %4916 = vmatprep.subr.mxu0 0.0
    %4917 = vmatpush1.msra.mxu0 0.0
    %4918 = vmatprep.subr.mxu0 0.0
    %4919 = vmatpush1.msra.mxu0 0.0
    %4920 = vmatprep.subr.mxu0 0.0
    %4921 = vmatpush1.msra.mxu0 0.0
    %4922 = vmatprep.subr.mxu0 0.0
    %4923 = vmatpush1.msra.mxu0 0.0
    %4924 = vmatprep.subr.mxu0 0.0
    %4925 = vmatpush1.msra.mxu0 0.0
    %4926 = vmatprep.subr.mxu0 0.0
    %4927 = vmatpush1.msra.mxu0 0.0
    %4928 = vmatprep.subr.mxu0 0.0
    %4929 = vmatpush1.msra.mxu0 0.0
    %4930 = vmatprep.subr.mxu0 0.0
    %4931 = vmatpush1.msra.mxu0 0.0
    %4932 = vmatprep.subr.mxu0 0.0
    %4933 = vmatpush1.msra.mxu0 0.0
    %4934 = vmatprep.subr.mxu0 0.0
    %4935 = vmatpush1.msra.mxu0 0.0
    %4936 = vmatprep.subr.mxu0 0.0
    %4937 = vmatpush1.msra.mxu0 0.0
    %4938 = vmatprep.subr.mxu0 0.0
    %4939 = vmatpush1.msra.mxu0 0.0
    %4940 = vmatprep.subr.mxu0 0.0
    %4941 = vmatpush1.msra.mxu0 0.0
    %4942 = vmatprep.subr.mxu0 0.0
    %4943 = vmatpush1.msra.mxu0 0.0
    %4944 = vmatprep.subr.mxu0 0.0
    %4945 = vmatpush1.msra.mxu0 0.0
    %4946 = vmatprep.subr.mxu0 0.0
    %4947 = vmatpush1.msra.mxu0 0.0
    %4948 = vmatprep.subr.mxu0 0.0
    %4949 = vmatpush1.msra.mxu0 0.0
    %4950 = vmatprep.subr.mxu0 0.0
    %4951 = vmatpush1.msra.mxu0 0.0
    %4952 = vmatprep.subr.mxu0 0.0
    %4953 = vmatpush1.msra.mxu0 0.0
    %4954 = vmatprep.subr.mxu0 0.0
    %4955 = vmatpush1.msra.mxu0 0.0
    %4956 = vmatprep.subr.mxu0 0.0
    %4957 = vmatpush1.msra.mxu0 0.0
    %4958 = vmatprep.subr.mxu0 0.0
    %4959 = vmatpush1.msra.mxu0 0.0
    %4960 = vmatprep.subr.mxu0 0.0
    %4961 = vmatpush1.msra.mxu0 0.0
    %4962 = vmatprep.mubr.f32.mxu0 0.0
    %4963 = vmatmul.mubr.f32.gmra.mrb[0].mxu0 %v4893
    %v4964 = vpop.f32.mrb[0].mxu0
    %v4965 = vadd.f32 %v4890, %v4964
    %v4966 = vpop.f32.mrb[0].mxu0
    %4967 = vdwg.mxu0
    %v4969 = vsel %vm4891, %v4820, 0
    %4971 = vmatprep.subr.mxu0 0.0
    %4972 = vmatpush1.msra.mxu0 %v4883
    %4973 = vmatprep.subr.mxu0 0.0
    %4974 = vmatpush1.msra.mxu0 %v4884
    %4975 = vmatprep.subr.mxu0 0.0
    %4976 = vmatpush1.msra.mxu0 %v4896
    %4977 = vmatprep.subr.mxu0 0.0
    %4978 = vmatpush1.msra.mxu0 0.0
    %4979 = vmatprep.subr.mxu0 0.0
    %4980 = vmatpush1.msra.mxu0 0.0
    %4981 = vmatprep.subr.mxu0 0.0
    %4982 = vmatpush1.msra.mxu0 0.0
    %4983 = vmatprep.subr.mxu0 0.0
    %4984 = vmatpush1.msra.mxu0 0.0
    %4985 = vmatprep.subr.mxu0 0.0
    %4986 = vmatpush1.msra.mxu0 0.0
    %4987 = vmatprep.subr.mxu0 0.0
    %4988 = vmatpush1.msra.mxu0 0.0
    %4989 = vmatprep.subr.mxu0 0.0
    %4990 = vmatpush1.msra.mxu0 0.0
    %4991 = vmatprep.subr.mxu0 0.0
    %4992 = vmatpush1.msra.mxu0 0.0
    %4993 = vmatprep.subr.mxu0 0.0
    %4994 = vmatpush1.msra.mxu0 0.0
    %4995 = vmatprep.subr.mxu0 0.0
    %4996 = vmatpush1.msra.mxu0 0.0
    %4997 = vmatprep.subr.mxu0 0.0
    %4998 = vmatpush1.msra.mxu0 0.0
    %4999 = vmatprep.subr.mxu0 0.0
    %5000 = vmatpush1.msra.mxu0 0.0
    %5001 = vmatprep.subr.mxu0 0.0
    %5002 = vmatpush1.msra.mxu0 0.0
    %5003 = vmatprep.subr.mxu0 0.0
    %5004 = vmatpush1.msra.mxu0 0.0
    %5005 = vmatprep.subr.mxu0 0.0
    %5006 = vmatpush1.msra.mxu0 0.0
    %5007 = vmatprep.subr.mxu0 0.0
    %5008 = vmatpush1.msra.mxu0 0.0
    %5009 = vmatprep.subr.mxu0 0.0
    %5010 = vmatpush1.msra.mxu0 0.0
    %5011 = vmatprep.subr.mxu0 0.0
    %5012 = vmatpush1.msra.mxu0 0.0
    %5013 = vmatprep.subr.mxu0 0.0
    %5014 = vmatpush1.msra.mxu0 0.0
    %5015 = vmatprep.subr.mxu0 0.0
    %5016 = vmatpush1.msra.mxu0 0.0
    %5017 = vmatprep.subr.mxu0 0.0
    %5018 = vmatpush1.msra.mxu0 0.0
    %5019 = vmatprep.subr.mxu0 0.0
    %5020 = vmatpush1.msra.mxu0 0.0
    %5021 = vmatprep.subr.mxu0 0.0
    %5022 = vmatpush1.msra.mxu0 0.0
    %5023 = vmatprep.subr.mxu0 0.0
    %5024 = vmatpush1.msra.mxu0 0.0
    %5025 = vmatprep.subr.mxu0 0.0
    %5026 = vmatpush1.msra.mxu0 0.0
    %5027 = vmatprep.subr.mxu0 0.0
    %5028 = vmatpush1.msra.mxu0 0.0
    %5029 = vmatprep.subr.mxu0 0.0
    %5030 = vmatpush1.msra.mxu0 0.0
    %5031 = vmatprep.subr.mxu0 0.0
    %5032 = vmatpush1.msra.mxu0 0.0
    %5033 = vmatprep.subr.mxu0 0.0
    %5034 = vmatpush1.msra.mxu0 0.0
    %5035 = vmatprep.mubr.f32.mxu0 0.0
    %5036 = vmatmul.mubr.f32.gmra.mrb[0].mxu0 %v4969
    %v5037 = vpop.f32.mrb[0].mxu0
    %v5038 = vadd.f32 %v4890, %v5037
    %v5039 = vpop.f32.mrb[0].mxu0
    %5040 = vdwg.mxu0
    %v5042 = vsel %vm4891, %v4821, 0
    %5044 = vmatprep.subr.mxu0 0.0
    %5045 = vmatpush1.msra.mxu0 %v4883
    %5046 = vmatprep.subr.mxu0 0.0
    %5047 = vmatpush1.msra.mxu0 %v4884
    %5048 = vmatprep.subr.mxu0 0.0
    %5049 = vmatpush1.msra.mxu0 %v4896
    %5050 = vmatprep.subr.mxu0 0.0
    %5051 = vmatpush1.msra.mxu0 0.0
    %5052 = vmatprep.subr.mxu0 0.0
    %5053 = vmatpush1.msra.mxu0 0.0
    %5054 = vmatprep.subr.mxu0 0.0
    %5055 = vmatpush1.msra.mxu0 0.0
    %5056 = vmatprep.subr.mxu0 0.0
    %5057 = vmatpush1.msra.mxu0 0.0
    %5058 = vmatprep.subr.mxu0 0.0
    %5059 = vmatpush1.msra.mxu0 0.0
    %5060 = vmatprep.subr.mxu0 0.0
    %5061 = vmatpush1.msra.mxu0 0.0
    %5062 = vmatprep.subr.mxu0 0.0
    %5063 = vmatpush1.msra.mxu0 0.0
    %5064 = vmatprep.subr.mxu0 0.0
    %5065 = vmatpush1.msra.mxu0 0.0
    %5066 = vmatprep.subr.mxu0 0.0
    %5067 = vmatpush1.msra.mxu0 0.0
    %5068 = vmatprep.subr.mxu0 0.0
    %5069 = vmatpush1.msra.mxu0 0.0
    %5070 = vmatprep.subr.mxu0 0.0
    %5071 = vmatpush1.msra.mxu0 0.0
    %5072 = vmatprep.subr.mxu0 0.0
    %5073 = vmatpush1.msra.mxu0 0.0
    %5074 = vmatprep.subr.mxu0 0.0
    %5075 = vmatpush1.msra.mxu0 0.0
    %5076 = vmatprep.subr.mxu0 0.0
    %5077 = vmatpush1.msra.mxu0 0.0
    %5078 = vmatprep.subr.mxu0 0.0
    %5079 = vmatpush1.msra.mxu0 0.0
    %5080 = vmatprep.subr.mxu0 0.0
    %5081 = vmatpush1.msra.mxu0 0.0
    %5082 = vmatprep.subr.mxu0 0.0
    %5083 = vmatpush1.msra.mxu0 0.0
    %5084 = vmatprep.subr.mxu0 0.0
    %5085 = vmatpush1.msra.mxu0 0.0
    %5086 = vmatprep.subr.mxu0 0.0
    %5087 = vmatpush1.msra.mxu0 0.0
    %5088 = vmatprep.subr.mxu0 0.0
    %5089 = vmatpush1.msra.mxu0 0.0
    %5090 = vmatprep.subr.mxu0 0.0
    %5091 = vmatpush1.msra.mxu0 0.0
    %5092 = vmatprep.subr.mxu0 0.0
    %5093 = vmatpush1.msra.mxu0 0.0
    %5094 = vmatprep.subr.mxu0 0.0
    %5095 = vmatpush1.msra.mxu0 0.0
    %5096 = vmatprep.subr.mxu0 0.0
    %5097 = vmatpush1.msra.mxu0 0.0
    %5098 = vmatprep.subr.mxu0 0.0
    %5099 = vmatpush1.msra.mxu0 0.0
    %5100 = vmatprep.subr.mxu0 0.0
    %5101 = vmatpush1.msra.mxu0 0.0
    %5102 = vmatprep.subr.mxu0 0.0
    %5103 = vmatpush1.msra.mxu0 0.0
    %5104 = vmatprep.subr.mxu0 0.0
    %5105 = vmatpush1.msra.mxu0 0.0
    %5106 = vmatprep.subr.mxu0 0.0
    %5107 = vmatpush1.msra.mxu0 0.0
    %5108 = vmatprep.mubr.f32.mxu0 0.0
    %5109 = vmatmul.mubr.f32.gmra.mrb[0].mxu0 %v5042
    %v5110 = vpop.f32.mrb[0].mxu0
    %v5111 = vadd.f32 %v4890, %v5110
    %v5112 = vpop.f32.mrb[0].mxu0
    %5113 = vdwg.mxu0
    %v5115 = vsel %vm4891, %v4822, 0
    %5117 = vmatprep.subr.mxu0 0.0
    %5118 = vmatpush1.msra.mxu0 %v4883
    %5119 = vmatprep.subr.mxu0 0.0
    %5120 = vmatpush1.msra.mxu0 %v4884
    %5121 = vmatprep.subr.mxu0 0.0
    %5122 = vmatpush1.msra.mxu0 %v4896
    %5123 = vmatprep.subr.mxu0 0.0
    %5124 = vmatpush1.msra.mxu0 0.0
    %5125 = vmatprep.subr.mxu0 0.0
    %5126 = vmatpush1.msra.mxu0 0.0
    %5127 = vmatprep.subr.mxu0 0.0
    %5128 = vmatpush1.msra.mxu0 0.0
    %5129 = vmatprep.subr.mxu0 0.0
    %5130 = vmatpush1.msra.mxu0 0.0
    %5131 = vmatprep.subr.mxu0 0.0
    %5132 = vmatpush1.msra.mxu0 0.0
    %5133 = vmatprep.subr.mxu0 0.0
    %5134 = vmatpush1.msra.mxu0 0.0
    %5135 = vmatprep.subr.mxu0 0.0
    %5136 = vmatpush1.msra.mxu0 0.0
    %5137 = vmatprep.subr.mxu0 0.0
    %5138 = vmatpush1.msra.mxu0 0.0
    %5139 = vmatprep.subr.mxu0 0.0
    %5140 = vmatpush1.msra.mxu0 0.0
    %5141 = vmatprep.subr.mxu0 0.0
    %5142 = vmatpush1.msra.mxu0 0.0
    %5143 = vmatprep.subr.mxu0 0.0
    %5144 = vmatpush1.msra.mxu0 0.0
    %5145 = vmatprep.subr.mxu0 0.0
    %5146 = vmatpush1.msra.mxu0 0.0
    %5147 = vmatprep.subr.mxu0 0.0
    %5148 = vmatpush1.msra.mxu0 0.0
    %5149 = vmatprep.subr.mxu0 0.0
    %5150 = vmatpush1.msra.mxu0 0.0
    %5151 = vmatprep.subr.mxu0 0.0
    %5152 = vmatpush1.msra.mxu0 0.0
    %5153 = vmatprep.subr.mxu0 0.0
    %5154 = vmatpush1.msra.mxu0 0.0
    %5155 = vmatprep.subr.mxu0 0.0
    %5156 = vmatpush1.msra.mxu0 0.0
    %5157 = vmatprep.subr.mxu0 0.0
    %5158 = vmatpush1.msra.mxu0 0.0
    %5159 = vmatprep.subr.mxu0 0.0
    %5160 = vmatpush1.msra.mxu0 0.0
    %5161 = vmatprep.subr.mxu0 0.0
    %5162 = vmatpush1.msra.mxu0 0.0
    %5163 = vmatprep.subr.mxu0 0.0
    %5164 = vmatpush1.msra.mxu0 0.0
    %5165 = vmatprep.subr.mxu0 0.0
    %5166 = vmatpush1.msra.mxu0 0.0
    %5167 = vmatprep.subr.mxu0 0.0
    %5168 = vmatpush1.msra.mxu0 0.0
    %5169 = vmatprep.subr.mxu0 0.0
    %5170 = vmatpush1.msra.mxu0 0.0
    %5171 = vmatprep.subr.mxu0 0.0
    %5172 = vmatpush1.msra.mxu0 0.0
    %5173 = vmatprep.subr.mxu0 0.0
    %5174 = vmatpush1.msra.mxu0 0.0
    %5175 = vmatprep.subr.mxu0 0.0
    %5176 = vmatpush1.msra.mxu0 0.0
    %5177 = vmatprep.subr.mxu0 0.0
    %5178 = vmatpush1.msra.mxu0 0.0
    %5179 = vmatprep.subr.mxu0 0.0
    %5180 = vmatpush1.msra.mxu0 0.0
    %5181 = vmatprep.mubr.f32.mxu0 0.0
    %5182 = vmatmul.mubr.f32.gmra.mrb[0].mxu0 %v5115
    %v5183 = vpop.f32.mrb[0].mxu0
    %v5184 = vadd.f32 %v4890, %v5183
    %v5185 = vpop.f32.mrb[0].mxu0
    %5186 = vdwg.mxu0
    %v5188 = vsel %vm4891, %v4823, 0
    %5190 = vmatprep.subr.mxu0 0.0
    %5191 = vmatpush1.msra.mxu0 %v4883
    %5192 = vmatprep.subr.mxu0 0.0
    %5193 = vmatpush1.msra.mxu0 %v4884
    %5194 = vmatprep.subr.mxu0 0.0
    %5195 = vmatpush1.msra.mxu0 %v4896
    %5196 = vmatprep.subr.mxu0 0.0
    %5197 = vmatpush1.msra.mxu0 0.0
    %5198 = vmatprep.subr.mxu0 0.0
    %5199 = vmatpush1.msra.mxu0 0.0
    %5200 = vmatprep.subr.mxu0 0.0
    %5201 = vmatpush1.msra.mxu0 0.0
    %5202 = vmatprep.subr.mxu0 0.0
    %5203 = vmatpush1.msra.mxu0 0.0
    %5204 = vmatprep.subr.mxu0 0.0
    %5205 = vmatpush1.msra.mxu0 0.0
    %5206 = vmatprep.subr.mxu0 0.0
    %5207 = vmatpush1.msra.mxu0 0.0
    %5208 = vmatprep.subr.mxu0 0.0
    %5209 = vmatpush1.msra.mxu0 0.0
    %5210 = vmatprep.subr.mxu0 0.0
    %5211 = vmatpush1.msra.mxu0 0.0
    %5212 = vmatprep.subr.mxu0 0.0
    %5213 = vmatpush1.msra.mxu0 0.0
    %5214 = vmatprep.subr.mxu0 0.0
    %5215 = vmatpush1.msra.mxu0 0.0
    %5216 = vmatprep.subr.mxu0 0.0
    %5217 = vmatpush1.msra.mxu0 0.0
    %5218 = vmatprep.subr.mxu0 0.0
    %5219 = vmatpush1.msra.mxu0 0.0
    %5220 = vmatprep.subr.mxu0 0.0
    %5221 = vmatpush1.msra.mxu0 0.0
    %5222 = vmatprep.subr.mxu0 0.0
    %5223 = vmatpush1.msra.mxu0 0.0
    %5224 = vmatprep.subr.mxu0 0.0
    %5225 = vmatpush1.msra.mxu0 0.0
    %5226 = vmatprep.subr.mxu0 0.0
    %5227 = vmatpush1.msra.mxu0 0.0
    %5228 = vmatprep.subr.mxu0 0.0
    %5229 = vmatpush1.msra.mxu0 0.0
    %5230 = vmatprep.subr.mxu0 0.0
    %5231 = vmatpush1.msra.mxu0 0.0
    %5232 = vmatprep.subr.mxu0 0.0
    %5233 = vmatpush1.msra.mxu0 0.0
    %5234 = vmatprep.subr.mxu0 0.0
    %5235 = vmatpush1.msra.mxu0 0.0
    %5236 = vmatprep.subr.mxu0 0.0
    %5237 = vmatpush1.msra.mxu0 0.0
    %5238 = vmatprep.subr.mxu0 0.0
    %5239 = vmatpush1.msra.mxu0 0.0
    %5240 = vmatprep.subr.mxu0 0.0
    %5241 = vmatpush1.msra.mxu0 0.0
    %5242 = vmatprep.subr.mxu0 0.0
    %5243 = vmatpush1.msra.mxu0 0.0
    %5244 = vmatprep.subr.mxu0 0.0
    %5245 = vmatpush1.msra.mxu0 0.0
    %5246 = vmatprep.subr.mxu0 0.0
    %5247 = vmatpush1.msra.mxu0 0.0
    %5248 = vmatprep.subr.mxu0 0.0
    %5249 = vmatpush1.msra.mxu0 0.0
    %5250 = vmatprep.subr.mxu0 0.0
    %5251 = vmatpush1.msra.mxu0 0.0
    %5252 = vmatprep.subr.mxu0 0.0
    %5253 = vmatpush1.msra.mxu0 0.0
    %5254 = vmatprep.mubr.f32.mxu0 0.0
    %5255 = vmatmul.mubr.f32.gmra.mrb[0].mxu0 %v5188
    %v5256 = vpop.f32.mrb[0].mxu0
    %v5257 = vadd.f32 %v4890, %v5256
    %v5258 = vpop.f32.mrb[0].mxu0
    %5259 = vdwg.mxu0
    %v5261 = vsel %vm4891, %v4824, 0
    %5263 = vmatprep.subr.mxu0 0.0
    %5264 = vmatpush1.msra.mxu0 %v4883
    %5265 = vmatprep.subr.mxu0 0.0
    %5266 = vmatpush1.msra.mxu0 %v4884
    %5267 = vmatprep.subr.mxu0 0.0
    %5268 = vmatpush1.msra.mxu0 %v4896
    %5269 = vmatprep.subr.mxu0 0.0
    %5270 = vmatpush1.msra.mxu0 0.0
    %5271 = vmatprep.subr.mxu0 0.0
    %5272 = vmatpush1.msra.mxu0 0.0
    %5273 = vmatprep.subr.mxu0 0.0
    %5274 = vmatpush1.msra.mxu0 0.0
    %5275 = vmatprep.subr.mxu0 0.0
    %5276 = vmatpush1.msra.mxu0 0.0
    %5277 = vmatprep.subr.mxu0 0.0
    %5278 = vmatpush1.msra.mxu0 0.0
    %5279 = vmatprep.subr.mxu0 0.0
    %5280 = vmatpush1.msra.mxu0 0.0
    %5281 = vmatprep.subr.mxu0 0.0
    %5282 = vmatpush1.msra.mxu0 0.0
    %5283 = vmatprep.subr.mxu0 0.0
    %5284 = vmatpush1.msra.mxu0 0.0
    %5285 = vmatprep.subr.mxu0 0.0
    %5286 = vmatpush1.msra.mxu0 0.0
    %5287 = vmatprep.subr.mxu0 0.0
    %5288 = vmatpush1.msra.mxu0 0.0
    %5289 = vmatprep.subr.mxu0 0.0
    %5290 = vmatpush1.msra.mxu0 0.0
    %5291 = vmatprep.subr.mxu0 0.0
    %5292 = vmatpush1.msra.mxu0 0.0
    %5293 = vmatprep.subr.mxu0 0.0
    %5294 = vmatpush1.msra.mxu0 0.0
    %5295 = vmatprep.subr.mxu0 0.0
    %5296 = vmatpush1.msra.mxu0 0.0
    %5297 = vmatprep.subr.mxu0 0.0
    %5298 = vmatpush1.msra.mxu0 0.0
    %5299 = vmatprep.subr.mxu0 0.0
    %5300 = vmatpush1.msra.mxu0 0.0
    %5301 = vmatprep.subr.mxu0 0.0
    %5302 = vmatpush1.msra.mxu0 0.0
    %5303 = vmatprep.subr.mxu0 0.0
    %5304 = vmatpush1.msra.mxu0 0.0
    %5305 = vmatprep.subr.mxu0 0.0
    %5306 = vmatpush1.msra.mxu0 0.0
    %5307 = vmatprep.subr.mxu0 0.0
    %5308 = vmatpush1.msra.mxu0 0.0
    %5309 = vmatprep.subr.mxu0 0.0
    %5310 = vmatpush1.msra.mxu0 0.0
    %5311 = vmatprep.subr.mxu0 0.0
    %5312 = vmatpush1.msra.mxu0 0.0
    %5313 = vmatprep.subr.mxu0 0.0
    %5314 = vmatpush1.msra.mxu0 0.0
    %5315 = vmatprep.subr.mxu0 0.0
    %5316 = vmatpush1.msra.mxu0 0.0
    %5317 = vmatprep.subr.mxu0 0.0
    %5318 = vmatpush1.msra.mxu0 0.0
    %5319 = vmatprep.subr.mxu0 0.0
    %5320 = vmatpush1.msra.mxu0 0.0
    %5321 = vmatprep.subr.mxu0 0.0
    %5322 = vmatpush1.msra.mxu0 0.0
    %5323 = vmatprep.subr.mxu0 0.0
    %5324 = vmatpush1.msra.mxu0 0.0
    %5325 = vmatprep.subr.mxu0 0.0
    %5326 = vmatpush1.msra.mxu0 0.0
    %5327 = vmatprep.mubr.f32.mxu0 0.0
    %5328 = vmatmul.mubr.f32.gmra.mrb[0].mxu0 %v5261
    %v5329 = vpop.f32.mrb[0].mxu0
    %v5330 = vadd.f32 %v4890, %v5329
    %v5331 = vpop.f32.mrb[0].mxu0
    %5332 = vdwg.mxu0
    %v5334 = vsel %vm4891, %v4825, 0
    %5336 = vmatprep.subr.mxu0 0.0
    %5337 = vmatpush1.msra.mxu0 %v4883
    %5338 = vmatprep.subr.mxu0 0.0
    %5339 = vmatpush1.msra.mxu0 %v4884
    %5340 = vmatprep.subr.mxu0 0.0
    %5341 = vmatpush1.msra.mxu0 %v4896
    %5342 = vmatprep.subr.mxu0 0.0
    %5343 = vmatpush1.msra.mxu0 0.0
    %5344 = vmatprep.subr.mxu0 0.0
    %5345 = vmatpush1.msra.mxu0 0.0
    %5346 = vmatprep.subr.mxu0 0.0
    %5347 = vmatpush1.msra.mxu0 0.0
    %5348 = vmatprep.subr.mxu0 0.0
    %5349 = vmatpush1.msra.mxu0 0.0
    %5350 = vmatprep.subr.mxu0 0.0
    %5351 = vmatpush1.msra.mxu0 0.0
    %5352 = vmatprep.subr.mxu0 0.0
    %5353 = vmatpush1.msra.mxu0 0.0
    %5354 = vmatprep.subr.mxu0 0.0
    %5355 = vmatpush1.msra.mxu0 0.0
    %5356 = vmatprep.subr.mxu0 0.0
    %5357 = vmatpush1.msra.mxu0 0.0
    %5358 = vmatprep.subr.mxu0 0.0
    %5359 = vmatpush1.msra.mxu0 0.0
    %5360 = vmatprep.subr.mxu0 0.0
    %5361 = vmatpush1.msra.mxu0 0.0
    %5362 = vmatprep.subr.mxu0 0.0
    %5363 = vmatpush1.msra.mxu0 0.0
    %5364 = vmatprep.subr.mxu0 0.0
    %5365 = vmatpush1.msra.mxu0 0.0
    %5366 = vmatprep.subr.mxu0 0.0
    %5367 = vmatpush1.msra.mxu0 0.0
    %5368 = vmatprep.subr.mxu0 0.0
    %5369 = vmatpush1.msra.mxu0 0.0
    %5370 = vmatprep.subr.mxu0 0.0
    %5371 = vmatpush1.msra.mxu0 0.0
    %5372 = vmatprep.subr.mxu0 0.0
    %5373 = vmatpush1.msra.mxu0 0.0
    %5374 = vmatprep.subr.mxu0 0.0
    %5375 = vmatpush1.msra.mxu0 0.0
    %5376 = vmatprep.subr.mxu0 0.0
    %5377 = vmatpush1.msra.mxu0 0.0
    %5378 = vmatprep.subr.mxu0 0.0
    %5379 = vmatpush1.msra.mxu0 0.0
    %5380 = vmatprep.subr.mxu0 0.0
    %5381 = vmatpush1.msra.mxu0 0.0
    %5382 = vmatprep.subr.mxu0 0.0
    %5383 = vmatpush1.msra.mxu0 0.0
    %5384 = vmatprep.subr.mxu0 0.0
    %5385 = vmatpush1.msra.mxu0 0.0
    %5386 = vmatprep.subr.mxu0 0.0
    %5387 = vmatpush1.msra.mxu0 0.0
    %5388 = vmatprep.subr.mxu0 0.0
    %5389 = vmatpush1.msra.mxu0 0.0
    %5390 = vmatprep.subr.mxu0 0.0
    %5391 = vmatpush1.msra.mxu0 0.0
    %5392 = vmatprep.subr.mxu0 0.0
    %5393 = vmatpush1.msra.mxu0 0.0
    %5394 = vmatprep.subr.mxu0 0.0
    %5395 = vmatpush1.msra.mxu0 0.0
    %5396 = vmatprep.subr.mxu0 0.0
    %5397 = vmatpush1.msra.mxu0 0.0
    %5398 = vmatprep.subr.mxu0 0.0
    %5399 = vmatpush1.msra.mxu0 0.0
    %5400 = vmatprep.mubr.f32.mxu0 0.0
    %5401 = vmatmul.mubr.f32.gmra.mrb[0].mxu0 %v5334
    %v5402 = vpop.f32.mrb[0].mxu0
    %v5403 = vadd.f32 %v4890, %v5402
    %v5404 = vpop.f32.mrb[0].mxu0
    %5405 = vdwg.mxu0
    %v5407 = vsel %vm4891, %v4826, 0
    %5409 = vmatprep.subr.mxu0 0.0
    %5410 = vmatpush1.msra.mxu0 %v4883
    %5411 = vmatprep.subr.mxu0 0.0
    %5412 = vmatpush1.msra.mxu0 %v4884
    %5413 = vmatprep.subr.mxu0 0.0
    %5414 = vmatpush1.msra.mxu0 %v4896
    %5415 = vmatprep.subr.mxu0 0.0
    %5416 = vmatpush1.msra.mxu0 0.0
    %5417 = vmatprep.subr.mxu0 0.0
    %5418 = vmatpush1.msra.mxu0 0.0
    %5419 = vmatprep.subr.mxu0 0.0
    %5420 = vmatpush1.msra.mxu0 0.0
    %5421 = vmatprep.subr.mxu0 0.0
    %5422 = vmatpush1.msra.mxu0 0.0
    %5423 = vmatprep.subr.mxu0 0.0
    %5424 = vmatpush1.msra.mxu0 0.0
    %5425 = vmatprep.subr.mxu0 0.0
    %5426 = vmatpush1.msra.mxu0 0.0
    %5427 = vmatprep.subr.mxu0 0.0
    %5428 = vmatpush1.msra.mxu0 0.0
    %5429 = vmatprep.subr.mxu0 0.0
    %5430 = vmatpush1.msra.mxu0 0.0
    %5431 = vmatprep.subr.mxu0 0.0
    %5432 = vmatpush1.msra.mxu0 0.0
    %5433 = vmatprep.subr.mxu0 0.0
    %5434 = vmatpush1.msra.mxu0 0.0
    %5435 = vmatprep.subr.mxu0 0.0
    %5436 = vmatpush1.msra.mxu0 0.0
    %5437 = vmatprep.subr.mxu0 0.0
    %5438 = vmatpush1.msra.mxu0 0.0
    %5439 = vmatprep.subr.mxu0 0.0
    %5440 = vmatpush1.msra.mxu0 0.0
    %5441 = vmatprep.subr.mxu0 0.0
    %5442 = vmatpush1.msra.mxu0 0.0
    %5443 = vmatprep.subr.mxu0 0.0
    %5444 = vmatpush1.msra.mxu0 0.0
    %5445 = vmatprep.subr.mxu0 0.0
    %5446 = vmatpush1.msra.mxu0 0.0
    %5447 = vmatprep.subr.mxu0 0.0
    %5448 = vmatpush1.msra.mxu0 0.0
    %5449 = vmatprep.subr.mxu0 0.0
    %5450 = vmatpush1.msra.mxu0 0.0
    %5451 = vmatprep.subr.mxu0 0.0
    %5452 = vmatpush1.msra.mxu0 0.0
    %5453 = vmatprep.subr.mxu0 0.0
    %5454 = vmatpush1.msra.mxu0 0.0
    %5455 = vmatprep.subr.mxu0 0.0
    %5456 = vmatpush1.msra.mxu0 0.0
    %5457 = vmatprep.subr.mxu0 0.0
    %5458 = vmatpush1.msra.mxu0 0.0
    %5459 = vmatprep.subr.mxu0 0.0
    %5460 = vmatpush1.msra.mxu0 0.0
    %5461 = vmatprep.subr.mxu0 0.0
    %5462 = vmatpush1.msra.mxu0 0.0
    %5463 = vmatprep.subr.mxu0 0.0
    %5464 = vmatpush1.msra.mxu0 0.0
    %5465 = vmatprep.subr.mxu0 0.0
    %5466 = vmatpush1.msra.mxu0 0.0
    %5467 = vmatprep.subr.mxu0 0.0
    %5468 = vmatpush1.msra.mxu0 0.0
    %5469 = vmatprep.subr.mxu0 0.0
    %5470 = vmatpush1.msra.mxu0 0.0
    %5471 = vmatprep.subr.mxu0 0.0
    %5472 = vmatpush1.msra.mxu0 0.0
    %5473 = vmatprep.mubr.f32.mxu0 0.0
    %5474 = vmatmul.mubr.f32.gmra.mrb[0].mxu0 %v5407
    %v5475 = vpop.f32.mrb[0].mxu0
    %v5476 = vadd.f32 %v4890, %v5475
    %v5477 = vpop.f32.mrb[0].mxu0
    %5478 = vdwg.mxu0
    %v5480 = vsel %vm4891, %v4827, 0
    %5482 = vmatprep.subr.mxu0 0.0
    %5483 = vmatpush1.msra.mxu0 %v4883
    %5484 = vmatprep.subr.mxu0 0.0
    %5485 = vmatpush1.msra.mxu0 %v4884
    %5486 = vmatprep.subr.mxu0 0.0
    %5487 = vmatpush1.msra.mxu0 %v4896
    %5488 = vmatprep.subr.mxu0 0.0
    %5489 = vmatpush1.msra.mxu0 0.0
    %5490 = vmatprep.subr.mxu0 0.0
    %5491 = vmatpush1.msra.mxu0 0.0
    %5492 = vmatprep.subr.mxu0 0.0
    %5493 = vmatpush1.msra.mxu0 0.0
    %5494 = vmatprep.subr.mxu0 0.0
    %5495 = vmatpush1.msra.mxu0 0.0
    %5496 = vmatprep.subr.mxu0 0.0
    %5497 = vmatpush1.msra.mxu0 0.0
    %5498 = vmatprep.subr.mxu0 0.0
    %5499 = vmatpush1.msra.mxu0 0.0
    %5500 = vmatprep.subr.mxu0 0.0
    %5501 = vmatpush1.msra.mxu0 0.0
    %5502 = vmatprep.subr.mxu0 0.0
    %5503 = vmatpush1.msra.mxu0 0.0
    %5504 = vmatprep.subr.mxu0 0.0
    %5505 = vmatpush1.msra.mxu0 0.0
    %5506 = vmatprep.subr.mxu0 0.0
    %5507 = vmatpush1.msra.mxu0 0.0
    %5508 = vmatprep.subr.mxu0 0.0
    %5509 = vmatpush1.msra.mxu0 0.0
    %5510 = vmatprep.subr.mxu0 0.0
    %5511 = vmatpush1.msra.mxu0 0.0
    %5512 = vmatprep.subr.mxu0 0.0
    %5513 = vmatpush1.msra.mxu0 0.0
    %5514 = vmatprep.subr.mxu0 0.0
    %5515 = vmatpush1.msra.mxu0 0.0
    %5516 = vmatprep.subr.mxu0 0.0
    %5517 = vmatpush1.msra.mxu0 0.0
    %5518 = vmatprep.subr.mxu0 0.0
    %5519 = vmatpush1.msra.mxu0 0.0
    %5520 = vmatprep.subr.mxu0 0.0
    %5521 = vmatpush1.msra.mxu0 0.0
    %5522 = vmatprep.subr.mxu0 0.0
    %5523 = vmatpush1.msra.mxu0 0.0
    %5524 = vmatprep.subr.mxu0 0.0
    %5525 = vmatpush1.msra.mxu0 0.0
    %5526 = vmatprep.subr.mxu0 0.0
    %5527 = vmatpush1.msra.mxu0 0.0
    %5528 = vmatprep.subr.mxu0 0.0
    %5529 = vmatpush1.msra.mxu0 0.0
    %5530 = vmatprep.subr.mxu0 0.0
    %5531 = vmatpush1.msra.mxu0 0.0
    %5532 = vmatprep.subr.mxu0 0.0
    %5533 = vmatpush1.msra.mxu0 0.0
    %5534 = vmatprep.subr.mxu0 0.0
    %5535 = vmatpush1.msra.mxu0 0.0
    %5536 = vmatprep.subr.mxu0 0.0
    %5537 = vmatpush1.msra.mxu0 0.0
    %5538 = vmatprep.subr.mxu0 0.0
    %5539 = vmatpush1.msra.mxu0 0.0
    %5540 = vmatprep.subr.mxu0 0.0
    %5541 = vmatpush1.msra.mxu0 0.0
    %5542 = vmatprep.subr.mxu0 0.0
    %5543 = vmatpush1.msra.mxu0 0.0
    %5544 = vmatprep.subr.mxu0 0.0
    %5545 = vmatpush1.msra.mxu0 0.0
    %5546 = vmatprep.mubr.f32.mxu0 0.0
    %5547 = vmatmul.mubr.f32.gmra.mrb[0].mxu0 %v5480
    %v5548 = vpop.f32.mrb[0].mxu0
    %v5549 = vadd.f32 %v4890, %v5548
    %v5550 = vpop.f32.mrb[0].mxu0
    %5551 = vdwg.mxu0
    %v5553 = vsel %vm4891, %v4828, 0
    %5555 = vmatprep.subr.mxu0 0.0
    %5556 = vmatpush1.msra.mxu0 %v4883
    %5557 = vmatprep.subr.mxu0 0.0
    %5558 = vmatpush1.msra.mxu0 %v4884
    %5559 = vmatprep.subr.mxu0 0.0
    %5560 = vmatpush1.msra.mxu0 %v4896
    %5561 = vmatprep.subr.mxu0 0.0
    %5562 = vmatpush1.msra.mxu0 0.0
    %5563 = vmatprep.subr.mxu0 0.0
    %5564 = vmatpush1.msra.mxu0 0.0
    %5565 = vmatprep.subr.mxu0 0.0
    %5566 = vmatpush1.msra.mxu0 0.0
    %5567 = vmatprep.subr.mxu0 0.0
    %5568 = vmatpush1.msra.mxu0 0.0
    %5569 = vmatprep.subr.mxu0 0.0
    %5570 = vmatpush1.msra.mxu0 0.0
    %5571 = vmatprep.subr.mxu0 0.0
    %5572 = vmatpush1.msra.mxu0 0.0
    %5573 = vmatprep.subr.mxu0 0.0
    %5574 = vmatpush1.msra.mxu0 0.0
    %5575 = vmatprep.subr.mxu0 0.0
    %5576 = vmatpush1.msra.mxu0 0.0
    %5577 = vmatprep.subr.mxu0 0.0
    %5578 = vmatpush1.msra.mxu0 0.0
    %5579 = vmatprep.subr.mxu0 0.0
    %5580 = vmatpush1.msra.mxu0 0.0
    %5581 = vmatprep.subr.mxu0 0.0
    %5582 = vmatpush1.msra.mxu0 0.0
    %5583 = vmatprep.subr.mxu0 0.0
    %5584 = vmatpush1.msra.mxu0 0.0
    %5585 = vmatprep.subr.mxu0 0.0
    %5586 = vmatpush1.msra.mxu0 0.0
    %5587 = vmatprep.subr.mxu0 0.0
    %5588 = vmatpush1.msra.mxu0 0.0
    %5589 = vmatprep.subr.mxu0 0.0
    %5590 = vmatpush1.msra.mxu0 0.0
    %5591 = vmatprep.subr.mxu0 0.0
    %5592 = vmatpush1.msra.mxu0 0.0
    %5593 = vmatprep.subr.mxu0 0.0
    %5594 = vmatpush1.msra.mxu0 0.0
    %5595 = vmatprep.subr.mxu0 0.0
    %5596 = vmatpush1.msra.mxu0 0.0
    %5597 = vmatprep.subr.mxu0 0.0
    %5598 = vmatpush1.msra.mxu0 0.0
    %5599 = vmatprep.subr.mxu0 0.0
    %5600 = vmatpush1.msra.mxu0 0.0
    %5601 = vmatprep.subr.mxu0 0.0
    %5602 = vmatpush1.msra.mxu0 0.0
    %5603 = vmatprep.subr.mxu0 0.0
    %5604 = vmatpush1.msra.mxu0 0.0
    %5605 = vmatprep.subr.mxu0 0.0
    %5606 = vmatpush1.msra.mxu0 0.0
    %5607 = vmatprep.subr.mxu0 0.0
    %5608 = vmatpush1.msra.mxu0 0.0
    %5609 = vmatprep.subr.mxu0 0.0
    %5610 = vmatpush1.msra.mxu0 0.0
    %5611 = vmatprep.subr.mxu0 0.0
    %5612 = vmatpush1.msra.mxu0 0.0
    %5613 = vmatprep.subr.mxu0 0.0
    %5614 = vmatpush1.msra.mxu0 0.0
    %5615 = vmatprep.subr.mxu0 0.0
    %5616 = vmatpush1.msra.mxu0 0.0
    %5617 = vmatprep.subr.mxu0 0.0
    %5618 = vmatpush1.msra.mxu0 0.0
    %5619 = vmatprep.mubr.f32.mxu0 0.0
    %5620 = vmatmul.mubr.f32.gmra.mrb[0].mxu0 %v5553
    %v5621 = vpop.f32.mrb[0].mxu0
    %v5622 = vadd.f32 %v4890, %v5621
    %v5623 = vpop.f32.mrb[0].mxu0
    %5624 = vdwg.mxu0
    %v5626 = vsel %vm4891, %v4829, 0
    %5628 = vmatprep.subr.mxu0 0.0
    %5629 = vmatpush1.msra.mxu0 %v4883
    %5630 = vmatprep.subr.mxu0 0.0
    %5631 = vmatpush1.msra.mxu0 %v4884
    %5632 = vmatprep.subr.mxu0 0.0
    %5633 = vmatpush1.msra.mxu0 %v4896
    %5634 = vmatprep.subr.mxu0 0.0
    %5635 = vmatpush1.msra.mxu0 0.0
    %5636 = vmatprep.subr.mxu0 0.0
    %5637 = vmatpush1.msra.mxu0 0.0
    %5638 = vmatprep.subr.mxu0 0.0
    %5639 = vmatpush1.msra.mxu0 0.0
    %5640 = vmatprep.subr.mxu0 0.0
    %5641 = vmatpush1.msra.mxu0 0.0
    %5642 = vmatprep.subr.mxu0 0.0
    %5643 = vmatpush1.msra.mxu0 0.0
    %5644 = vmatprep.subr.mxu0 0.0
    %5645 = vmatpush1.msra.mxu0 0.0
    %5646 = vmatprep.subr.mxu0 0.0
    %5647 = vmatpush1.msra.mxu0 0.0
    %5648 = vmatprep.subr.mxu0 0.0
    %5649 = vmatpush1.msra.mxu0 0.0
    %5650 = vmatprep.subr.mxu0 0.0
    %5651 = vmatpush1.msra.mxu0 0.0
    %5652 = vmatprep.subr.mxu0 0.0
    %5653 = vmatpush1.msra.mxu0 0.0
    %5654 = vmatprep.subr.mxu0 0.0
    %5655 = vmatpush1.msra.mxu0 0.0
    %5656 = vmatprep.subr.mxu0 0.0
    %5657 = vmatpush1.msra.mxu0 0.0
    %5658 = vmatprep.subr.mxu0 0.0
    %5659 = vmatpush1.msra.mxu0 0.0
    %5660 = vmatprep.subr.mxu0 0.0
    %5661 = vmatpush1.msra.mxu0 0.0
    %5662 = vmatprep.subr.mxu0 0.0
    %5663 = vmatpush1.msra.mxu0 0.0
    %5664 = vmatprep.subr.mxu0 0.0
    %5665 = vmatpush1.msra.mxu0 0.0
    %5666 = vmatprep.subr.mxu0 0.0
    %5667 = vmatpush1.msra.mxu0 0.0
    %5668 = vmatprep.subr.mxu0 0.0
    %5669 = vmatpush1.msra.mxu0 0.0
    %5670 = vmatprep.subr.mxu0 0.0
    %5671 = vmatpush1.msra.mxu0 0.0
    %5672 = vmatprep.subr.mxu0 0.0
    %5673 = vmatpush1.msra.mxu0 0.0
    %5674 = vmatprep.subr.mxu0 0.0
    %5675 = vmatpush1.msra.mxu0 0.0
    %5676 = vmatprep.subr.mxu0 0.0
    %5677 = vmatpush1.msra.mxu0 0.0
    %5678 = vmatprep.subr.mxu0 0.0
    %5679 = vmatpush1.msra.mxu0 0.0
    %5680 = vmatprep.subr.mxu0 0.0
    %5681 = vmatpush1.msra.mxu0 0.0
    %5682 = vmatprep.subr.mxu0 0.0
    %5683 = vmatpush1.msra.mxu0 0.0
    %5684 = vmatprep.subr.mxu0 0.0
    %5685 = vmatpush1.msra.mxu0 0.0
    %5686 = vmatprep.subr.mxu0 0.0
    %5687 = vmatpush1.msra.mxu0 0.0
    %5688 = vmatprep.subr.mxu0 0.0
    %5689 = vmatpush1.msra.mxu0 0.0
    %5690 = vmatprep.subr.mxu0 0.0
    %5691 = vmatpush1.msra.mxu0 0.0
    %5692 = vmatprep.mubr.f32.mxu0 0.0
    %5693 = vmatmul.mubr.f32.gmra.mrb[0].mxu0 %v5626
    %v5694 = vpop.f32.mrb[0].mxu0
    %v5695 = vadd.f32 %v4890, %v5694
    %v5696 = vpop.f32.mrb[0].mxu0
    %5697 = vdwg.mxu0
    %v5699 = vsel %vm4891, %v4830, 0
    %5701 = vmatprep.subr.mxu0 0.0
    %5702 = vmatpush1.msra.mxu0 %v4883
    %5703 = vmatprep.subr.mxu0 0.0
    %5704 = vmatpush1.msra.mxu0 %v4884
    %5705 = vmatprep.subr.mxu0 0.0
    %5706 = vmatpush1.msra.mxu0 %v4896
    %5707 = vmatprep.subr.mxu0 0.0
    %5708 = vmatpush1.msra.mxu0 0.0
    %5709 = vmatprep.subr.mxu0 0.0
    %5710 = vmatpush1.msra.mxu0 0.0
    %5711 = vmatprep.subr.mxu0 0.0
    %5712 = vmatpush1.msra.mxu0 0.0
    %5713 = vmatprep.subr.mxu0 0.0
    %5714 = vmatpush1.msra.mxu0 0.0
    %5715 = vmatprep.subr.mxu0 0.0
    %5716 = vmatpush1.msra.mxu0 0.0
    %5717 = vmatprep.subr.mxu0 0.0
    %5718 = vmatpush1.msra.mxu0 0.0
    %5719 = vmatprep.subr.mxu0 0.0
    %5720 = vmatpush1.msra.mxu0 0.0
    %5721 = vmatprep.subr.mxu0 0.0
    %5722 = vmatpush1.msra.mxu0 0.0
    %5723 = vmatprep.subr.mxu0 0.0
    %5724 = vmatpush1.msra.mxu0 0.0
    %5725 = vmatprep.subr.mxu0 0.0
    %5726 = vmatpush1.msra.mxu0 0.0
    %5727 = vmatprep.subr.mxu0 0.0
    %5728 = vmatpush1.msra.mxu0 0.0
    %5729 = vmatprep.subr.mxu0 0.0
    %5730 = vmatpush1.msra.mxu0 0.0
    %5731 = vmatprep.subr.mxu0 0.0
    %5732 = vmatpush1.msra.mxu0 0.0
    %5733 = vmatprep.subr.mxu0 0.0
    %5734 = vmatpush1.msra.mxu0 0.0
    %5735 = vmatprep.subr.mxu0 0.0
    %5736 = vmatpush1.msra.mxu0 0.0
    %5737 = vmatprep.subr.mxu0 0.0
    %5738 = vmatpush1.msra.mxu0 0.0
    %5739 = vmatprep.subr.mxu0 0.0
    %5740 = vmatpush1.msra.mxu0 0.0
    %5741 = vmatprep.subr.mxu0 0.0
    %5742 = vmatpush1.msra.mxu0 0.0
    %5743 = vmatprep.subr.mxu0 0.0
    %5744 = vmatpush1.msra.mxu0 0.0
    %5745 = vmatprep.subr.mxu0 0.0
    %5746 = vmatpush1.msra.mxu0 0.0
    %5747 = vmatprep.subr.mxu0 0.0
    %5748 = vmatpush1.msra.mxu0 0.0
    %5749 = vmatprep.subr.mxu0 0.0
    %5750 = vmatpush1.msra.mxu0 0.0
    %5751 = vmatprep.subr.mxu0 0.0
    %5752 = vmatpush1.msra.mxu0 0.0
    %5753 = vmatprep.subr.mxu0 0.0
    %5754 = vmatpush1.msra.mxu0 0.0
    %5755 = vmatprep.subr.mxu0 0.0
    %5756 = vmatpush1.msra.mxu0 0.0
    %5757 = vmatprep.subr.mxu0 0.0
    %5758 = vmatpush1.msra.mxu0 0.0
    %5759 = vmatprep.subr.mxu0 0.0
    %5760 = vmatpush1.msra.mxu0 0.0
    %5761 = vmatprep.subr.mxu0 0.0
    %5762 = vmatpush1.msra.mxu0 0.0
    %5763 = vmatprep.subr.mxu0 0.0
    %5764 = vmatpush1.msra.mxu0 0.0
    %5765 = vmatprep.mubr.f32.mxu0 0.0
    %5766 = vmatmul.mubr.f32.gmra.mrb[0].mxu0 %v5699
    %v5767 = vpop.f32.mrb[0].mxu0
    %v5768 = vadd.f32 %v4890, %v5767
    %v5769 = vpop.f32.mrb[0].mxu0
    %5770 = vdwg.mxu0
    %v5772 = vsel %vm4891, %v4831, 0
    %5774 = vmatprep.subr.mxu0 0.0
    %5775 = vmatpush1.msra.mxu0 %v4883
    %5776 = vmatprep.subr.mxu0 0.0
    %5777 = vmatpush1.msra.mxu0 %v4884
    %5778 = vmatprep.subr.mxu0 0.0
    %5779 = vmatpush1.msra.mxu0 %v4896
    %5780 = vmatprep.subr.mxu0 0.0
    %5781 = vmatpush1.msra.mxu0 0.0
    %5782 = vmatprep.subr.mxu0 0.0
    %5783 = vmatpush1.msra.mxu0 0.0
    %5784 = vmatprep.subr.mxu0 0.0
    %5785 = vmatpush1.msra.mxu0 0.0
    %5786 = vmatprep.subr.mxu0 0.0
    %5787 = vmatpush1.msra.mxu0 0.0
    %5788 = vmatprep.subr.mxu0 0.0
    %5789 = vmatpush1.msra.mxu0 0.0
    %5790 = vmatprep.subr.mxu0 0.0
    %5791 = vmatpush1.msra.mxu0 0.0
    %5792 = vmatprep.subr.mxu0 0.0
    %5793 = vmatpush1.msra.mxu0 0.0
    %5794 = vmatprep.subr.mxu0 0.0
    %5795 = vmatpush1.msra.mxu0 0.0
    %5796 = vmatprep.subr.mxu0 0.0
    %5797 = vmatpush1.msra.mxu0 0.0
    %5798 = vmatprep.subr.mxu0 0.0
    %5799 = vmatpush1.msra.mxu0 0.0
    %5800 = vmatprep.subr.mxu0 0.0
    %5801 = vmatpush1.msra.mxu0 0.0
    %5802 = vmatprep.subr.mxu0 0.0
    %5803 = vmatpush1.msra.mxu0 0.0
    %5804 = vmatprep.subr.mxu0 0.0
    %5805 = vmatpush1.msra.mxu0 0.0
    %5806 = vmatprep.subr.mxu0 0.0
    %5807 = vmatpush1.msra.mxu0 0.0
    %5808 = vmatprep.subr.mxu0 0.0
    %5809 = vmatpush1.msra.mxu0 0.0
    %5810 = vmatprep.subr.mxu0 0.0
    %5811 = vmatpush1.msra.mxu0 0.0
    %5812 = vmatprep.subr.mxu0 0.0
    %5813 = vmatpush1.msra.mxu0 0.0
    %5814 = vmatprep.subr.mxu0 0.0
    %5815 = vmatpush1.msra.mxu0 0.0
    %5816 = vmatprep.subr.mxu0 0.0
    %5817 = vmatpush1.msra.mxu0 0.0
    %5818 = vmatprep.subr.mxu0 0.0
    %5819 = vmatpush1.msra.mxu0 0.0
    %5820 = vmatprep.subr.mxu0 0.0
    %5821 = vmatpush1.msra.mxu0 0.0
    %5822 = vmatprep.subr.mxu0 0.0
    %5823 = vmatpush1.msra.mxu0 0.0
    %5824 = vmatprep.subr.mxu0 0.0
    %5825 = vmatpush1.msra.mxu0 0.0
    %5826 = vmatprep.subr.mxu0 0.0
    %5827 = vmatpush1.msra.mxu0 0.0
    %5828 = vmatprep.subr.mxu0 0.0
    %5829 = vmatpush1.msra.mxu0 0.0
    %5830 = vmatprep.subr.mxu0 0.0
    %5831 = vmatpush1.msra.mxu0 0.0
    %5832 = vmatprep.subr.mxu0 0.0
    %5833 = vmatpush1.msra.mxu0 0.0
    %5834 = vmatprep.subr.mxu0 0.0
    %5835 = vmatpush1.msra.mxu0 0.0
    %5836 = vmatprep.subr.mxu0 0.0
    %5837 = vmatpush1.msra.mxu0 0.0
    %5838 = vmatprep.mubr.f32.mxu0 0.0
    %5839 = vmatmul.mubr.f32.gmra.mrb[0].mxu0 %v5772
    %v5840 = vpop.f32.mrb[0].mxu0
    %v5841 = vadd.f32 %v4890, %v5840
    %v5842 = vpop.f32.mrb[0].mxu0
    %5843 = vdwg.mxu0
    %v5845 = vsel %vm4891, %v4832, 0
    %5847 = vmatprep.subr.mxu0 0.0
    %5848 = vmatpush1.msra.mxu0 %v4883
    %5849 = vmatprep.subr.mxu0 0.0
    %5850 = vmatpush1.msra.mxu0 %v4884
    %5851 = vmatprep.subr.mxu0 0.0
    %5852 = vmatpush1.msra.mxu0 %v4896
    %5853 = vmatprep.subr.mxu0 0.0
    %5854 = vmatpush1.msra.mxu0 0.0
    %5855 = vmatprep.subr.mxu0 0.0
    %5856 = vmatpush1.msra.mxu0 0.0
    %5857 = vmatprep.subr.mxu0 0.0
    %5858 = vmatpush1.msra.mxu0 0.0
    %5859 = vmatprep.subr.mxu0 0.0
    %5860 = vmatpush1.msra.mxu0 0.0
    %5861 = vmatprep.subr.mxu0 0.0
    %5862 = vmatpush1.msra.mxu0 0.0
    %5863 = vmatprep.subr.mxu0 0.0
    %5864 = vmatpush1.msra.mxu0 0.0
    %5865 = vmatprep.subr.mxu0 0.0
    %5866 = vmatpush1.msra.mxu0 0.0
    %5867 = vmatprep.subr.mxu0 0.0
    %5868 = vmatpush1.msra.mxu0 0.0
    %5869 = vmatprep.subr.mxu0 0.0
    %5870 = vmatpush1.msra.mxu0 0.0
    %5871 = vmatprep.subr.mxu0 0.0
    %5872 = vmatpush1.msra.mxu0 0.0
    %5873 = vmatprep.subr.mxu0 0.0
    %5874 = vmatpush1.msra.mxu0 0.0
    %5875 = vmatprep.subr.mxu0 0.0
    %5876 = vmatpush1.msra.mxu0 0.0
    %5877 = vmatprep.subr.mxu0 0.0
    %5878 = vmatpush1.msra.mxu0 0.0
    %5879 = vmatprep.subr.mxu0 0.0
    %5880 = vmatpush1.msra.mxu0 0.0
    %5881 = vmatprep.subr.mxu0 0.0
    %5882 = vmatpush1.msra.mxu0 0.0
    %5883 = vmatprep.subr.mxu0 0.0
    %5884 = vmatpush1.msra.mxu0 0.0
    %5885 = vmatprep.subr.mxu0 0.0
    %5886 = vmatpush1.msra.mxu0 0.0
    %5887 = vmatprep.subr.mxu0 0.0
    %5888 = vmatpush1.msra.mxu0 0.0
    %5889 = vmatprep.subr.mxu0 0.0
    %5890 = vmatpush1.msra.mxu0 0.0
    %5891 = vmatprep.subr.mxu0 0.0
    %5892 = vmatpush1.msra.mxu0 0.0
    %5893 = vmatprep.subr.mxu0 0.0
    %5894 = vmatpush1.msra.mxu0 0.0
    %5895 = vmatprep.subr.mxu0 0.0
    %5896 = vmatpush1.msra.mxu0 0.0
    %5897 = vmatprep.subr.mxu0 0.0
    %5898 = vmatpush1.msra.mxu0 0.0
    %5899 = vmatprep.subr.mxu0 0.0
    %5900 = vmatpush1.msra.mxu0 0.0
    %5901 = vmatprep.subr.mxu0 0.0
    %5902 = vmatpush1.msra.mxu0 0.0
    %5903 = vmatprep.subr.mxu0 0.0
    %5904 = vmatpush1.msra.mxu0 0.0
    %5905 = vmatprep.subr.mxu0 0.0
    %5906 = vmatpush1.msra.mxu0 0.0
    %5907 = vmatprep.subr.mxu0 0.0
    %5908 = vmatpush1.msra.mxu0 0.0
    %5909 = vmatprep.subr.mxu0 0.0
    %5910 = vmatpush1.msra.mxu0 0.0
    %5911 = vmatprep.mubr.f32.mxu0 0.0
    %5912 = vmatmul.mubr.f32.gmra.mrb[0].mxu0 %v5845
    %v5913 = vpop.f32.mrb[0].mxu0
    %v5914 = vadd.f32 %v4890, %v5913
    %v5915 = vpop.f32.mrb[0].mxu0
    %5916 = vdwg.mxu0
    %v5918 = vsel %vm4891, %v4833, 0
    %5920 = vmatprep.subr.mxu0 0.0
    %5921 = vmatpush1.msra.mxu0 %v4883
    %5922 = vmatprep.subr.mxu0 0.0
    %5923 = vmatpush1.msra.mxu0 %v4884
    %5924 = vmatprep.subr.mxu0 0.0
    %5925 = vmatpush1.msra.mxu0 %v4896
    %5926 = vmatprep.subr.mxu0 0.0
    %5927 = vmatpush1.msra.mxu0 0.0
    %5928 = vmatprep.subr.mxu0 0.0
    %5929 = vmatpush1.msra.mxu0 0.0
    %5930 = vmatprep.subr.mxu0 0.0
    %5931 = vmatpush1.msra.mxu0 0.0
    %5932 = vmatprep.subr.mxu0 0.0
    %5933 = vmatpush1.msra.mxu0 0.0
    %5934 = vmatprep.subr.mxu0 0.0
    %5935 = vmatpush1.msra.mxu0 0.0
    %5936 = vmatprep.subr.mxu0 0.0
    %5937 = vmatpush1.msra.mxu0 0.0
    %5938 = vmatprep.subr.mxu0 0.0
    %5939 = vmatpush1.msra.mxu0 0.0
    %5940 = vmatprep.subr.mxu0 0.0
    %5941 = vmatpush1.msra.mxu0 0.0
    %5942 = vmatprep.subr.mxu0 0.0
    %5943 = vmatpush1.msra.mxu0 0.0
    %5944 = vmatprep.subr.mxu0 0.0
    %5945 = vmatpush1.msra.mxu0 0.0
    %5946 = vmatprep.subr.mxu0 0.0
    %5947 = vmatpush1.msra.mxu0 0.0
    %5948 = vmatprep.subr.mxu0 0.0
    %5949 = vmatpush1.msra.mxu0 0.0
    %5950 = vmatprep.subr.mxu0 0.0
    %5951 = vmatpush1.msra.mxu0 0.0
    %5952 = vmatprep.subr.mxu0 0.0
    %5953 = vmatpush1.msra.mxu0 0.0
    %5954 = vmatprep.subr.mxu0 0.0
    %5955 = vmatpush1.msra.mxu0 0.0
    %5956 = vmatprep.subr.mxu0 0.0
    %5957 = vmatpush1.msra.mxu0 0.0
    %5958 = vmatprep.subr.mxu0 0.0
    %5959 = vmatpush1.msra.mxu0 0.0
    %5960 = vmatprep.subr.mxu0 0.0
    %5961 = vmatpush1.msra.mxu0 0.0
    %5962 = vmatprep.subr.mxu0 0.0
    %5963 = vmatpush1.msra.mxu0 0.0
    %5964 = vmatprep.subr.mxu0 0.0
    %5965 = vmatpush1.msra.mxu0 0.0
    %5966 = vmatprep.subr.mxu0 0.0
    %5967 = vmatpush1.msra.mxu0 0.0
    %5968 = vmatprep.subr.mxu0 0.0
    %5969 = vmatpush1.msra.mxu0 0.0
    %5970 = vmatprep.subr.mxu0 0.0
    %5971 = vmatpush1.msra.mxu0 0.0
    %5972 = vmatprep.subr.mxu0 0.0
    %5973 = vmatpush1.msra.mxu0 0.0
    %5974 = vmatprep.subr.mxu0 0.0
    %5975 = vmatpush1.msra.mxu0 0.0
    %5976 = vmatprep.subr.mxu0 0.0
    %5977 = vmatpush1.msra.mxu0 0.0
    %5978 = vmatprep.subr.mxu0 0.0
    %5979 = vmatpush1.msra.mxu0 0.0
    %5980 = vmatprep.subr.mxu0 0.0
    %5981 = vmatpush1.msra.mxu0 0.0
    %5982 = vmatprep.subr.mxu0 0.0
    %5983 = vmatpush1.msra.mxu0 0.0
    %5984 = vmatprep.mubr.f32.mxu0 0.0
    %5985 = vmatmul.mubr.f32.gmra.mrb[0].mxu0 %v5918
    %v5986 = vpop.f32.mrb[0].mxu0
    %v5987 = vadd.f32 %v4890, %v5986
    %v5988 = vpop.f32.mrb[0].mxu0
    %5989 = vdwg.mxu0
    %v5991 = vsel %vm4891, %v4834, 0
    %5993 = vmatprep.subr.mxu0 0.0
    %5994 = vmatpush1.msra.mxu0 %v4883
    %5995 = vmatprep.subr.mxu0 0.0
    %5996 = vmatpush1.msra.mxu0 %v4884
    %5997 = vmatprep.subr.mxu0 0.0
    %5998 = vmatpush1.msra.mxu0 %v4896
    %5999 = vmatprep.subr.mxu0 0.0
    %6000 = vmatpush1.msra.mxu0 0.0
    %6001 = vmatprep.subr.mxu0 0.0
    %6002 = vmatpush1.msra.mxu0 0.0
    %6003 = vmatprep.subr.mxu0 0.0
    %6004 = vmatpush1.msra.mxu0 0.0
    %6005 = vmatprep.subr.mxu0 0.0
    %6006 = vmatpush1.msra.mxu0 0.0
    %6007 = vmatprep.subr.mxu0 0.0
    %6008 = vmatpush1.msra.mxu0 0.0
    %6009 = vmatprep.subr.mxu0 0.0
    %6010 = vmatpush1.msra.mxu0 0.0
    %6011 = vmatprep.subr.mxu0 0.0
    %6012 = vmatpush1.msra.mxu0 0.0
    %6013 = vmatprep.subr.mxu0 0.0
    %6014 = vmatpush1.msra.mxu0 0.0
    %6015 = vmatprep.subr.mxu0 0.0
    %6016 = vmatpush1.msra.mxu0 0.0
    %6017 = vmatprep.subr.mxu0 0.0
    %6018 = vmatpush1.msra.mxu0 0.0
    %6019 = vmatprep.subr.mxu0 0.0
    %6020 = vmatpush1.msra.mxu0 0.0
    %6021 = vmatprep.subr.mxu0 0.0
    %6022 = vmatpush1.msra.mxu0 0.0
    %6023 = vmatprep.subr.mxu0 0.0
    %6024 = vmatpush1.msra.mxu0 0.0
    %6025 = vmatprep.subr.mxu0 0.0
    %6026 = vmatpush1.msra.mxu0 0.0
    %6027 = vmatprep.subr.mxu0 0.0
    %6028 = vmatpush1.msra.mxu0 0.0
    %6029 = vmatprep.subr.mxu0 0.0
    %6030 = vmatpush1.msra.mxu0 0.0
    %6031 = vmatprep.subr.mxu0 0.0
    %6032 = vmatpush1.msra.mxu0 0.0
    %6033 = vmatprep.subr.mxu0 0.0
    %6034 = vmatpush1.msra.mxu0 0.0
    %6035 = vmatprep.subr.mxu0 0.0
    %6036 = vmatpush1.msra.mxu0 0.0
    %6037 = vmatprep.subr.mxu0 0.0
    %6038 = vmatpush1.msra.mxu0 0.0
    %6039 = vmatprep.subr.mxu0 0.0
    %6040 = vmatpush1.msra.mxu0 0.0
    %6041 = vmatprep.subr.mxu0 0.0
    %6042 = vmatpush1.msra.mxu0 0.0
    %6043 = vmatprep.subr.mxu0 0.0
    %6044 = vmatpush1.msra.mxu0 0.0
    %6045 = vmatprep.subr.mxu0 0.0
    %6046 = vmatpush1.msra.mxu0 0.0
    %6047 = vmatprep.subr.mxu0 0.0
    %6048 = vmatpush1.msra.mxu0 0.0
    %6049 = vmatprep.subr.mxu0 0.0
    %6050 = vmatpush1.msra.mxu0 0.0
    %6051 = vmatprep.subr.mxu0 0.0
    %6052 = vmatpush1.msra.mxu0 0.0
    %6053 = vmatprep.subr.mxu0 0.0
    %6054 = vmatpush1.msra.mxu0 0.0
    %6055 = vmatprep.subr.mxu0 0.0
    %6056 = vmatpush1.msra.mxu0 0.0
    %6057 = vmatprep.mubr.f32.mxu0 0.0
    %6058 = vmatmul.mubr.f32.gmra.mrb[0].mxu0 %v5991
    %v6059 = vpop.f32.mrb[0].mxu0
    %v6060 = vadd.f32 %v4890, %v6059
    %v6061 = vpop.f32.mrb[0].mxu0
    %6062 = vdwg.mxu0
    %v6064 = vsel %vm4891, %v4835, 0
    %6066 = vmatprep.subr.mxu0 0.0
    %6067 = vmatpush1.msra.mxu0 %v4883
    %6068 = vmatprep.subr.mxu0 0.0
    %6069 = vmatpush1.msra.mxu0 %v4884
    %6070 = vmatprep.subr.mxu0 0.0
    %6071 = vmatpush1.msra.mxu0 %v4896
    %6072 = vmatprep.subr.mxu0 0.0
    %6073 = vmatpush1.msra.mxu0 0.0
    %6074 = vmatprep.subr.mxu0 0.0
    %6075 = vmatpush1.msra.mxu0 0.0
    %6076 = vmatprep.subr.mxu0 0.0
    %6077 = vmatpush1.msra.mxu0 0.0
    %6078 = vmatprep.subr.mxu0 0.0
    %6079 = vmatpush1.msra.mxu0 0.0
    %6080 = vmatprep.subr.mxu0 0.0
    %6081 = vmatpush1.msra.mxu0 0.0
    %6082 = vmatprep.subr.mxu0 0.0
    %6083 = vmatpush1.msra.mxu0 0.0
    %6084 = vmatprep.subr.mxu0 0.0
    %6085 = vmatpush1.msra.mxu0 0.0
    %6086 = vmatprep.subr.mxu0 0.0
    %6087 = vmatpush1.msra.mxu0 0.0
    %6088 = vmatprep.subr.mxu0 0.0
    %6089 = vmatpush1.msra.mxu0 0.0
    %6090 = vmatprep.subr.mxu0 0.0
    %6091 = vmatpush1.msra.mxu0 0.0
    %6092 = vmatprep.subr.mxu0 0.0
    %6093 = vmatpush1.msra.mxu0 0.0
    %6094 = vmatprep.subr.mxu0 0.0
    %6095 = vmatpush1.msra.mxu0 0.0
    %6096 = vmatprep.subr.mxu0 0.0
    %6097 = vmatpush1.msra.mxu0 0.0
    %6098 = vmatprep.subr.mxu0 0.0
    %6099 = vmatpush1.msra.mxu0 0.0
    %6100 = vmatprep.subr.mxu0 0.0
    %6101 = vmatpush1.msra.mxu0 0.0
    %6102 = vmatprep.subr.mxu0 0.0
    %6103 = vmatpush1.msra.mxu0 0.0
    %6104 = vmatprep.subr.mxu0 0.0
    %6105 = vmatpush1.msra.mxu0 0.0
    %6106 = vmatprep.subr.mxu0 0.0
    %6107 = vmatpush1.msra.mxu0 0.0
    %6108 = vmatprep.subr.mxu0 0.0
    %6109 = vmatpush1.msra.mxu0 0.0
    %6110 = vmatprep.subr.mxu0 0.0
    %6111 = vmatpush1.msra.mxu0 0.0
    %6112 = vmatprep.subr.mxu0 0.0
    %6113 = vmatpush1.msra.mxu0 0.0
    %6114 = vmatprep.subr.mxu0 0.0
    %6115 = vmatpush1.msra.mxu0 0.0
    %6116 = vmatprep.subr.mxu0 0.0
    %6117 = vmatpush1.msra.mxu0 0.0
    %6118 = vmatprep.subr.mxu0 0.0
    %6119 = vmatpush1.msra.mxu0 0.0
    %6120 = vmatprep.subr.mxu0 0.0
    %6121 = vmatpush1.msra.mxu0 0.0
    %6122 = vmatprep.subr.mxu0 0.0
    %6123 = vmatpush1.msra.mxu0 0.0
    %6124 = vmatprep.subr.mxu0 0.0
    %6125 = vmatpush1.msra.mxu0 0.0
    %6126 = vmatprep.subr.mxu0 0.0
    %6127 = vmatpush1.msra.mxu0 0.0
    %6128 = vmatprep.subr.mxu0 0.0
    %6129 = vmatpush1.msra.mxu0 0.0
    %6130 = vmatprep.mubr.f32.mxu0 0.0
    %6131 = vmatmul.mubr.f32.gmra.mrb[0].mxu0 %v6064
    %v6132 = vpop.f32.mrb[0].mxu0
    %v6133 = vadd.f32 %v4890, %v6132
    %v6134 = vpop.f32.mrb[0].mxu0
    %6135 = vdwg.mxu0
    %v6137 = vsel %vm4891, %v4836, 0
    %6139 = vmatprep.subr.mxu0 0.0
    %6140 = vmatpush1.msra.mxu0 %v4883
    %6141 = vmatprep.subr.mxu0 0.0
    %6142 = vmatpush1.msra.mxu0 %v4884
    %6143 = vmatprep.subr.mxu0 0.0
    %6144 = vmatpush1.msra.mxu0 %v4896
    %6145 = vmatprep.subr.mxu0 0.0
    %6146 = vmatpush1.msra.mxu0 0.0
    %6147 = vmatprep.subr.mxu0 0.0
    %6148 = vmatpush1.msra.mxu0 0.0
    %6149 = vmatprep.subr.mxu0 0.0
    %6150 = vmatpush1.msra.mxu0 0.0
    %6151 = vmatprep.subr.mxu0 0.0
    %6152 = vmatpush1.msra.mxu0 0.0
    %6153 = vmatprep.subr.mxu0 0.0
    %6154 = vmatpush1.msra.mxu0 0.0
    %6155 = vmatprep.subr.mxu0 0.0
    %6156 = vmatpush1.msra.mxu0 0.0
    %6157 = vmatprep.subr.mxu0 0.0
    %6158 = vmatpush1.msra.mxu0 0.0
    %6159 = vmatprep.subr.mxu0 0.0
    %6160 = vmatpush1.msra.mxu0 0.0
    %6161 = vmatprep.subr.mxu0 0.0
    %6162 = vmatpush1.msra.mxu0 0.0
    %6163 = vmatprep.subr.mxu0 0.0
    %6164 = vmatpush1.msra.mxu0 0.0
    %6165 = vmatprep.subr.mxu0 0.0
    %6166 = vmatpush1.msra.mxu0 0.0
    %6167 = vmatprep.subr.mxu0 0.0
    %6168 = vmatpush1.msra.mxu0 0.0
    %6169 = vmatprep.subr.mxu0 0.0
    %6170 = vmatpush1.msra.mxu0 0.0
    %6171 = vmatprep.subr.mxu0 0.0
    %6172 = vmatpush1.msra.mxu0 0.0
    %6173 = vmatprep.subr.mxu0 0.0
    %6174 = vmatpush1.msra.mxu0 0.0
    %6175 = vmatprep.subr.mxu0 0.0
    %6176 = vmatpush1.msra.mxu0 0.0
    %6177 = vmatprep.subr.mxu0 0.0
    %6178 = vmatpush1.msra.mxu0 0.0
    %6179 = vmatprep.subr.mxu0 0.0
    %6180 = vmatpush1.msra.mxu0 0.0
    %6181 = vmatprep.subr.mxu0 0.0
    %6182 = vmatpush1.msra.mxu0 0.0
    %6183 = vmatprep.subr.mxu0 0.0
    %6184 = vmatpush1.msra.mxu0 0.0
    %6185 = vmatprep.subr.mxu0 0.0
    %6186 = vmatpush1.msra.mxu0 0.0
    %6187 = vmatprep.subr.mxu0 0.0
    %6188 = vmatpush1.msra.mxu0 0.0
    %6189 = vmatprep.subr.mxu0 0.0
    %6190 = vmatpush1.msra.mxu0 0.0
    %6191 = vmatprep.subr.mxu0 0.0
    %6192 = vmatpush1.msra.mxu0 0.0
    %6193 = vmatprep.subr.mxu0 0.0
    %6194 = vmatpush1.msra.mxu0 0.0
    %6195 = vmatprep.subr.mxu0 0.0
    %6196 = vmatpush1.msra.mxu0 0.0
    %6197 = vmatprep.subr.mxu0 0.0
    %6198 = vmatpush1.msra.mxu0 0.0
    %6199 = vmatprep.subr.mxu0 0.0
    %6200 = vmatpush1.msra.mxu0 0.0
    %6201 = vmatprep.subr.mxu0 0.0
    %6202 = vmatpush1.msra.mxu0 0.0
    %6203 = vmatprep.mubr.f32.mxu0 0.0
    %6204 = vmatmul.mubr.f32.gmra.mrb[0].mxu0 %v6137
    %v6205 = vpop.f32.mrb[0].mxu0
    %v6206 = vadd.f32 %v4890, %v6205
    %v6207 = vpop.f32.mrb[0].mxu0
    %6208 = vdwg.mxu0
    %v6210 = vsel %vm4891, %v4837, 0
    %6212 = vmatprep.subr.mxu0 0.0
    %6213 = vmatpush1.msra.mxu0 %v4883
    %6214 = vmatprep.subr.mxu0 0.0
    %6215 = vmatpush1.msra.mxu0 %v4884
    %6216 = vmatprep.subr.mxu0 0.0
    %6217 = vmatpush1.msra.mxu0 %v4896
    %6218 = vmatprep.subr.mxu0 0.0
    %6219 = vmatpush1.msra.mxu0 0.0
    %6220 = vmatprep.subr.mxu0 0.0
    %6221 = vmatpush1.msra.mxu0 0.0
    %6222 = vmatprep.subr.mxu0 0.0
    %6223 = vmatpush1.msra.mxu0 0.0
    %6224 = vmatprep.subr.mxu0 0.0
    %6225 = vmatpush1.msra.mxu0 0.0
    %6226 = vmatprep.subr.mxu0 0.0
    %6227 = vmatpush1.msra.mxu0 0.0
    %6228 = vmatprep.subr.mxu0 0.0
    %6229 = vmatpush1.msra.mxu0 0.0
    %6230 = vmatprep.subr.mxu0 0.0
    %6231 = vmatpush1.msra.mxu0 0.0
    %6232 = vmatprep.subr.mxu0 0.0
    %6233 = vmatpush1.msra.mxu0 0.0
    %6234 = vmatprep.subr.mxu0 0.0
    %6235 = vmatpush1.msra.mxu0 0.0
    %6236 = vmatprep.subr.mxu0 0.0
    %6237 = vmatpush1.msra.mxu0 0.0
    %6238 = vmatprep.subr.mxu0 0.0
    %6239 = vmatpush1.msra.mxu0 0.0
    %6240 = vmatprep.subr.mxu0 0.0
    %6241 = vmatpush1.msra.mxu0 0.0
    %6242 = vmatprep.subr.mxu0 0.0
    %6243 = vmatpush1.msra.mxu0 0.0
    %6244 = vmatprep.subr.mxu0 0.0
    %6245 = vmatpush1.msra.mxu0 0.0
    %6246 = vmatprep.subr.mxu0 0.0
    %6247 = vmatpush1.msra.mxu0 0.0
    %6248 = vmatprep.subr.mxu0 0.0
    %6249 = vmatpush1.msra.mxu0 0.0
    %6250 = vmatprep.subr.mxu0 0.0
    %6251 = vmatpush1.msra.mxu0 0.0
    %6252 = vmatprep.subr.mxu0 0.0
    %6253 = vmatpush1.msra.mxu0 0.0
    %6254 = vmatprep.subr.mxu0 0.0
    %6255 = vmatpush1.msra.mxu0 0.0
    %6256 = vmatprep.subr.mxu0 0.0
    %6257 = vmatpush1.msra.mxu0 0.0
    %6258 = vmatprep.subr.mxu0 0.0
    %6259 = vmatpush1.msra.mxu0 0.0
    %6260 = vmatprep.subr.mxu0 0.0
    %6261 = vmatpush1.msra.mxu0 0.0
    %6262 = vmatprep.subr.mxu0 0.0
    %6263 = vmatpush1.msra.mxu0 0.0
    %6264 = vmatprep.subr.mxu0 0.0
    %6265 = vmatpush1.msra.mxu0 0.0
    %6266 = vmatprep.subr.mxu0 0.0
    %6267 = vmatpush1.msra.mxu0 0.0
    %6268 = vmatprep.subr.mxu0 0.0
    %6269 = vmatpush1.msra.mxu0 0.0
    %6270 = vmatprep.subr.mxu0 0.0
    %6271 = vmatpush1.msra.mxu0 0.0
    %6272 = vmatprep.subr.mxu0 0.0
    %6273 = vmatpush1.msra.mxu0 0.0
    %6274 = vmatprep.subr.mxu0 0.0
    %6275 = vmatpush1.msra.mxu0 0.0
    %6276 = vmatprep.mubr.f32.mxu0 0.0
    %6277 = vmatmul.mubr.f32.gmra.mrb[0].mxu0 %v6210
    %v6278 = vpop.f32.mrb[0].mxu0
    %v6279 = vadd.f32 %v4890, %v6278
    %v6280 = vpop.f32.mrb[0].mxu0
    %6281 = vdwg.mxu0
    %v6283 = vsel %vm4891, %v4838, 0
    %6285 = vmatprep.subr.mxu0 0.0
    %6286 = vmatpush1.msra.mxu0 %v4883
    %6287 = vmatprep.subr.mxu0 0.0
    %6288 = vmatpush1.msra.mxu0 %v4884
    %6289 = vmatprep.subr.mxu0 0.0
    %6290 = vmatpush1.msra.mxu0 %v4896
    %6291 = vmatprep.subr.mxu0 0.0
    %6292 = vmatpush1.msra.mxu0 0.0
    %6293 = vmatprep.subr.mxu0 0.0
    %6294 = vmatpush1.msra.mxu0 0.0
    %6295 = vmatprep.subr.mxu0 0.0
    %6296 = vmatpush1.msra.mxu0 0.0
    %6297 = vmatprep.subr.mxu0 0.0
    %6298 = vmatpush1.msra.mxu0 0.0
    %6299 = vmatprep.subr.mxu0 0.0
    %6300 = vmatpush1.msra.mxu0 0.0
    %6301 = vmatprep.subr.mxu0 0.0
    %6302 = vmatpush1.msra.mxu0 0.0
    %6303 = vmatprep.subr.mxu0 0.0
    %6304 = vmatpush1.msra.mxu0 0.0
    %6305 = vmatprep.subr.mxu0 0.0
    %6306 = vmatpush1.msra.mxu0 0.0
    %6307 = vmatprep.subr.mxu0 0.0
    %6308 = vmatpush1.msra.mxu0 0.0
    %6309 = vmatprep.subr.mxu0 0.0
    %6310 = vmatpush1.msra.mxu0 0.0
    %6311 = vmatprep.subr.mxu0 0.0
    %6312 = vmatpush1.msra.mxu0 0.0
    %6313 = vmatprep.subr.mxu0 0.0
    %6314 = vmatpush1.msra.mxu0 0.0
    %6315 = vmatprep.subr.mxu0 0.0
    %6316 = vmatpush1.msra.mxu0 0.0
    %6317 = vmatprep.subr.mxu0 0.0
    %6318 = vmatpush1.msra.mxu0 0.0
    %6319 = vmatprep.subr.mxu0 0.0
    %6320 = vmatpush1.msra.mxu0 0.0
    %6321 = vmatprep.subr.mxu0 0.0
    %6322 = vmatpush1.msra.mxu0 0.0
    %6323 = vmatprep.subr.mxu0 0.0
    %6324 = vmatpush1.msra.mxu0 0.0
    %6325 = vmatprep.subr.mxu0 0.0
    %6326 = vmatpush1.msra.mxu0 0.0
    %6327 = vmatprep.subr.mxu0 0.0
    %6328 = vmatpush1.msra.mxu0 0.0
    %6329 = vmatprep.subr.mxu0 0.0
    %6330 = vmatpush1.msra.mxu0 0.0
    %6331 = vmatprep.subr.mxu0 0.0
    %6332 = vmatpush1.msra.mxu0 0.0
    %6333 = vmatprep.subr.mxu0 0.0
    %6334 = vmatpush1.msra.mxu0 0.0
    %6335 = vmatprep.subr.mxu0 0.0
    %6336 = vmatpush1.msra.mxu0 0.0
    %6337 = vmatprep.subr.mxu0 0.0
    %6338 = vmatpush1.msra.mxu0 0.0
    %6339 = vmatprep.subr.mxu0 0.0
    %6340 = vmatpush1.msra.mxu0 0.0
    %6341 = vmatprep.subr.mxu0 0.0
    %6342 = vmatpush1.msra.mxu0 0.0
    %6343 = vmatprep.subr.mxu0 0.0
    %6344 = vmatpush1.msra.mxu0 0.0
    %6345 = vmatprep.subr.mxu0 0.0
    %6346 = vmatpush1.msra.mxu0 0.0
    %6347 = vmatprep.subr.mxu0 0.0
    %6348 = vmatpush1.msra.mxu0 0.0
    %6349 = vmatprep.mubr.f32.mxu0 0.0
    %6350 = vmatmul.mubr.f32.gmra.mrb[0].mxu0 %v6283
    %v6351 = vpop.f32.mrb[0].mxu0
    %v6352 = vadd.f32 %v4890, %v6351
    %v6353 = vpop.f32.mrb[0].mxu0
    %6354 = vdwg.mxu0
    %v6356 = vsel %vm4891, %v4839, 0
    %6358 = vmatprep.subr.mxu0 0.0
    %6359 = vmatpush1.msra.mxu0 %v4883
    %6360 = vmatprep.subr.mxu0 0.0
    %6361 = vmatpush1.msra.mxu0 %v4884
    %6362 = vmatprep.subr.mxu0 0.0
    %6363 = vmatpush1.msra.mxu0 %v4896
    %6364 = vmatprep.subr.mxu0 0.0
    %6365 = vmatpush1.msra.mxu0 0.0
    %6366 = vmatprep.subr.mxu0 0.0
    %6367 = vmatpush1.msra.mxu0 0.0
    %6368 = vmatprep.subr.mxu0 0.0
    %6369 = vmatpush1.msra.mxu0 0.0
    %6370 = vmatprep.subr.mxu0 0.0
    %6371 = vmatpush1.msra.mxu0 0.0
    %6372 = vmatprep.subr.mxu0 0.0
    %6373 = vmatpush1.msra.mxu0 0.0
    %6374 = vmatprep.subr.mxu0 0.0
    %6375 = vmatpush1.msra.mxu0 0.0
    %6376 = vmatprep.subr.mxu0 0.0
    %6377 = vmatpush1.msra.mxu0 0.0
    %6378 = vmatprep.subr.mxu0 0.0
    %6379 = vmatpush1.msra.mxu0 0.0
    %6380 = vmatprep.subr.mxu0 0.0
    %6381 = vmatpush1.msra.mxu0 0.0
    %6382 = vmatprep.subr.mxu0 0.0
    %6383 = vmatpush1.msra.mxu0 0.0
    %6384 = vmatprep.subr.mxu0 0.0
    %6385 = vmatpush1.msra.mxu0 0.0
    %6386 = vmatprep.subr.mxu0 0.0
    %6387 = vmatpush1.msra.mxu0 0.0
    %6388 = vmatprep.subr.mxu0 0.0
    %6389 = vmatpush1.msra.mxu0 0.0
    %6390 = vmatprep.subr.mxu0 0.0
    %6391 = vmatpush1.msra.mxu0 0.0
    %6392 = vmatprep.subr.mxu0 0.0
    %6393 = vmatpush1.msra.mxu0 0.0
    %6394 = vmatprep.subr.mxu0 0.0
    %6395 = vmatpush1.msra.mxu0 0.0
    %6396 = vmatprep.subr.mxu0 0.0
    %6397 = vmatpush1.msra.mxu0 0.0
    %6398 = vmatprep.subr.mxu0 0.0
    %6399 = vmatpush1.msra.mxu0 0.0
    %6400 = vmatprep.subr.mxu0 0.0
    %6401 = vmatpush1.msra.mxu0 0.0
    %6402 = vmatprep.subr.mxu0 0.0
    %6403 = vmatpush1.msra.mxu0 0.0
    %6404 = vmatprep.subr.mxu0 0.0
    %6405 = vmatpush1.msra.mxu0 0.0
    %6406 = vmatprep.subr.mxu0 0.0
    %6407 = vmatpush1.msra.mxu0 0.0
    %6408 = vmatprep.subr.mxu0 0.0
    %6409 = vmatpush1.msra.mxu0 0.0
    %6410 = vmatprep.subr.mxu0 0.0
    %6411 = vmatpush1.msra.mxu0 0.0
    %6412 = vmatprep.subr.mxu0 0.0
    %6413 = vmatpush1.msra.mxu0 0.0
    %6414 = vmatprep.subr.mxu0 0.0
    %6415 = vmatpush1.msra.mxu0 0.0
    %6416 = vmatprep.subr.mxu0 0.0
    %6417 = vmatpush1.msra.mxu0 0.0
    %6418 = vmatprep.subr.mxu0 0.0
    %6419 = vmatpush1.msra.mxu0 0.0
    %6420 = vmatprep.subr.mxu0 0.0
    %6421 = vmatpush1.msra.mxu0 0.0
    %6422 = vmatprep.mubr.f32.mxu0 0.0
    %6423 = vmatmul.mubr.f32.gmra.mrb[0].mxu0 %v6356
    %v6424 = vpop.f32.mrb[0].mxu0
    %v6425 = vadd.f32 %v4890, %v6424
    %v6426 = vpop.f32.mrb[0].mxu0
    %6427 = vdwg.mxu0
    %v6429 = vsel %vm4891, %v4840, 0
    %6431 = vmatprep.subr.mxu0 0.0
    %6432 = vmatpush1.msra.mxu0 %v4883
    %6433 = vmatprep.subr.mxu0 0.0
    %6434 = vmatpush1.msra.mxu0 %v4884
    %6435 = vmatprep.subr.mxu0 0.0
    %6436 = vmatpush1.msra.mxu0 %v4896
    %6437 = vmatprep.subr.mxu0 0.0
    %6438 = vmatpush1.msra.mxu0 0.0
    %6439 = vmatprep.subr.mxu0 0.0
    %6440 = vmatpush1.msra.mxu0 0.0
    %6441 = vmatprep.subr.mxu0 0.0
    %6442 = vmatpush1.msra.mxu0 0.0
    %6443 = vmatprep.subr.mxu0 0.0
    %6444 = vmatpush1.msra.mxu0 0.0
    %6445 = vmatprep.subr.mxu0 0.0
    %6446 = vmatpush1.msra.mxu0 0.0
    %6447 = vmatprep.subr.mxu0 0.0
    %6448 = vmatpush1.msra.mxu0 0.0
    %6449 = vmatprep.subr.mxu0 0.0
    %6450 = vmatpush1.msra.mxu0 0.0
    %6451 = vmatprep.subr.mxu0 0.0
    %6452 = vmatpush1.msra.mxu0 0.0
    %6453 = vmatprep.subr.mxu0 0.0
    %6454 = vmatpush1.msra.mxu0 0.0
    %6455 = vmatprep.subr.mxu0 0.0
    %6456 = vmatpush1.msra.mxu0 0.0
    %6457 = vmatprep.subr.mxu0 0.0
    %6458 = vmatpush1.msra.mxu0 0.0
    %6459 = vmatprep.subr.mxu0 0.0
    %6460 = vmatpush1.msra.mxu0 0.0
    %6461 = vmatprep.subr.mxu0 0.0
    %6462 = vmatpush1.msra.mxu0 0.0
    %6463 = vmatprep.subr.mxu0 0.0
    %6464 = vmatpush1.msra.mxu0 0.0
    %6465 = vmatprep.subr.mxu0 0.0
    %6466 = vmatpush1.msra.mxu0 0.0
    %6467 = vmatprep.subr.mxu0 0.0
    %6468 = vmatpush1.msra.mxu0 0.0
    %6469 = vmatprep.subr.mxu0 0.0
    %6470 = vmatpush1.msra.mxu0 0.0
    %6471 = vmatprep.subr.mxu0 0.0
    %6472 = vmatpush1.msra.mxu0 0.0
    %6473 = vmatprep.subr.mxu0 0.0
    %6474 = vmatpush1.msra.mxu0 0.0
    %6475 = vmatprep.subr.mxu0 0.0
    %6476 = vmatpush1.msra.mxu0 0.0
    %6477 = vmatprep.subr.mxu0 0.0
    %6478 = vmatpush1.msra.mxu0 0.0
    %6479 = vmatprep.subr.mxu0 0.0
    %6480 = vmatpush1.msra.mxu0 0.0
    %6481 = vmatprep.subr.mxu0 0.0
    %6482 = vmatpush1.msra.mxu0 0.0
    %6483 = vmatprep.subr.mxu0 0.0
    %6484 = vmatpush1.msra.mxu0 0.0
    %6485 = vmatprep.subr.mxu0 0.0
    %6486 = vmatpush1.msra.mxu0 0.0
    %6487 = vmatprep.subr.mxu0 0.0
    %6488 = vmatpush1.msra.mxu0 0.0
    %6489 = vmatprep.subr.mxu0 0.0
    %6490 = vmatpush1.msra.mxu0 0.0
    %6491 = vmatprep.subr.mxu0 0.0
    %6492 = vmatpush1.msra.mxu0 0.0
    %6493 = vmatprep.subr.mxu0 0.0
    %6494 = vmatpush1.msra.mxu0 0.0
    %6495 = vmatprep.mubr.f32.mxu0 0.0
    %6496 = vmatmul.mubr.f32.gmra.mrb[0].mxu0 %v6429
    %v6497 = vpop.f32.mrb[0].mxu0
    %v6498 = vadd.f32 %v4890, %v6497
    %v6499 = vpop.f32.mrb[0].mxu0
    %6500 = vdwg.mxu0
    %v6502 = vsel %vm4891, %v4841, 0
    %6504 = vmatprep.subr.mxu0 0.0
    %6505 = vmatpush1.msra.mxu0 %v4883
    %6506 = vmatprep.subr.mxu0 0.0
    %6507 = vmatpush1.msra.mxu0 %v4884
    %6508 = vmatprep.subr.mxu0 0.0
    %6509 = vmatpush1.msra.mxu0 %v4896
    %6510 = vmatprep.subr.mxu0 0.0
    %6511 = vmatpush1.msra.mxu0 0.0
    %6512 = vmatprep.subr.mxu0 0.0
    %6513 = vmatpush1.msra.mxu0 0.0
    %6514 = vmatprep.subr.mxu0 0.0
    %6515 = vmatpush1.msra.mxu0 0.0
    %6516 = vmatprep.subr.mxu0 0.0
    %6517 = vmatpush1.msra.mxu0 0.0
    %6518 = vmatprep.subr.mxu0 0.0
    %6519 = vmatpush1.msra.mxu0 0.0
    %6520 = vmatprep.subr.mxu0 0.0
    %6521 = vmatpush1.msra.mxu0 0.0
    %6522 = vmatprep.subr.mxu0 0.0
    %6523 = vmatpush1.msra.mxu0 0.0
    %6524 = vmatprep.subr.mxu0 0.0
    %6525 = vmatpush1.msra.mxu0 0.0
    %6526 = vmatprep.subr.mxu0 0.0
    %6527 = vmatpush1.msra.mxu0 0.0
    %6528 = vmatprep.subr.mxu0 0.0
    %6529 = vmatpush1.msra.mxu0 0.0
    %6530 = vmatprep.subr.mxu0 0.0
    %6531 = vmatpush1.msra.mxu0 0.0
    %6532 = vmatprep.subr.mxu0 0.0
    %6533 = vmatpush1.msra.mxu0 0.0
    %6534 = vmatprep.subr.mxu0 0.0
    %6535 = vmatpush1.msra.mxu0 0.0
    %6536 = vmatprep.subr.mxu0 0.0
    %6537 = vmatpush1.msra.mxu0 0.0
    %6538 = vmatprep.subr.mxu0 0.0
    %6539 = vmatpush1.msra.mxu0 0.0
    %6540 = vmatprep.subr.mxu0 0.0
    %6541 = vmatpush1.msra.mxu0 0.0
    %6542 = vmatprep.subr.mxu0 0.0
    %6543 = vmatpush1.msra.mxu0 0.0
    %6544 = vmatprep.subr.mxu0 0.0
    %6545 = vmatpush1.msra.mxu0 0.0
    %6546 = vmatprep.subr.mxu0 0.0
    %6547 = vmatpush1.msra.mxu0 0.0
    %6548 = vmatprep.subr.mxu0 0.0
    %6549 = vmatpush1.msra.mxu0 0.0
    %6550 = vmatprep.subr.mxu0 0.0
    %6551 = vmatpush1.msra.mxu0 0.0
    %6552 = vmatprep.subr.mxu0 0.0
    %6553 = vmatpush1.msra.mxu0 0.0
    %6554 = vmatprep.subr.mxu0 0.0
    %6555 = vmatpush1.msra.mxu0 0.0
    %6556 = vmatprep.subr.mxu0 0.0
    %6557 = vmatpush1.msra.mxu0 0.0
    %6558 = vmatprep.subr.mxu0 0.0
    %6559 = vmatpush1.msra.mxu0 0.0
    %6560 = vmatprep.subr.mxu0 0.0
    %6561 = vmatpush1.msra.mxu0 0.0
    %6562 = vmatprep.subr.mxu0 0.0
    %6563 = vmatpush1.msra.mxu0 0.0
    %6564 = vmatprep.subr.mxu0 0.0
    %6565 = vmatpush1.msra.mxu0 0.0
    %6566 = vmatprep.subr.mxu0 0.0
    %6567 = vmatpush1.msra.mxu0 0.0
    %6568 = vmatprep.mubr.f32.mxu0 0.0
    %6569 = vmatmul.mubr.f32.gmra.mrb[0].mxu0 %v6502
    %v6570 = vpop.f32.mrb[0].mxu0
    %v6571 = vadd.f32 %v4890, %v6570
    %v6572 = vpop.f32.mrb[0].mxu0
    %6573 = vdwg.mxu0
    %v6575 = vsel %vm4891, %v4842, 0
    %6577 = vmatprep.subr.mxu0 0.0
    %6578 = vmatpush1.msra.mxu0 %v4883
    %6579 = vmatprep.subr.mxu0 0.0
    %6580 = vmatpush1.msra.mxu0 %v4884
    %6581 = vmatprep.subr.mxu0 0.0
    %6582 = vmatpush1.msra.mxu0 %v4896
    %6583 = vmatprep.subr.mxu0 0.0
    %6584 = vmatpush1.msra.mxu0 0.0
    %6585 = vmatprep.subr.mxu0 0.0
    %6586 = vmatpush1.msra.mxu0 0.0
    %6587 = vmatprep.subr.mxu0 0.0
    %6588 = vmatpush1.msra.mxu0 0.0
    %6589 = vmatprep.subr.mxu0 0.0
    %6590 = vmatpush1.msra.mxu0 0.0
    %6591 = vmatprep.subr.mxu0 0.0
    %6592 = vmatpush1.msra.mxu0 0.0
    %6593 = vmatprep.subr.mxu0 0.0
    %6594 = vmatpush1.msra.mxu0 0.0
    %6595 = vmatprep.subr.mxu0 0.0
    %6596 = vmatpush1.msra.mxu0 0.0
    %6597 = vmatprep.subr.mxu0 0.0
    %6598 = vmatpush1.msra.mxu0 0.0
    %6599 = vmatprep.subr.mxu0 0.0
    %6600 = vmatpush1.msra.mxu0 0.0
    %6601 = vmatprep.subr.mxu0 0.0
    %6602 = vmatpush1.msra.mxu0 0.0
    %6603 = vmatprep.subr.mxu0 0.0
    %6604 = vmatpush1.msra.mxu0 0.0
    %6605 = vmatprep.subr.mxu0 0.0
    %6606 = vmatpush1.msra.mxu0 0.0
    %6607 = vmatprep.subr.mxu0 0.0
    %6608 = vmatpush1.msra.mxu0 0.0
    %6609 = vmatprep.subr.mxu0 0.0
    %6610 = vmatpush1.msra.mxu0 0.0
    %6611 = vmatprep.subr.mxu0 0.0
    %6612 = vmatpush1.msra.mxu0 0.0
    %6613 = vmatprep.subr.mxu0 0.0
    %6614 = vmatpush1.msra.mxu0 0.0
    %6615 = vmatprep.subr.mxu0 0.0
    %6616 = vmatpush1.msra.mxu0 0.0
    %6617 = vmatprep.subr.mxu0 0.0
    %6618 = vmatpush1.msra.mxu0 0.0
    %6619 = vmatprep.subr.mxu0 0.0
    %6620 = vmatpush1.msra.mxu0 0.0
    %6621 = vmatprep.subr.mxu0 0.0
    %6622 = vmatpush1.msra.mxu0 0.0
    %6623 = vmatprep.subr.mxu0 0.0
    %6624 = vmatpush1.msra.mxu0 0.0
    %6625 = vmatprep.subr.mxu0 0.0
    %6626 = vmatpush1.msra.mxu0 0.0
    %6627 = vmatprep.subr.mxu0 0.0
    %6628 = vmatpush1.msra.mxu0 0.0
    %6629 = vmatprep.subr.mxu0 0.0
    %6630 = vmatpush1.msra.mxu0 0.0
    %6631 = vmatprep.subr.mxu0 0.0
    %6632 = vmatpush1.msra.mxu0 0.0
    %6633 = vmatprep.subr.mxu0 0.0
    %6634 = vmatpush1.msra.mxu0 0.0
    %6635 = vmatprep.subr.mxu0 0.0
    %6636 = vmatpush1.msra.mxu0 0.0
    %6637 = vmatprep.subr.mxu0 0.0
    %6638 = vmatpush1.msra.mxu0 0.0
    %6639 = vmatprep.subr.mxu0 0.0
    %6640 = vmatpush1.msra.mxu0 0.0
    %6641 = vmatprep.mubr.f32.mxu0 0.0
    %6642 = vmatmul.mubr.f32.gmra.mrb[0].mxu0 %v6575
    %v6643 = vpop.f32.mrb[0].mxu0
    %v6644 = vadd.f32 %v4890, %v6643
    %v6645 = vpop.f32.mrb[0].mxu0
    %6646 = vdwg.mxu0
    %v6648 = vsel %vm4891, %v4843, 0
    %6650 = vmatprep.subr.mxu0 0.0
    %6651 = vmatpush1.msra.mxu0 %v4883
    %6652 = vmatprep.subr.mxu0 0.0
    %6653 = vmatpush1.msra.mxu0 %v4884
    %6654 = vmatprep.subr.mxu0 0.0
    %6655 = vmatpush1.msra.mxu0 %v4896
    %6656 = vmatprep.subr.mxu0 0.0
    %6657 = vmatpush1.msra.mxu0 0.0
    %6658 = vmatprep.subr.mxu0 0.0
    %6659 = vmatpush1.msra.mxu0 0.0
    %6660 = vmatprep.subr.mxu0 0.0
    %6661 = vmatpush1.msra.mxu0 0.0
    %6662 = vmatprep.subr.mxu0 0.0
    %6663 = vmatpush1.msra.mxu0 0.0
    %6664 = vmatprep.subr.mxu0 0.0
    %6665 = vmatpush1.msra.mxu0 0.0
    %6666 = vmatprep.subr.mxu0 0.0
    %6667 = vmatpush1.msra.mxu0 0.0
    %6668 = vmatprep.subr.mxu0 0.0
    %6669 = vmatpush1.msra.mxu0 0.0
    %6670 = vmatprep.subr.mxu0 0.0
    %6671 = vmatpush1.msra.mxu0 0.0
    %6672 = vmatprep.subr.mxu0 0.0
    %6673 = vmatpush1.msra.mxu0 0.0
    %6674 = vmatprep.subr.mxu0 0.0
    %6675 = vmatpush1.msra.mxu0 0.0
    %6676 = vmatprep.subr.mxu0 0.0
    %6677 = vmatpush1.msra.mxu0 0.0
    %6678 = vmatprep.subr.mxu0 0.0
    %6679 = vmatpush1.msra.mxu0 0.0
    %6680 = vmatprep.subr.mxu0 0.0
    %6681 = vmatpush1.msra.mxu0 0.0
    %6682 = vmatprep.subr.mxu0 0.0
    %6683 = vmatpush1.msra.mxu0 0.0
    %6684 = vmatprep.subr.mxu0 0.0
    %6685 = vmatpush1.msra.mxu0 0.0
    %6686 = vmatprep.subr.mxu0 0.0
    %6687 = vmatpush1.msra.mxu0 0.0
    %6688 = vmatprep.subr.mxu0 0.0
    %6689 = vmatpush1.msra.mxu0 0.0
    %6690 = vmatprep.subr.mxu0 0.0
    %6691 = vmatpush1.msra.mxu0 0.0
    %6692 = vmatprep.subr.mxu0 0.0
    %6693 = vmatpush1.msra.mxu0 0.0
    %6694 = vmatprep.subr.mxu0 0.0
    %6695 = vmatpush1.msra.mxu0 0.0
    %6696 = vmatprep.subr.mxu0 0.0
    %6697 = vmatpush1.msra.mxu0 0.0
    %6698 = vmatprep.subr.mxu0 0.0
    %6699 = vmatpush1.msra.mxu0 0.0
    %6700 = vmatprep.subr.mxu0 0.0
    %6701 = vmatpush1.msra.mxu0 0.0
    %6702 = vmatprep.subr.mxu0 0.0
    %6703 = vmatpush1.msra.mxu0 0.0
    %6704 = vmatprep.subr.mxu0 0.0
    %6705 = vmatpush1.msra.mxu0 0.0
    %6706 = vmatprep.subr.mxu0 0.0
    %6707 = vmatpush1.msra.mxu0 0.0
    %6708 = vmatprep.subr.mxu0 0.0
    %6709 = vmatpush1.msra.mxu0 0.0
    %6710 = vmatprep.subr.mxu0 0.0
    %6711 = vmatpush1.msra.mxu0 0.0
    %6712 = vmatprep.subr.mxu0 0.0
    %6713 = vmatpush1.msra.mxu0 0.0
    %6714 = vmatprep.mubr.f32.mxu0 0.0
    %6715 = vmatmul.mubr.f32.gmra.mrb[0].mxu0 %v6648
    %v6716 = vpop.f32.mrb[0].mxu0
    %v6717 = vadd.f32 %v4890, %v6716
    %v6718 = vpop.f32.mrb[0].mxu0
    %6719 = vdwg.mxu0
    %v6721 = vsel %vm4891, %v4844, 0
    %6723 = vmatprep.subr.mxu0 0.0
    %6724 = vmatpush1.msra.mxu0 %v4883
    %6725 = vmatprep.subr.mxu0 0.0
    %6726 = vmatpush1.msra.mxu0 %v4884
    %6727 = vmatprep.subr.mxu0 0.0
    %6728 = vmatpush1.msra.mxu0 %v4896
    %6729 = vmatprep.subr.mxu0 0.0
    %6730 = vmatpush1.msra.mxu0 0.0
    %6731 = vmatprep.subr.mxu0 0.0
    %6732 = vmatpush1.msra.mxu0 0.0
    %6733 = vmatprep.subr.mxu0 0.0
    %6734 = vmatpush1.msra.mxu0 0.0
    %6735 = vmatprep.subr.mxu0 0.0
    %6736 = vmatpush1.msra.mxu0 0.0
    %6737 = vmatprep.subr.mxu0 0.0
    %6738 = vmatpush1.msra.mxu0 0.0
    %6739 = vmatprep.subr.mxu0 0.0
    %6740 = vmatpush1.msra.mxu0 0.0
    %6741 = vmatprep.subr.mxu0 0.0
    %6742 = vmatpush1.msra.mxu0 0.0
    %6743 = vmatprep.subr.mxu0 0.0
    %6744 = vmatpush1.msra.mxu0 0.0
    %6745 = vmatprep.subr.mxu0 0.0
    %6746 = vmatpush1.msra.mxu0 0.0
    %6747 = vmatprep.subr.mxu0 0.0
    %6748 = vmatpush1.msra.mxu0 0.0
    %6749 = vmatprep.subr.mxu0 0.0
    %6750 = vmatpush1.msra.mxu0 0.0
    %6751 = vmatprep.subr.mxu0 0.0
    %6752 = vmatpush1.msra.mxu0 0.0
    %6753 = vmatprep.subr.mxu0 0.0
    %6754 = vmatpush1.msra.mxu0 0.0
    %6755 = vmatprep.subr.mxu0 0.0
    %6756 = vmatpush1.msra.mxu0 0.0
    %6757 = vmatprep.subr.mxu0 0.0
    %6758 = vmatpush1.msra.mxu0 0.0
    %6759 = vmatprep.subr.mxu0 0.0
    %6760 = vmatpush1.msra.mxu0 0.0
    %6761 = vmatprep.subr.mxu0 0.0
    %6762 = vmatpush1.msra.mxu0 0.0
    %6763 = vmatprep.subr.mxu0 0.0
    %6764 = vmatpush1.msra.mxu0 0.0
    %6765 = vmatprep.subr.mxu0 0.0
    %6766 = vmatpush1.msra.mxu0 0.0
    %6767 = vmatprep.subr.mxu0 0.0
    %6768 = vmatpush1.msra.mxu0 0.0
    %6769 = vmatprep.subr.mxu0 0.0
    %6770 = vmatpush1.msra.mxu0 0.0
    %6771 = vmatprep.subr.mxu0 0.0
    %6772 = vmatpush1.msra.mxu0 0.0
    %6773 = vmatprep.subr.mxu0 0.0
    %6774 = vmatpush1.msra.mxu0 0.0
    %6775 = vmatprep.subr.mxu0 0.0
    %6776 = vmatpush1.msra.mxu0 0.0
    %6777 = vmatprep.subr.mxu0 0.0
    %6778 = vmatpush1.msra.mxu0 0.0
    %6779 = vmatprep.subr.mxu0 0.0
    %6780 = vmatpush1.msra.mxu0 0.0
    %6781 = vmatprep.subr.mxu0 0.0
    %6782 = vmatpush1.msra.mxu0 0.0
    %6783 = vmatprep.subr.mxu0 0.0
    %6784 = vmatpush1.msra.mxu0 0.0
    %6785 = vmatprep.subr.mxu0 0.0
    %6786 = vmatpush1.msra.mxu0 0.0
    %6787 = vmatprep.mubr.f32.mxu0 0.0
    %6788 = vmatmul.mubr.f32.gmra.mrb[0].mxu0 %v6721
    %v6789 = vpop.f32.mrb[0].mxu0
    %v6790 = vadd.f32 %v4890, %v6789
    %v6791 = vpop.f32.mrb[0].mxu0
    %6792 = vdwg.mxu0
    %v6794 = vsel %vm4891, %v4845, 0
    %6796 = vmatprep.subr.mxu0 0.0
    %6797 = vmatpush1.msra.mxu0 %v4883
    %6798 = vmatprep.subr.mxu0 0.0
    %6799 = vmatpush1.msra.mxu0 %v4884
    %6800 = vmatprep.subr.mxu0 0.0
    %6801 = vmatpush1.msra.mxu0 %v4896
    %6802 = vmatprep.subr.mxu0 0.0
    %6803 = vmatpush1.msra.mxu0 0.0
    %6804 = vmatprep.subr.mxu0 0.0
    %6805 = vmatpush1.msra.mxu0 0.0
    %6806 = vmatprep.subr.mxu0 0.0
    %6807 = vmatpush1.msra.mxu0 0.0
    %6808 = vmatprep.subr.mxu0 0.0
    %6809 = vmatpush1.msra.mxu0 0.0
    %6810 = vmatprep.subr.mxu0 0.0
    %6811 = vmatpush1.msra.mxu0 0.0
    %6812 = vmatprep.subr.mxu0 0.0
    %6813 = vmatpush1.msra.mxu0 0.0
    %6814 = vmatprep.subr.mxu0 0.0
    %6815 = vmatpush1.msra.mxu0 0.0
    %6816 = vmatprep.subr.mxu0 0.0
    %6817 = vmatpush1.msra.mxu0 0.0
    %6818 = vmatprep.subr.mxu0 0.0
    %6819 = vmatpush1.msra.mxu0 0.0
    %6820 = vmatprep.subr.mxu0 0.0
    %6821 = vmatpush1.msra.mxu0 0.0
    %6822 = vmatprep.subr.mxu0 0.0
    %6823 = vmatpush1.msra.mxu0 0.0
    %6824 = vmatprep.subr.mxu0 0.0
    %6825 = vmatpush1.msra.mxu0 0.0
    %6826 = vmatprep.subr.mxu0 0.0
    %6827 = vmatpush1.msra.mxu0 0.0
    %6828 = vmatprep.subr.mxu0 0.0
    %6829 = vmatpush1.msra.mxu0 0.0
    %6830 = vmatprep.subr.mxu0 0.0
    %6831 = vmatpush1.msra.mxu0 0.0
    %6832 = vmatprep.subr.mxu0 0.0
    %6833 = vmatpush1.msra.mxu0 0.0
    %6834 = vmatprep.subr.mxu0 0.0
    %6835 = vmatpush1.msra.mxu0 0.0
    %6836 = vmatprep.subr.mxu0 0.0
    %6837 = vmatpush1.msra.mxu0 0.0
    %6838 = vmatprep.subr.mxu0 0.0
    %6839 = vmatpush1.msra.mxu0 0.0
    %6840 = vmatprep.subr.mxu0 0.0
    %6841 = vmatpush1.msra.mxu0 0.0
    %6842 = vmatprep.subr.mxu0 0.0
    %6843 = vmatpush1.msra.mxu0 0.0
    %6844 = vmatprep.subr.mxu0 0.0
    %6845 = vmatpush1.msra.mxu0 0.0
    %6846 = vmatprep.subr.mxu0 0.0
    %6847 = vmatpush1.msra.mxu0 0.0
    %6848 = vmatprep.subr.mxu0 0.0
    %6849 = vmatpush1.msra.mxu0 0.0
    %6850 = vmatprep.subr.mxu0 0.0
    %6851 = vmatpush1.msra.mxu0 0.0
    %6852 = vmatprep.subr.mxu0 0.0
    %6853 = vmatpush1.msra.mxu0 0.0
    %6854 = vmatprep.subr.mxu0 0.0
    %6855 = vmatpush1.msra.mxu0 0.0
    %6856 = vmatprep.subr.mxu0 0.0
    %6857 = vmatpush1.msra.mxu0 0.0
    %6858 = vmatprep.subr.mxu0 0.0
    %6859 = vmatpush1.msra.mxu0 0.0
    %6860 = vmatprep.mubr.f32.mxu0 0.0
    %6861 = vmatmul.mubr.f32.gmra.mrb[0].mxu0 %v6794
    %v6862 = vpop.f32.mrb[0].mxu0
    %v6863 = vadd.f32 %v4890, %v6862
    %v6864 = vpop.f32.mrb[0].mxu0
    %6865 = vdwg.mxu0
    %v6867 = vsel %vm4891, %v4846, 0
    %6869 = vmatprep.subr.mxu0 0.0
    %6870 = vmatpush1.msra.mxu0 %v4883
    %6871 = vmatprep.subr.mxu0 0.0
    %6872 = vmatpush1.msra.mxu0 %v4884
    %6873 = vmatprep.subr.mxu0 0.0
    %6874 = vmatpush1.msra.mxu0 %v4896
    %6875 = vmatprep.subr.mxu0 0.0
    %6876 = vmatpush1.msra.mxu0 0.0
    %6877 = vmatprep.subr.mxu0 0.0
    %6878 = vmatpush1.msra.mxu0 0.0
    %6879 = vmatprep.subr.mxu0 0.0
    %6880 = vmatpush1.msra.mxu0 0.0
    %6881 = vmatprep.subr.mxu0 0.0
    %6882 = vmatpush1.msra.mxu0 0.0
    %6883 = vmatprep.subr.mxu0 0.0
    %6884 = vmatpush1.msra.mxu0 0.0
    %6885 = vmatprep.subr.mxu0 0.0
    %6886 = vmatpush1.msra.mxu0 0.0
    %6887 = vmatprep.subr.mxu0 0.0
    %6888 = vmatpush1.msra.mxu0 0.0
    %6889 = vmatprep.subr.mxu0 0.0
    %6890 = vmatpush1.msra.mxu0 0.0
    %6891 = vmatprep.subr.mxu0 0.0
    %6892 = vmatpush1.msra.mxu0 0.0
    %6893 = vmatprep.subr.mxu0 0.0
    %6894 = vmatpush1.msra.mxu0 0.0
    %6895 = vmatprep.subr.mxu0 0.0
    %6896 = vmatpush1.msra.mxu0 0.0
    %6897 = vmatprep.subr.mxu0 0.0
    %6898 = vmatpush1.msra.mxu0 0.0
    %6899 = vmatprep.subr.mxu0 0.0
    %6900 = vmatpush1.msra.mxu0 0.0
    %6901 = vmatprep.subr.mxu0 0.0
    %6902 = vmatpush1.msra.mxu0 0.0
    %6903 = vmatprep.subr.mxu0 0.0
    %6904 = vmatpush1.msra.mxu0 0.0
    %6905 = vmatprep.subr.mxu0 0.0
    %6906 = vmatpush1.msra.mxu0 0.0
    %6907 = vmatprep.subr.mxu0 0.0
    %6908 = vmatpush1.msra.mxu0 0.0
    %6909 = vmatprep.subr.mxu0 0.0
    %6910 = vmatpush1.msra.mxu0 0.0
    %6911 = vmatprep.subr.mxu0 0.0
    %6912 = vmatpush1.msra.mxu0 0.0
    %6913 = vmatprep.subr.mxu0 0.0
    %6914 = vmatpush1.msra.mxu0 0.0
    %6915 = vmatprep.subr.mxu0 0.0
    %6916 = vmatpush1.msra.mxu0 0.0
    %6917 = vmatprep.subr.mxu0 0.0
    %6918 = vmatpush1.msra.mxu0 0.0
    %6919 = vmatprep.subr.mxu0 0.0
    %6920 = vmatpush1.msra.mxu0 0.0
    %6921 = vmatprep.subr.mxu0 0.0
    %6922 = vmatpush1.msra.mxu0 0.0
    %6923 = vmatprep.subr.mxu0 0.0
    %6924 = vmatpush1.msra.mxu0 0.0
    %6925 = vmatprep.subr.mxu0 0.0
    %6926 = vmatpush1.msra.mxu0 0.0
    %6927 = vmatprep.subr.mxu0 0.0
    %6928 = vmatpush1.msra.mxu0 0.0
    %6929 = vmatprep.subr.mxu0 0.0
    %6930 = vmatpush1.msra.mxu0 0.0
    %6931 = vmatprep.subr.mxu0 0.0
    %6932 = vmatpush1.msra.mxu0 0.0
    %6933 = vmatprep.mubr.f32.mxu0 0.0
    %6934 = vmatmul.mubr.f32.gmra.mrb[0].mxu0 %v6867
    %v6935 = vpop.f32.mrb[0].mxu0
    %v6936 = vadd.f32 %v4890, %v6935
    %v6937 = vpop.f32.mrb[0].mxu0
    %6938 = vdwg.mxu0
    %v6940 = vsel %vm4891, %v4847, 0
    %6942 = vmatprep.subr.mxu0 0.0
    %6943 = vmatpush1.msra.mxu0 %v4883
    %6944 = vmatprep.subr.mxu0 0.0
    %6945 = vmatpush1.msra.mxu0 %v4884
    %6946 = vmatprep.subr.mxu0 0.0
    %6947 = vmatpush1.msra.mxu0 %v4896
    %6948 = vmatprep.subr.mxu0 0.0
    %6949 = vmatpush1.msra.mxu0 0.0
    %6950 = vmatprep.subr.mxu0 0.0
    %6951 = vmatpush1.msra.mxu0 0.0
    %6952 = vmatprep.subr.mxu0 0.0
    %6953 = vmatpush1.msra.mxu0 0.0
    %6954 = vmatprep.subr.mxu0 0.0
    %6955 = vmatpush1.msra.mxu0 0.0
    %6956 = vmatprep.subr.mxu0 0.0
    %6957 = vmatpush1.msra.mxu0 0.0
    %6958 = vmatprep.subr.mxu0 0.0
    %6959 = vmatpush1.msra.mxu0 0.0
    %6960 = vmatprep.subr.mxu0 0.0
    %6961 = vmatpush1.msra.mxu0 0.0
    %6962 = vmatprep.subr.mxu0 0.0
    %6963 = vmatpush1.msra.mxu0 0.0
    %6964 = vmatprep.subr.mxu0 0.0
    %6965 = vmatpush1.msra.mxu0 0.0
    %6966 = vmatprep.subr.mxu0 0.0
    %6967 = vmatpush1.msra.mxu0 0.0
    %6968 = vmatprep.subr.mxu0 0.0
    %6969 = vmatpush1.msra.mxu0 0.0
    %6970 = vmatprep.subr.mxu0 0.0
    %6971 = vmatpush1.msra.mxu0 0.0
    %6972 = vmatprep.subr.mxu0 0.0
    %6973 = vmatpush1.msra.mxu0 0.0
    %6974 = vmatprep.subr.mxu0 0.0
    %6975 = vmatpush1.msra.mxu0 0.0
    %6976 = vmatprep.subr.mxu0 0.0
    %6977 = vmatpush1.msra.mxu0 0.0
    %6978 = vmatprep.subr.mxu0 0.0
    %6979 = vmatpush1.msra.mxu0 0.0
    %6980 = vmatprep.subr.mxu0 0.0
    %6981 = vmatpush1.msra.mxu0 0.0
    %6982 = vmatprep.subr.mxu0 0.0
    %6983 = vmatpush1.msra.mxu0 0.0
    %6984 = vmatprep.subr.mxu0 0.0
    %6985 = vmatpush1.msra.mxu0 0.0
    %6986 = vmatprep.subr.mxu0 0.0
    %6987 = vmatpush1.msra.mxu0 0.0
    %6988 = vmatprep.subr.mxu0 0.0
    %6989 = vmatpush1.msra.mxu0 0.0
    %6990 = vmatprep.subr.mxu0 0.0
    %6991 = vmatpush1.msra.mxu0 0.0
    %6992 = vmatprep.subr.mxu0 0.0
    %6993 = vmatpush1.msra.mxu0 0.0
    %6994 = vmatprep.subr.mxu0 0.0
    %6995 = vmatpush1.msra.mxu0 0.0
    %6996 = vmatprep.subr.mxu0 0.0
    %6997 = vmatpush1.msra.mxu0 0.0
    %6998 = vmatprep.subr.mxu0 0.0
    %6999 = vmatpush1.msra.mxu0 0.0
    %7000 = vmatprep.subr.mxu0 0.0
    %7001 = vmatpush1.msra.mxu0 0.0
    %7002 = vmatprep.subr.mxu0 0.0
    %7003 = vmatpush1.msra.mxu0 0.0
    %7004 = vmatprep.subr.mxu0 0.0
    %7005 = vmatpush1.msra.mxu0 0.0
    %7006 = vmatprep.mubr.f32.mxu0 0.0
    %7007 = vmatmul.mubr.f32.gmra.mrb[0].mxu0 %v6940
    %v7008 = vpop.f32.mrb[0].mxu0
    %v7009 = vadd.f32 %v4890, %v7008
    %v7010 = vpop.f32.mrb[0].mxu0
    %7011 = vdwg.mxu0
    %v7013 = vsel %vm4891, %v4848, 0
    %7015 = vmatprep.subr.mxu0 0.0
    %7016 = vmatpush1.msra.mxu0 %v4883
    %7017 = vmatprep.subr.mxu0 0.0
    %7018 = vmatpush1.msra.mxu0 %v4884
    %7019 = vmatprep.subr.mxu0 0.0
    %7020 = vmatpush1.msra.mxu0 %v4896
    %7021 = vmatprep.subr.mxu0 0.0
    %7022 = vmatpush1.msra.mxu0 0.0
    %7023 = vmatprep.subr.mxu0 0.0
    %7024 = vmatpush1.msra.mxu0 0.0
    %7025 = vmatprep.subr.mxu0 0.0
    %7026 = vmatpush1.msra.mxu0 0.0
    %7027 = vmatprep.subr.mxu0 0.0
    %7028 = vmatpush1.msra.mxu0 0.0
    %7029 = vmatprep.subr.mxu0 0.0
    %7030 = vmatpush1.msra.mxu0 0.0
    %7031 = vmatprep.subr.mxu0 0.0
    %7032 = vmatpush1.msra.mxu0 0.0
    %7033 = vmatprep.subr.mxu0 0.0
    %7034 = vmatpush1.msra.mxu0 0.0
    %7035 = vmatprep.subr.mxu0 0.0
    %7036 = vmatpush1.msra.mxu0 0.0
    %7037 = vmatprep.subr.mxu0 0.0
    %7038 = vmatpush1.msra.mxu0 0.0
    %7039 = vmatprep.subr.mxu0 0.0
    %7040 = vmatpush1.msra.mxu0 0.0
    %7041 = vmatprep.subr.mxu0 0.0
    %7042 = vmatpush1.msra.mxu0 0.0
    %7043 = vmatprep.subr.mxu0 0.0
    %7044 = vmatpush1.msra.mxu0 0.0
    %7045 = vmatprep.subr.mxu0 0.0
    %7046 = vmatpush1.msra.mxu0 0.0
    %7047 = vmatprep.subr.mxu0 0.0
    %7048 = vmatpush1.msra.mxu0 0.0
    %7049 = vmatprep.subr.mxu0 0.0
    %7050 = vmatpush1.msra.mxu0 0.0
    %7051 = vmatprep.subr.mxu0 0.0
    %7052 = vmatpush1.msra.mxu0 0.0
    %7053 = vmatprep.subr.mxu0 0.0
    %7054 = vmatpush1.msra.mxu0 0.0
    %7055 = vmatprep.subr.mxu0 0.0
    %7056 = vmatpush1.msra.mxu0 0.0
    %7057 = vmatprep.subr.mxu0 0.0
    %7058 = vmatpush1.msra.mxu0 0.0
    %7059 = vmatprep.subr.mxu0 0.0
    %7060 = vmatpush1.msra.mxu0 0.0
    %7061 = vmatprep.subr.mxu0 0.0
    %7062 = vmatpush1.msra.mxu0 0.0
    %7063 = vmatprep.subr.mxu0 0.0
    %7064 = vmatpush1.msra.mxu0 0.0
    %7065 = vmatprep.subr.mxu0 0.0
    %7066 = vmatpush1.msra.mxu0 0.0
    %7067 = vmatprep.subr.mxu0 0.0
    %7068 = vmatpush1.msra.mxu0 0.0
    %7069 = vmatprep.subr.mxu0 0.0
    %7070 = vmatpush1.msra.mxu0 0.0
    %7071 = vmatprep.subr.mxu0 0.0
    %7072 = vmatpush1.msra.mxu0 0.0
    %7073 = vmatprep.subr.mxu0 0.0
    %7074 = vmatpush1.msra.mxu0 0.0
    %7075 = vmatprep.subr.mxu0 0.0
    %7076 = vmatpush1.msra.mxu0 0.0
    %7077 = vmatprep.subr.mxu0 0.0
    %7078 = vmatpush1.msra.mxu0 0.0
    %7079 = vmatprep.mubr.f32.mxu0 0.0
    %7080 = vmatmul.mubr.f32.gmra.mrb[0].mxu0 %v7013
    %v7081 = vpop.f32.mrb[0].mxu0
    %v7082 = vadd.f32 %v4890, %v7081
    %v7083 = vpop.f32.mrb[0].mxu0
    %7084 = vdwg.mxu0
    %v7086 = vsel %vm4891, %v4849, 0
    %7088 = vmatprep.subr.mxu0 0.0
    %7089 = vmatpush1.msra.mxu0 %v4883
    %7090 = vmatprep.subr.mxu0 0.0
    %7091 = vmatpush1.msra.mxu0 %v4884
    %7092 = vmatprep.subr.mxu0 0.0
    %7093 = vmatpush1.msra.mxu0 %v4896
    %7094 = vmatprep.subr.mxu0 0.0
    %7095 = vmatpush1.msra.mxu0 0.0
    %7096 = vmatprep.subr.mxu0 0.0
    %7097 = vmatpush1.msra.mxu0 0.0
    %7098 = vmatprep.subr.mxu0 0.0
    %7099 = vmatpush1.msra.mxu0 0.0
    %7100 = vmatprep.subr.mxu0 0.0
    %7101 = vmatpush1.msra.mxu0 0.0
    %7102 = vmatprep.subr.mxu0 0.0
    %7103 = vmatpush1.msra.mxu0 0.0
    %7104 = vmatprep.subr.mxu0 0.0
    %7105 = vmatpush1.msra.mxu0 0.0
    %7106 = vmatprep.subr.mxu0 0.0
    %7107 = vmatpush1.msra.mxu0 0.0
    %7108 = vmatprep.subr.mxu0 0.0
    %7109 = vmatpush1.msra.mxu0 0.0
    %7110 = vmatprep.subr.mxu0 0.0
    %7111 = vmatpush1.msra.mxu0 0.0
    %7112 = vmatprep.subr.mxu0 0.0
    %7113 = vmatpush1.msra.mxu0 0.0
    %7114 = vmatprep.subr.mxu0 0.0
    %7115 = vmatpush1.msra.mxu0 0.0
    %7116 = vmatprep.subr.mxu0 0.0
    %7117 = vmatpush1.msra.mxu0 0.0
    %7118 = vmatprep.subr.mxu0 0.0
    %7119 = vmatpush1.msra.mxu0 0.0
    %7120 = vmatprep.subr.mxu0 0.0
    %7121 = vmatpush1.msra.mxu0 0.0
    %7122 = vmatprep.subr.mxu0 0.0
    %7123 = vmatpush1.msra.mxu0 0.0
    %7124 = vmatprep.subr.mxu0 0.0
    %7125 = vmatpush1.msra.mxu0 0.0
    %7126 = vmatprep.subr.mxu0 0.0
    %7127 = vmatpush1.msra.mxu0 0.0
    %7128 = vmatprep.subr.mxu0 0.0
    %7129 = vmatpush1.msra.mxu0 0.0
    %7130 = vmatprep.subr.mxu0 0.0
    %7131 = vmatpush1.msra.mxu0 0.0
    %7132 = vmatprep.subr.mxu0 0.0
    %7133 = vmatpush1.msra.mxu0 0.0
    %7134 = vmatprep.subr.mxu0 0.0
    %7135 = vmatpush1.msra.mxu0 0.0
    %7136 = vmatprep.subr.mxu0 0.0
    %7137 = vmatpush1.msra.mxu0 0.0
    %7138 = vmatprep.subr.mxu0 0.0
    %7139 = vmatpush1.msra.mxu0 0.0
    %7140 = vmatprep.subr.mxu0 0.0
    %7141 = vmatpush1.msra.mxu0 0.0
    %7142 = vmatprep.subr.mxu0 0.0
    %7143 = vmatpush1.msra.mxu0 0.0
    %7144 = vmatprep.subr.mxu0 0.0
    %7145 = vmatpush1.msra.mxu0 0.0
    %7146 = vmatprep.subr.mxu0 0.0
    %7147 = vmatpush1.msra.mxu0 0.0
    %7148 = vmatprep.subr.mxu0 0.0
    %7149 = vmatpush1.msra.mxu0 0.0
    %7150 = vmatprep.subr.mxu0 0.0
    %7151 = vmatpush1.msra.mxu0 0.0
    %7152 = vmatprep.mubr.f32.mxu0 0.0
    %7153 = vmatmul.mubr.f32.gmra.mrb[0].mxu0 %v7086
    %v7154 = vpop.f32.mrb[0].mxu0
    %v7155 = vadd.f32 %v4890, %v7154
    %v7156 = vpop.f32.mrb[0].mxu0
    %7157 = vdwg.mxu0
    %v7159 = vsel %vm4891, %v4850, 0
    %7161 = vmatprep.subr.mxu0 0.0
    %7162 = vmatpush1.msra.mxu0 %v4883
    %7163 = vmatprep.subr.mxu0 0.0
    %7164 = vmatpush1.msra.mxu0 %v4884
    %7165 = vmatprep.subr.mxu0 0.0
    %7166 = vmatpush1.msra.mxu0 %v4896
    %7167 = vmatprep.subr.mxu0 0.0
    %7168 = vmatpush1.msra.mxu0 0.0
    %7169 = vmatprep.subr.mxu0 0.0
    %7170 = vmatpush1.msra.mxu0 0.0
    %7171 = vmatprep.subr.mxu0 0.0
    %7172 = vmatpush1.msra.mxu0 0.0
    %7173 = vmatprep.subr.mxu0 0.0
    %7174 = vmatpush1.msra.mxu0 0.0
    %7175 = vmatprep.subr.mxu0 0.0
    %7176 = vmatpush1.msra.mxu0 0.0
    %7177 = vmatprep.subr.mxu0 0.0
    %7178 = vmatpush1.msra.mxu0 0.0
    %7179 = vmatprep.subr.mxu0 0.0
    %7180 = vmatpush1.msra.mxu0 0.0
    %7181 = vmatprep.subr.mxu0 0.0
    %7182 = vmatpush1.msra.mxu0 0.0
    %7183 = vmatprep.subr.mxu0 0.0
    %7184 = vmatpush1.msra.mxu0 0.0
    %7185 = vmatprep.subr.mxu0 0.0
    %7186 = vmatpush1.msra.mxu0 0.0
    %7187 = vmatprep.subr.mxu0 0.0
    %7188 = vmatpush1.msra.mxu0 0.0
    %7189 = vmatprep.subr.mxu0 0.0
    %7190 = vmatpush1.msra.mxu0 0.0
    %7191 = vmatprep.subr.mxu0 0.0
    %7192 = vmatpush1.msra.mxu0 0.0
    %7193 = vmatprep.subr.mxu0 0.0
    %7194 = vmatpush1.msra.mxu0 0.0
    %7195 = vmatprep.subr.mxu0 0.0
    %7196 = vmatpush1.msra.mxu0 0.0
    %7197 = vmatprep.subr.mxu0 0.0
    %7198 = vmatpush1.msra.mxu0 0.0
    %7199 = vmatprep.subr.mxu0 0.0
    %7200 = vmatpush1.msra.mxu0 0.0
    %7201 = vmatprep.subr.mxu0 0.0
    %7202 = vmatpush1.msra.mxu0 0.0
    %7203 = vmatprep.subr.mxu0 0.0
    %7204 = vmatpush1.msra.mxu0 0.0
    %7205 = vmatprep.subr.mxu0 0.0
    %7206 = vmatpush1.msra.mxu0 0.0
    %7207 = vmatprep.subr.mxu0 0.0
    %7208 = vmatpush1.msra.mxu0 0.0
    %7209 = vmatprep.subr.mxu0 0.0
    %7210 = vmatpush1.msra.mxu0 0.0
    %7211 = vmatprep.subr.mxu0 0.0
    %7212 = vmatpush1.msra.mxu0 0.0
    %7213 = vmatprep.subr.mxu0 0.0
    %7214 = vmatpush1.msra.mxu0 0.0
    %7215 = vmatprep.subr.mxu0 0.0
    %7216 = vmatpush1.msra.mxu0 0.0
    %7217 = vmatprep.subr.mxu0 0.0
    %7218 = vmatpush1.msra.mxu0 0.0
    %7219 = vmatprep.subr.mxu0 0.0
    %7220 = vmatpush1.msra.mxu0 0.0
    %7221 = vmatprep.subr.mxu0 0.0
    %7222 = vmatpush1.msra.mxu0 0.0
    %7223 = vmatprep.subr.mxu0 0.0
    %7224 = vmatpush1.msra.mxu0 0.0
    %7225 = vmatprep.mubr.f32.mxu0 0.0
    %7226 = vmatmul.mubr.f32.gmra.mrb[0].mxu0 %v7159
    %v7227 = vpop.f32.mrb[0].mxu0
    %v7228 = vadd.f32 %v4890, %v7227
    %v7229 = vpop.f32.mrb[0].mxu0
    %7230 = vdwg.mxu0
    %v7232 = vsel %vm4891, %v4851, 0
    %7234 = vmatprep.subr.mxu0 0.0
    %7235 = vmatpush1.msra.mxu0 %v4883
    %7236 = vmatprep.subr.mxu0 0.0
    %7237 = vmatpush1.msra.mxu0 %v4884
    %7238 = vmatprep.subr.mxu0 0.0
    %7239 = vmatpush1.msra.mxu0 %v4896
    %7240 = vmatprep.subr.mxu0 0.0
    %7241 = vmatpush1.msra.mxu0 0.0
    %7242 = vmatprep.subr.mxu0 0.0
    %7243 = vmatpush1.msra.mxu0 0.0
    %7244 = vmatprep.subr.mxu0 0.0
    %7245 = vmatpush1.msra.mxu0 0.0
    %7246 = vmatprep.subr.mxu0 0.0
    %7247 = vmatpush1.msra.mxu0 0.0
    %7248 = vmatprep.subr.mxu0 0.0
    %7249 = vmatpush1.msra.mxu0 0.0
    %7250 = vmatprep.subr.mxu0 0.0
    %7251 = vmatpush1.msra.mxu0 0.0
    %7252 = vmatprep.subr.mxu0 0.0
    %7253 = vmatpush1.msra.mxu0 0.0
    %7254 = vmatprep.subr.mxu0 0.0
    %7255 = vmatpush1.msra.mxu0 0.0
    %7256 = vmatprep.subr.mxu0 0.0
    %7257 = vmatpush1.msra.mxu0 0.0
    %7258 = vmatprep.subr.mxu0 0.0
    %7259 = vmatpush1.msra.mxu0 0.0
    %7260 = vmatprep.subr.mxu0 0.0
    %7261 = vmatpush1.msra.mxu0 0.0
    %7262 = vmatprep.subr.mxu0 0.0
    %7263 = vmatpush1.msra.mxu0 0.0
    %7264 = vmatprep.subr.mxu0 0.0
    %7265 = vmatpush1.msra.mxu0 0.0
    %7266 = vmatprep.subr.mxu0 0.0
    %7267 = vmatpush1.msra.mxu0 0.0
    %7268 = vmatprep.subr.mxu0 0.0
    %7269 = vmatpush1.msra.mxu0 0.0
    %7270 = vmatprep.subr.mxu0 0.0
    %7271 = vmatpush1.msra.mxu0 0.0
    %7272 = vmatprep.subr.mxu0 0.0
    %7273 = vmatpush1.msra.mxu0 0.0
    %7274 = vmatprep.subr.mxu0 0.0
    %7275 = vmatpush1.msra.mxu0 0.0
    %7276 = vmatprep.subr.mxu0 0.0
    %7277 = vmatpush1.msra.mxu0 0.0
    %7278 = vmatprep.subr.mxu0 0.0
    %7279 = vmatpush1.msra.mxu0 0.0
    %7280 = vmatprep.subr.mxu0 0.0
    %7281 = vmatpush1.msra.mxu0 0.0
    %7282 = vmatprep.subr.mxu0 0.0
    %7283 = vmatpush1.msra.mxu0 0.0
    %7284 = vmatprep.subr.mxu0 0.0
    %7285 = vmatpush1.msra.mxu0 0.0
    %7286 = vmatprep.subr.mxu0 0.0
    %7287 = vmatpush1.msra.mxu0 0.0
    %7288 = vmatprep.subr.mxu0 0.0
    %7289 = vmatpush1.msra.mxu0 0.0
    %7290 = vmatprep.subr.mxu0 0.0
    %7291 = vmatpush1.msra.mxu0 0.0
    %7292 = vmatprep.subr.mxu0 0.0
    %7293 = vmatpush1.msra.mxu0 0.0
    %7294 = vmatprep.subr.mxu0 0.0
    %7295 = vmatpush1.msra.mxu0 0.0
    %7296 = vmatprep.subr.mxu0 0.0
    %7297 = vmatpush1.msra.mxu0 0.0
    %7298 = vmatprep.mubr.f32.mxu0 0.0
    %7299 = vmatmul.mubr.f32.gmra.mrb[0].mxu0 %v7232
    %v7300 = vpop.f32.mrb[0].mxu0
    %v7301 = vadd.f32 %v4890, %v7300
    %v7302 = vpop.f32.mrb[0].mxu0
    %7303 = vdwg.mxu0
    %v7305 = vsel %vm4891, %v4852, 0
    %7307 = vmatprep.subr.mxu0 0.0
    %7308 = vmatpush1.msra.mxu0 %v4883
    %7309 = vmatprep.subr.mxu0 0.0
    %7310 = vmatpush1.msra.mxu0 %v4884
    %7311 = vmatprep.subr.mxu0 0.0
    %7312 = vmatpush1.msra.mxu0 %v4896
    %7313 = vmatprep.subr.mxu0 0.0
    %7314 = vmatpush1.msra.mxu0 0.0
    %7315 = vmatprep.subr.mxu0 0.0
    %7316 = vmatpush1.msra.mxu0 0.0
    %7317 = vmatprep.subr.mxu0 0.0
    %7318 = vmatpush1.msra.mxu0 0.0
    %7319 = vmatprep.subr.mxu0 0.0
    %7320 = vmatpush1.msra.mxu0 0.0
    %7321 = vmatprep.subr.mxu0 0.0
    %7322 = vmatpush1.msra.mxu0 0.0
    %7323 = vmatprep.subr.mxu0 0.0
    %7324 = vmatpush1.msra.mxu0 0.0
    %7325 = vmatprep.subr.mxu0 0.0
    %7326 = vmatpush1.msra.mxu0 0.0
    %7327 = vmatprep.subr.mxu0 0.0
    %7328 = vmatpush1.msra.mxu0 0.0
    %7329 = vmatprep.subr.mxu0 0.0
    %7330 = vmatpush1.msra.mxu0 0.0
    %7331 = vmatprep.subr.mxu0 0.0
    %7332 = vmatpush1.msra.mxu0 0.0
    %7333 = vmatprep.subr.mxu0 0.0
    %7334 = vmatpush1.msra.mxu0 0.0
    %7335 = vmatprep.subr.mxu0 0.0
    %7336 = vmatpush1.msra.mxu0 0.0
    %7337 = vmatprep.subr.mxu0 0.0
    %7338 = vmatpush1.msra.mxu0 0.0
    %7339 = vmatprep.subr.mxu0 0.0
    %7340 = vmatpush1.msra.mxu0 0.0
    %7341 = vmatprep.subr.mxu0 0.0
    %7342 = vmatpush1.msra.mxu0 0.0
    %7343 = vmatprep.subr.mxu0 0.0
    %7344 = vmatpush1.msra.mxu0 0.0
    %7345 = vmatprep.subr.mxu0 0.0
    %7346 = vmatpush1.msra.mxu0 0.0
    %7347 = vmatprep.subr.mxu0 0.0
    %7348 = vmatpush1.msra.mxu0 0.0
    %7349 = vmatprep.subr.mxu0 0.0
    %7350 = vmatpush1.msra.mxu0 0.0
    %7351 = vmatprep.subr.mxu0 0.0
    %7352 = vmatpush1.msra.mxu0 0.0
    %7353 = vmatprep.subr.mxu0 0.0
    %7354 = vmatpush1.msra.mxu0 0.0
    %7355 = vmatprep.subr.mxu0 0.0
    %7356 = vmatpush1.msra.mxu0 0.0
    %7357 = vmatprep.subr.mxu0 0.0
    %7358 = vmatpush1.msra.mxu0 0.0
    %7359 = vmatprep.subr.mxu0 0.0
    %7360 = vmatpush1.msra.mxu0 0.0
    %7361 = vmatprep.subr.mxu0 0.0
    %7362 = vmatpush1.msra.mxu0 0.0
    %7363 = vmatprep.subr.mxu0 0.0
    %7364 = vmatpush1.msra.mxu0 0.0
    %7365 = vmatprep.subr.mxu0 0.0
    %7366 = vmatpush1.msra.mxu0 0.0
    %7367 = vmatprep.subr.mxu0 0.0
    %7368 = vmatpush1.msra.mxu0 0.0
    %7369 = vmatprep.subr.mxu0 0.0
    %7370 = vmatpush1.msra.mxu0 0.0
    %7371 = vmatprep.mubr.f32.mxu0 0.0
    %7372 = vmatmul.mubr.f32.gmra.mrb[0].mxu0 %v7305
    %v7373 = vpop.f32.mrb[0].mxu0
    %v7374 = vadd.f32 %v4890, %v7373
    %v7375 = vpop.f32.mrb[0].mxu0
    %7376 = vdwg.mxu0
    %v7378 = vsel %vm4891, %v4853, 0
    %7380 = vmatprep.subr.mxu0 0.0
    %7381 = vmatpush1.msra.mxu0 %v4883
    %7382 = vmatprep.subr.mxu0 0.0
    %7383 = vmatpush1.msra.mxu0 %v4884
    %7384 = vmatprep.subr.mxu0 0.0
    %7385 = vmatpush1.msra.mxu0 %v4896
    %7386 = vmatprep.subr.mxu0 0.0
    %7387 = vmatpush1.msra.mxu0 0.0
    %7388 = vmatprep.subr.mxu0 0.0
    %7389 = vmatpush1.msra.mxu0 0.0
    %7390 = vmatprep.subr.mxu0 0.0
    %7391 = vmatpush1.msra.mxu0 0.0
    %7392 = vmatprep.subr.mxu0 0.0
    %7393 = vmatpush1.msra.mxu0 0.0
    %7394 = vmatprep.subr.mxu0 0.0
    %7395 = vmatpush1.msra.mxu0 0.0
    %7396 = vmatprep.subr.mxu0 0.0
    %7397 = vmatpush1.msra.mxu0 0.0
    %7398 = vmatprep.subr.mxu0 0.0
    %7399 = vmatpush1.msra.mxu0 0.0
    %7400 = vmatprep.subr.mxu0 0.0
    %7401 = vmatpush1.msra.mxu0 0.0
    %7402 = vmatprep.subr.mxu0 0.0
    %7403 = vmatpush1.msra.mxu0 0.0
    %7404 = vmatprep.subr.mxu0 0.0
    %7405 = vmatpush1.msra.mxu0 0.0
    %7406 = vmatprep.subr.mxu0 0.0
    %7407 = vmatpush1.msra.mxu0 0.0
    %7408 = vmatprep.subr.mxu0 0.0
    %7409 = vmatpush1.msra.mxu0 0.0
    %7410 = vmatprep.subr.mxu0 0.0
    %7411 = vmatpush1.msra.mxu0 0.0
    %7412 = vmatprep.subr.mxu0 0.0
    %7413 = vmatpush1.msra.mxu0 0.0
    %7414 = vmatprep.subr.mxu0 0.0
    %7415 = vmatpush1.msra.mxu0 0.0
    %7416 = vmatprep.subr.mxu0 0.0
    %7417 = vmatpush1.msra.mxu0 0.0
    %7418 = vmatprep.subr.mxu0 0.0
    %7419 = vmatpush1.msra.mxu0 0.0
    %7420 = vmatprep.subr.mxu0 0.0
    %7421 = vmatpush1.msra.mxu0 0.0
    %7422 = vmatprep.subr.mxu0 0.0
    %7423 = vmatpush1.msra.mxu0 0.0
    %7424 = vmatprep.subr.mxu0 0.0
    %7425 = vmatpush1.msra.mxu0 0.0
    %7426 = vmatprep.subr.mxu0 0.0
    %7427 = vmatpush1.msra.mxu0 0.0
    %7428 = vmatprep.subr.mxu0 0.0
    %7429 = vmatpush1.msra.mxu0 0.0
    %7430 = vmatprep.subr.mxu0 0.0
    %7431 = vmatpush1.msra.mxu0 0.0
    %7432 = vmatprep.subr.mxu0 0.0
    %7433 = vmatpush1.msra.mxu0 0.0
    %7434 = vmatprep.subr.mxu0 0.0
    %7435 = vmatpush1.msra.mxu0 0.0
    %7436 = vmatprep.subr.mxu0 0.0
    %7437 = vmatpush1.msra.mxu0 0.0
    %7438 = vmatprep.subr.mxu0 0.0
    %7439 = vmatpush1.msra.mxu0 0.0
    %7440 = vmatprep.subr.mxu0 0.0
    %7441 = vmatpush1.msra.mxu0 0.0
    %7442 = vmatprep.subr.mxu0 0.0
    %7443 = vmatpush1.msra.mxu0 0.0
    %7444 = vmatprep.mubr.f32.mxu0 0.0
    %7445 = vmatmul.mubr.f32.gmra.mrb[0].mxu0 %v7378
    %v7446 = vpop.f32.mrb[0].mxu0
    %v7447 = vadd.f32 %v4890, %v7446
    %v7448 = vpop.f32.mrb[0].mxu0
    %7449 = vdwg.mxu0
    %v7451 = vsel %vm4891, %v4854, 0
    %7453 = vmatprep.subr.mxu0 0.0
    %7454 = vmatpush1.msra.mxu0 %v4883
    %7455 = vmatprep.subr.mxu0 0.0
    %7456 = vmatpush1.msra.mxu0 %v4884
    %7457 = vmatprep.subr.mxu0 0.0
    %7458 = vmatpush1.msra.mxu0 %v4896
    %7459 = vmatprep.subr.mxu0 0.0
    %7460 = vmatpush1.msra.mxu0 0.0
    %7461 = vmatprep.subr.mxu0 0.0
    %7462 = vmatpush1.msra.mxu0 0.0
    %7463 = vmatprep.subr.mxu0 0.0
    %7464 = vmatpush1.msra.mxu0 0.0
    %7465 = vmatprep.subr.mxu0 0.0
    %7466 = vmatpush1.msra.mxu0 0.0
    %7467 = vmatprep.subr.mxu0 0.0
    %7468 = vmatpush1.msra.mxu0 0.0
    %7469 = vmatprep.subr.mxu0 0.0
    %7470 = vmatpush1.msra.mxu0 0.0
    %7471 = vmatprep.subr.mxu0 0.0
    %7472 = vmatpush1.msra.mxu0 0.0
    %7473 = vmatprep.subr.mxu0 0.0
    %7474 = vmatpush1.msra.mxu0 0.0
    %7475 = vmatprep.subr.mxu0 0.0
    %7476 = vmatpush1.msra.mxu0 0.0
    %7477 = vmatprep.subr.mxu0 0.0
    %7478 = vmatpush1.msra.mxu0 0.0
    %7479 = vmatprep.subr.mxu0 0.0
    %7480 = vmatpush1.msra.mxu0 0.0
    %7481 = vmatprep.subr.mxu0 0.0
    %7482 = vmatpush1.msra.mxu0 0.0
    %7483 = vmatprep.subr.mxu0 0.0
    %7484 = vmatpush1.msra.mxu0 0.0
    %7485 = vmatprep.subr.mxu0 0.0
    %7486 = vmatpush1.msra.mxu0 0.0
    %7487 = vmatprep.subr.mxu0 0.0
    %7488 = vmatpush1.msra.mxu0 0.0
    %7489 = vmatprep.subr.mxu0 0.0
    %7490 = vmatpush1.msra.mxu0 0.0
    %7491 = vmatprep.subr.mxu0 0.0
    %7492 = vmatpush1.msra.mxu0 0.0
    %7493 = vmatprep.subr.mxu0 0.0
    %7494 = vmatpush1.msra.mxu0 0.0
    %7495 = vmatprep.subr.mxu0 0.0
    %7496 = vmatpush1.msra.mxu0 0.0
    %7497 = vmatprep.subr.mxu0 0.0
    %7498 = vmatpush1.msra.mxu0 0.0
    %7499 = vmatprep.subr.mxu0 0.0
    %7500 = vmatpush1.msra.mxu0 0.0
    %7501 = vmatprep.subr.mxu0 0.0
    %7502 = vmatpush1.msra.mxu0 0.0
    %7503 = vmatprep.subr.mxu0 0.0
    %7504 = vmatpush1.msra.mxu0 0.0
    %7505 = vmatprep.subr.mxu0 0.0
    %7506 = vmatpush1.msra.mxu0 0.0
    %7507 = vmatprep.subr.mxu0 0.0
    %7508 = vmatpush1.msra.mxu0 0.0
    %7509 = vmatprep.subr.mxu0 0.0
    %7510 = vmatpush1.msra.mxu0 0.0
    %7511 = vmatprep.subr.mxu0 0.0
    %7512 = vmatpush1.msra.mxu0 0.0
    %7513 = vmatprep.subr.mxu0 0.0
    %7514 = vmatpush1.msra.mxu0 0.0
    %7515 = vmatprep.subr.mxu0 0.0
    %7516 = vmatpush1.msra.mxu0 0.0
    %7517 = vmatprep.mubr.f32.mxu0 0.0
    %7518 = vmatmul.mubr.f32.gmra.mrb[0].mxu0 %v7451
    %v7519 = vpop.f32.mrb[0].mxu0
    %v7520 = vadd.f32 %v4890, %v7519
    %v7521 = vpop.f32.mrb[0].mxu0
    %7522 = vdwg.mxu0
    %v7524 = vsel %vm4891, %v4855, 0
    %7526 = vmatprep.subr.mxu0 0.0
    %7527 = vmatpush1.msra.mxu0 %v4883
    %7528 = vmatprep.subr.mxu0 0.0
    %7529 = vmatpush1.msra.mxu0 %v4884
    %7530 = vmatprep.subr.mxu0 0.0
    %7531 = vmatpush1.msra.mxu0 %v4896
    %7532 = vmatprep.subr.mxu0 0.0
    %7533 = vmatpush1.msra.mxu0 0.0
    %7534 = vmatprep.subr.mxu0 0.0
    %7535 = vmatpush1.msra.mxu0 0.0
    %7536 = vmatprep.subr.mxu0 0.0
    %7537 = vmatpush1.msra.mxu0 0.0
    %7538 = vmatprep.subr.mxu0 0.0
    %7539 = vmatpush1.msra.mxu0 0.0
    %7540 = vmatprep.subr.mxu0 0.0
    %7541 = vmatpush1.msra.mxu0 0.0
    %7542 = vmatprep.subr.mxu0 0.0
    %7543 = vmatpush1.msra.mxu0 0.0
    %7544 = vmatprep.subr.mxu0 0.0
    %7545 = vmatpush1.msra.mxu0 0.0
    %7546 = vmatprep.subr.mxu0 0.0
    %7547 = vmatpush1.msra.mxu0 0.0
    %7548 = vmatprep.subr.mxu0 0.0
    %7549 = vmatpush1.msra.mxu0 0.0
    %7550 = vmatprep.subr.mxu0 0.0
    %7551 = vmatpush1.msra.mxu0 0.0
    %7552 = vmatprep.subr.mxu0 0.0
    %7553 = vmatpush1.msra.mxu0 0.0
    %7554 = vmatprep.subr.mxu0 0.0
    %7555 = vmatpush1.msra.mxu0 0.0
    %7556 = vmatprep.subr.mxu0 0.0
    %7557 = vmatpush1.msra.mxu0 0.0
    %7558 = vmatprep.subr.mxu0 0.0
    %7559 = vmatpush1.msra.mxu0 0.0
    %7560 = vmatprep.subr.mxu0 0.0
    %7561 = vmatpush1.msra.mxu0 0.0
    %7562 = vmatprep.subr.mxu0 0.0
    %7563 = vmatpush1.msra.mxu0 0.0
    %7564 = vmatprep.subr.mxu0 0.0
    %7565 = vmatpush1.msra.mxu0 0.0
    %7566 = vmatprep.subr.mxu0 0.0
    %7567 = vmatpush1.msra.mxu0 0.0
    %7568 = vmatprep.subr.mxu0 0.0
    %7569 = vmatpush1.msra.mxu0 0.0
    %7570 = vmatprep.subr.mxu0 0.0
    %7571 = vmatpush1.msra.mxu0 0.0
    %7572 = vmatprep.subr.mxu0 0.0
    %7573 = vmatpush1.msra.mxu0 0.0
    %7574 = vmatprep.subr.mxu0 0.0
    %7575 = vmatpush1.msra.mxu0 0.0
    %7576 = vmatprep.subr.mxu0 0.0
    %7577 = vmatpush1.msra.mxu0 0.0
    %7578 = vmatprep.subr.mxu0 0.0
    %7579 = vmatpush1.msra.mxu0 0.0
    %7580 = vmatprep.subr.mxu0 0.0
    %7581 = vmatpush1.msra.mxu0 0.0
    %7582 = vmatprep.subr.mxu0 0.0
    %7583 = vmatpush1.msra.mxu0 0.0
    %7584 = vmatprep.subr.mxu0 0.0
    %7585 = vmatpush1.msra.mxu0 0.0
    %7586 = vmatprep.subr.mxu0 0.0
    %7587 = vmatpush1.msra.mxu0 0.0
    %7588 = vmatprep.subr.mxu0 0.0
    %7589 = vmatpush1.msra.mxu0 0.0
    %7590 = vmatprep.mubr.f32.mxu0 0.0
    %7591 = vmatmul.mubr.f32.gmra.mrb[0].mxu0 %v7524
    %v7592 = vpop.f32.mrb[0].mxu0
    %v7593 = vadd.f32 %v4890, %v7592
    %v7594 = vpop.f32.mrb[0].mxu0
    %7595 = vdwg.mxu0
    %v7597 = vsel %vm4891, %v4856, 0
    %7599 = vmatprep.subr.mxu0 0.0
    %7600 = vmatpush1.msra.mxu0 %v4883
    %7601 = vmatprep.subr.mxu0 0.0
    %7602 = vmatpush1.msra.mxu0 %v4884
    %7603 = vmatprep.subr.mxu0 0.0
    %7604 = vmatpush1.msra.mxu0 %v4896
    %7605 = vmatprep.subr.mxu0 0.0
    %7606 = vmatpush1.msra.mxu0 0.0
    %7607 = vmatprep.subr.mxu0 0.0
    %7608 = vmatpush1.msra.mxu0 0.0
    %7609 = vmatprep.subr.mxu0 0.0
    %7610 = vmatpush1.msra.mxu0 0.0
    %7611 = vmatprep.subr.mxu0 0.0
    %7612 = vmatpush1.msra.mxu0 0.0
    %7613 = vmatprep.subr.mxu0 0.0
    %7614 = vmatpush1.msra.mxu0 0.0
    %7615 = vmatprep.subr.mxu0 0.0
    %7616 = vmatpush1.msra.mxu0 0.0
    %7617 = vmatprep.subr.mxu0 0.0
    %7618 = vmatpush1.msra.mxu0 0.0
    %7619 = vmatprep.subr.mxu0 0.0
    %7620 = vmatpush1.msra.mxu0 0.0
    %7621 = vmatprep.subr.mxu0 0.0
    %7622 = vmatpush1.msra.mxu0 0.0
    %7623 = vmatprep.subr.mxu0 0.0
    %7624 = vmatpush1.msra.mxu0 0.0
    %7625 = vmatprep.subr.mxu0 0.0
    %7626 = vmatpush1.msra.mxu0 0.0
    %7627 = vmatprep.subr.mxu0 0.0
    %7628 = vmatpush1.msra.mxu0 0.0
    %7629 = vmatprep.subr.mxu0 0.0
    %7630 = vmatpush1.msra.mxu0 0.0
    %7631 = vmatprep.subr.mxu0 0.0
    %7632 = vmatpush1.msra.mxu0 0.0
    %7633 = vmatprep.subr.mxu0 0.0
    %7634 = vmatpush1.msra.mxu0 0.0
    %7635 = vmatprep.subr.mxu0 0.0
    %7636 = vmatpush1.msra.mxu0 0.0
    %7637 = vmatprep.subr.mxu0 0.0
    %7638 = vmatpush1.msra.mxu0 0.0
    %7639 = vmatprep.subr.mxu0 0.0
    %7640 = vmatpush1.msra.mxu0 0.0
    %7641 = vmatprep.subr.mxu0 0.0
    %7642 = vmatpush1.msra.mxu0 0.0
    %7643 = vmatprep.subr.mxu0 0.0
    %7644 = vmatpush1.msra.mxu0 0.0
    %7645 = vmatprep.subr.mxu0 0.0
    %7646 = vmatpush1.msra.mxu0 0.0
    %7647 = vmatprep.subr.mxu0 0.0
    %7648 = vmatpush1.msra.mxu0 0.0
    %7649 = vmatprep.subr.mxu0 0.0
    %7650 = vmatpush1.msra.mxu0 0.0
    %7651 = vmatprep.subr.mxu0 0.0
    %7652 = vmatpush1.msra.mxu0 0.0
    %7653 = vmatprep.subr.mxu0 0.0
    %7654 = vmatpush1.msra.mxu0 0.0
    %7655 = vmatprep.subr.mxu0 0.0
    %7656 = vmatpush1.msra.mxu0 0.0
    %7657 = vmatprep.subr.mxu0 0.0
    %7658 = vmatpush1.msra.mxu0 0.0
    %7659 = vmatprep.subr.mxu0 0.0
    %7660 = vmatpush1.msra.mxu0 0.0
    %7661 = vmatprep.subr.mxu0 0.0
    %7662 = vmatpush1.msra.mxu0 0.0
    %7663 = vmatprep.mubr.f32.mxu0 0.0
    %7664 = vmatmul.mubr.f32.gmra.mrb[0].mxu0 %v7597
    %v7665 = vpop.f32.mrb[0].mxu0
    %v7666 = vadd.f32 %v4890, %v7665
    %v7667 = vpop.f32.mrb[0].mxu0
    %7668 = vdwg.mxu0
    %v7670 = vsel %vm4891, %v4857, 0
    %7672 = vmatprep.subr.mxu0 0.0
    %7673 = vmatpush1.msra.mxu0 %v4883
    %7674 = vmatprep.subr.mxu0 0.0
    %7675 = vmatpush1.msra.mxu0 %v4884
    %7676 = vmatprep.subr.mxu0 0.0
    %7677 = vmatpush1.msra.mxu0 %v4896
    %7678 = vmatprep.subr.mxu0 0.0
    %7679 = vmatpush1.msra.mxu0 0.0
    %7680 = vmatprep.subr.mxu0 0.0
    %7681 = vmatpush1.msra.mxu0 0.0
    %7682 = vmatprep.subr.mxu0 0.0
    %7683 = vmatpush1.msra.mxu0 0.0
    %7684 = vmatprep.subr.mxu0 0.0
    %7685 = vmatpush1.msra.mxu0 0.0
    %7686 = vmatprep.subr.mxu0 0.0
    %7687 = vmatpush1.msra.mxu0 0.0
    %7688 = vmatprep.subr.mxu0 0.0
    %7689 = vmatpush1.msra.mxu0 0.0
    %7690 = vmatprep.subr.mxu0 0.0
    %7691 = vmatpush1.msra.mxu0 0.0
    %7692 = vmatprep.subr.mxu0 0.0
    %7693 = vmatpush1.msra.mxu0 0.0
    %7694 = vmatprep.subr.mxu0 0.0
    %7695 = vmatpush1.msra.mxu0 0.0
    %7696 = vmatprep.subr.mxu0 0.0
    %7697 = vmatpush1.msra.mxu0 0.0
    %7698 = vmatprep.subr.mxu0 0.0
    %7699 = vmatpush1.msra.mxu0 0.0
    %7700 = vmatprep.subr.mxu0 0.0
    %7701 = vmatpush1.msra.mxu0 0.0
    %7702 = vmatprep.subr.mxu0 0.0
    %7703 = vmatpush1.msra.mxu0 0.0
    %7704 = vmatprep.subr.mxu0 0.0
    %7705 = vmatpush1.msra.mxu0 0.0
    %7706 = vmatprep.subr.mxu0 0.0
    %7707 = vmatpush1.msra.mxu0 0.0
    %7708 = vmatprep.subr.mxu0 0.0
    %7709 = vmatpush1.msra.mxu0 0.0
    %7710 = vmatprep.subr.mxu0 0.0
    %7711 = vmatpush1.msra.mxu0 0.0
    %7712 = vmatprep.subr.mxu0 0.0
    %7713 = vmatpush1.msra.mxu0 0.0
    %7714 = vmatprep.subr.mxu0 0.0
    %7715 = vmatpush1.msra.mxu0 0.0
    %7716 = vmatprep.subr.mxu0 0.0
    %7717 = vmatpush1.msra.mxu0 0.0
    %7718 = vmatprep.subr.mxu0 0.0
    %7719 = vmatpush1.msra.mxu0 0.0
    %7720 = vmatprep.subr.mxu0 0.0
    %7721 = vmatpush1.msra.mxu0 0.0
    %7722 = vmatprep.subr.mxu0 0.0
    %7723 = vmatpush1.msra.mxu0 0.0
    %7724 = vmatprep.subr.mxu0 0.0
    %7725 = vmatpush1.msra.mxu0 0.0
    %7726 = vmatprep.subr.mxu0 0.0
    %7727 = vmatpush1.msra.mxu0 0.0
    %7728 = vmatprep.subr.mxu0 0.0
    %7729 = vmatpush1.msra.mxu0 0.0
    %7730 = vmatprep.subr.mxu0 0.0
    %7731 = vmatpush1.msra.mxu0 0.0
    %7732 = vmatprep.subr.mxu0 0.0
    %7733 = vmatpush1.msra.mxu0 0.0
    %7734 = vmatprep.subr.mxu0 0.0
    %7735 = vmatpush1.msra.mxu0 0.0
    %7736 = vmatprep.mubr.f32.mxu0 0.0
    %7737 = vmatmul.mubr.f32.gmra.mrb[0].mxu0 %v7670
    %v7738 = vpop.f32.mrb[0].mxu0
    %v7739 = vadd.f32 %v4890, %v7738
    %v7740 = vpop.f32.mrb[0].mxu0
    %7741 = vdwg.mxu0
    %v7743 = vsel %vm4891, %v4858, 0
    %7745 = vmatprep.subr.mxu0 0.0
    %7746 = vmatpush1.msra.mxu0 %v4883
    %7747 = vmatprep.subr.mxu0 0.0
    %7748 = vmatpush1.msra.mxu0 %v4884
    %7749 = vmatprep.subr.mxu0 0.0
    %7750 = vmatpush1.msra.mxu0 %v4896
    %7751 = vmatprep.subr.mxu0 0.0
    %7752 = vmatpush1.msra.mxu0 0.0
    %7753 = vmatprep.subr.mxu0 0.0
    %7754 = vmatpush1.msra.mxu0 0.0
    %7755 = vmatprep.subr.mxu0 0.0
    %7756 = vmatpush1.msra.mxu0 0.0
    %7757 = vmatprep.subr.mxu0 0.0
    %7758 = vmatpush1.msra.mxu0 0.0
    %7759 = vmatprep.subr.mxu0 0.0
    %7760 = vmatpush1.msra.mxu0 0.0
    %7761 = vmatprep.subr.mxu0 0.0
    %7762 = vmatpush1.msra.mxu0 0.0
    %7763 = vmatprep.subr.mxu0 0.0
    %7764 = vmatpush1.msra.mxu0 0.0
    %7765 = vmatprep.subr.mxu0 0.0
    %7766 = vmatpush1.msra.mxu0 0.0
    %7767 = vmatprep.subr.mxu0 0.0
    %7768 = vmatpush1.msra.mxu0 0.0
    %7769 = vmatprep.subr.mxu0 0.0
    %7770 = vmatpush1.msra.mxu0 0.0
    %7771 = vmatprep.subr.mxu0 0.0
    %7772 = vmatpush1.msra.mxu0 0.0
    %7773 = vmatprep.subr.mxu0 0.0
    %7774 = vmatpush1.msra.mxu0 0.0
    %7775 = vmatprep.subr.mxu0 0.0
    %7776 = vmatpush1.msra.mxu0 0.0
    %7777 = vmatprep.subr.mxu0 0.0
    %7778 = vmatpush1.msra.mxu0 0.0
    %7779 = vmatprep.subr.mxu0 0.0
    %7780 = vmatpush1.msra.mxu0 0.0
    %7781 = vmatprep.subr.mxu0 0.0
    %7782 = vmatpush1.msra.mxu0 0.0
    %7783 = vmatprep.subr.mxu0 0.0
    %7784 = vmatpush1.msra.mxu0 0.0
    %7785 = vmatprep.subr.mxu0 0.0
    %7786 = vmatpush1.msra.mxu0 0.0
    %7787 = vmatprep.subr.mxu0 0.0
    %7788 = vmatpush1.msra.mxu0 0.0
    %7789 = vmatprep.subr.mxu0 0.0
    %7790 = vmatpush1.msra.mxu0 0.0
    %7791 = vmatprep.subr.mxu0 0.0
    %7792 = vmatpush1.msra.mxu0 0.0
    %7793 = vmatprep.subr.mxu0 0.0
    %7794 = vmatpush1.msra.mxu0 0.0
    %7795 = vmatprep.subr.mxu0 0.0
    %7796 = vmatpush1.msra.mxu0 0.0
    %7797 = vmatprep.subr.mxu0 0.0
    %7798 = vmatpush1.msra.mxu0 0.0
    %7799 = vmatprep.subr.mxu0 0.0
    %7800 = vmatpush1.msra.mxu0 0.0
    %7801 = vmatprep.subr.mxu0 0.0
    %7802 = vmatpush1.msra.mxu0 0.0
    %7803 = vmatprep.subr.mxu0 0.0
    %7804 = vmatpush1.msra.mxu0 0.0
    %7805 = vmatprep.subr.mxu0 0.0
    %7806 = vmatpush1.msra.mxu0 0.0
    %7807 = vmatprep.subr.mxu0 0.0
    %7808 = vmatpush1.msra.mxu0 0.0
    %7809 = vmatprep.mubr.f32.mxu0 0.0
    %7810 = vmatmul.mubr.f32.gmra.mrb[0].mxu0 %v7743
    %v7811 = vpop.f32.mrb[0].mxu0
    %v7812 = vadd.f32 %v4890, %v7811
    %v7813 = vpop.f32.mrb[0].mxu0
    %7814 = vdwg.mxu0
    %v7816 = vsel %vm4891, %v4859, 0
    %7818 = vmatprep.subr.mxu0 0.0
    %7819 = vmatpush1.msra.mxu0 %v4883
    %7820 = vmatprep.subr.mxu0 0.0
    %7821 = vmatpush1.msra.mxu0 %v4884
    %7822 = vmatprep.subr.mxu0 0.0
    %7823 = vmatpush1.msra.mxu0 %v4896
    %7824 = vmatprep.subr.mxu0 0.0
    %7825 = vmatpush1.msra.mxu0 0.0
    %7826 = vmatprep.subr.mxu0 0.0
    %7827 = vmatpush1.msra.mxu0 0.0
    %7828 = vmatprep.subr.mxu0 0.0
    %7829 = vmatpush1.msra.mxu0 0.0
    %7830 = vmatprep.subr.mxu0 0.0
    %7831 = vmatpush1.msra.mxu0 0.0
    %7832 = vmatprep.subr.mxu0 0.0
    %7833 = vmatpush1.msra.mxu0 0.0
    %7834 = vmatprep.subr.mxu0 0.0
    %7835 = vmatpush1.msra.mxu0 0.0
    %7836 = vmatprep.subr.mxu0 0.0
    %7837 = vmatpush1.msra.mxu0 0.0
    %7838 = vmatprep.subr.mxu0 0.0
    %7839 = vmatpush1.msra.mxu0 0.0
    %7840 = vmatprep.subr.mxu0 0.0
    %7841 = vmatpush1.msra.mxu0 0.0
    %7842 = vmatprep.subr.mxu0 0.0
    %7843 = vmatpush1.msra.mxu0 0.0
    %7844 = vmatprep.subr.mxu0 0.0
    %7845 = vmatpush1.msra.mxu0 0.0
    %7846 = vmatprep.subr.mxu0 0.0
    %7847 = vmatpush1.msra.mxu0 0.0
    %7848 = vmatprep.subr.mxu0 0.0
    %7849 = vmatpush1.msra.mxu0 0.0
    %7850 = vmatprep.subr.mxu0 0.0
    %7851 = vmatpush1.msra.mxu0 0.0
    %7852 = vmatprep.subr.mxu0 0.0
    %7853 = vmatpush1.msra.mxu0 0.0
    %7854 = vmatprep.subr.mxu0 0.0
    %7855 = vmatpush1.msra.mxu0 0.0
    %7856 = vmatprep.subr.mxu0 0.0
    %7857 = vmatpush1.msra.mxu0 0.0
    %7858 = vmatprep.subr.mxu0 0.0
    %7859 = vmatpush1.msra.mxu0 0.0
    %7860 = vmatprep.subr.mxu0 0.0
    %7861 = vmatpush1.msra.mxu0 0.0
    %7862 = vmatprep.subr.mxu0 0.0
    %7863 = vmatpush1.msra.mxu0 0.0
    %7864 = vmatprep.subr.mxu0 0.0
    %7865 = vmatpush1.msra.mxu0 0.0
    %7866 = vmatprep.subr.mxu0 0.0
    %7867 = vmatpush1.msra.mxu0 0.0
    %7868 = vmatprep.subr.mxu0 0.0
    %7869 = vmatpush1.msra.mxu0 0.0
    %7870 = vmatprep.subr.mxu0 0.0
    %7871 = vmatpush1.msra.mxu0 0.0
    %7872 = vmatprep.subr.mxu0 0.0
    %7873 = vmatpush1.msra.mxu0 0.0
    %7874 = vmatprep.subr.mxu0 0.0
    %7875 = vmatpush1.msra.mxu0 0.0
    %7876 = vmatprep.subr.mxu0 0.0
    %7877 = vmatpush1.msra.mxu0 0.0
    %7878 = vmatprep.subr.mxu0 0.0
    %7879 = vmatpush1.msra.mxu0 0.0
    %7880 = vmatprep.subr.mxu0 0.0
    %7881 = vmatpush1.msra.mxu0 0.0
    %7882 = vmatprep.mubr.f32.mxu0 0.0
    %7883 = vmatmul.mubr.f32.gmra.mrb[0].mxu0 %v7816
    %v7884 = vpop.f32.mrb[0].mxu0
    %v7885 = vadd.f32 %v4890, %v7884
    %v7886 = vpop.f32.mrb[0].mxu0
    %7887 = vdwg.mxu0
    %v7889 = vsel %vm4891, %v4860, 0
    %7891 = vmatprep.subr.mxu0 0.0
    %7892 = vmatpush1.msra.mxu0 %v4883
    %7893 = vmatprep.subr.mxu0 0.0
    %7894 = vmatpush1.msra.mxu0 %v4884
    %7895 = vmatprep.subr.mxu0 0.0
    %7896 = vmatpush1.msra.mxu0 %v4896
    %7897 = vmatprep.subr.mxu0 0.0
    %7898 = vmatpush1.msra.mxu0 0.0
    %7899 = vmatprep.subr.mxu0 0.0
    %7900 = vmatpush1.msra.mxu0 0.0
    %7901 = vmatprep.subr.mxu0 0.0
    %7902 = vmatpush1.msra.mxu0 0.0
    %7903 = vmatprep.subr.mxu0 0.0
    %7904 = vmatpush1.msra.mxu0 0.0
    %7905 = vmatprep.subr.mxu0 0.0
    %7906 = vmatpush1.msra.mxu0 0.0
    %7907 = vmatprep.subr.mxu0 0.0
    %7908 = vmatpush1.msra.mxu0 0.0
    %7909 = vmatprep.subr.mxu0 0.0
    %7910 = vmatpush1.msra.mxu0 0.0
    %7911 = vmatprep.subr.mxu0 0.0
    %7912 = vmatpush1.msra.mxu0 0.0
    %7913 = vmatprep.subr.mxu0 0.0
    %7914 = vmatpush1.msra.mxu0 0.0
    %7915 = vmatprep.subr.mxu0 0.0
    %7916 = vmatpush1.msra.mxu0 0.0
    %7917 = vmatprep.subr.mxu0 0.0
    %7918 = vmatpush1.msra.mxu0 0.0
    %7919 = vmatprep.subr.mxu0 0.0
    %7920 = vmatpush1.msra.mxu0 0.0
    %7921 = vmatprep.subr.mxu0 0.0
    %7922 = vmatpush1.msra.mxu0 0.0
    %7923 = vmatprep.subr.mxu0 0.0
    %7924 = vmatpush1.msra.mxu0 0.0
    %7925 = vmatprep.subr.mxu0 0.0
    %7926 = vmatpush1.msra.mxu0 0.0
    %7927 = vmatprep.subr.mxu0 0.0
    %7928 = vmatpush1.msra.mxu0 0.0
    %7929 = vmatprep.subr.mxu0 0.0
    %7930 = vmatpush1.msra.mxu0 0.0
    %7931 = vmatprep.subr.mxu0 0.0
    %7932 = vmatpush1.msra.mxu0 0.0
    %7933 = vmatprep.subr.mxu0 0.0
    %7934 = vmatpush1.msra.mxu0 0.0
    %7935 = vmatprep.subr.mxu0 0.0
    %7936 = vmatpush1.msra.mxu0 0.0
    %7937 = vmatprep.subr.mxu0 0.0
    %7938 = vmatpush1.msra.mxu0 0.0
    %7939 = vmatprep.subr.mxu0 0.0
    %7940 = vmatpush1.msra.mxu0 0.0
    %7941 = vmatprep.subr.mxu0 0.0
    %7942 = vmatpush1.msra.mxu0 0.0
    %7943 = vmatprep.subr.mxu0 0.0
    %7944 = vmatpush1.msra.mxu0 0.0
    %7945 = vmatprep.subr.mxu0 0.0
    %7946 = vmatpush1.msra.mxu0 0.0
    %7947 = vmatprep.subr.mxu0 0.0
    %7948 = vmatpush1.msra.mxu0 0.0
    %7949 = vmatprep.subr.mxu0 0.0
    %7950 = vmatpush1.msra.mxu0 0.0
    %7951 = vmatprep.subr.mxu0 0.0
    %7952 = vmatpush1.msra.mxu0 0.0
    %7953 = vmatprep.subr.mxu0 0.0
    %7954 = vmatpush1.msra.mxu0 0.0
    %7955 = vmatprep.mubr.f32.mxu0 0.0
    %7956 = vmatmul.mubr.f32.gmra.mrb[0].mxu0 %v7889
    %v7957 = vpop.f32.mrb[0].mxu0
    %v7958 = vadd.f32 %v4890, %v7957
    %v7959 = vpop.f32.mrb[0].mxu0
    %7960 = vdwg.mxu0
    %v7962 = vsel %vm4891, %v4861, 0
    %7964 = vmatprep.subr.mxu0 0.0
    %7965 = vmatpush1.msra.mxu0 %v4883
    %7966 = vmatprep.subr.mxu0 0.0
    %7967 = vmatpush1.msra.mxu0 %v4884
    %7968 = vmatprep.subr.mxu0 0.0
    %7969 = vmatpush1.msra.mxu0 %v4896
    %7970 = vmatprep.subr.mxu0 0.0
    %7971 = vmatpush1.msra.mxu0 0.0
    %7972 = vmatprep.subr.mxu0 0.0
    %7973 = vmatpush1.msra.mxu0 0.0
    %7974 = vmatprep.subr.mxu0 0.0
    %7975 = vmatpush1.msra.mxu0 0.0
    %7976 = vmatprep.subr.mxu0 0.0
    %7977 = vmatpush1.msra.mxu0 0.0
    %7978 = vmatprep.subr.mxu0 0.0
    %7979 = vmatpush1.msra.mxu0 0.0
    %7980 = vmatprep.subr.mxu0 0.0
    %7981 = vmatpush1.msra.mxu0 0.0
    %7982 = vmatprep.subr.mxu0 0.0
    %7983 = vmatpush1.msra.mxu0 0.0
    %7984 = vmatprep.subr.mxu0 0.0
    %7985 = vmatpush1.msra.mxu0 0.0
    %7986 = vmatprep.subr.mxu0 0.0
    %7987 = vmatpush1.msra.mxu0 0.0
    %7988 = vmatprep.subr.mxu0 0.0
    %7989 = vmatpush1.msra.mxu0 0.0
    %7990 = vmatprep.subr.mxu0 0.0
    %7991 = vmatpush1.msra.mxu0 0.0
    %7992 = vmatprep.subr.mxu0 0.0
    %7993 = vmatpush1.msra.mxu0 0.0
    %7994 = vmatprep.subr.mxu0 0.0
    %7995 = vmatpush1.msra.mxu0 0.0
    %7996 = vmatprep.subr.mxu0 0.0
    %7997 = vmatpush1.msra.mxu0 0.0
    %7998 = vmatprep.subr.mxu0 0.0
    %7999 = vmatpush1.msra.mxu0 0.0
    %8000 = vmatprep.subr.mxu0 0.0
    %8001 = vmatpush1.msra.mxu0 0.0
    %8002 = vmatprep.subr.mxu0 0.0
    %8003 = vmatpush1.msra.mxu0 0.0
    %8004 = vmatprep.subr.mxu0 0.0
    %8005 = vmatpush1.msra.mxu0 0.0
    %8006 = vmatprep.subr.mxu0 0.0
    %8007 = vmatpush1.msra.mxu0 0.0
    %8008 = vmatprep.subr.mxu0 0.0
    %8009 = vmatpush1.msra.mxu0 0.0
    %8010 = vmatprep.subr.mxu0 0.0
    %8011 = vmatpush1.msra.mxu0 0.0
    %8012 = vmatprep.subr.mxu0 0.0
    %8013 = vmatpush1.msra.mxu0 0.0
    %8014 = vmatprep.subr.mxu0 0.0
    %8015 = vmatpush1.msra.mxu0 0.0
    %8016 = vmatprep.subr.mxu0 0.0
    %8017 = vmatpush1.msra.mxu0 0.0
    %8018 = vmatprep.subr.mxu0 0.0
    %8019 = vmatpush1.msra.mxu0 0.0
    %8020 = vmatprep.subr.mxu0 0.0
    %8021 = vmatpush1.msra.mxu0 0.0
    %8022 = vmatprep.subr.mxu0 0.0
    %8023 = vmatpush1.msra.mxu0 0.0
    %8024 = vmatprep.subr.mxu0 0.0
    %8025 = vmatpush1.msra.mxu0 0.0
    %8026 = vmatprep.subr.mxu0 0.0
    %8027 = vmatpush1.msra.mxu0 0.0
    %8028 = vmatprep.mubr.f32.mxu0 0.0
    %8029 = vmatmul.mubr.f32.gmra.mrb[0].mxu0 %v7962
    %v8030 = vpop.f32.mrb[0].mxu0
    %v8031 = vadd.f32 %v4890, %v8030
    %v8032 = vpop.f32.mrb[0].mxu0
    %8033 = vdwg.mxu0
    %v8035 = vsel %vm4891, %v4862, 0
    %8037 = vmatprep.subr.mxu0 0.0
    %8038 = vmatpush1.msra.mxu0 %v4883
    %8039 = vmatprep.subr.mxu0 0.0
    %8040 = vmatpush1.msra.mxu0 %v4884
    %8041 = vmatprep.subr.mxu0 0.0
    %8042 = vmatpush1.msra.mxu0 %v4896
    %8043 = vmatprep.subr.mxu0 0.0
    %8044 = vmatpush1.msra.mxu0 0.0
    %8045 = vmatprep.subr.mxu0 0.0
    %8046 = vmatpush1.msra.mxu0 0.0
    %8047 = vmatprep.subr.mxu0 0.0
    %8048 = vmatpush1.msra.mxu0 0.0
    %8049 = vmatprep.subr.mxu0 0.0
    %8050 = vmatpush1.msra.mxu0 0.0
    %8051 = vmatprep.subr.mxu0 0.0
    %8052 = vmatpush1.msra.mxu0 0.0
    %8053 = vmatprep.subr.mxu0 0.0
    %8054 = vmatpush1.msra.mxu0 0.0
    %8055 = vmatprep.subr.mxu0 0.0
    %8056 = vmatpush1.msra.mxu0 0.0
    %8057 = vmatprep.subr.mxu0 0.0
    %8058 = vmatpush1.msra.mxu0 0.0
    %8059 = vmatprep.subr.mxu0 0.0
    %8060 = vmatpush1.msra.mxu0 0.0
    %8061 = vmatprep.subr.mxu0 0.0
    %8062 = vmatpush1.msra.mxu0 0.0
    %8063 = vmatprep.subr.mxu0 0.0
    %8064 = vmatpush1.msra.mxu0 0.0
    %8065 = vmatprep.subr.mxu0 0.0
    %8066 = vmatpush1.msra.mxu0 0.0
    %8067 = vmatprep.subr.mxu0 0.0
    %8068 = vmatpush1.msra.mxu0 0.0
    %8069 = vmatprep.subr.mxu0 0.0
    %8070 = vmatpush1.msra.mxu0 0.0
    %8071 = vmatprep.subr.mxu0 0.0
    %8072 = vmatpush1.msra.mxu0 0.0
    %8073 = vmatprep.subr.mxu0 0.0
    %8074 = vmatpush1.msra.mxu0 0.0
    %8075 = vmatprep.subr.mxu0 0.0
    %8076 = vmatpush1.msra.mxu0 0.0
    %8077 = vmatprep.subr.mxu0 0.0
    %8078 = vmatpush1.msra.mxu0 0.0
    %8079 = vmatprep.subr.mxu0 0.0
    %8080 = vmatpush1.msra.mxu0 0.0
    %8081 = vmatprep.subr.mxu0 0.0
    %8082 = vmatpush1.msra.mxu0 0.0
    %8083 = vmatprep.subr.mxu0 0.0
    %8084 = vmatpush1.msra.mxu0 0.0
    %8085 = vmatprep.subr.mxu0 0.0
    %8086 = vmatpush1.msra.mxu0 0.0
    %8087 = vmatprep.subr.mxu0 0.0
    %8088 = vmatpush1.msra.mxu0 0.0
    %8089 = vmatprep.subr.mxu0 0.0
    %8090 = vmatpush1.msra.mxu0 0.0
    %8091 = vmatprep.subr.mxu0 0.0
    %8092 = vmatpush1.msra.mxu0 0.0
    %8093 = vmatprep.subr.mxu0 0.0
    %8094 = vmatpush1.msra.mxu0 0.0
    %8095 = vmatprep.subr.mxu0 0.0
    %8096 = vmatpush1.msra.mxu0 0.0
    %8097 = vmatprep.subr.mxu0 0.0
    %8098 = vmatpush1.msra.mxu0 0.0
    %8099 = vmatprep.subr.mxu0 0.0
    %8100 = vmatpush1.msra.mxu0 0.0
    %8101 = vmatprep.mubr.f32.mxu0 0.0
    %8102 = vmatmul.mubr.f32.gmra.mrb[0].mxu0 %v8035
    %v8103 = vpop.f32.mrb[0].mxu0
    %v8104 = vadd.f32 %v4890, %v8103
    %v8105 = vpop.f32.mrb[0].mxu0
    %8106 = vdwg.mxu0
    %v8108 = vsel %vm4891, %v4863, 0
    %8110 = vmatprep.subr.mxu0 0.0
    %8111 = vmatpush1.msra.mxu0 %v4883
    %8112 = vmatprep.subr.mxu0 0.0
    %8113 = vmatpush1.msra.mxu0 %v4884
    %8114 = vmatprep.subr.mxu0 0.0
    %8115 = vmatpush1.msra.mxu0 %v4896
    %8116 = vmatprep.subr.mxu0 0.0
    %8117 = vmatpush1.msra.mxu0 0.0
    %8118 = vmatprep.subr.mxu0 0.0
    %8119 = vmatpush1.msra.mxu0 0.0
    %8120 = vmatprep.subr.mxu0 0.0
    %8121 = vmatpush1.msra.mxu0 0.0
    %8122 = vmatprep.subr.mxu0 0.0
    %8123 = vmatpush1.msra.mxu0 0.0
    %8124 = vmatprep.subr.mxu0 0.0
    %8125 = vmatpush1.msra.mxu0 0.0
    %8126 = vmatprep.subr.mxu0 0.0
    %8127 = vmatpush1.msra.mxu0 0.0
    %8128 = vmatprep.subr.mxu0 0.0
    %8129 = vmatpush1.msra.mxu0 0.0
    %8130 = vmatprep.subr.mxu0 0.0
    %8131 = vmatpush1.msra.mxu0 0.0
    %8132 = vmatprep.subr.mxu0 0.0
    %8133 = vmatpush1.msra.mxu0 0.0
    %8134 = vmatprep.subr.mxu0 0.0
    %8135 = vmatpush1.msra.mxu0 0.0
    %8136 = vmatprep.subr.mxu0 0.0
    %8137 = vmatpush1.msra.mxu0 0.0
    %8138 = vmatprep.subr.mxu0 0.0
    %8139 = vmatpush1.msra.mxu0 0.0
    %8140 = vmatprep.subr.mxu0 0.0
    %8141 = vmatpush1.msra.mxu0 0.0
    %8142 = vmatprep.subr.mxu0 0.0
    %8143 = vmatpush1.msra.mxu0 0.0
    %8144 = vmatprep.subr.mxu0 0.0
    %8145 = vmatpush1.msra.mxu0 0.0
    %8146 = vmatprep.subr.mxu0 0.0
    %8147 = vmatpush1.msra.mxu0 0.0
    %8148 = vmatprep.subr.mxu0 0.0
    %8149 = vmatpush1.msra.mxu0 0.0
    %8150 = vmatprep.subr.mxu0 0.0
    %8151 = vmatpush1.msra.mxu0 0.0
    %8152 = vmatprep.subr.mxu0 0.0
    %8153 = vmatpush1.msra.mxu0 0.0
    %8154 = vmatprep.subr.mxu0 0.0
    %8155 = vmatpush1.msra.mxu0 0.0
    %8156 = vmatprep.subr.mxu0 0.0
    %8157 = vmatpush1.msra.mxu0 0.0
    %8158 = vmatprep.subr.mxu0 0.0
    %8159 = vmatpush1.msra.mxu0 0.0
    %8160 = vmatprep.subr.mxu0 0.0
    %8161 = vmatpush1.msra.mxu0 0.0
    %8162 = vmatprep.subr.mxu0 0.0
    %8163 = vmatpush1.msra.mxu0 0.0
    %8164 = vmatprep.subr.mxu0 0.0
    %8165 = vmatpush1.msra.mxu0 0.0
    %8166 = vmatprep.subr.mxu0 0.0
    %8167 = vmatpush1.msra.mxu0 0.0
    %8168 = vmatprep.subr.mxu0 0.0
    %8169 = vmatpush1.msra.mxu0 0.0
    %8170 = vmatprep.subr.mxu0 0.0
    %8171 = vmatpush1.msra.mxu0 0.0
    %8172 = vmatprep.subr.mxu0 0.0
    %8173 = vmatpush1.msra.mxu0 0.0
    %8174 = vmatprep.mubr.f32.mxu0 0.0
    %8175 = vmatmul.mubr.f32.gmra.mrb[0].mxu0 %v8108
    %v8176 = vpop.f32.mrb[0].mxu0
    %v8177 = vadd.f32 %v4890, %v8176
    %v8178 = vpop.f32.mrb[0].mxu0
    %8179 = vdwg.mxu0
    %v8181 = vsel %vm4891, %v4864, 0
    %8183 = vmatprep.subr.mxu0 0.0
    %8184 = vmatpush1.msra.mxu0 %v4883
    %8185 = vmatprep.subr.mxu0 0.0
    %8186 = vmatpush1.msra.mxu0 %v4884
    %8187 = vmatprep.subr.mxu0 0.0
    %8188 = vmatpush1.msra.mxu0 %v4896
    %8189 = vmatprep.subr.mxu0 0.0
    %8190 = vmatpush1.msra.mxu0 0.0
    %8191 = vmatprep.subr.mxu0 0.0
    %8192 = vmatpush1.msra.mxu0 0.0
    %8193 = vmatprep.subr.mxu0 0.0
    %8194 = vmatpush1.msra.mxu0 0.0
    %8195 = vmatprep.subr.mxu0 0.0
    %8196 = vmatpush1.msra.mxu0 0.0
    %8197 = vmatprep.subr.mxu0 0.0
    %8198 = vmatpush1.msra.mxu0 0.0
    %8199 = vmatprep.subr.mxu0 0.0
    %8200 = vmatpush1.msra.mxu0 0.0
    %8201 = vmatprep.subr.mxu0 0.0
    %8202 = vmatpush1.msra.mxu0 0.0
    %8203 = vmatprep.subr.mxu0 0.0
    %8204 = vmatpush1.msra.mxu0 0.0
    %8205 = vmatprep.subr.mxu0 0.0
    %8206 = vmatpush1.msra.mxu0 0.0
    %8207 = vmatprep.subr.mxu0 0.0
    %8208 = vmatpush1.msra.mxu0 0.0
    %8209 = vmatprep.subr.mxu0 0.0
    %8210 = vmatpush1.msra.mxu0 0.0
    %8211 = vmatprep.subr.mxu0 0.0
    %8212 = vmatpush1.msra.mxu0 0.0
    %8213 = vmatprep.subr.mxu0 0.0
    %8214 = vmatpush1.msra.mxu0 0.0
    %8215 = vmatprep.subr.mxu0 0.0
    %8216 = vmatpush1.msra.mxu0 0.0
    %8217 = vmatprep.subr.mxu0 0.0
    %8218 = vmatpush1.msra.mxu0 0.0
    %8219 = vmatprep.subr.mxu0 0.0
    %8220 = vmatpush1.msra.mxu0 0.0
    %8221 = vmatprep.subr.mxu0 0.0
    %8222 = vmatpush1.msra.mxu0 0.0
    %8223 = vmatprep.subr.mxu0 0.0
    %8224 = vmatpush1.msra.mxu0 0.0
    %8225 = vmatprep.subr.mxu0 0.0
    %8226 = vmatpush1.msra.mxu0 0.0
    %8227 = vmatprep.subr.mxu0 0.0
    %8228 = vmatpush1.msra.mxu0 0.0
    %8229 = vmatprep.subr.mxu0 0.0
    %8230 = vmatpush1.msra.mxu0 0.0
    %8231 = vmatprep.subr.mxu0 0.0
    %8232 = vmatpush1.msra.mxu0 0.0
    %8233 = vmatprep.subr.mxu0 0.0
    %8234 = vmatpush1.msra.mxu0 0.0
    %8235 = vmatprep.subr.mxu0 0.0
    %8236 = vmatpush1.msra.mxu0 0.0
    %8237 = vmatprep.subr.mxu0 0.0
    %8238 = vmatpush1.msra.mxu0 0.0
    %8239 = vmatprep.subr.mxu0 0.0
    %8240 = vmatpush1.msra.mxu0 0.0
    %8241 = vmatprep.subr.mxu0 0.0
    %8242 = vmatpush1.msra.mxu0 0.0
    %8243 = vmatprep.subr.mxu0 0.0
    %8244 = vmatpush1.msra.mxu0 0.0
    %8245 = vmatprep.subr.mxu0 0.0
    %8246 = vmatpush1.msra.mxu0 0.0
    %8247 = vmatprep.mubr.f32.mxu0 0.0
    %8248 = vmatmul.mubr.f32.gmra.mrb[0].mxu0 %v8181
    %v8249 = vpop.f32.mrb[0].mxu0
    %v8250 = vadd.f32 %v4890, %v8249
    %v8251 = vpop.f32.mrb[0].mxu0
    %8252 = vdwg.mxu0
    %v8254 = vsel %vm4891, %v4865, 0
    %8256 = vmatprep.subr.mxu0 0.0
    %8257 = vmatpush1.msra.mxu0 %v4883
    %8258 = vmatprep.subr.mxu0 0.0
    %8259 = vmatpush1.msra.mxu0 %v4884
    %8260 = vmatprep.subr.mxu0 0.0
    %8261 = vmatpush1.msra.mxu0 %v4896
    %8262 = vmatprep.subr.mxu0 0.0
    %8263 = vmatpush1.msra.mxu0 0.0
    %8264 = vmatprep.subr.mxu0 0.0
    %8265 = vmatpush1.msra.mxu0 0.0
    %8266 = vmatprep.subr.mxu0 0.0
    %8267 = vmatpush1.msra.mxu0 0.0
    %8268 = vmatprep.subr.mxu0 0.0
    %8269 = vmatpush1.msra.mxu0 0.0
    %8270 = vmatprep.subr.mxu0 0.0
    %8271 = vmatpush1.msra.mxu0 0.0
    %8272 = vmatprep.subr.mxu0 0.0
    %8273 = vmatpush1.msra.mxu0 0.0
    %8274 = vmatprep.subr.mxu0 0.0
    %8275 = vmatpush1.msra.mxu0 0.0
    %8276 = vmatprep.subr.mxu0 0.0
    %8277 = vmatpush1.msra.mxu0 0.0
    %8278 = vmatprep.subr.mxu0 0.0
    %8279 = vmatpush1.msra.mxu0 0.0
    %8280 = vmatprep.subr.mxu0 0.0
    %8281 = vmatpush1.msra.mxu0 0.0
    %8282 = vmatprep.subr.mxu0 0.0
    %8283 = vmatpush1.msra.mxu0 0.0
    %8284 = vmatprep.subr.mxu0 0.0
    %8285 = vmatpush1.msra.mxu0 0.0
    %8286 = vmatprep.subr.mxu0 0.0
    %8287 = vmatpush1.msra.mxu0 0.0
    %8288 = vmatprep.subr.mxu0 0.0
    %8289 = vmatpush1.msra.mxu0 0.0
    %8290 = vmatprep.subr.mxu0 0.0
    %8291 = vmatpush1.msra.mxu0 0.0
    %8292 = vmatprep.subr.mxu0 0.0
    %8293 = vmatpush1.msra.mxu0 0.0
    %8294 = vmatprep.subr.mxu0 0.0
    %8295 = vmatpush1.msra.mxu0 0.0
    %8296 = vmatprep.subr.mxu0 0.0
    %8297 = vmatpush1.msra.mxu0 0.0
    %8298 = vmatprep.subr.mxu0 0.0
    %8299 = vmatpush1.msra.mxu0 0.0
    %8300 = vmatprep.subr.mxu0 0.0
    %8301 = vmatpush1.msra.mxu0 0.0
    %8302 = vmatprep.subr.mxu0 0.0
    %8303 = vmatpush1.msra.mxu0 0.0
    %8304 = vmatprep.subr.mxu0 0.0
    %8305 = vmatpush1.msra.mxu0 0.0
    %8306 = vmatprep.subr.mxu0 0.0
    %8307 = vmatpush1.msra.mxu0 0.0
    %8308 = vmatprep.subr.mxu0 0.0
    %8309 = vmatpush1.msra.mxu0 0.0
    %8310 = vmatprep.subr.mxu0 0.0
    %8311 = vmatpush1.msra.mxu0 0.0
    %8312 = vmatprep.subr.mxu0 0.0
    %8313 = vmatpush1.msra.mxu0 0.0
    %8314 = vmatprep.subr.mxu0 0.0
    %8315 = vmatpush1.msra.mxu0 0.0
    %8316 = vmatprep.subr.mxu0 0.0
    %8317 = vmatpush1.msra.mxu0 0.0
    %8318 = vmatprep.subr.mxu0 0.0
    %8319 = vmatpush1.msra.mxu0 0.0
    %8320 = vmatprep.mubr.f32.mxu0 0.0
    %8321 = vmatmul.mubr.f32.gmra.mrb[0].mxu0 %v8254
    %v8322 = vpop.f32.mrb[0].mxu0
    %v8323 = vadd.f32 %v4890, %v8322
    %v8324 = vpop.f32.mrb[0].mxu0
    %8325 = vdwg.mxu0
    %v8327 = vsel %vm4891, %v4866, 0
    %8329 = vmatprep.subr.mxu0 0.0
    %8330 = vmatpush1.msra.mxu0 %v4883
    %8331 = vmatprep.subr.mxu0 0.0
    %8332 = vmatpush1.msra.mxu0 %v4884
    %8333 = vmatprep.subr.mxu0 0.0
    %8334 = vmatpush1.msra.mxu0 %v4896
    %8335 = vmatprep.subr.mxu0 0.0
    %8336 = vmatpush1.msra.mxu0 0.0
    %8337 = vmatprep.subr.mxu0 0.0
    %8338 = vmatpush1.msra.mxu0 0.0
    %8339 = vmatprep.subr.mxu0 0.0
    %8340 = vmatpush1.msra.mxu0 0.0
    %8341 = vmatprep.subr.mxu0 0.0
    %8342 = vmatpush1.msra.mxu0 0.0
    %8343 = vmatprep.subr.mxu0 0.0
    %8344 = vmatpush1.msra.mxu0 0.0
    %8345 = vmatprep.subr.mxu0 0.0
    %8346 = vmatpush1.msra.mxu0 0.0
    %8347 = vmatprep.subr.mxu0 0.0
    %8348 = vmatpush1.msra.mxu0 0.0
    %8349 = vmatprep.subr.mxu0 0.0
    %8350 = vmatpush1.msra.mxu0 0.0
    %8351 = vmatprep.subr.mxu0 0.0
    %8352 = vmatpush1.msra.mxu0 0.0
    %8353 = vmatprep.subr.mxu0 0.0
    %8354 = vmatpush1.msra.mxu0 0.0
    %8355 = vmatprep.subr.mxu0 0.0
    %8356 = vmatpush1.msra.mxu0 0.0
    %8357 = vmatprep.subr.mxu0 0.0
    %8358 = vmatpush1.msra.mxu0 0.0
    %8359 = vmatprep.subr.mxu0 0.0
    %8360 = vmatpush1.msra.mxu0 0.0
    %8361 = vmatprep.subr.mxu0 0.0
    %8362 = vmatpush1.msra.mxu0 0.0
    %8363 = vmatprep.subr.mxu0 0.0
    %8364 = vmatpush1.msra.mxu0 0.0
    %8365 = vmatprep.subr.mxu0 0.0
    %8366 = vmatpush1.msra.mxu0 0.0
    %8367 = vmatprep.subr.mxu0 0.0
    %8368 = vmatpush1.msra.mxu0 0.0
    %8369 = vmatprep.subr.mxu0 0.0
    %8370 = vmatpush1.msra.mxu0 0.0
    %8371 = vmatprep.subr.mxu0 0.0
    %8372 = vmatpush1.msra.mxu0 0.0
    %8373 = vmatprep.subr.mxu0 0.0
    %8374 = vmatpush1.msra.mxu0 0.0
    %8375 = vmatprep.subr.mxu0 0.0
    %8376 = vmatpush1.msra.mxu0 0.0
    %8377 = vmatprep.subr.mxu0 0.0
    %8378 = vmatpush1.msra.mxu0 0.0
    %8379 = vmatprep.subr.mxu0 0.0
    %8380 = vmatpush1.msra.mxu0 0.0
    %8381 = vmatprep.subr.mxu0 0.0
    %8382 = vmatpush1.msra.mxu0 0.0
    %8383 = vmatprep.subr.mxu0 0.0
    %8384 = vmatpush1.msra.mxu0 0.0
    %8385 = vmatprep.subr.mxu0 0.0
    %8386 = vmatpush1.msra.mxu0 0.0
    %8387 = vmatprep.subr.mxu0 0.0
    %8388 = vmatpush1.msra.mxu0 0.0
    %8389 = vmatprep.subr.mxu0 0.0
    %8390 = vmatpush1.msra.mxu0 0.0
    %8391 = vmatprep.subr.mxu0 0.0
    %8392 = vmatpush1.msra.mxu0 0.0
    %8393 = vmatprep.mubr.f32.mxu0 0.0
    %8394 = vmatmul.mubr.f32.gmra.mrb[0].mxu0 %v8327
    %v8395 = vpop.f32.mrb[0].mxu0
    %v8396 = vadd.f32 %v4890, %v8395
    %v8397 = vpop.f32.mrb[0].mxu0
    %8398 = vdwg.mxu0
    %v8400 = vsel %vm4891, %v4867, 0
    %8402 = vmatprep.subr.mxu0 0.0
    %8403 = vmatpush1.msra.mxu0 %v4883
    %8404 = vmatprep.subr.mxu0 0.0
    %8405 = vmatpush1.msra.mxu0 %v4884
    %8406 = vmatprep.subr.mxu0 0.0
    %8407 = vmatpush1.msra.mxu0 %v4896
    %8408 = vmatprep.subr.mxu0 0.0
    %8409 = vmatpush1.msra.mxu0 0.0
    %8410 = vmatprep.subr.mxu0 0.0
    %8411 = vmatpush1.msra.mxu0 0.0
    %8412 = vmatprep.subr.mxu0 0.0
    %8413 = vmatpush1.msra.mxu0 0.0
    %8414 = vmatprep.subr.mxu0 0.0
    %8415 = vmatpush1.msra.mxu0 0.0
    %8416 = vmatprep.subr.mxu0 0.0
    %8417 = vmatpush1.msra.mxu0 0.0
    %8418 = vmatprep.subr.mxu0 0.0
    %8419 = vmatpush1.msra.mxu0 0.0
    %8420 = vmatprep.subr.mxu0 0.0
    %8421 = vmatpush1.msra.mxu0 0.0
    %8422 = vmatprep.subr.mxu0 0.0
    %8423 = vmatpush1.msra.mxu0 0.0
    %8424 = vmatprep.subr.mxu0 0.0
    %8425 = vmatpush1.msra.mxu0 0.0
    %8426 = vmatprep.subr.mxu0 0.0
    %8427 = vmatpush1.msra.mxu0 0.0
    %8428 = vmatprep.subr.mxu0 0.0
    %8429 = vmatpush1.msra.mxu0 0.0
    %8430 = vmatprep.subr.mxu0 0.0
    %8431 = vmatpush1.msra.mxu0 0.0
    %8432 = vmatprep.subr.mxu0 0.0
    %8433 = vmatpush1.msra.mxu0 0.0
    %8434 = vmatprep.subr.mxu0 0.0
    %8435 = vmatpush1.msra.mxu0 0.0
    %8436 = vmatprep.subr.mxu0 0.0
    %8437 = vmatpush1.msra.mxu0 0.0
    %8438 = vmatprep.subr.mxu0 0.0
    %8439 = vmatpush1.msra.mxu0 0.0
    %8440 = vmatprep.subr.mxu0 0.0
    %8441 = vmatpush1.msra.mxu0 0.0
    %8442 = vmatprep.subr.mxu0 0.0
    %8443 = vmatpush1.msra.mxu0 0.0
    %8444 = vmatprep.subr.mxu0 0.0
    %8445 = vmatpush1.msra.mxu0 0.0
    %8446 = vmatprep.subr.mxu0 0.0
    %8447 = vmatpush1.msra.mxu0 0.0
    %8448 = vmatprep.subr.mxu0 0.0
    %8449 = vmatpush1.msra.mxu0 0.0
    %8450 = vmatprep.subr.mxu0 0.0
    %8451 = vmatpush1.msra.mxu0 0.0
    %8452 = vmatprep.subr.mxu0 0.0
    %8453 = vmatpush1.msra.mxu0 0.0
    %8454 = vmatprep.subr.mxu0 0.0
    %8455 = vmatpush1.msra.mxu0 0.0
    %8456 = vmatprep.subr.mxu0 0.0
    %8457 = vmatpush1.msra.mxu0 0.0
    %8458 = vmatprep.subr.mxu0 0.0
    %8459 = vmatpush1.msra.mxu0 0.0
    %8460 = vmatprep.subr.mxu0 0.0
    %8461 = vmatpush1.msra.mxu0 0.0
    %8462 = vmatprep.subr.mxu0 0.0
    %8463 = vmatpush1.msra.mxu0 0.0
    %8464 = vmatprep.subr.mxu0 0.0
    %8465 = vmatpush1.msra.mxu0 0.0
    %8466 = vmatprep.mubr.f32.mxu0 0.0
    %8467 = vmatmul.mubr.f32.gmra.mrb[0].mxu0 %v8400
    %v8468 = vpop.f32.mrb[0].mxu0
    %v8469 = vadd.f32 %v4890, %v8468
    %v8470 = vpop.f32.mrb[0].mxu0
    %8471 = vdwg.mxu0
    %v8473 = vsel %vm4891, %v4868, 0
    %8475 = vmatprep.subr.mxu0 0.0
    %8476 = vmatpush1.msra.mxu0 %v4883
    %8477 = vmatprep.subr.mxu0 0.0
    %8478 = vmatpush1.msra.mxu0 %v4884
    %8479 = vmatprep.subr.mxu0 0.0
    %8480 = vmatpush1.msra.mxu0 %v4896
    %8481 = vmatprep.subr.mxu0 0.0
    %8482 = vmatpush1.msra.mxu0 0.0
    %8483 = vmatprep.subr.mxu0 0.0
    %8484 = vmatpush1.msra.mxu0 0.0
    %8485 = vmatprep.subr.mxu0 0.0
    %8486 = vmatpush1.msra.mxu0 0.0
    %8487 = vmatprep.subr.mxu0 0.0
    %8488 = vmatpush1.msra.mxu0 0.0
    %8489 = vmatprep.subr.mxu0 0.0
    %8490 = vmatpush1.msra.mxu0 0.0
    %8491 = vmatprep.subr.mxu0 0.0
    %8492 = vmatpush1.msra.mxu0 0.0
    %8493 = vmatprep.subr.mxu0 0.0
    %8494 = vmatpush1.msra.mxu0 0.0
    %8495 = vmatprep.subr.mxu0 0.0
    %8496 = vmatpush1.msra.mxu0 0.0
    %8497 = vmatprep.subr.mxu0 0.0
    %8498 = vmatpush1.msra.mxu0 0.0
    %8499 = vmatprep.subr.mxu0 0.0
    %8500 = vmatpush1.msra.mxu0 0.0
    %8501 = vmatprep.subr.mxu0 0.0
    %8502 = vmatpush1.msra.mxu0 0.0
    %8503 = vmatprep.subr.mxu0 0.0
    %8504 = vmatpush1.msra.mxu0 0.0
    %8505 = vmatprep.subr.mxu0 0.0
    %8506 = vmatpush1.msra.mxu0 0.0
    %8507 = vmatprep.subr.mxu0 0.0
    %8508 = vmatpush1.msra.mxu0 0.0
    %8509 = vmatprep.subr.mxu0 0.0
    %8510 = vmatpush1.msra.mxu0 0.0
    %8511 = vmatprep.subr.mxu0 0.0
    %8512 = vmatpush1.msra.mxu0 0.0
    %8513 = vmatprep.subr.mxu0 0.0
    %8514 = vmatpush1.msra.mxu0 0.0
    %8515 = vmatprep.subr.mxu0 0.0
    %8516 = vmatpush1.msra.mxu0 0.0
    %8517 = vmatprep.subr.mxu0 0.0
    %8518 = vmatpush1.msra.mxu0 0.0
    %8519 = vmatprep.subr.mxu0 0.0
    %8520 = vmatpush1.msra.mxu0 0.0
    %8521 = vmatprep.subr.mxu0 0.0
    %8522 = vmatpush1.msra.mxu0 0.0
    %8523 = vmatprep.subr.mxu0 0.0
    %8524 = vmatpush1.msra.mxu0 0.0
    %8525 = vmatprep.subr.mxu0 0.0
    %8526 = vmatpush1.msra.mxu0 0.0
    %8527 = vmatprep.subr.mxu0 0.0
    %8528 = vmatpush1.msra.mxu0 0.0
    %8529 = vmatprep.subr.mxu0 0.0
    %8530 = vmatpush1.msra.mxu0 0.0
    %8531 = vmatprep.subr.mxu0 0.0
    %8532 = vmatpush1.msra.mxu0 0.0
    %8533 = vmatprep.subr.mxu0 0.0
    %8534 = vmatpush1.msra.mxu0 0.0
    %8535 = vmatprep.subr.mxu0 0.0
    %8536 = vmatpush1.msra.mxu0 0.0
    %8537 = vmatprep.subr.mxu0 0.0
    %8538 = vmatpush1.msra.mxu0 0.0
    %8539 = vmatprep.mubr.f32.mxu0 0.0
    %8540 = vmatmul.mubr.f32.gmra.mrb[0].mxu0 %v8473
    %v8541 = vpop.f32.mrb[0].mxu0
    %v8542 = vadd.f32 %v4890, %v8541
    %v8543 = vpop.f32.mrb[0].mxu0
    %8544 = vdwg.mxu0
    %v8546 = vsel %vm4891, %v4869, 0
    %8548 = vmatprep.subr.mxu0 0.0
    %8549 = vmatpush1.msra.mxu0 %v4883
    %8550 = vmatprep.subr.mxu0 0.0
    %8551 = vmatpush1.msra.mxu0 %v4884
    %8552 = vmatprep.subr.mxu0 0.0
    %8553 = vmatpush1.msra.mxu0 %v4896
    %8554 = vmatprep.subr.mxu0 0.0
    %8555 = vmatpush1.msra.mxu0 0.0
    %8556 = vmatprep.subr.mxu0 0.0
    %8557 = vmatpush1.msra.mxu0 0.0
    %8558 = vmatprep.subr.mxu0 0.0
    %8559 = vmatpush1.msra.mxu0 0.0
    %8560 = vmatprep.subr.mxu0 0.0
    %8561 = vmatpush1.msra.mxu0 0.0
    %8562 = vmatprep.subr.mxu0 0.0
    %8563 = vmatpush1.msra.mxu0 0.0
    %8564 = vmatprep.subr.mxu0 0.0
    %8565 = vmatpush1.msra.mxu0 0.0
    %8566 = vmatprep.subr.mxu0 0.0
    %8567 = vmatpush1.msra.mxu0 0.0
    %8568 = vmatprep.subr.mxu0 0.0
    %8569 = vmatpush1.msra.mxu0 0.0
    %8570 = vmatprep.subr.mxu0 0.0
    %8571 = vmatpush1.msra.mxu0 0.0
    %8572 = vmatprep.subr.mxu0 0.0
    %8573 = vmatpush1.msra.mxu0 0.0
    %8574 = vmatprep.subr.mxu0 0.0
    %8575 = vmatpush1.msra.mxu0 0.0
    %8576 = vmatprep.subr.mxu0 0.0
    %8577 = vmatpush1.msra.mxu0 0.0
    %8578 = vmatprep.subr.mxu0 0.0
    %8579 = vmatpush1.msra.mxu0 0.0
    %8580 = vmatprep.subr.mxu0 0.0
    %8581 = vmatpush1.msra.mxu0 0.0
    %8582 = vmatprep.subr.mxu0 0.0
    %8583 = vmatpush1.msra.mxu0 0.0
    %8584 = vmatprep.subr.mxu0 0.0
    %8585 = vmatpush1.msra.mxu0 0.0
    %8586 = vmatprep.subr.mxu0 0.0
    %8587 = vmatpush1.msra.mxu0 0.0
    %8588 = vmatprep.subr.mxu0 0.0
    %8589 = vmatpush1.msra.mxu0 0.0
    %8590 = vmatprep.subr.mxu0 0.0
    %8591 = vmatpush1.msra.mxu0 0.0
    %8592 = vmatprep.subr.mxu0 0.0
    %8593 = vmatpush1.msra.mxu0 0.0
    %8594 = vmatprep.subr.mxu0 0.0
    %8595 = vmatpush1.msra.mxu0 0.0
    %8596 = vmatprep.subr.mxu0 0.0
    %8597 = vmatpush1.msra.mxu0 0.0
    %8598 = vmatprep.subr.mxu0 0.0
    %8599 = vmatpush1.msra.mxu0 0.0
    %8600 = vmatprep.subr.mxu0 0.0
    %8601 = vmatpush1.msra.mxu0 0.0
    %8602 = vmatprep.subr.mxu0 0.0
    %8603 = vmatpush1.msra.mxu0 0.0
    %8604 = vmatprep.subr.mxu0 0.0
    %8605 = vmatpush1.msra.mxu0 0.0
    %8606 = vmatprep.subr.mxu0 0.0
    %8607 = vmatpush1.msra.mxu0 0.0
    %8608 = vmatprep.subr.mxu0 0.0
    %8609 = vmatpush1.msra.mxu0 0.0
    %8610 = vmatprep.subr.mxu0 0.0
    %8611 = vmatpush1.msra.mxu0 0.0
    %8612 = vmatprep.mubr.f32.mxu0 0.0
    %8613 = vmatmul.mubr.f32.gmra.mrb[0].mxu0 %v8546
    %v8614 = vpop.f32.mrb[0].mxu0
    %v8615 = vadd.f32 %v4890, %v8614
    %v8616 = vpop.f32.mrb[0].mxu0
    %8617 = vdwg.mxu0
    %v8619 = vsel %vm4891, %v4870, 0
    %8621 = vmatprep.subr.mxu0 0.0
    %8622 = vmatpush1.msra.mxu0 %v4883
    %8623 = vmatprep.subr.mxu0 0.0
    %8624 = vmatpush1.msra.mxu0 %v4884
    %8625 = vmatprep.subr.mxu0 0.0
    %8626 = vmatpush1.msra.mxu0 %v4896
    %8627 = vmatprep.subr.mxu0 0.0
    %8628 = vmatpush1.msra.mxu0 0.0
    %8629 = vmatprep.subr.mxu0 0.0
    %8630 = vmatpush1.msra.mxu0 0.0
    %8631 = vmatprep.subr.mxu0 0.0
    %8632 = vmatpush1.msra.mxu0 0.0
    %8633 = vmatprep.subr.mxu0 0.0
    %8634 = vmatpush1.msra.mxu0 0.0
    %8635 = vmatprep.subr.mxu0 0.0
    %8636 = vmatpush1.msra.mxu0 0.0
    %8637 = vmatprep.subr.mxu0 0.0
    %8638 = vmatpush1.msra.mxu0 0.0
    %8639 = vmatprep.subr.mxu0 0.0
    %8640 = vmatpush1.msra.mxu0 0.0
    %8641 = vmatprep.subr.mxu0 0.0
    %8642 = vmatpush1.msra.mxu0 0.0
    %8643 = vmatprep.subr.mxu0 0.0
    %8644 = vmatpush1.msra.mxu0 0.0
    %8645 = vmatprep.subr.mxu0 0.0
    %8646 = vmatpush1.msra.mxu0 0.0
    %8647 = vmatprep.subr.mxu0 0.0
    %8648 = vmatpush1.msra.mxu0 0.0
    %8649 = vmatprep.subr.mxu0 0.0
    %8650 = vmatpush1.msra.mxu0 0.0
    %8651 = vmatprep.subr.mxu0 0.0
    %8652 = vmatpush1.msra.mxu0 0.0
    %8653 = vmatprep.subr.mxu0 0.0
    %8654 = vmatpush1.msra.mxu0 0.0
    %8655 = vmatprep.subr.mxu0 0.0
    %8656 = vmatpush1.msra.mxu0 0.0
    %8657 = vmatprep.subr.mxu0 0.0
    %8658 = vmatpush1.msra.mxu0 0.0
    %8659 = vmatprep.subr.mxu0 0.0
    %8660 = vmatpush1.msra.mxu0 0.0
    %8661 = vmatprep.subr.mxu0 0.0
    %8662 = vmatpush1.msra.mxu0 0.0
    %8663 = vmatprep.subr.mxu0 0.0
    %8664 = vmatpush1.msra.mxu0 0.0
    %8665 = vmatprep.subr.mxu0 0.0
    %8666 = vmatpush1.msra.mxu0 0.0
    %8667 = vmatprep.subr.mxu0 0.0
    %8668 = vmatpush1.msra.mxu0 0.0
    %8669 = vmatprep.subr.mxu0 0.0
    %8670 = vmatpush1.msra.mxu0 0.0
    %8671 = vmatprep.subr.mxu0 0.0
    %8672 = vmatpush1.msra.mxu0 0.0
    %8673 = vmatprep.subr.mxu0 0.0
    %8674 = vmatpush1.msra.mxu0 0.0
    %8675 = vmatprep.subr.mxu0 0.0
    %8676 = vmatpush1.msra.mxu0 0.0
    %8677 = vmatprep.subr.mxu0 0.0
    %8678 = vmatpush1.msra.mxu0 0.0
    %8679 = vmatprep.subr.mxu0 0.0
    %8680 = vmatpush1.msra.mxu0 0.0
    %8681 = vmatprep.subr.mxu0 0.0
    %8682 = vmatpush1.msra.mxu0 0.0
    %8683 = vmatprep.subr.mxu0 0.0
    %8684 = vmatpush1.msra.mxu0 0.0
    %8685 = vmatprep.mubr.f32.mxu0 0.0
    %8686 = vmatmul.mubr.f32.gmra.mrb[0].mxu0 %v8619
    %v8687 = vpop.f32.mrb[0].mxu0
    %v8688 = vadd.f32 %v4890, %v8687
    %v8689 = vpop.f32.mrb[0].mxu0
    %8690 = vdwg.mxu0
    %v8692 = vsel %vm4891, %v4871, 0
    %8694 = vmatprep.subr.mxu0 0.0
    %8695 = vmatpush1.msra.mxu0 %v4883
    %8696 = vmatprep.subr.mxu0 0.0
    %8697 = vmatpush1.msra.mxu0 %v4884
    %8698 = vmatprep.subr.mxu0 0.0
    %8699 = vmatpush1.msra.mxu0 %v4896
    %8700 = vmatprep.subr.mxu0 0.0
    %8701 = vmatpush1.msra.mxu0 0.0
    %8702 = vmatprep.subr.mxu0 0.0
    %8703 = vmatpush1.msra.mxu0 0.0
    %8704 = vmatprep.subr.mxu0 0.0
    %8705 = vmatpush1.msra.mxu0 0.0
    %8706 = vmatprep.subr.mxu0 0.0
    %8707 = vmatpush1.msra.mxu0 0.0
    %8708 = vmatprep.subr.mxu0 0.0
    %8709 = vmatpush1.msra.mxu0 0.0
    %8710 = vmatprep.subr.mxu0 0.0
    %8711 = vmatpush1.msra.mxu0 0.0
    %8712 = vmatprep.subr.mxu0 0.0
    %8713 = vmatpush1.msra.mxu0 0.0
    %8714 = vmatprep.subr.mxu0 0.0
    %8715 = vmatpush1.msra.mxu0 0.0
    %8716 = vmatprep.subr.mxu0 0.0
    %8717 = vmatpush1.msra.mxu0 0.0
    %8718 = vmatprep.subr.mxu0 0.0
    %8719 = vmatpush1.msra.mxu0 0.0
    %8720 = vmatprep.subr.mxu0 0.0
    %8721 = vmatpush1.msra.mxu0 0.0
    %8722 = vmatprep.subr.mxu0 0.0
    %8723 = vmatpush1.msra.mxu0 0.0
    %8724 = vmatprep.subr.mxu0 0.0
    %8725 = vmatpush1.msra.mxu0 0.0
    %8726 = vmatprep.subr.mxu0 0.0
    %8727 = vmatpush1.msra.mxu0 0.0
    %8728 = vmatprep.subr.mxu0 0.0
    %8729 = vmatpush1.msra.mxu0 0.0
    %8730 = vmatprep.subr.mxu0 0.0
    %8731 = vmatpush1.msra.mxu0 0.0
    %8732 = vmatprep.subr.mxu0 0.0
    %8733 = vmatpush1.msra.mxu0 0.0
    %8734 = vmatprep.subr.mxu0 0.0
    %8735 = vmatpush1.msra.mxu0 0.0
    %8736 = vmatprep.subr.mxu0 0.0
    %8737 = vmatpush1.msra.mxu0 0.0
    %8738 = vmatprep.subr.mxu0 0.0
    %8739 = vmatpush1.msra.mxu0 0.0
    %8740 = vmatprep.subr.mxu0 0.0
    %8741 = vmatpush1.msra.mxu0 0.0
    %8742 = vmatprep.subr.mxu0 0.0
    %8743 = vmatpush1.msra.mxu0 0.0
    %8744 = vmatprep.subr.mxu0 0.0
    %8745 = vmatpush1.msra.mxu0 0.0
    %8746 = vmatprep.subr.mxu0 0.0
    %8747 = vmatpush1.msra.mxu0 0.0
    %8748 = vmatprep.subr.mxu0 0.0
    %8749 = vmatpush1.msra.mxu0 0.0
    %8750 = vmatprep.subr.mxu0 0.0
    %8751 = vmatpush1.msra.mxu0 0.0
    %8752 = vmatprep.subr.mxu0 0.0
    %8753 = vmatpush1.msra.mxu0 0.0
    %8754 = vmatprep.subr.mxu0 0.0
    %8755 = vmatpush1.msra.mxu0 0.0
    %8756 = vmatprep.subr.mxu0 0.0
    %8757 = vmatpush1.msra.mxu0 0.0
    %8758 = vmatprep.mubr.f32.mxu0 0.0
    %8759 = vmatmul.mubr.f32.gmra.mrb[0].mxu0 %v8692
    %v8760 = vpop.f32.mrb[0].mxu0
    %v8761 = vadd.f32 %v4890, %v8760
    %v8762 = vpop.f32.mrb[0].mxu0
    %8763 = vdwg.mxu0
    %v8765 = vsel %vm4891, %v4872, 0
    %8767 = vmatprep.subr.mxu0 0.0
    %8768 = vmatpush1.msra.mxu0 %v4883
    %8769 = vmatprep.subr.mxu0 0.0
    %8770 = vmatpush1.msra.mxu0 %v4884
    %8771 = vmatprep.subr.mxu0 0.0
    %8772 = vmatpush1.msra.mxu0 %v4896
    %8773 = vmatprep.subr.mxu0 0.0
    %8774 = vmatpush1.msra.mxu0 0.0
    %8775 = vmatprep.subr.mxu0 0.0
    %8776 = vmatpush1.msra.mxu0 0.0
    %8777 = vmatprep.subr.mxu0 0.0
    %8778 = vmatpush1.msra.mxu0 0.0
    %8779 = vmatprep.subr.mxu0 0.0
    %8780 = vmatpush1.msra.mxu0 0.0
    %8781 = vmatprep.subr.mxu0 0.0
    %8782 = vmatpush1.msra.mxu0 0.0
    %8783 = vmatprep.subr.mxu0 0.0
    %8784 = vmatpush1.msra.mxu0 0.0
    %8785 = vmatprep.subr.mxu0 0.0
    %8786 = vmatpush1.msra.mxu0 0.0
    %8787 = vmatprep.subr.mxu0 0.0
    %8788 = vmatpush1.msra.mxu0 0.0
    %8789 = vmatprep.subr.mxu0 0.0
    %8790 = vmatpush1.msra.mxu0 0.0
    %8791 = vmatprep.subr.mxu0 0.0
    %8792 = vmatpush1.msra.mxu0 0.0
    %8793 = vmatprep.subr.mxu0 0.0
    %8794 = vmatpush1.msra.mxu0 0.0
    %8795 = vmatprep.subr.mxu0 0.0
    %8796 = vmatpush1.msra.mxu0 0.0
    %8797 = vmatprep.subr.mxu0 0.0
    %8798 = vmatpush1.msra.mxu0 0.0
    %8799 = vmatprep.subr.mxu0 0.0
    %8800 = vmatpush1.msra.mxu0 0.0
    %8801 = vmatprep.subr.mxu0 0.0
    %8802 = vmatpush1.msra.mxu0 0.0
    %8803 = vmatprep.subr.mxu0 0.0
    %8804 = vmatpush1.msra.mxu0 0.0
    %8805 = vmatprep.subr.mxu0 0.0
    %8806 = vmatpush1.msra.mxu0 0.0
    %8807 = vmatprep.subr.mxu0 0.0
    %8808 = vmatpush1.msra.mxu0 0.0
    %8809 = vmatprep.subr.mxu0 0.0
    %8810 = vmatpush1.msra.mxu0 0.0
    %8811 = vmatprep.subr.mxu0 0.0
    %8812 = vmatpush1.msra.mxu0 0.0
    %8813 = vmatprep.subr.mxu0 0.0
    %8814 = vmatpush1.msra.mxu0 0.0
    %8815 = vmatprep.subr.mxu0 0.0
    %8816 = vmatpush1.msra.mxu0 0.0
    %8817 = vmatprep.subr.mxu0 0.0
    %8818 = vmatpush1.msra.mxu0 0.0
    %8819 = vmatprep.subr.mxu0 0.0
    %8820 = vmatpush1.msra.mxu0 0.0
    %8821 = vmatprep.subr.mxu0 0.0
    %8822 = vmatpush1.msra.mxu0 0.0
    %8823 = vmatprep.subr.mxu0 0.0
    %8824 = vmatpush1.msra.mxu0 0.0
    %8825 = vmatprep.subr.mxu0 0.0
    %8826 = vmatpush1.msra.mxu0 0.0
    %8827 = vmatprep.subr.mxu0 0.0
    %8828 = vmatpush1.msra.mxu0 0.0
    %8829 = vmatprep.subr.mxu0 0.0
    %8830 = vmatpush1.msra.mxu0 0.0
    %8831 = vmatprep.mubr.f32.mxu0 0.0
    %8832 = vmatmul.mubr.f32.gmra.mrb[0].mxu0 %v8765
    %v8833 = vpop.f32.mrb[0].mxu0
    %v8834 = vadd.f32 %v4890, %v8833
    %v8835 = vpop.f32.mrb[0].mxu0
    %8836 = vdwg.mxu0
    %v8838 = vsel %vm4891, %v4873, 0
    %8840 = vmatprep.subr.mxu0 0.0
    %8841 = vmatpush1.msra.mxu0 %v4883
    %8842 = vmatprep.subr.mxu0 0.0
    %8843 = vmatpush1.msra.mxu0 %v4884
    %8844 = vmatprep.subr.mxu0 0.0
    %8845 = vmatpush1.msra.mxu0 %v4896
    %8846 = vmatprep.subr.mxu0 0.0
    %8847 = vmatpush1.msra.mxu0 0.0
    %8848 = vmatprep.subr.mxu0 0.0
    %8849 = vmatpush1.msra.mxu0 0.0
    %8850 = vmatprep.subr.mxu0 0.0
    %8851 = vmatpush1.msra.mxu0 0.0
    %8852 = vmatprep.subr.mxu0 0.0
    %8853 = vmatpush1.msra.mxu0 0.0
    %8854 = vmatprep.subr.mxu0 0.0
    %8855 = vmatpush1.msra.mxu0 0.0
    %8856 = vmatprep.subr.mxu0 0.0
    %8857 = vmatpush1.msra.mxu0 0.0
    %8858 = vmatprep.subr.mxu0 0.0
    %8859 = vmatpush1.msra.mxu0 0.0
    %8860 = vmatprep.subr.mxu0 0.0
    %8861 = vmatpush1.msra.mxu0 0.0
    %8862 = vmatprep.subr.mxu0 0.0
    %8863 = vmatpush1.msra.mxu0 0.0
    %8864 = vmatprep.subr.mxu0 0.0
    %8865 = vmatpush1.msra.mxu0 0.0
    %8866 = vmatprep.subr.mxu0 0.0
    %8867 = vmatpush1.msra.mxu0 0.0
    %8868 = vmatprep.subr.mxu0 0.0
    %8869 = vmatpush1.msra.mxu0 0.0
    %8870 = vmatprep.subr.mxu0 0.0
    %8871 = vmatpush1.msra.mxu0 0.0
    %8872 = vmatprep.subr.mxu0 0.0
    %8873 = vmatpush1.msra.mxu0 0.0
    %8874 = vmatprep.subr.mxu0 0.0
    %8875 = vmatpush1.msra.mxu0 0.0
    %8876 = vmatprep.subr.mxu0 0.0
    %8877 = vmatpush1.msra.mxu0 0.0
    %8878 = vmatprep.subr.mxu0 0.0
    %8879 = vmatpush1.msra.mxu0 0.0
    %8880 = vmatprep.subr.mxu0 0.0
    %8881 = vmatpush1.msra.mxu0 0.0
    %8882 = vmatprep.subr.mxu0 0.0
    %8883 = vmatpush1.msra.mxu0 0.0
    %8884 = vmatprep.subr.mxu0 0.0
    %8885 = vmatpush1.msra.mxu0 0.0
    %8886 = vmatprep.subr.mxu0 0.0
    %8887 = vmatpush1.msra.mxu0 0.0
    %8888 = vmatprep.subr.mxu0 0.0
    %8889 = vmatpush1.msra.mxu0 0.0
    %8890 = vmatprep.subr.mxu0 0.0
    %8891 = vmatpush1.msra.mxu0 0.0
    %8892 = vmatprep.subr.mxu0 0.0
    %8893 = vmatpush1.msra.mxu0 0.0
    %8894 = vmatprep.subr.mxu0 0.0
    %8895 = vmatpush1.msra.mxu0 0.0
    %8896 = vmatprep.subr.mxu0 0.0
    %8897 = vmatpush1.msra.mxu0 0.0
    %8898 = vmatprep.subr.mxu0 0.0
    %8899 = vmatpush1.msra.mxu0 0.0
    %8900 = vmatprep.subr.mxu0 0.0
    %8901 = vmatpush1.msra.mxu0 0.0
    %8902 = vmatprep.subr.mxu0 0.0
    %8903 = vmatpush1.msra.mxu0 0.0
    %8904 = vmatprep.mubr.f32.mxu0 0.0
    %8905 = vmatmul.mubr.f32.gmra.mrb[0].mxu0 %v8838
    %v8906 = vpop.f32.mrb[0].mxu0
    %v8907 = vadd.f32 %v4890, %v8906
    %v8908 = vpop.f32.mrb[0].mxu0
    %8909 = vdwg.mxu0
    %v8911 = vsel %vm4891, %v4874, 0
    %8913 = vmatprep.subr.mxu0 0.0
    %8914 = vmatpush1.msra.mxu0 %v4883
    %8915 = vmatprep.subr.mxu0 0.0
    %8916 = vmatpush1.msra.mxu0 %v4884
    %8917 = vmatprep.subr.mxu0 0.0
    %8918 = vmatpush1.msra.mxu0 %v4896
    %8919 = vmatprep.subr.mxu0 0.0
    %8920 = vmatpush1.msra.mxu0 0.0
    %8921 = vmatprep.subr.mxu0 0.0
    %8922 = vmatpush1.msra.mxu0 0.0
    %8923 = vmatprep.subr.mxu0 0.0
    %8924 = vmatpush1.msra.mxu0 0.0
    %8925 = vmatprep.subr.mxu0 0.0
    %8926 = vmatpush1.msra.mxu0 0.0
    %8927 = vmatprep.subr.mxu0 0.0
    %8928 = vmatpush1.msra.mxu0 0.0
    %8929 = vmatprep.subr.mxu0 0.0
    %8930 = vmatpush1.msra.mxu0 0.0
    %8931 = vmatprep.subr.mxu0 0.0
    %8932 = vmatpush1.msra.mxu0 0.0
    %8933 = vmatprep.subr.mxu0 0.0
    %8934 = vmatpush1.msra.mxu0 0.0
    %8935 = vmatprep.subr.mxu0 0.0
    %8936 = vmatpush1.msra.mxu0 0.0
    %8937 = vmatprep.subr.mxu0 0.0
    %8938 = vmatpush1.msra.mxu0 0.0
    %8939 = vmatprep.subr.mxu0 0.0
    %8940 = vmatpush1.msra.mxu0 0.0
    %8941 = vmatprep.subr.mxu0 0.0
    %8942 = vmatpush1.msra.mxu0 0.0
    %8943 = vmatprep.subr.mxu0 0.0
    %8944 = vmatpush1.msra.mxu0 0.0
    %8945 = vmatprep.subr.mxu0 0.0
    %8946 = vmatpush1.msra.mxu0 0.0
    %8947 = vmatprep.subr.mxu0 0.0
    %8948 = vmatpush1.msra.mxu0 0.0
    %8949 = vmatprep.subr.mxu0 0.0
    %8950 = vmatpush1.msra.mxu0 0.0
    %8951 = vmatprep.subr.mxu0 0.0
    %8952 = vmatpush1.msra.mxu0 0.0
    %8953 = vmatprep.subr.mxu0 0.0
    %8954 = vmatpush1.msra.mxu0 0.0
    %8955 = vmatprep.subr.mxu0 0.0
    %8956 = vmatpush1.msra.mxu0 0.0
    %8957 = vmatprep.subr.mxu0 0.0
    %8958 = vmatpush1.msra.mxu0 0.0
    %8959 = vmatprep.subr.mxu0 0.0
    %8960 = vmatpush1.msra.mxu0 0.0
    %8961 = vmatprep.subr.mxu0 0.0
    %8962 = vmatpush1.msra.mxu0 0.0
    %8963 = vmatprep.subr.mxu0 0.0
    %8964 = vmatpush1.msra.mxu0 0.0
    %8965 = vmatprep.subr.mxu0 0.0
    %8966 = vmatpush1.msra.mxu0 0.0
    %8967 = vmatprep.subr.mxu0 0.0
    %8968 = vmatpush1.msra.mxu0 0.0
    %8969 = vmatprep.subr.mxu0 0.0
    %8970 = vmatpush1.msra.mxu0 0.0
    %8971 = vmatprep.subr.mxu0 0.0
    %8972 = vmatpush1.msra.mxu0 0.0
    %8973 = vmatprep.subr.mxu0 0.0
    %8974 = vmatpush1.msra.mxu0 0.0
    %8975 = vmatprep.subr.mxu0 0.0
    %8976 = vmatpush1.msra.mxu0 0.0
    %8977 = vmatprep.mubr.f32.mxu0 0.0
    %8978 = vmatmul.mubr.f32.gmra.mrb[0].mxu0 %v8911
    %v8979 = vpop.f32.mrb[0].mxu0
    %v8980 = vadd.f32 %v4890, %v8979
    %v8981 = vpop.f32.mrb[0].mxu0
    %8982 = vdwg.mxu0
    %v8984 = vsel %vm4891, %v4875, 0
    %8986 = vmatprep.subr.mxu0 0.0
    %8987 = vmatpush1.msra.mxu0 %v4883
    %8988 = vmatprep.subr.mxu0 0.0
    %8989 = vmatpush1.msra.mxu0 %v4884
    %8990 = vmatprep.subr.mxu0 0.0
    %8991 = vmatpush1.msra.mxu0 %v4896
    %8992 = vmatprep.subr.mxu0 0.0
    %8993 = vmatpush1.msra.mxu0 0.0
    %8994 = vmatprep.subr.mxu0 0.0
    %8995 = vmatpush1.msra.mxu0 0.0
    %8996 = vmatprep.subr.mxu0 0.0
    %8997 = vmatpush1.msra.mxu0 0.0
    %8998 = vmatprep.subr.mxu0 0.0
    %8999 = vmatpush1.msra.mxu0 0.0
    %9000 = vmatprep.subr.mxu0 0.0
    %9001 = vmatpush1.msra.mxu0 0.0
    %9002 = vmatprep.subr.mxu0 0.0
    %9003 = vmatpush1.msra.mxu0 0.0
    %9004 = vmatprep.subr.mxu0 0.0
    %9005 = vmatpush1.msra.mxu0 0.0
    %9006 = vmatprep.subr.mxu0 0.0
    %9007 = vmatpush1.msra.mxu0 0.0
    %9008 = vmatprep.subr.mxu0 0.0
    %9009 = vmatpush1.msra.mxu0 0.0
    %9010 = vmatprep.subr.mxu0 0.0
    %9011 = vmatpush1.msra.mxu0 0.0
    %9012 = vmatprep.subr.mxu0 0.0
    %9013 = vmatpush1.msra.mxu0 0.0
    %9014 = vmatprep.subr.mxu0 0.0
    %9015 = vmatpush1.msra.mxu0 0.0
    %9016 = vmatprep.subr.mxu0 0.0
    %9017 = vmatpush1.msra.mxu0 0.0
    %9018 = vmatprep.subr.mxu0 0.0
    %9019 = vmatpush1.msra.mxu0 0.0
    %9020 = vmatprep.subr.mxu0 0.0
    %9021 = vmatpush1.msra.mxu0 0.0
    %9022 = vmatprep.subr.mxu0 0.0
    %9023 = vmatpush1.msra.mxu0 0.0
    %9024 = vmatprep.subr.mxu0 0.0
    %9025 = vmatpush1.msra.mxu0 0.0
    %9026 = vmatprep.subr.mxu0 0.0
    %9027 = vmatpush1.msra.mxu0 0.0
    %9028 = vmatprep.subr.mxu0 0.0
    %9029 = vmatpush1.msra.mxu0 0.0
    %9030 = vmatprep.subr.mxu0 0.0
    %9031 = vmatpush1.msra.mxu0 0.0
    %9032 = vmatprep.subr.mxu0 0.0
    %9033 = vmatpush1.msra.mxu0 0.0
    %9034 = vmatprep.subr.mxu0 0.0
    %9035 = vmatpush1.msra.mxu0 0.0
    %9036 = vmatprep.subr.mxu0 0.0
    %9037 = vmatpush1.msra.mxu0 0.0
    %9038 = vmatprep.subr.mxu0 0.0
    %9039 = vmatpush1.msra.mxu0 0.0
    %9040 = vmatprep.subr.mxu0 0.0
    %9041 = vmatpush1.msra.mxu0 0.0
    %9042 = vmatprep.subr.mxu0 0.0
    %9043 = vmatpush1.msra.mxu0 0.0
    %9044 = vmatprep.subr.mxu0 0.0
    %9045 = vmatpush1.msra.mxu0 0.0
    %9046 = vmatprep.subr.mxu0 0.0
    %9047 = vmatpush1.msra.mxu0 0.0
    %9048 = vmatprep.subr.mxu0 0.0
    %9049 = vmatpush1.msra.mxu0 0.0
    %9050 = vmatprep.mubr.f32.mxu0 0.0
    %9051 = vmatmul.mubr.f32.gmra.mrb[0].mxu0 %v8984
    %v9052 = vpop.f32.mrb[0].mxu0
    %v9053 = vadd.f32 %v4890, %v9052
    %v9054 = vpop.f32.mrb[0].mxu0
    %9055 = vdwg.mxu0
    %v9057 = vsel %vm4891, %v4876, 0
    %9059 = vmatprep.subr.mxu0 0.0
    %9060 = vmatpush1.msra.mxu0 %v4883
    %9061 = vmatprep.subr.mxu0 0.0
    %9062 = vmatpush1.msra.mxu0 %v4884
    %9063 = vmatprep.subr.mxu0 0.0
    %9064 = vmatpush1.msra.mxu0 %v4896
    %9065 = vmatprep.subr.mxu0 0.0
    %9066 = vmatpush1.msra.mxu0 0.0
    %9067 = vmatprep.subr.mxu0 0.0
    %9068 = vmatpush1.msra.mxu0 0.0
    %9069 = vmatprep.subr.mxu0 0.0
    %9070 = vmatpush1.msra.mxu0 0.0
    %9071 = vmatprep.subr.mxu0 0.0
    %9072 = vmatpush1.msra.mxu0 0.0
    %9073 = vmatprep.subr.mxu0 0.0
    %9074 = vmatpush1.msra.mxu0 0.0
    %9075 = vmatprep.subr.mxu0 0.0
    %9076 = vmatpush1.msra.mxu0 0.0
    %9077 = vmatprep.subr.mxu0 0.0
    %9078 = vmatpush1.msra.mxu0 0.0
    %9079 = vmatprep.subr.mxu0 0.0
    %9080 = vmatpush1.msra.mxu0 0.0
    %9081 = vmatprep.subr.mxu0 0.0
    %9082 = vmatpush1.msra.mxu0 0.0
    %9083 = vmatprep.subr.mxu0 0.0
    %9084 = vmatpush1.msra.mxu0 0.0
    %9085 = vmatprep.subr.mxu0 0.0
    %9086 = vmatpush1.msra.mxu0 0.0
    %9087 = vmatprep.subr.mxu0 0.0
    %9088 = vmatpush1.msra.mxu0 0.0
    %9089 = vmatprep.subr.mxu0 0.0
    %9090 = vmatpush1.msra.mxu0 0.0
    %9091 = vmatprep.subr.mxu0 0.0
    %9092 = vmatpush1.msra.mxu0 0.0
    %9093 = vmatprep.subr.mxu0 0.0
    %9094 = vmatpush1.msra.mxu0 0.0
    %9095 = vmatprep.subr.mxu0 0.0
    %9096 = vmatpush1.msra.mxu0 0.0
    %9097 = vmatprep.subr.mxu0 0.0
    %9098 = vmatpush1.msra.mxu0 0.0
    %9099 = vmatprep.subr.mxu0 0.0
    %9100 = vmatpush1.msra.mxu0 0.0
    %9101 = vmatprep.subr.mxu0 0.0
    %9102 = vmatpush1.msra.mxu0 0.0
    %9103 = vmatprep.subr.mxu0 0.0
    %9104 = vmatpush1.msra.mxu0 0.0
    %9105 = vmatprep.subr.mxu0 0.0
    %9106 = vmatpush1.msra.mxu0 0.0
    %9107 = vmatprep.subr.mxu0 0.0
    %9108 = vmatpush1.msra.mxu0 0.0
    %9109 = vmatprep.subr.mxu0 0.0
    %9110 = vmatpush1.msra.mxu0 0.0
    %9111 = vmatprep.subr.mxu0 0.0
    %9112 = vmatpush1.msra.mxu0 0.0
    %9113 = vmatprep.subr.mxu0 0.0
    %9114 = vmatpush1.msra.mxu0 0.0
    %9115 = vmatprep.subr.mxu0 0.0
    %9116 = vmatpush1.msra.mxu0 0.0
    %9117 = vmatprep.subr.mxu0 0.0
    %9118 = vmatpush1.msra.mxu0 0.0
    %9119 = vmatprep.subr.mxu0 0.0
    %9120 = vmatpush1.msra.mxu0 0.0
    %9121 = vmatprep.subr.mxu0 0.0
    %9122 = vmatpush1.msra.mxu0 0.0
    %9123 = vmatprep.mubr.f32.mxu0 0.0
    %9124 = vmatmul.mubr.f32.gmra.mrb[0].mxu0 %v9057
    %v9125 = vpop.f32.mrb[0].mxu0
    %v9126 = vadd.f32 %v4890, %v9125
    %v9127 = vpop.f32.mrb[0].mxu0
    %9128 = vdwg.mxu0
    %v9130 = vsel %vm4891, %v4877, 0
    %9132 = vmatprep.subr.mxu0 0.0
    %9133 = vmatpush1.msra.mxu0 %v4883
    %9134 = vmatprep.subr.mxu0 0.0
    %9135 = vmatpush1.msra.mxu0 %v4884
    %9136 = vmatprep.subr.mxu0 0.0
    %9137 = vmatpush1.msra.mxu0 %v4896
    %9138 = vmatprep.subr.mxu0 0.0
    %9139 = vmatpush1.msra.mxu0 0.0
    %9140 = vmatprep.subr.mxu0 0.0
    %9141 = vmatpush1.msra.mxu0 0.0
    %9142 = vmatprep.subr.mxu0 0.0
    %9143 = vmatpush1.msra.mxu0 0.0
    %9144 = vmatprep.subr.mxu0 0.0
    %9145 = vmatpush1.msra.mxu0 0.0
    %9146 = vmatprep.subr.mxu0 0.0
    %9147 = vmatpush1.msra.mxu0 0.0
    %9148 = vmatprep.subr.mxu0 0.0
    %9149 = vmatpush1.msra.mxu0 0.0
    %9150 = vmatprep.subr.mxu0 0.0
    %9151 = vmatpush1.msra.mxu0 0.0
    %9152 = vmatprep.subr.mxu0 0.0
    %9153 = vmatpush1.msra.mxu0 0.0
    %9154 = vmatprep.subr.mxu0 0.0
    %9155 = vmatpush1.msra.mxu0 0.0
    %9156 = vmatprep.subr.mxu0 0.0
    %9157 = vmatpush1.msra.mxu0 0.0
    %9158 = vmatprep.subr.mxu0 0.0
    %9159 = vmatpush1.msra.mxu0 0.0
    %9160 = vmatprep.subr.mxu0 0.0
    %9161 = vmatpush1.msra.mxu0 0.0
    %9162 = vmatprep.subr.mxu0 0.0
    %9163 = vmatpush1.msra.mxu0 0.0
    %9164 = vmatprep.subr.mxu0 0.0
    %9165 = vmatpush1.msra.mxu0 0.0
    %9166 = vmatprep.subr.mxu0 0.0
    %9167 = vmatpush1.msra.mxu0 0.0
    %9168 = vmatprep.subr.mxu0 0.0
    %9169 = vmatpush1.msra.mxu0 0.0
    %9170 = vmatprep.subr.mxu0 0.0
    %9171 = vmatpush1.msra.mxu0 0.0
    %9172 = vmatprep.subr.mxu0 0.0
    %9173 = vmatpush1.msra.mxu0 0.0
    %9174 = vmatprep.subr.mxu0 0.0
    %9175 = vmatpush1.msra.mxu0 0.0
    %9176 = vmatprep.subr.mxu0 0.0
    %9177 = vmatpush1.msra.mxu0 0.0
    %9178 = vmatprep.subr.mxu0 0.0
    %9179 = vmatpush1.msra.mxu0 0.0
    %9180 = vmatprep.subr.mxu0 0.0
    %9181 = vmatpush1.msra.mxu0 0.0
    %9182 = vmatprep.subr.mxu0 0.0
    %9183 = vmatpush1.msra.mxu0 0.0
    %9184 = vmatprep.subr.mxu0 0.0
    %9185 = vmatpush1.msra.mxu0 0.0
    %9186 = vmatprep.subr.mxu0 0.0
    %9187 = vmatpush1.msra.mxu0 0.0
    %9188 = vmatprep.subr.mxu0 0.0
    %9189 = vmatpush1.msra.mxu0 0.0
    %9190 = vmatprep.subr.mxu0 0.0
    %9191 = vmatpush1.msra.mxu0 0.0
    %9192 = vmatprep.subr.mxu0 0.0
    %9193 = vmatpush1.msra.mxu0 0.0
    %9194 = vmatprep.subr.mxu0 0.0
    %9195 = vmatpush1.msra.mxu0 0.0
    %9196 = vmatprep.mubr.f32.mxu0 0.0
    %9197 = vmatmul.mubr.f32.gmra.mrb[0].mxu0 %v9130
    %v9198 = vpop.f32.mrb[0].mxu0
    %v9199 = vadd.f32 %v4890, %v9198
    %v9200 = vpop.f32.mrb[0].mxu0
    %9201 = vdwg.mxu0
    %v9203 = vsel %vm4891, %v4878, 0
    %9205 = vmatprep.subr.mxu0 0.0
    %9206 = vmatpush1.msra.mxu0 %v4883
    %9207 = vmatprep.subr.mxu0 0.0
    %9208 = vmatpush1.msra.mxu0 %v4884
    %9209 = vmatprep.subr.mxu0 0.0
    %9210 = vmatpush1.msra.mxu0 %v4896
    %9211 = vmatprep.subr.mxu0 0.0
    %9212 = vmatpush1.msra.mxu0 0.0
    %9213 = vmatprep.subr.mxu0 0.0
    %9214 = vmatpush1.msra.mxu0 0.0
    %9215 = vmatprep.subr.mxu0 0.0
    %9216 = vmatpush1.msra.mxu0 0.0
    %9217 = vmatprep.subr.mxu0 0.0
    %9218 = vmatpush1.msra.mxu0 0.0
    %9219 = vmatprep.subr.mxu0 0.0
    %9220 = vmatpush1.msra.mxu0 0.0
    %9221 = vmatprep.subr.mxu0 0.0
    %9222 = vmatpush1.msra.mxu0 0.0
    %9223 = vmatprep.subr.mxu0 0.0
    %9224 = vmatpush1.msra.mxu0 0.0
    %9225 = vmatprep.subr.mxu0 0.0
    %9226 = vmatpush1.msra.mxu0 0.0
    %9227 = vmatprep.subr.mxu0 0.0
    %9228 = vmatpush1.msra.mxu0 0.0
    %9229 = vmatprep.subr.mxu0 0.0
    %9230 = vmatpush1.msra.mxu0 0.0
    %9231 = vmatprep.subr.mxu0 0.0
    %9232 = vmatpush1.msra.mxu0 0.0
    %9233 = vmatprep.subr.mxu0 0.0
    %9234 = vmatpush1.msra.mxu0 0.0
    %9235 = vmatprep.subr.mxu0 0.0
    %9236 = vmatpush1.msra.mxu0 0.0
    %9237 = vmatprep.subr.mxu0 0.0
    %9238 = vmatpush1.msra.mxu0 0.0
    %9239 = vmatprep.subr.mxu0 0.0
    %9240 = vmatpush1.msra.mxu0 0.0
    %9241 = vmatprep.subr.mxu0 0.0
    %9242 = vmatpush1.msra.mxu0 0.0
    %9243 = vmatprep.subr.mxu0 0.0
    %9244 = vmatpush1.msra.mxu0 0.0
    %9245 = vmatprep.subr.mxu0 0.0
    %9246 = vmatpush1.msra.mxu0 0.0
    %9247 = vmatprep.subr.mxu0 0.0
    %9248 = vmatpush1.msra.mxu0 0.0
    %9249 = vmatprep.subr.mxu0 0.0
    %9250 = vmatpush1.msra.mxu0 0.0
    %9251 = vmatprep.subr.mxu0 0.0
    %9252 = vmatpush1.msra.mxu0 0.0
    %9253 = vmatprep.subr.mxu0 0.0
    %9254 = vmatpush1.msra.mxu0 0.0
    %9255 = vmatprep.subr.mxu0 0.0
    %9256 = vmatpush1.msra.mxu0 0.0
    %9257 = vmatprep.subr.mxu0 0.0
    %9258 = vmatpush1.msra.mxu0 0.0
    %9259 = vmatprep.subr.mxu0 0.0
    %9260 = vmatpush1.msra.mxu0 0.0
    %9261 = vmatprep.subr.mxu0 0.0
    %9262 = vmatpush1.msra.mxu0 0.0
    %9263 = vmatprep.subr.mxu0 0.0
    %9264 = vmatpush1.msra.mxu0 0.0
    %9265 = vmatprep.subr.mxu0 0.0
    %9266 = vmatpush1.msra.mxu0 0.0
    %9267 = vmatprep.subr.mxu0 0.0
    %9268 = vmatpush1.msra.mxu0 0.0
    %9269 = vmatprep.mubr.f32.mxu0 0.0
    %9270 = vmatmul.mubr.f32.gmra.mrb[0].mxu0 %v9203
    %v9271 = vpop.f32.mrb[0].mxu0
    %v9272 = vadd.f32 %v4890, %v9271
    %v9273 = vpop.f32.mrb[0].mxu0
    %9274 = vdwg.mxu0
    %v9276 = vsel %vm4891, %v4879, 0
    %9278 = vmatprep.subr.mxu0 0.0
    %9279 = vmatpush1.msra.mxu0 %v4883
    %9280 = vmatprep.subr.mxu0 0.0
    %9281 = vmatpush1.msra.mxu0 %v4884
    %9282 = vmatprep.subr.mxu0 0.0
    %9283 = vmatpush1.msra.mxu0 %v4896
    %9284 = vmatprep.subr.mxu0 0.0
    %9285 = vmatpush1.msra.mxu0 0.0
    %9286 = vmatprep.subr.mxu0 0.0
    %9287 = vmatpush1.msra.mxu0 0.0
    %9288 = vmatprep.subr.mxu0 0.0
    %9289 = vmatpush1.msra.mxu0 0.0
    %9290 = vmatprep.subr.mxu0 0.0
    %9291 = vmatpush1.msra.mxu0 0.0
    %9292 = vmatprep.subr.mxu0 0.0
    %9293 = vmatpush1.msra.mxu0 0.0
    %9294 = vmatprep.subr.mxu0 0.0
    %9295 = vmatpush1.msra.mxu0 0.0
    %9296 = vmatprep.subr.mxu0 0.0
    %9297 = vmatpush1.msra.mxu0 0.0
    %9298 = vmatprep.subr.mxu0 0.0
    %9299 = vmatpush1.msra.mxu0 0.0
    %9300 = vmatprep.subr.mxu0 0.0
    %9301 = vmatpush1.msra.mxu0 0.0
    %9302 = vmatprep.subr.mxu0 0.0
    %9303 = vmatpush1.msra.mxu0 0.0
    %9304 = vmatprep.subr.mxu0 0.0
    %9305 = vmatpush1.msra.mxu0 0.0
    %9306 = vmatprep.subr.mxu0 0.0
    %9307 = vmatpush1.msra.mxu0 0.0
    %9308 = vmatprep.subr.mxu0 0.0
    %9309 = vmatpush1.msra.mxu0 0.0
    %9310 = vmatprep.subr.mxu0 0.0
    %9311 = vmatpush1.msra.mxu0 0.0
    %9312 = vmatprep.subr.mxu0 0.0
    %9313 = vmatpush1.msra.mxu0 0.0
    %9314 = vmatprep.subr.mxu0 0.0
    %9315 = vmatpush1.msra.mxu0 0.0
    %9316 = vmatprep.subr.mxu0 0.0
    %9317 = vmatpush1.msra.mxu0 0.0
    %9318 = vmatprep.subr.mxu0 0.0
    %9319 = vmatpush1.msra.mxu0 0.0
    %9320 = vmatprep.subr.mxu0 0.0
    %9321 = vmatpush1.msra.mxu0 0.0
    %9322 = vmatprep.subr.mxu0 0.0
    %9323 = vmatpush1.msra.mxu0 0.0
    %9324 = vmatprep.subr.mxu0 0.0
    %9325 = vmatpush1.msra.mxu0 0.0
    %9326 = vmatprep.subr.mxu0 0.0
    %9327 = vmatpush1.msra.mxu0 0.0
    %9328 = vmatprep.subr.mxu0 0.0
    %9329 = vmatpush1.msra.mxu0 0.0
    %9330 = vmatprep.subr.mxu0 0.0
    %9331 = vmatpush1.msra.mxu0 0.0
    %9332 = vmatprep.subr.mxu0 0.0
    %9333 = vmatpush1.msra.mxu0 0.0
    %9334 = vmatprep.subr.mxu0 0.0
    %9335 = vmatpush1.msra.mxu0 0.0
    %9336 = vmatprep.subr.mxu0 0.0
    %9337 = vmatpush1.msra.mxu0 0.0
    %9338 = vmatprep.subr.mxu0 0.0
    %9339 = vmatpush1.msra.mxu0 0.0
    %9340 = vmatprep.subr.mxu0 0.0
    %9341 = vmatpush1.msra.mxu0 0.0
    %9342 = vmatprep.mubr.f32.mxu0 0.0
    %9343 = vmatmul.mubr.f32.gmra.mrb[0].mxu0 %v9276
    %v9344 = vpop.f32.mrb[0].mxu0
    %v9345 = vadd.f32 %v4890, %v9344
    %v9346 = vpop.f32.mrb[0].mxu0
    %9347 = vdwg.mxu0
    %v9349 = vsel %vm4891, %v4880, 0
    %9351 = vmatprep.subr.mxu0 0.0
    %9352 = vmatpush1.msra.mxu0 %v4883
    %9353 = vmatprep.subr.mxu0 0.0
    %9354 = vmatpush1.msra.mxu0 %v4884
    %9355 = vmatprep.subr.mxu0 0.0
    %9356 = vmatpush1.msra.mxu0 %v4896
    %9357 = vmatprep.subr.mxu0 0.0
    %9358 = vmatpush1.msra.mxu0 0.0
    %9359 = vmatprep.subr.mxu0 0.0
    %9360 = vmatpush1.msra.mxu0 0.0
    %9361 = vmatprep.subr.mxu0 0.0
    %9362 = vmatpush1.msra.mxu0 0.0
    %9363 = vmatprep.subr.mxu0 0.0
    %9364 = vmatpush1.msra.mxu0 0.0
    %9365 = vmatprep.subr.mxu0 0.0
    %9366 = vmatpush1.msra.mxu0 0.0
    %9367 = vmatprep.subr.mxu0 0.0
    %9368 = vmatpush1.msra.mxu0 0.0
    %9369 = vmatprep.subr.mxu0 0.0
    %9370 = vmatpush1.msra.mxu0 0.0
    %9371 = vmatprep.subr.mxu0 0.0
    %9372 = vmatpush1.msra.mxu0 0.0
    %9373 = vmatprep.subr.mxu0 0.0
    %9374 = vmatpush1.msra.mxu0 0.0
    %9375 = vmatprep.subr.mxu0 0.0
    %9376 = vmatpush1.msra.mxu0 0.0
    %9377 = vmatprep.subr.mxu0 0.0
    %9378 = vmatpush1.msra.mxu0 0.0
    %9379 = vmatprep.subr.mxu0 0.0
    %9380 = vmatpush1.msra.mxu0 0.0
    %9381 = vmatprep.subr.mxu0 0.0
    %9382 = vmatpush1.msra.mxu0 0.0
    %9383 = vmatprep.subr.mxu0 0.0
    %9384 = vmatpush1.msra.mxu0 0.0
    %9385 = vmatprep.subr.mxu0 0.0
    %9386 = vmatpush1.msra.mxu0 0.0
    %9387 = vmatprep.subr.mxu0 0.0
    %9388 = vmatpush1.msra.mxu0 0.0
    %9389 = vmatprep.subr.mxu0 0.0
    %9390 = vmatpush1.msra.mxu0 0.0
    %9391 = vmatprep.subr.mxu0 0.0
    %9392 = vmatpush1.msra.mxu0 0.0
    %9393 = vmatprep.subr.mxu0 0.0
    %9394 = vmatpush1.msra.mxu0 0.0
    %9395 = vmatprep.subr.mxu0 0.0
    %9396 = vmatpush1.msra.mxu0 0.0
    %9397 = vmatprep.subr.mxu0 0.0
    %9398 = vmatpush1.msra.mxu0 0.0
    %9399 = vmatprep.subr.mxu0 0.0
    %9400 = vmatpush1.msra.mxu0 0.0
    %9401 = vmatprep.subr.mxu0 0.0
    %9402 = vmatpush1.msra.mxu0 0.0
    %9403 = vmatprep.subr.mxu0 0.0
    %9404 = vmatpush1.msra.mxu0 0.0
    %9405 = vmatprep.subr.mxu0 0.0
    %9406 = vmatpush1.msra.mxu0 0.0
    %9407 = vmatprep.subr.mxu0 0.0
    %9408 = vmatpush1.msra.mxu0 0.0
    %9409 = vmatprep.subr.mxu0 0.0
    %9410 = vmatpush1.msra.mxu0 0.0
    %9411 = vmatprep.subr.mxu0 0.0
    %9412 = vmatpush1.msra.mxu0 0.0
    %9413 = vmatprep.subr.mxu0 0.0
    %9414 = vmatpush1.msra.mxu0 0.0
    %9415 = vmatprep.mubr.f32.mxu0 0.0
    %9416 = vmatmul.mubr.f32.gmra.mrb[0].mxu0 %v9349
    %v9417 = vpop.f32.mrb[0].mxu0
    %v9418 = vadd.f32 %v4890, %v9417
    %v9419 = vpop.f32.mrb[0].mxu0
    %9420 = vdwg.mxu0
    %v9422 = vsel %vm4891, %v4881, 0
    %9424 = vmatprep.subr.mxu0 0.0
    %9425 = vmatpush1.msra.mxu0 %v4883
    %9426 = vmatprep.subr.mxu0 0.0
    %9427 = vmatpush1.msra.mxu0 %v4884
    %9428 = vmatprep.subr.mxu0 0.0
    %9429 = vmatpush1.msra.mxu0 %v4896
    %9430 = vmatprep.subr.mxu0 0.0
    %9431 = vmatpush1.msra.mxu0 0.0
    %9432 = vmatprep.subr.mxu0 0.0
    %9433 = vmatpush1.msra.mxu0 0.0
    %9434 = vmatprep.subr.mxu0 0.0
    %9435 = vmatpush1.msra.mxu0 0.0
    %9436 = vmatprep.subr.mxu0 0.0
    %9437 = vmatpush1.msra.mxu0 0.0
    %9438 = vmatprep.subr.mxu0 0.0
    %9439 = vmatpush1.msra.mxu0 0.0
    %9440 = vmatprep.subr.mxu0 0.0
    %9441 = vmatpush1.msra.mxu0 0.0
    %9442 = vmatprep.subr.mxu0 0.0
    %9443 = vmatpush1.msra.mxu0 0.0
    %9444 = vmatprep.subr.mxu0 0.0
    %9445 = vmatpush1.msra.mxu0 0.0
    %9446 = vmatprep.subr.mxu0 0.0
    %9447 = vmatpush1.msra.mxu0 0.0
    %9448 = vmatprep.subr.mxu0 0.0
    %9449 = vmatpush1.msra.mxu0 0.0
    %9450 = vmatprep.subr.mxu0 0.0
    %9451 = vmatpush1.msra.mxu0 0.0
    %9452 = vmatprep.subr.mxu0 0.0
    %9453 = vmatpush1.msra.mxu0 0.0
    %9454 = vmatprep.subr.mxu0 0.0
    %9455 = vmatpush1.msra.mxu0 0.0
    %9456 = vmatprep.subr.mxu0 0.0
    %9457 = vmatpush1.msra.mxu0 0.0
    %9458 = vmatprep.subr.mxu0 0.0
    %9459 = vmatpush1.msra.mxu0 0.0
    %9460 = vmatprep.subr.mxu0 0.0
    %9461 = vmatpush1.msra.mxu0 0.0
    %9462 = vmatprep.subr.mxu0 0.0
    %9463 = vmatpush1.msra.mxu0 0.0
    %9464 = vmatprep.subr.mxu0 0.0
    %9465 = vmatpush1.msra.mxu0 0.0
    %9466 = vmatprep.subr.mxu0 0.0
    %9467 = vmatpush1.msra.mxu0 0.0
    %9468 = vmatprep.subr.mxu0 0.0
    %9469 = vmatpush1.msra.mxu0 0.0
    %9470 = vmatprep.subr.mxu0 0.0
    %9471 = vmatpush1.msra.mxu0 0.0
    %9472 = vmatprep.subr.mxu0 0.0
    %9473 = vmatpush1.msra.mxu0 0.0
    %9474 = vmatprep.subr.mxu0 0.0
    %9475 = vmatpush1.msra.mxu0 0.0
    %9476 = vmatprep.subr.mxu0 0.0
    %9477 = vmatpush1.msra.mxu0 0.0
    %9478 = vmatprep.subr.mxu0 0.0
    %9479 = vmatpush1.msra.mxu0 0.0
    %9480 = vmatprep.subr.mxu0 0.0
    %9481 = vmatpush1.msra.mxu0 0.0
    %9482 = vmatprep.subr.mxu0 0.0
    %9483 = vmatpush1.msra.mxu0 0.0
    %9484 = vmatprep.subr.mxu0 0.0
    %9485 = vmatpush1.msra.mxu0 0.0
    %9486 = vmatprep.subr.mxu0 0.0
    %9487 = vmatpush1.msra.mxu0 0.0
    %9488 = vmatprep.mubr.f32.mxu0 0.0
    %9489 = vmatmul.mubr.f32.gmra.mrb[0].mxu0 %v9422
    %v9490 = vpop.f32.mrb[0].mxu0
    %v9491 = vadd.f32 %v4890, %v9490
    %v9492 = vpop.f32.mrb[0].mxu0
    %9493 = vdwg.mxu0
    %v9495 = vsel %vm4891, %v4882, 0
    %9497 = vmatprep.subr.mxu0 0.0
    %9498 = vmatpush1.msra.mxu0 %v4883
    %9499 = vmatprep.subr.mxu0 0.0
    %9500 = vmatpush1.msra.mxu0 %v4884
    %9501 = vmatprep.subr.mxu0 0.0
    %9502 = vmatpush1.msra.mxu0 %v4896
    %9503 = vmatprep.subr.mxu0 0.0
    %9504 = vmatpush1.msra.mxu0 0.0
    %9505 = vmatprep.subr.mxu0 0.0
    %9506 = vmatpush1.msra.mxu0 0.0
    %9507 = vmatprep.subr.mxu0 0.0
    %9508 = vmatpush1.msra.mxu0 0.0
    %9509 = vmatprep.subr.mxu0 0.0
    %9510 = vmatpush1.msra.mxu0 0.0
    %9511 = vmatprep.subr.mxu0 0.0
    %9512 = vmatpush1.msra.mxu0 0.0
    %9513 = vmatprep.subr.mxu0 0.0
    %9514 = vmatpush1.msra.mxu0 0.0
    %9515 = vmatprep.subr.mxu0 0.0
    %9516 = vmatpush1.msra.mxu0 0.0
    %9517 = vmatprep.subr.mxu0 0.0
    %9518 = vmatpush1.msra.mxu0 0.0
    %9519 = vmatprep.subr.mxu0 0.0
    %9520 = vmatpush1.msra.mxu0 0.0
    %9521 = vmatprep.subr.mxu0 0.0
    %9522 = vmatpush1.msra.mxu0 0.0
    %9523 = vmatprep.subr.mxu0 0.0
    %9524 = vmatpush1.msra.mxu0 0.0
    %9525 = vmatprep.subr.mxu0 0.0
    %9526 = vmatpush1.msra.mxu0 0.0
    %9527 = vmatprep.subr.mxu0 0.0
    %9528 = vmatpush1.msra.mxu0 0.0
    %9529 = vmatprep.subr.mxu0 0.0
    %9530 = vmatpush1.msra.mxu0 0.0
    %9531 = vmatprep.subr.mxu0 0.0
    %9532 = vmatpush1.msra.mxu0 0.0
    %9533 = vmatprep.subr.mxu0 0.0
    %9534 = vmatpush1.msra.mxu0 0.0
    %9535 = vmatprep.subr.mxu0 0.0
    %9536 = vmatpush1.msra.mxu0 0.0
    %9537 = vmatprep.subr.mxu0 0.0
    %9538 = vmatpush1.msra.mxu0 0.0
    %9539 = vmatprep.subr.mxu0 0.0
    %9540 = vmatpush1.msra.mxu0 0.0
    %9541 = vmatprep.subr.mxu0 0.0
    %9542 = vmatpush1.msra.mxu0 0.0
    %9543 = vmatprep.subr.mxu0 0.0
    %9544 = vmatpush1.msra.mxu0 0.0
    %9545 = vmatprep.subr.mxu0 0.0
    %9546 = vmatpush1.msra.mxu0 0.0
    %9547 = vmatprep.subr.mxu0 0.0
    %9548 = vmatpush1.msra.mxu0 0.0
    %9549 = vmatprep.subr.mxu0 0.0
    %9550 = vmatpush1.msra.mxu0 0.0
    %9551 = vmatprep.subr.mxu0 0.0
    %9552 = vmatpush1.msra.mxu0 0.0
    %9553 = vmatprep.subr.mxu0 0.0
    %9554 = vmatpush1.msra.mxu0 0.0
    %9555 = vmatprep.subr.mxu0 0.0
    %9556 = vmatpush1.msra.mxu0 0.0
    %9557 = vmatprep.subr.mxu0 0.0
    %9558 = vmatpush1.msra.mxu0 0.0
    %9559 = vmatprep.subr.mxu0 0.0
    %9560 = vmatpush1.msra.mxu0 0.0
    %9561 = vmatprep.mubr.f32.mxu0 0.0
    %9562 = vmatmul.mubr.f32.gmra.mrb[0].mxu0 %v9495
    %v9563 = vpop.f32.mrb[0].mxu0
    %v9564 = vadd.f32 %v4890, %v9563
    %v9565 = vpop.f32.mrb[0].mxu0
    %9566 = vdwg.mxu0
    %v9567 = vmax.f32 %v4965, 0.0
    %v9568 = vmax.f32 %v5038, 0.0
    %v9569 = vmax.f32 %v5111, 0.0
    %v9570 = vmax.f32 %v5184, 0.0
    %v9571 = vmax.f32 %v5257, 0.0
    %v9572 = vmax.f32 %v5330, 0.0
    %v9573 = vmax.f32 %v5403, 0.0
    %v9574 = vmax.f32 %v5476, 0.0
    %v9575 = vmax.f32 %v5549, 0.0
    %v9576 = vmax.f32 %v5622, 0.0
    %v9577 = vmax.f32 %v5695, 0.0
    %v9578 = vmax.f32 %v5768, 0.0
    %v9579 = vmax.f32 %v5841, 0.0
    %v9580 = vmax.f32 %v5914, 0.0
    %v9581 = vmax.f32 %v5987, 0.0
    %v9582 = vmax.f32 %v6060, 0.0
    %v9583 = vmax.f32 %v6133, 0.0
    %v9584 = vmax.f32 %v6206, 0.0
    %v9585 = vmax.f32 %v6279, 0.0
    %v9586 = vmax.f32 %v6352, 0.0
    %v9587 = vmax.f32 %v6425, 0.0
    %v9588 = vmax.f32 %v6498, 0.0
    %v9589 = vmax.f32 %v6571, 0.0
    %v9590 = vmax.f32 %v6644, 0.0
    %v9591 = vmax.f32 %v6717, 0.0
    %v9592 = vmax.f32 %v6790, 0.0
    %v9593 = vmax.f32 %v6863, 0.0
    %v9594 = vmax.f32 %v6936, 0.0
    %v9595 = vmax.f32 %v7009, 0.0
    %v9596 = vmax.f32 %v7082, 0.0
    %v9597 = vmax.f32 %v7155, 0.0
    %v9598 = vmax.f32 %v7228, 0.0
    %v9599 = vmax.f32 %v7301, 0.0
    %v9600 = vmax.f32 %v7374, 0.0
    %v9601 = vmax.f32 %v7447, 0.0
    %v9602 = vmax.f32 %v7520, 0.0
    %v9603 = vmax.f32 %v7593, 0.0
    %v9604 = vmax.f32 %v7666, 0.0
    %v9605 = vmax.f32 %v7739, 0.0
    %v9606 = vmax.f32 %v7812, 0.0
    %v9607 = vmax.f32 %v7885, 0.0
    %v9608 = vmax.f32 %v7958, 0.0
    %v9609 = vmax.f32 %v8031, 0.0
    %v9610 = vmax.f32 %v8104, 0.0
    %v9611 = vmax.f32 %v8177, 0.0
    %v9612 = vmax.f32 %v8250, 0.0
    %v9613 = vmax.f32 %v8323, 0.0
    %v9614 = vmax.f32 %v8396, 0.0
    %v9615 = vmax.f32 %v8469, 0.0
    %v9616 = vmax.f32 %v8542, 0.0
    %v9617 = vmax.f32 %v8615, 0.0
    %v9618 = vmax.f32 %v8688, 0.0
    %v9619 = vmax.f32 %v8761, 0.0
    %v9620 = vmax.f32 %v8834, 0.0
    %v9621 = vmax.f32 %v8907, 0.0
    %v9622 = vmax.f32 %v8980, 0.0
    %v9623 = vmax.f32 %v9053, 0.0
    %v9624 = vmax.f32 %v9126, 0.0
    %v9625 = vmax.f32 %v9199, 0.0
    %v9626 = vmax.f32 %v9272, 0.0
    %v9627 = vmax.f32 %v9345, 0.0
    %v9628 = vmax.f32 %v9418, 0.0
    %v9629 = vmax.f32 %v9491, 0.0
    %v9630 = vmax.f32 %v9564, 0.0
    %v9631 = vld [vmem:[#allocation6 + $0x180] sm:$0x1]
    %v9632 = vlaneseq
    %v9633 = vshrl.u32 %v9632, 7
    %v9634 = vsub.s32 0, %v9633
    %v9635 = vrot.slane %v9631, %v9634
    %v9636 = vmul.f32 %v9567, %v9635
    %v9637 = vmul.f32 %v9568, %v9635
    %v9638 = vmul.f32 %v9569, %v9635
    %v9639 = vmul.f32 %v9570, %v9635
    %v9640 = vmul.f32 %v9571, %v9635
    %v9641 = vmul.f32 %v9572, %v9635
    %v9642 = vmul.f32 %v9573, %v9635
    %v9643 = vmul.f32 %v9574, %v9635
    %v9644 = vmul.f32 %v9575, %v9635
    %v9645 = vmul.f32 %v9576, %v9635
    %v9646 = vmul.f32 %v9577, %v9635
    %v9647 = vmul.f32 %v9578, %v9635
    %v9648 = vmul.f32 %v9579, %v9635
    %v9649 = vmul.f32 %v9580, %v9635
    %v9650 = vmul.f32 %v9581, %v9635
    %v9651 = vmul.f32 %v9582, %v9635
    %v9652 = vmul.f32 %v9583, %v9635
    %v9653 = vmul.f32 %v9584, %v9635
    %v9654 = vmul.f32 %v9585, %v9635
    %v9655 = vmul.f32 %v9586, %v9635
    %v9656 = vmul.f32 %v9587, %v9635
    %v9657 = vmul.f32 %v9588, %v9635
    %v9658 = vmul.f32 %v9589, %v9635
    %v9659 = vmul.f32 %v9590, %v9635
    %v9660 = vmul.f32 %v9591, %v9635
    %v9661 = vmul.f32 %v9592, %v9635
    %v9662 = vmul.f32 %v9593, %v9635
    %v9663 = vmul.f32 %v9594, %v9635
    %v9664 = vmul.f32 %v9595, %v9635
    %v9665 = vmul.f32 %v9596, %v9635
    %v9666 = vmul.f32 %v9597, %v9635
    %v9667 = vmul.f32 %v9598, %v9635
    %v9668 = vmul.f32 %v9599, %v9635
    %v9669 = vmul.f32 %v9600, %v9635
    %v9670 = vmul.f32 %v9601, %v9635
    %v9671 = vmul.f32 %v9602, %v9635
    %v9672 = vmul.f32 %v9603, %v9635
    %v9673 = vmul.f32 %v9604, %v9635
    %v9674 = vmul.f32 %v9605, %v9635
    %v9675 = vmul.f32 %v9606, %v9635
    %v9676 = vmul.f32 %v9607, %v9635
    %v9677 = vmul.f32 %v9608, %v9635
    %v9678 = vmul.f32 %v9609, %v9635
    %v9679 = vmul.f32 %v9610, %v9635
    %v9680 = vmul.f32 %v9611, %v9635
    %v9681 = vmul.f32 %v9612, %v9635
    %v9682 = vmul.f32 %v9613, %v9635
    %v9683 = vmul.f32 %v9614, %v9635
    %v9684 = vmul.f32 %v9615, %v9635
    %v9685 = vmul.f32 %v9616, %v9635
    %v9686 = vmul.f32 %v9617, %v9635
    %v9687 = vmul.f32 %v9618, %v9635
    %v9688 = vmul.f32 %v9619, %v9635
    %v9689 = vmul.f32 %v9620, %v9635
    %v9690 = vmul.f32 %v9621, %v9635
    %v9691 = vmul.f32 %v9622, %v9635
    %v9692 = vmul.f32 %v9623, %v9635
    %v9693 = vmul.f32 %v9624, %v9635
    %v9694 = vmul.f32 %v9625, %v9635
    %v9695 = vmul.f32 %v9626, %v9635
    %v9696 = vmul.f32 %v9627, %v9635
    %v9697 = vmul.f32 %v9628, %v9635
    %v9698 = vmul.f32 %v9629, %v9635
    %v9699 = vmul.f32 %v9630, %v9635
    %vm9700 = vcmask 156672
    %v9701 = vsel %vm9700, %v9636, 0.0
    %9702 = vadd.xlane.f32.xlu0 %v9701
    %v9703 = vpop.xlane.xlu0 %9702
    %v9704 = vsel %vm9700, %v9637, 0.0
    %9705 = vadd.xlane.f32.xlu0 %v9704
    %v9706 = vpop.xlane.xlu0 %9705
    %v9707 = vsel %vm9700, %v9638, 0.0
    %9708 = vadd.xlane.f32.xlu0 %v9707
    %v9709 = vpop.xlane.xlu0 %9708
    %v9710 = vsel %vm9700, %v9639, 0.0
    %9711 = vadd.xlane.f32.xlu0 %v9710
    %v9712 = vpop.xlane.xlu0 %9711
    %v9713 = vsel %vm9700, %v9640, 0.0
    %9714 = vadd.xlane.f32.xlu0 %v9713
    %v9715 = vpop.xlane.xlu0 %9714
    %v9716 = vsel %vm9700, %v9641, 0.0
    %9717 = vadd.xlane.f32.xlu0 %v9716
    %v9718 = vpop.xlane.xlu0 %9717
    %v9719 = vsel %vm9700, %v9642, 0.0
    %9720 = vadd.xlane.f32.xlu0 %v9719
    %v9721 = vpop.xlane.xlu0 %9720
    %v9722 = vsel %vm9700, %v9643, 0.0
    %9723 = vadd.xlane.f32.xlu0 %v9722
    %v9724 = vpop.xlane.xlu0 %9723
    %v9725 = vsel %vm9700, %v9644, 0.0
    %9726 = vadd.xlane.f32.xlu0 %v9725
    %v9727 = vpop.xlane.xlu0 %9726
    %v9728 = vsel %vm9700, %v9645, 0.0
    %9729 = vadd.xlane.f32.xlu0 %v9728
    %v9730 = vpop.xlane.xlu0 %9729
    %v9731 = vsel %vm9700, %v9646, 0.0
    %9732 = vadd.xlane.f32.xlu0 %v9731
    %v9733 = vpop.xlane.xlu0 %9732
    %v9734 = vsel %vm9700, %v9647, 0.0
    %9735 = vadd.xlane.f32.xlu0 %v9734
    %v9736 = vpop.xlane.xlu0 %9735
    %v9737 = vsel %vm9700, %v9648, 0.0
    %9738 = vadd.xlane.f32.xlu0 %v9737
    %v9739 = vpop.xlane.xlu0 %9738
    %v9740 = vsel %vm9700, %v9649, 0.0
    %9741 = vadd.xlane.f32.xlu0 %v9740
    %v9742 = vpop.xlane.xlu0 %9741
    %v9743 = vsel %vm9700, %v9650, 0.0
    %9744 = vadd.xlane.f32.xlu0 %v9743
    %v9745 = vpop.xlane.xlu0 %9744
    %v9746 = vsel %vm9700, %v9651, 0.0
    %9747 = vadd.xlane.f32.xlu0 %v9746
    %v9748 = vpop.xlane.xlu0 %9747
    %v9749 = vsel %vm9700, %v9652, 0.0
    %9750 = vadd.xlane.f32.xlu0 %v9749
    %v9751 = vpop.xlane.xlu0 %9750
    %v9752 = vsel %vm9700, %v9653, 0.0
    %9753 = vadd.xlane.f32.xlu0 %v9752
    %v9754 = vpop.xlane.xlu0 %9753
    %v9755 = vsel %vm9700, %v9654, 0.0
    %9756 = vadd.xlane.f32.xlu0 %v9755
    %v9757 = vpop.xlane.xlu0 %9756
    %v9758 = vsel %vm9700, %v9655, 0.0
    %9759 = vadd.xlane.f32.xlu0 %v9758
    %v9760 = vpop.xlane.xlu0 %9759
    %v9761 = vsel %vm9700, %v9656, 0.0
    %9762 = vadd.xlane.f32.xlu0 %v9761
    %v9763 = vpop.xlane.xlu0 %9762
    %v9764 = vsel %vm9700, %v9657, 0.0
    %9765 = vadd.xlane.f32.xlu0 %v9764
    %v9766 = vpop.xlane.xlu0 %9765
    %v9767 = vsel %vm9700, %v9658, 0.0
    %9768 = vadd.xlane.f32.xlu0 %v9767
    %v9769 = vpop.xlane.xlu0 %9768
    %v9770 = vsel %vm9700, %v9659, 0.0
    %9771 = vadd.xlane.f32.xlu0 %v9770
    %v9772 = vpop.xlane.xlu0 %9771
    %v9773 = vsel %vm9700, %v9660, 0.0
    %9774 = vadd.xlane.f32.xlu0 %v9773
    %v9775 = vpop.xlane.xlu0 %9774
    %v9776 = vsel %vm9700, %v9661, 0.0
    %9777 = vadd.xlane.f32.xlu0 %v9776
    %v9778 = vpop.xlane.xlu0 %9777
    %v9779 = vsel %vm9700, %v9662, 0.0
    %9780 = vadd.xlane.f32.xlu0 %v9779
    %v9781 = vpop.xlane.xlu0 %9780
    %v9782 = vsel %vm9700, %v9663, 0.0
    %9783 = vadd.xlane.f32.xlu0 %v9782
    %v9784 = vpop.xlane.xlu0 %9783
    %v9785 = vsel %vm9700, %v9664, 0.0
    %9786 = vadd.xlane.f32.xlu0 %v9785
    %v9787 = vpop.xlane.xlu0 %9786
    %v9788 = vsel %vm9700, %v9665, 0.0
    %9789 = vadd.xlane.f32.xlu0 %v9788
    %v9790 = vpop.xlane.xlu0 %9789
    %v9791 = vsel %vm9700, %v9666, 0.0
    %9792 = vadd.xlane.f32.xlu0 %v9791
    %v9793 = vpop.xlane.xlu0 %9792
    %v9794 = vsel %vm9700, %v9667, 0.0
    %9795 = vadd.xlane.f32.xlu0 %v9794
    %v9796 = vpop.xlane.xlu0 %9795
    %v9797 = vsel %vm9700, %v9668, 0.0
    %9798 = vadd.xlane.f32.xlu0 %v9797
    %v9799 = vpop.xlane.xlu0 %9798
    %v9800 = vsel %vm9700, %v9669, 0.0
    %9801 = vadd.xlane.f32.xlu0 %v9800
    %v9802 = vpop.xlane.xlu0 %9801
    %v9803 = vsel %vm9700, %v9670, 0.0
    %9804 = vadd.xlane.f32.xlu0 %v9803
    %v9805 = vpop.xlane.xlu0 %9804
    %v9806 = vsel %vm9700, %v9671, 0.0
    %9807 = vadd.xlane.f32.xlu0 %v9806
    %v9808 = vpop.xlane.xlu0 %9807
    %v9809 = vsel %vm9700, %v9672, 0.0
    %9810 = vadd.xlane.f32.xlu0 %v9809
    %v9811 = vpop.xlane.xlu0 %9810
    %v9812 = vsel %vm9700, %v9673, 0.0
    %9813 = vadd.xlane.f32.xlu0 %v9812
    %v9814 = vpop.xlane.xlu0 %9813
    %v9815 = vsel %vm9700, %v9674, 0.0
    %9816 = vadd.xlane.f32.xlu0 %v9815
    %v9817 = vpop.xlane.xlu0 %9816
    %v9818 = vsel %vm9700, %v9675, 0.0
    %9819 = vadd.xlane.f32.xlu0 %v9818
    %v9820 = vpop.xlane.xlu0 %9819
    %v9821 = vsel %vm9700, %v9676, 0.0
    %9822 = vadd.xlane.f32.xlu0 %v9821
    %v9823 = vpop.xlane.xlu0 %9822
    %v9824 = vsel %vm9700, %v9677, 0.0
    %9825 = vadd.xlane.f32.xlu0 %v9824
    %v9826 = vpop.xlane.xlu0 %9825
    %v9827 = vsel %vm9700, %v9678, 0.0
    %9828 = vadd.xlane.f32.xlu0 %v9827
    %v9829 = vpop.xlane.xlu0 %9828
    %v9830 = vsel %vm9700, %v9679, 0.0
    %9831 = vadd.xlane.f32.xlu0 %v9830
    %v9832 = vpop.xlane.xlu0 %9831
    %v9833 = vsel %vm9700, %v9680, 0.0
    %9834 = vadd.xlane.f32.xlu0 %v9833
    %v9835 = vpop.xlane.xlu0 %9834
    %v9836 = vsel %vm9700, %v9681, 0.0
    %9837 = vadd.xlane.f32.xlu0 %v9836
    %v9838 = vpop.xlane.xlu0 %9837
    %v9839 = vsel %vm9700, %v9682, 0.0
    %9840 = vadd.xlane.f32.xlu0 %v9839
    %v9841 = vpop.xlane.xlu0 %9840
    %v9842 = vsel %vm9700, %v9683, 0.0
    %9843 = vadd.xlane.f32.xlu0 %v9842
    %v9844 = vpop.xlane.xlu0 %9843
    %v9845 = vsel %vm9700, %v9684, 0.0
    %9846 = vadd.xlane.f32.xlu0 %v9845
    %v9847 = vpop.xlane.xlu0 %9846
    %v9848 = vsel %vm9700, %v9685, 0.0
    %9849 = vadd.xlane.f32.xlu0 %v9848
    %v9850 = vpop.xlane.xlu0 %9849
    %v9851 = vsel %vm9700, %v9686, 0.0
    %9852 = vadd.xlane.f32.xlu0 %v9851
    %v9853 = vpop.xlane.xlu0 %9852
    %v9854 = vsel %vm9700, %v9687, 0.0
    %9855 = vadd.xlane.f32.xlu0 %v9854
    %v9856 = vpop.xlane.xlu0 %9855
    %v9857 = vsel %vm9700, %v9688, 0.0
    %9858 = vadd.xlane.f32.xlu0 %v9857
    %v9859 = vpop.xlane.xlu0 %9858
    %v9860 = vsel %vm9700, %v9689, 0.0
    %9861 = vadd.xlane.f32.xlu0 %v9860
    %v9862 = vpop.xlane.xlu0 %9861
    %v9863 = vsel %vm9700, %v9690, 0.0
    %9864 = vadd.xlane.f32.xlu0 %v9863
    %v9865 = vpop.xlane.xlu0 %9864
    %v9866 = vsel %vm9700, %v9691, 0.0
    %9867 = vadd.xlane.f32.xlu0 %v9866
    %v9868 = vpop.xlane.xlu0 %9867
    %v9869 = vsel %vm9700, %v9692, 0.0
    %9870 = vadd.xlane.f32.xlu0 %v9869
    %v9871 = vpop.xlane.xlu0 %9870
    %v9872 = vsel %vm9700, %v9693, 0.0
    %9873 = vadd.xlane.f32.xlu0 %v9872
    %v9874 = vpop.xlane.xlu0 %9873
    %v9875 = vsel %vm9700, %v9694, 0.0
    %9876 = vadd.xlane.f32.xlu0 %v9875
    %v9877 = vpop.xlane.xlu0 %9876
    %v9878 = vsel %vm9700, %v9695, 0.0
    %9879 = vadd.xlane.f32.xlu0 %v9878
    %v9880 = vpop.xlane.xlu0 %9879
    %v9881 = vsel %vm9700, %v9696, 0.0
    %9882 = vadd.xlane.f32.xlu0 %v9881
    %v9883 = vpop.xlane.xlu0 %9882
    %v9884 = vsel %vm9700, %v9697, 0.0
    %9885 = vadd.xlane.f32.xlu0 %v9884
    %v9886 = vpop.xlane.xlu0 %9885
    %v9887 = vsel %vm9700, %v9698, 0.0
    %9888 = vadd.xlane.f32.xlu0 %v9887
    %v9889 = vpop.xlane.xlu0 %9888
    %v9890 = vsel %vm9700, %v9699, 0.0
    %9891 = vadd.xlane.f32.xlu0 %v9890
    %v9892 = vpop.xlane.xlu0 %9891
    %v9893 = vld [vmem:[#allocation6 + $0x188] sm:$0x1]
    %s9895 = vtos %v9893
    %v9896 = vstv %s9895
    %v9898 = vadd.f32 %v9703, %v9896
    %v9899 = vadd.f32 %v9706, %v9896
    %v9900 = vadd.f32 %v9709, %v9896
    %v9901 = vadd.f32 %v9712, %v9896
    %v9902 = vadd.f32 %v9715, %v9896
    %v9903 = vadd.f32 %v9718, %v9896
    %v9904 = vadd.f32 %v9721, %v9896
    %v9905 = vadd.f32 %v9724, %v9896
    %v9906 = vadd.f32 %v9727, %v9896
    %v9907 = vadd.f32 %v9730, %v9896
    %v9908 = vadd.f32 %v9733, %v9896
    %v9909 = vadd.f32 %v9736, %v9896
    %v9910 = vadd.f32 %v9739, %v9896
    %v9911 = vadd.f32 %v9742, %v9896
    %v9912 = vadd.f32 %v9745, %v9896
    %v9913 = vadd.f32 %v9748, %v9896
    %v9914 = vadd.f32 %v9751, %v9896
    %v9915 = vadd.f32 %v9754, %v9896
    %v9916 = vadd.f32 %v9757, %v9896
    %v9917 = vadd.f32 %v9760, %v9896
    %v9918 = vadd.f32 %v9763, %v9896
    %v9919 = vadd.f32 %v9766, %v9896
    %v9920 = vadd.f32 %v9769, %v9896
    %v9921 = vadd.f32 %v9772, %v9896
    %v9922 = vadd.f32 %v9775, %v9896
    %v9923 = vadd.f32 %v9778, %v9896
    %v9924 = vadd.f32 %v9781, %v9896
    %v9925 = vadd.f32 %v9784, %v9896
    %v9926 = vadd.f32 %v9787, %v9896
    %v9927 = vadd.f32 %v9790, %v9896
    %v9928 = vadd.f32 %v9793, %v9896
    %v9929 = vadd.f32 %v9796, %v9896
    %v9930 = vadd.f32 %v9799, %v9896
    %v9931 = vadd.f32 %v9802, %v9896
    %v9932 = vadd.f32 %v9805, %v9896
    %v9933 = vadd.f32 %v9808, %v9896
    %v9934 = vadd.f32 %v9811, %v9896
    %v9935 = vadd.f32 %v9814, %v9896
    %v9936 = vadd.f32 %v9817, %v9896
    %v9937 = vadd.f32 %v9820, %v9896
    %v9938 = vadd.f32 %v9823, %v9896
    %v9939 = vadd.f32 %v9826, %v9896
    %v9940 = vadd.f32 %v9829, %v9896
    %v9941 = vadd.f32 %v9832, %v9896
    %v9942 = vadd.f32 %v9835, %v9896
    %v9943 = vadd.f32 %v9838, %v9896
    %v9944 = vadd.f32 %v9841, %v9896
    %v9945 = vadd.f32 %v9844, %v9896
    %v9946 = vadd.f32 %v9847, %v9896
    %v9947 = vadd.f32 %v9850, %v9896
    %v9948 = vadd.f32 %v9853, %v9896
    %v9949 = vadd.f32 %v9856, %v9896
    %v9950 = vadd.f32 %v9859, %v9896
    %v9951 = vadd.f32 %v9862, %v9896
    %v9952 = vadd.f32 %v9865, %v9896
    %v9953 = vadd.f32 %v9868, %v9896
    %v9954 = vadd.f32 %v9871, %v9896
    %v9955 = vadd.f32 %v9874, %v9896
    %v9956 = vadd.f32 %v9877, %v9896
    %v9957 = vadd.f32 %v9880, %v9896
    %v9958 = vadd.f32 %v9883, %v9896
    %v9959 = vadd.f32 %v9886, %v9896
    %v9960 = vadd.f32 %v9889, %v9896
    %v9961 = vadd.f32 %v9892, %v9896
    %v9962 = vld [vmem:[#allocation6 + $0x190] sm:$0xff]
    %9964 = vset.pattern.permute.xlu0 0
    %9965 = vperm.xlu0 %9964, %v9962
    %v9966 = vpop.permute.xlu0 %9965
    %v9967 = vlaneseq
    %v9968 = vshrl.u32 %v9967, 7
    %v9969 = vsub.s32 0, %v9968
    %v9970 = vrot.slane %v9966, %v9969
    %v9971 = vlaneseq
    %v9972 = vshrl.u32 %v9971, 7
    %v9973 = vsub.s32 1, %v9972
    %v9974 = vrot.slane %v9966, %v9973
    %v9975 = vlaneseq
    %v9976 = vshrl.u32 %v9975, 7
    %v9977 = vsub.s32 2, %v9976
    %v9978 = vrot.slane %v9966, %v9977
    %v9979 = vlaneseq
    %v9980 = vshrl.u32 %v9979, 7
    %v9981 = vsub.s32 3, %v9980
    %v9982 = vrot.slane %v9966, %v9981
    %v9983 = vlaneseq
    %v9984 = vshrl.u32 %v9983, 7
    %v9985 = vsub.s32 4, %v9984
    %v9986 = vrot.slane %v9966, %v9985
    %v9987 = vlaneseq
    %v9988 = vshrl.u32 %v9987, 7
    %v9989 = vsub.s32 5, %v9988
    %v9990 = vrot.slane %v9966, %v9989
    %v9991 = vlaneseq
    %v9992 = vshrl.u32 %v9991, 7
    %v9993 = vsub.s32 6, %v9992
    %v9994 = vrot.slane %v9966, %v9993
    %v9995 = vlaneseq
    %v9996 = vshrl.u32 %v9995, 7
    %v9997 = vsub.s32 7, %v9996
    %v9998 = vrot.slane %v9966, %v9997
    %v10007 = vmul.f32 %v9898, %v9970
    %v10008 = vmul.f32 %v9906, %v9974
    %v10009 = vmul.f32 %v9914, %v9978
    %v10010 = vmul.f32 %v9922, %v9982
    %v10011 = vmul.f32 %v9930, %v9986
    %v10012 = vmul.f32 %v9938, %v9990
    %v10013 = vmul.f32 %v9946, %v9994
    %v10014 = vmul.f32 %v9954, %v9998
    %10015 = vset.pattern.permute.xlu0 1
    %10016 = vperm.xlu0 %10015, %v9962
    %v10017 = vpop.permute.xlu0 %10016
    %v10018 = vlaneseq
    %v10019 = vshrl.u32 %v10018, 7
    %v10020 = vsub.s32 0, %v10019
    %v10021 = vrot.slane %v10017, %v10020
    %v10022 = vlaneseq
    %v10023 = vshrl.u32 %v10022, 7
    %v10024 = vsub.s32 1, %v10023
    %v10025 = vrot.slane %v10017, %v10024
    %v10026 = vlaneseq
    %v10027 = vshrl.u32 %v10026, 7
    %v10028 = vsub.s32 2, %v10027
    %v10029 = vrot.slane %v10017, %v10028
    %v10030 = vlaneseq
    %v10031 = vshrl.u32 %v10030, 7
    %v10032 = vsub.s32 3, %v10031
    %v10033 = vrot.slane %v10017, %v10032
    %v10034 = vlaneseq
    %v10035 = vshrl.u32 %v10034, 7
    %v10036 = vsub.s32 4, %v10035
    %v10037 = vrot.slane %v10017, %v10036
    %v10038 = vlaneseq
    %v10039 = vshrl.u32 %v10038, 7
    %v10040 = vsub.s32 5, %v10039
    %v10041 = vrot.slane %v10017, %v10040
    %v10042 = vlaneseq
    %v10043 = vshrl.u32 %v10042, 7
    %v10044 = vsub.s32 6, %v10043
    %v10045 = vrot.slane %v10017, %v10044
    %v10046 = vlaneseq
    %v10047 = vshrl.u32 %v10046, 7
    %v10048 = vsub.s32 7, %v10047
    %v10049 = vrot.slane %v10017, %v10048
    %v10058 = vmul.f32 %v9899, %v10021
    %v10059 = vmul.f32 %v9907, %v10025
    %v10060 = vmul.f32 %v9915, %v10029
    %v10061 = vmul.f32 %v9923, %v10033
    %v10062 = vmul.f32 %v9931, %v10037
    %v10063 = vmul.f32 %v9939, %v10041
    %v10064 = vmul.f32 %v9947, %v10045
    %v10065 = vmul.f32 %v9955, %v10049
    %v10066 = vadd.f32 %v10007, %v10058
    %v10067 = vadd.f32 %v10008, %v10059
    %v10068 = vadd.f32 %v10009, %v10060
    %v10069 = vadd.f32 %v10010, %v10061
    %v10070 = vadd.f32 %v10011, %v10062
    %v10071 = vadd.f32 %v10012, %v10063
    %v10072 = vadd.f32 %v10013, %v10064
    %v10073 = vadd.f32 %v10014, %v10065
    %10074 = vset.pattern.permute.xlu0 2
    %10075 = vperm.xlu0 %10074, %v9962
    %v10076 = vpop.permute.xlu0 %10075
    %v10077 = vlaneseq
    %v10078 = vshrl.u32 %v10077, 7
    %v10079 = vsub.s32 0, %v10078
    %v10080 = vrot.slane %v10076, %v10079
    %v10081 = vlaneseq
    %v10082 = vshrl.u32 %v10081, 7
    %v10083 = vsub.s32 1, %v10082
    %v10084 = vrot.slane %v10076, %v10083
    %v10085 = vlaneseq
    %v10086 = vshrl.u32 %v10085, 7
    %v10087 = vsub.s32 2, %v10086
    %v10088 = vrot.slane %v10076, %v10087
    %v10089 = vlaneseq
    %v10090 = vshrl.u32 %v10089, 7
    %v10091 = vsub.s32 3, %v10090
    %v10092 = vrot.slane %v10076, %v10091
    %v10093 = vlaneseq
    %v10094 = vshrl.u32 %v10093, 7
    %v10095 = vsub.s32 4, %v10094
    %v10096 = vrot.slane %v10076, %v10095
    %v10097 = vlaneseq
    %v10098 = vshrl.u32 %v10097, 7
    %v10099 = vsub.s32 5, %v10098
    %v10100 = vrot.slane %v10076, %v10099
    %v10101 = vlaneseq
    %v10102 = vshrl.u32 %v10101, 7
    %v10103 = vsub.s32 6, %v10102
    %v10104 = vrot.slane %v10076, %v10103
    %v10105 = vlaneseq
    %v10106 = vshrl.u32 %v10105, 7
    %v10107 = vsub.s32 7, %v10106
    %v10108 = vrot.slane %v10076, %v10107
    %v10117 = vmul.f32 %v9900, %v10080
    %v10118 = vmul.f32 %v9908, %v10084
    %v10119 = vmul.f32 %v9916, %v10088
    %v10120 = vmul.f32 %v9924, %v10092
    %v10121 = vmul.f32 %v9932, %v10096
    %v10122 = vmul.f32 %v9940, %v10100
    %v10123 = vmul.f32 %v9948, %v10104
    %v10124 = vmul.f32 %v9956, %v10108
    %v10125 = vadd.f32 %v10066, %v10117
    %v10126 = vadd.f32 %v10067, %v10118
    %v10127 = vadd.f32 %v10068, %v10119
    %v10128 = vadd.f32 %v10069, %v10120
    %v10129 = vadd.f32 %v10070, %v10121
    %v10130 = vadd.f32 %v10071, %v10122
    %v10131 = vadd.f32 %v10072, %v10123
    %v10132 = vadd.f32 %v10073, %v10124
    %10133 = vset.pattern.permute.xlu0 3
    %10134 = vperm.xlu0 %10133, %v9962
    %v10135 = vpop.permute.xlu0 %10134
    %v10136 = vlaneseq
    %v10137 = vshrl.u32 %v10136, 7
    %v10138 = vsub.s32 0, %v10137
    %v10139 = vrot.slane %v10135, %v10138
    %v10140 = vlaneseq
    %v10141 = vshrl.u32 %v10140, 7
    %v10142 = vsub.s32 1, %v10141
    %v10143 = vrot.slane %v10135, %v10142
    %v10144 = vlaneseq
    %v10145 = vshrl.u32 %v10144, 7
    %v10146 = vsub.s32 2, %v10145
    %v10147 = vrot.slane %v10135, %v10146
    %v10148 = vlaneseq
    %v10149 = vshrl.u32 %v10148, 7
    %v10150 = vsub.s32 3, %v10149
    %v10151 = vrot.slane %v10135, %v10150
    %v10152 = vlaneseq
    %v10153 = vshrl.u32 %v10152, 7
    %v10154 = vsub.s32 4, %v10153
    %v10155 = vrot.slane %v10135, %v10154
    %v10156 = vlaneseq
    %v10157 = vshrl.u32 %v10156, 7
    %v10158 = vsub.s32 5, %v10157
    %v10159 = vrot.slane %v10135, %v10158
    %v10160 = vlaneseq
    %v10161 = vshrl.u32 %v10160, 7
    %v10162 = vsub.s32 6, %v10161
    %v10163 = vrot.slane %v10135, %v10162
    %v10164 = vlaneseq
    %v10165 = vshrl.u32 %v10164, 7
    %v10166 = vsub.s32 7, %v10165
    %v10167 = vrot.slane %v10135, %v10166
    %v10176 = vmul.f32 %v9901, %v10139
    %v10177 = vmul.f32 %v9909, %v10143
    %v10178 = vmul.f32 %v9917, %v10147
    %v10179 = vmul.f32 %v9925, %v10151
    %v10180 = vmul.f32 %v9933, %v10155
    %v10181 = vmul.f32 %v9941, %v10159
    %v10182 = vmul.f32 %v9949, %v10163
    %v10183 = vmul.f32 %v9957, %v10167
    %v10184 = vadd.f32 %v10125, %v10176
    %v10185 = vadd.f32 %v10126, %v10177
    %v10186 = vadd.f32 %v10127, %v10178
    %v10187 = vadd.f32 %v10128, %v10179
    %v10188 = vadd.f32 %v10129, %v10180
    %v10189 = vadd.f32 %v10130, %v10181
    %v10190 = vadd.f32 %v10131, %v10182
    %v10191 = vadd.f32 %v10132, %v10183
    %10192 = vset.pattern.permute.xlu0 4
    %10193 = vperm.xlu0 %10192, %v9962
    %v10194 = vpop.permute.xlu0 %10193
    %v10195 = vlaneseq
    %v10196 = vshrl.u32 %v10195, 7
    %v10197 = vsub.s32 0, %v10196
    %v10198 = vrot.slane %v10194, %v10197
    %v10199 = vlaneseq
    %v10200 = vshrl.u32 %v10199, 7
    %v10201 = vsub.s32 1, %v10200
    %v10202 = vrot.slane %v10194, %v10201
    %v10203 = vlaneseq
    %v10204 = vshrl.u32 %v10203, 7
    %v10205 = vsub.s32 2, %v10204
    %v10206 = vrot.slane %v10194, %v10205
    %v10207 = vlaneseq
    %v10208 = vshrl.u32 %v10207, 7
    %v10209 = vsub.s32 3, %v10208
    %v10210 = vrot.slane %v10194, %v10209
    %v10211 = vlaneseq
    %v10212 = vshrl.u32 %v10211, 7
    %v10213 = vsub.s32 4, %v10212
    %v10214 = vrot.slane %v10194, %v10213
    %v10215 = vlaneseq
    %v10216 = vshrl.u32 %v10215, 7
    %v10217 = vsub.s32 5, %v10216
    %v10218 = vrot.slane %v10194, %v10217
    %v10219 = vlaneseq
    %v10220 = vshrl.u32 %v10219, 7
    %v10221 = vsub.s32 6, %v10220
    %v10222 = vrot.slane %v10194, %v10221
    %v10223 = vlaneseq
    %v10224 = vshrl.u32 %v10223, 7
    %v10225 = vsub.s32 7, %v10224
    %v10226 = vrot.slane %v10194, %v10225
    %v10235 = vmul.f32 %v9902, %v10198
    %v10236 = vmul.f32 %v9910, %v10202
    %v10237 = vmul.f32 %v9918, %v10206
    %v10238 = vmul.f32 %v9926, %v10210
    %v10239 = vmul.f32 %v9934, %v10214
    %v10240 = vmul.f32 %v9942, %v10218
    %v10241 = vmul.f32 %v9950, %v10222
    %v10242 = vmul.f32 %v9958, %v10226
    %v10243 = vadd.f32 %v10184, %v10235
    %v10244 = vadd.f32 %v10185, %v10236
    %v10245 = vadd.f32 %v10186, %v10237
    %v10246 = vadd.f32 %v10187, %v10238
    %v10247 = vadd.f32 %v10188, %v10239
    %v10248 = vadd.f32 %v10189, %v10240
    %v10249 = vadd.f32 %v10190, %v10241
    %v10250 = vadd.f32 %v10191, %v10242
    %10251 = vset.pattern.permute.xlu0 5
    %10252 = vperm.xlu0 %10251, %v9962
    %v10253 = vpop.permute.xlu0 %10252
    %v10254 = vlaneseq
    %v10255 = vshrl.u32 %v10254, 7
    %v10256 = vsub.s32 0, %v10255
    %v10257 = vrot.slane %v10253, %v10256
    %v10258 = vlaneseq
    %v10259 = vshrl.u32 %v10258, 7
    %v10260 = vsub.s32 1, %v10259
    %v10261 = vrot.slane %v10253, %v10260
    %v10262 = vlaneseq
    %v10263 = vshrl.u32 %v10262, 7
    %v10264 = vsub.s32 2, %v10263
    %v10265 = vrot.slane %v10253, %v10264
    %v10266 = vlaneseq
    %v10267 = vshrl.u32 %v10266, 7
    %v10268 = vsub.s32 3, %v10267
    %v10269 = vrot.slane %v10253, %v10268
    %v10270 = vlaneseq
    %v10271 = vshrl.u32 %v10270, 7
    %v10272 = vsub.s32 4, %v10271
    %v10273 = vrot.slane %v10253, %v10272
    %v10274 = vlaneseq
    %v10275 = vshrl.u32 %v10274, 7
    %v10276 = vsub.s32 5, %v10275
    %v10277 = vrot.slane %v10253, %v10276
    %v10278 = vlaneseq
    %v10279 = vshrl.u32 %v10278, 7
    %v10280 = vsub.s32 6, %v10279
    %v10281 = vrot.slane %v10253, %v10280
    %v10282 = vlaneseq
    %v10283 = vshrl.u32 %v10282, 7
    %v10284 = vsub.s32 7, %v10283
    %v10285 = vrot.slane %v10253, %v10284
    %v10294 = vmul.f32 %v9903, %v10257
    %v10295 = vmul.f32 %v9911, %v10261
    %v10296 = vmul.f32 %v9919, %v10265
    %v10297 = vmul.f32 %v9927, %v10269
    %v10298 = vmul.f32 %v9935, %v10273
    %v10299 = vmul.f32 %v9943, %v10277
    %v10300 = vmul.f32 %v9951, %v10281
    %v10301 = vmul.f32 %v9959, %v10285
    %v10302 = vadd.f32 %v10243, %v10294
    %v10303 = vadd.f32 %v10244, %v10295
    %v10304 = vadd.f32 %v10245, %v10296
    %v10305 = vadd.f32 %v10246, %v10297
    %v10306 = vadd.f32 %v10247, %v10298
    %v10307 = vadd.f32 %v10248, %v10299
    %v10308 = vadd.f32 %v10249, %v10300
    %v10309 = vadd.f32 %v10250, %v10301
    %10310 = vset.pattern.permute.xlu0 6
    %10311 = vperm.xlu0 %10310, %v9962
    %v10312 = vpop.permute.xlu0 %10311
    %v10313 = vlaneseq
    %v10314 = vshrl.u32 %v10313, 7
    %v10315 = vsub.s32 0, %v10314
    %v10316 = vrot.slane %v10312, %v10315
    %v10317 = vlaneseq
    %v10318 = vshrl.u32 %v10317, 7
    %v10319 = vsub.s32 1, %v10318
    %v10320 = vrot.slane %v10312, %v10319
    %v10321 = vlaneseq
    %v10322 = vshrl.u32 %v10321, 7
    %v10323 = vsub.s32 2, %v10322
    %v10324 = vrot.slane %v10312, %v10323
    %v10325 = vlaneseq
    %v10326 = vshrl.u32 %v10325, 7
    %v10327 = vsub.s32 3, %v10326
    %v10328 = vrot.slane %v10312, %v10327
    %v10329 = vlaneseq
    %v10330 = vshrl.u32 %v10329, 7
    %v10331 = vsub.s32 4, %v10330
    %v10332 = vrot.slane %v10312, %v10331
    %v10333 = vlaneseq
    %v10334 = vshrl.u32 %v10333, 7
    %v10335 = vsub.s32 5, %v10334
    %v10336 = vrot.slane %v10312, %v10335
    %v10337 = vlaneseq
    %v10338 = vshrl.u32 %v10337, 7
    %v10339 = vsub.s32 6, %v10338
    %v10340 = vrot.slane %v10312, %v10339
    %v10341 = vlaneseq
    %v10342 = vshrl.u32 %v10341, 7
    %v10343 = vsub.s32 7, %v10342
    %v10344 = vrot.slane %v10312, %v10343
    %v10353 = vmul.f32 %v9904, %v10316
    %v10354 = vmul.f32 %v9912, %v10320
    %v10355 = vmul.f32 %v9920, %v10324
    %v10356 = vmul.f32 %v9928, %v10328
    %v10357 = vmul.f32 %v9936, %v10332
    %v10358 = vmul.f32 %v9944, %v10336
    %v10359 = vmul.f32 %v9952, %v10340
    %v10360 = vmul.f32 %v9960, %v10344
    %v10361 = vadd.f32 %v10302, %v10353
    %v10362 = vadd.f32 %v10303, %v10354
    %v10363 = vadd.f32 %v10304, %v10355
    %v10364 = vadd.f32 %v10305, %v10356
    %v10365 = vadd.f32 %v10306, %v10357
    %v10366 = vadd.f32 %v10307, %v10358
    %v10367 = vadd.f32 %v10308, %v10359
    %v10368 = vadd.f32 %v10309, %v10360
    %10369 = vset.pattern.permute.xlu0 7
    %10370 = vperm.xlu0 %10369, %v9962
    %v10371 = vpop.permute.xlu0 %10370
    %v10372 = vlaneseq
    %v10373 = vshrl.u32 %v10372, 7
    %v10374 = vsub.s32 0, %v10373
    %v10375 = vrot.slane %v10371, %v10374
    %v10376 = vlaneseq
    %v10377 = vshrl.u32 %v10376, 7
    %v10378 = vsub.s32 1, %v10377
    %v10379 = vrot.slane %v10371, %v10378
    %v10380 = vlaneseq
    %v10381 = vshrl.u32 %v10380, 7
    %v10382 = vsub.s32 2, %v10381
    %v10383 = vrot.slane %v10371, %v10382
    %v10384 = vlaneseq
    %v10385 = vshrl.u32 %v10384, 7
    %v10386 = vsub.s32 3, %v10385
    %v10387 = vrot.slane %v10371, %v10386
    %v10388 = vlaneseq
    %v10389 = vshrl.u32 %v10388, 7
    %v10390 = vsub.s32 4, %v10389
    %v10391 = vrot.slane %v10371, %v10390
    %v10392 = vlaneseq
    %v10393 = vshrl.u32 %v10392, 7
    %v10394 = vsub.s32 5, %v10393
    %v10395 = vrot.slane %v10371, %v10394
    %v10396 = vlaneseq
    %v10397 = vshrl.u32 %v10396, 7
    %v10398 = vsub.s32 6, %v10397
    %v10399 = vrot.slane %v10371, %v10398
    %v10400 = vlaneseq
    %v10401 = vshrl.u32 %v10400, 7
    %v10402 = vsub.s32 7, %v10401
    %v10403 = vrot.slane %v10371, %v10402
    %v10412 = vmul.f32 %v9905, %v10375
    %v10413 = vmul.f32 %v9913, %v10379
    %v10414 = vmul.f32 %v9921, %v10383
    %v10415 = vmul.f32 %v9929, %v10387
    %v10416 = vmul.f32 %v9937, %v10391
    %v10417 = vmul.f32 %v9945, %v10395
    %v10418 = vmul.f32 %v9953, %v10399
    %v10419 = vmul.f32 %v9961, %v10403
    %v10420 = vadd.f32 %v10361, %v10412
    %v10421 = vadd.f32 %v10362, %v10413
    %v10422 = vadd.f32 %v10363, %v10414
    %v10423 = vadd.f32 %v10364, %v10415
    %v10424 = vadd.f32 %v10365, %v10416
    %v10425 = vadd.f32 %v10366, %v10417
    %v10426 = vadd.f32 %v10367, %v10418
    %v10427 = vadd.f32 %v10368, %v10419
    %10436 = vset.pattern.permute.xlu0 0
    %10437 = vperm.xlu0 %10436, %v10420
    %v10438 = vpop.permute.xlu0 %10437
    %10439 = vset.pattern.permute.xlu0 0
    %10440 = vperm.xlu0 %10439, %v10421
    %v10441 = vpop.permute.xlu0 %10440
    %10442 = vset.pattern.permute.xlu0 0
    %10443 = vperm.xlu0 %10442, %v10422
    %v10444 = vpop.permute.xlu0 %10443
    %10445 = vset.pattern.permute.xlu0 0
    %10446 = vperm.xlu0 %10445, %v10423
    %v10447 = vpop.permute.xlu0 %10446
    %10448 = vset.pattern.permute.xlu0 0
    %10449 = vperm.xlu0 %10448, %v10424
    %v10450 = vpop.permute.xlu0 %10449
    %10451 = vset.pattern.permute.xlu0 0
    %10452 = vperm.xlu0 %10451, %v10425
    %v10453 = vpop.permute.xlu0 %10452
    %10454 = vset.pattern.permute.xlu0 0
    %10455 = vperm.xlu0 %10454, %v10426
    %v10456 = vpop.permute.xlu0 %10455
    %10457 = vset.pattern.permute.xlu0 0
    %10458 = vperm.xlu0 %10457, %v10427
    %v10459 = vpop.permute.xlu0 %10458
    %v10460 = vlaneseq
    %v10461 = vand.u32 %v10460, 127
    %v10462 = vlaneseq
    %v10463 = vshrl.u32 %v10462, 7
    %v10464 = vsub.s32 %v10461, %v10463
    %v10465 = vrot.slane %v10438, %v10464
    %v10466 = vlaneseq
    %v10467 = vshrl.u32 %v10466, 7
    %v10468 = vsub.s32 %v10461, %v10467
    %v10469 = vrot.slane %v10441, %v10468
    %v10470 = vlaneseq
    %v10471 = vshrl.u32 %v10470, 7
    %v10472 = vsub.s32 %v10461, %v10471
    %v10473 = vrot.slane %v10444, %v10472
    %v10474 = vlaneseq
    %v10475 = vshrl.u32 %v10474, 7
    %v10476 = vsub.s32 %v10461, %v10475
    %v10477 = vrot.slane %v10447, %v10476
    %v10478 = vlaneseq
    %v10479 = vshrl.u32 %v10478, 7
    %v10480 = vsub.s32 %v10461, %v10479
    %v10481 = vrot.slane %v10450, %v10480
    %v10482 = vlaneseq
    %v10483 = vshrl.u32 %v10482, 7
    %v10484 = vsub.s32 %v10461, %v10483
    %v10485 = vrot.slane %v10453, %v10484
    %v10486 = vlaneseq
    %v10487 = vshrl.u32 %v10486, 7
    %v10488 = vsub.s32 %v10461, %v10487
    %v10489 = vrot.slane %v10456, %v10488
    %v10490 = vlaneseq
    %v10491 = vshrl.u32 %v10490, 7
    %v10492 = vsub.s32 %v10461, %v10491
    %v10493 = vrot.slane %v10459, %v10492
    %v10494 = vsel %vm798, %v10469, %v10465
    %vm10495 = vcmask 1042434
    %v10496 = vsel %vm10495, %v10473, %v10494
    %vm10497 = vcmask 1043459
    %v10498 = vsel %vm10497, %v10477, %v10496
    %vm10499 = vcmask 1044484
    %v10500 = vsel %vm10499, %v10481, %v10498
    %vm10501 = vcmask 1045509
    %v10502 = vsel %vm10501, %v10485, %v10500
    %vm10503 = vcmask 1046534
    %v10504 = vsel %vm10503, %v10489, %v10502
    %vm10505 = vcmask 1047559
    %v10506 = vsel %vm10505, %v10493, %v10504
    %vm10508 = vcmask 15360
    %10509 = vst.msk [vmem:[%s4] sm:$0xff] %vm10508, %v10506
    // Predicated region
    $region34: #{tpu_custom_call.1} parent=1 // pred_check
      _
    $region35: #{tpu_custom_call.1} parent=1 // pred_check_branch
      %10511 = sbr.rel (0) target = $region37
    $region36: #{tpu_custom_call.1} parent=1 // pred_region
      _
    $region37: #{tpu_custom_call.1} parent=1 // pred_fallthru
      _
    // Predicated region
    $region38: #{tpu_custom_call.1} parent=1 // pred_check
      _
    $region39: #{tpu_custom_call.1} parent=1 // pred_check_branch
      %10513 = sbr.rel (0) target = $region41
    $region40: #{tpu_custom_call.1} parent=1 // pred_region
      _
    $region41: #{tpu_custom_call.1} parent=1 // pred_fallthru
      _
    %10514 = vsyncpa [#allocation3], 1
    %10515 = vsyncpa [#allocation5], 1
    %10516 = vsyncpa [#allocation8], 1

</llo_original>
